<compile_context>
chip_gen: v6e
topology: v6e:2x2x1
jax: 0.10.0
libtpu: 0.0.40
codegen_flags: <defaults>
</compile_context>

<pallas_src>
from functools import partial

import jax
import jax.numpy as jnp
from jax.experimental import pallas as pl
from jax.experimental.pallas import tpu as pltpu

EPS = 1e-5
MATMUL_DTYPE = jnp.bfloat16          # MXU operand / intermediate dtype.


def _round_up(x, m):
    return (x + m - 1) // m * m


def _device_budget():
    """Generation-aware (scoped-VMEM limit, max row-tile) tuple."""
    kind = ""
    try:
        kind = jax.devices()[0].device_kind.lower()
    except Exception:
        pass
    if "v7" in kind or "7x" in kind:
        # v7x: 64 MiB physical VMEM per TensorCore -> leave compiler headroom.
        return 48 * 1024 * 1024, 512
    # v5e / v6e (and older): 128 MiB physical VMEM.
    return 96 * 1024 * 1024, 1024


def _pick_row_tile(m, max_rows):
    """Largest multiple-of-8 divisor of m that is <= max_rows (fallback: m)."""
    for cand in range(min(max_rows, m), 7, -1):
        if m % cand == 0 and cand % 8 == 0:
            return cand
    return m


# --------------------------------------------------------------------------
# Pass 1: conv1 (1x1) + per-tile (sum, sumsq) partials for BN1
# --------------------------------------------------------------------------
def _conv1x1_stats_kernel(x_ref, w_ref, y_ref, stats_ref):
    y = jnp.dot(x_ref[...], w_ref[...], preferred_element_type=jnp.float32)
    y_ref[...] = y.astype(y_ref.dtype)               # bf16 store to HBM
    stats_ref[...] = jnp.concatenate(
        [jnp.sum(y, axis=0, keepdims=True),
         jnp.sum(y * y, axis=0, keepdims=True)], axis=0)[None]


# --------------------------------------------------------------------------
# Pass 2: BN1+ReLU -> conv2 (3x3, dilated, im2col) + BN2 partials.
# One image per grid step.
# --------------------------------------------------------------------------
def _bn_relu_conv3x3_stats_kernel(y1_ref, w2_ref, sc_ref, sh_ref,
                                  y2_ref, stats_ref, pad_ref, col_ref,
                                  *, W, dil):
    HW, P = y1_ref.shape
    S = pad_ref.shape[0]
    h0 = dil * W + dil                      # flat offset of pixel (0, 0)

    # Halo rows zeroed unconditionally every step: cheap, and required now
    # that the grid axis is "parallel" (no single step owns index 0).
    pad_ref[0:h0, :] = jnp.zeros((h0, P), pad_ref.dtype)
    pad_ref[h0 + HW:, :] = jnp.zeros((S - h0 - HW, P), pad_ref.dtype)

    # Folded BN1 (scale/shift) + ReLU; single f32->bf16 cast on write.
    a = jnp.maximum(
        y1_ref[...].astype(jnp.float32) * sc_ref[...] + sh_ref[...], 0.0)
    pad_ref[h0:h0 + HW, :] = a.astype(pad_ref.dtype)

    # Left/right wrap masks generated in-kernel (no (HW,1) HBM round trip).
    xcol = jax.lax.broadcasted_iota(jnp.int32, (HW, 1), 0) % W
    lmask = xcol >= dil
    rmask = xcol < (W - dil)

    # im2col: 9 contiguous flat taps of the padded buffer staged into a
    # (HW, 9*P) bf16 buffer -> single K=9P MXU matmul (fills the MXU depth).
    for ky in range(3):
        for kx in range(3):
            off = ky * dil * W + kx * dil   # >= 0 by construction of h0
            tap = pad_ref[off:off + HW, :]
            if kx == 0:
                tap = jnp.where(lmask, tap, jnp.zeros_like(tap))
            elif kx == 2:
                tap = jnp.where(rmask, tap, jnp.zeros_like(tap))
            t = ky * 3 + kx
            col_ref[:, t * P:(t + 1) * P] = tap

    acc = jnp.dot(col_ref[...], w2_ref[...],
                  preferred_element_type=jnp.float32)        # (HW, P) f32

    y2_ref[...] = acc.astype(y2_ref.dtype)             # bf16 store to HBM
    stats_ref[...] = jnp.concatenate(
        [jnp.sum(acc, axis=0, keepdims=True),
         jnp.sum(acc * acc, axis=0, keepdims=True)], axis=0)[None]


# --------------------------------------------------------------------------
# Pass 3: BN2+ReLU -> conv3 (1x1) + BN3 partials
# --------------------------------------------------------------------------
def _bn_relu_conv1x1_stats_kernel(y_ref, w_ref, sc_ref, sh_ref, o_ref, stats_ref):
    a = jnp.maximum(
        y_ref[...].astype(jnp.float32) * sc_ref[...] + sh_ref[...], 0.0)
    o = jnp.dot(a.astype(MATMUL_DTYPE), w_ref[...],
                preferred_element_type=jnp.float32)
    o_ref[...] = o.astype(o_ref.dtype)                 # bf16 store to HBM
    stats_ref[...] = jnp.concatenate(
        [jnp.sum(o, axis=0, keepdims=True),
         jnp.sum(o * o, axis=0, keepdims=True)], axis=0)[None]


# --------------------------------------------------------------------------
# Pass 4: BN3 + residual add + ReLU  (purely parallel; residual kept f32)
# --------------------------------------------------------------------------
def _bn_residual_relu_kernel(y_ref, x_ref, sc_ref, sh_ref, o_ref):
    o_ref[...] = jnp.maximum(
        y_ref[...].astype(jnp.float32) * sc_ref[...] + sh_ref[...] + x_ref[...],
        0.0)


def _fold_bn(stats, count, gamma, beta):
    """One-pass batch stats (sum, sumsq) -> folded per-channel scale/shift."""
    mean = stats[0:1, :] / count
    var = jnp.maximum(stats[1:2, :] / count - mean * mean, 0.0)
    inv_std = jax.lax.rsqrt(var + EPS)
    scale = gamma * inv_std
    shift = beta - mean * scale
    return scale, shift


def bottleneck_forward_nhwc(x, params, *, dilation=1):
    """x: (N, H, W, Cin) f32, NHWC.  Returns (N, H, W, Cout) f32."""
    w1, w2, w3, g1, b1, g2, b2, g3, b3 = params
    N, H, W, Cin = x.shape
    P = w1.shape[1]
    Cout = w3.shape[1]
    assert Cin == Cout, "downsample=None requires inplanes == planes * expansion"

    M = N * H * W
    HW = H * W
    assert M % 8 == 0 and HW % 8 == 0, "ragged shapes need masked tiles (TODO)"

    vmem_limit, max_rows = _device_budget()
    TM = _pick_row_tile(M, max_rows)
    nt = M // TM

    x2d = x.reshape(M, Cin).astype(jnp.float32)        # f32 residual (pass 4)
    x2d_bf = x2d.astype(MATMUL_DTYPE)                  # bf16 operand (pass 1)

    # bf16 weights in HBM; activations travel between passes as bf16.
    w1b = w1.astype(MATMUL_DTYPE)                          # (Cin, P)
    w2b = w2.reshape(9 * P, P).astype(MATMUL_DTYPE)        # HWIO -> (9P, P)
    w3b = w3.astype(MATMUL_DTYPE)                          # (P, Cout)

    par = pltpu.CompilerParams(dimension_semantics=("parallel",),
                               vmem_limit_bytes=vmem_limit)
    grid1 = (nt,)

    # ---- pass 1: conv1 (1x1) + BN1 per-tile statistics ---------------------
    y1, st1 = pl.pallas_call(
        _conv1x1_stats_kernel,
        grid=grid1,
        in_specs=[pl.BlockSpec((TM, Cin), lambda i: (i, 0)),
                  pl.BlockSpec((Cin, P), lambda i: (0, 0))],
        out_specs=[pl.BlockSpec((TM, P), lambda i: (i, 0)),
                   pl.BlockSpec((1, 2, P), lambda i: (i, 0, 0))],
        out_shape=[jax.ShapeDtypeStruct((M, P), MATMUL_DTYPE),
                   jax.ShapeDtypeStruct((nt, 2, P), jnp.float32)],
        compiler_params=par,
        cost_estimate=pl.CostEstimate(
            flops=2 * M * Cin * P + 3 * M * P, transcendentals=0,
            bytes_accessed=2 * M * Cin + 2 * Cin * P + 2 * M * P),
    )(x2d_bf, w1b)
    sc1, sh1 = _fold_bn(jnp.sum(st1, axis=0), M, g1, b1)

    # ---- pass 2: BN1+ReLU -> conv2 (3x3 dilated, im2col) + BN2 statistics --
    # Flat halo-padded scratch: pixel (y, x) lives at row h0 + y*W + x.
    S = _round_up((H + 2 * dilation) * W + 2 * dilation, 8)
    y2, st2 = pl.pallas_call(
        partial(_bn_relu_conv3x3_stats_kernel, W=W, dil=dilation),
        grid=(N,),
        in_specs=[pl.BlockSpec((HW, P), lambda n: (n, 0)),
                  pl.BlockSpec((9 * P, P), lambda n: (0, 0)),
                  pl.BlockSpec((1, P), lambda n: (0, 0)),
                  pl.BlockSpec((1, P), lambda n: (0, 0))],
        out_specs=[pl.BlockSpec((HW, P), lambda n: (n, 0)),
                   pl.BlockSpec((1, 2, P), lambda n: (n, 0, 0))],
        out_shape=[jax.ShapeDtypeStruct((M, P), MATMUL_DTYPE),
                   jax.ShapeDtypeStruct((N, 2, P), jnp.float32)],
        scratch_shapes=[pltpu.VMEM((S, P), MATMUL_DTYPE),
                        pltpu.VMEM((HW, 9 * P), MATMUL_DTYPE)],
        compiler_params=par,
        cost_estimate=pl.CostEstimate(
            flops=2 * M * 9 * P * P + 8 * M * P, transcendentals=0,
            bytes_accessed=4 * M * P + 2 * 9 * P * P),
    )(y1, w2b, sc1, sh1)
    sc2, sh2 = _fold_bn(jnp.sum(st2, axis=0), M, g2, b2)

    # ---- pass 3: BN2+ReLU -> conv3 (1x1) + BN3 statistics ------------------
    y3, st3 = pl.pallas_call(
        _bn_relu_conv1x1_stats_kernel,
        grid=grid1,
        in_specs=[pl.BlockSpec((TM, P), lambda i: (i, 0)),
                  pl.BlockSpec((P, Cout), lambda i: (0, 0)),
                  pl.BlockSpec((1, P), lambda i: (0, 0)),
                  pl.BlockSpec((1, P), lambda i: (0, 0))],
        out_specs=[pl.BlockSpec((TM, Cout), lambda i: (i, 0)),
                   pl.BlockSpec((1, 2, Cout), lambda i: (i, 0, 0))],
        out_shape=[jax.ShapeDtypeStruct((M, Cout), MATMUL_DTYPE),
                   jax.ShapeDtypeStruct((nt, 2, Cout), jnp.float32)],
        compiler_params=par,
        cost_estimate=pl.CostEstimate(
            flops=2 * M * P * Cout + 6 * M * P, transcendentals=0,
            bytes_accessed=2 * M * P + 2 * P * Cout + 2 * M * Cout),
    )(y2, w3b, sc2, sh2)
    sc3, sh3 = _fold_bn(jnp.sum(st3, axis=0), M, g3, b3)

    # ---- pass 4: BN3 + residual add + ReLU (lane-dense Cout output) --------
    out2d = pl.pallas_call(
        _bn_residual_relu_kernel,
        grid=grid1,
        in_specs=[pl.BlockSpec((TM, Cout), lambda i: (i, 0)),
                  pl.BlockSpec((TM, Cout), lambda i: (i, 0)),
                  pl.BlockSpec((1, Cout), lambda i: (0, 0)),
                  pl.BlockSpec((1, Cout), lambda i: (0, 0))],
        out_specs=pl.BlockSpec((TM, Cout), lambda i: (i, 0)),
        out_shape=jax.ShapeDtypeStruct((M, Cout), jnp.float32),
        compiler_params=par,
        cost_estimate=pl.CostEstimate(
            flops=4 * M * Cout, transcendentals=0,
            bytes_accessed=10 * M * Cout),
    )(y3, x2d, sc3, sh3)

    return out2d.reshape(N, H, W, Cout)


@partial(jax.jit, static_argnames=("dilation",))
def bottleneck_forward(x_nchw, params, *, dilation=1):
    """PyTorch-layout entry point (NCHW in / NCHW out).  In a full network,
    keep activations NHWC and call bottleneck_forward_nhwc to avoid the
    boundary transposes."""
    x = jnp.transpose(x_nchw, (0, 2, 3, 1))
    out = bottleneck_forward_nhwc(x, params, dilation=dilation)
    return jnp.transpose(out, (0, 3, 1, 2))


def make_params(key, inplanes, planes, expansion=4):
    """Matches Bottleneck._initialize_weights: conv ~ N(0, 0.01), BN gamma=1, beta=0."""
    k1, k2, k3 = jax.random.split(key, 3)
    outplanes = planes * expansion
    w1_oihw = 0.01 * jax.random.normal(k1, (planes, inplanes, 1, 1), jnp.float32)
    w2_oihw = 0.01 * jax.random.normal(k2, (planes, planes, 3, 3), jnp.float32)
    w3_oihw = 0.01 * jax.random.normal(k3, (outplanes, planes, 1, 1), jnp.float32)

    w1 = jnp.transpose(w1_oihw[:, :, 0, 0], (1, 0))      # (Cin, P)
    w2 = jnp.transpose(w2_oihw, (2, 3, 1, 0))            # (3, 3, P, P) HWIO
    w3 = jnp.transpose(w3_oihw[:, :, 0, 0], (1, 0))      # (P, Cout)

    g1 = jnp.ones((1, planes), jnp.float32)
    b1 = jnp.zeros((1, planes), jnp.float32)
    g2 = jnp.ones((1, planes), jnp.float32)
    b2 = jnp.zeros((1, planes), jnp.float32)
    g3 = jnp.ones((1, outplanes), jnp.float32)
    b3 = jnp.zeros((1, outplanes), jnp.float32)
    return (w1, w2, w3, g1, b1, g2, b2, g3, b3)


@partial(jax.jit, static_argnames=("dilation",))
def reference_forward(x_nchw, params, *, dilation=1):
    """Pure-JAX reference (bf16 conv operands, f32 accumulate/BN)."""
    w1, w2, w3, g1, b1, g2, b2, g3, b3 = params
    x = jnp.transpose(x_nchw, (0, 2, 3, 1)).astype(jnp.float32)

    def bn(y, g, b):
        m = y.reshape(-1, y.shape[-1])
        mean = jnp.mean(m, axis=0, keepdims=True)
        var = jnp.mean((m - mean) ** 2, axis=0, keepdims=True)
        return ((m - mean) * jax.lax.rsqrt(var + EPS) * g + b).reshape(y.shape)

    def mm(a, w):
        return jnp.einsum("nhwc,co->nhwo", a.astype(MATMUL_DTYPE),
                          w.astype(MATMUL_DTYPE),
                          preferred_element_type=jnp.float32)

    t = mm(x, w1)
    t = jnp.maximum(bn(t, g1, b1), 0.0)
    t = jax.lax.conv_general_dilated(
        t.astype(MATMUL_DTYPE), w2.astype(MATMUL_DTYPE),
        window_strides=(1, 1),
        padding=[(dilation, dilation), (dilation, dilation)],
        rhs_dilation=(dilation, dilation),
        dimension_numbers=("NHWC", "HWIO", "NHWC"),
        preferred_element_type=jnp.float32)
    t = jnp.maximum(bn(t, g2, b2), 0.0)
    t = mm(t, w3)
    t = bn(t, g3, b3)
    out = jnp.maximum(t + x, 0.0)
    return jnp.transpose(out, (0, 3, 1, 2))


if __name__ == "__main__":
    key = jax.random.PRNGKey(0)
    kx, kp = jax.random.split(key)

    planes, expansion = 32, 4
    inplanes = planes * expansion        # 128: lane-dense in/out channel dims
    N, H, W = 2, 16, 16
    dilation = 2                         # DeepLab-style dilated 3x3

    x = jax.random.normal(kx, (N, inplanes, H, W), jnp.float32)   # NCHW input
    params = make_params(kp, inplanes, planes, expansion)

    out = jax.block_until_ready(bottleneck_forward(x, params, dilation=dilation))
    ref = jax.block_until_ready(reference_forward(x, params, dilation=dilation))

    assert out.shape == (N, planes * expansion, H, W)
    max_diff = float(jnp.max(jnp.abs(out - ref)))
    # bf16 MXU operands + bf16 intermediates => allow bf16-level deviation;
    # structural bugs give O(1) errors.
    assert max_diff < 5e-2, f"max |out - ref| = {max_diff}"
    print("KERNEL_OK")
</pallas_src>

<mosaic_0001>
module attributes {stable_mosaic.version = 11 : i64} {
  func.func @_conv1x1_stats_kernel(%arg0: i32, %arg1: memref<512x128xbf16, #tpu.memory_space<vmem>>, %arg2: memref<128x32xbf16, #tpu.memory_space<vmem>>, %arg3: memref<512x32xbf16, #tpu.memory_space<vmem>>, %arg4: memref<1x2x32xf32, #tpu.memory_space<vmem>>) attributes {dimension_semantics = [#tpu.dimension_semantics<parallel>], iteration_bounds = array<i64: 1>, scalar_prefetch = 0 : i64, scratch_operands = 0 : i64, tpu.core_type = #tpu.core_type<tc>, window_params = [{transform_indices = @transform_0, window_bounds = array<i64: 512, 128>}, {pipeline_mode = #tpu.pipeline_mode<synchronous>, transform_indices = @transform_1, window_bounds = array<i64: 128, 32>}, {transform_indices = @transform_2, window_bounds = array<i64: 512, 32>}, {transform_indices = @transform_3, window_bounds = array<i64: 1, 2, 32>}]} {
    %c0 = arith.constant 0 : index
    %c0_0 = arith.constant 0 : index
    %0 = vector.load %arg1[%c0, %c0_0] : memref<512x128xbf16, #tpu.memory_space<vmem>>, vector<512x128xbf16>
    %c0_1 = arith.constant 0 : index
    %c0_2 = arith.constant 0 : index
    %1 = vector.load %arg2[%c0_1, %c0_2] : memref<128x32xbf16, #tpu.memory_space<vmem>>, vector<128x32xbf16>
    %cst = arith.constant dense<0.000000e+00> : vector<512x32xf32>
    %2 = tpu.matmul %0, %1, %cst {dimension_numbers = #tpu.dot_dimension_numbers<[1], [0], [0], [1], [0, 0, 1, 1], [], []>} : vector<512x128xbf16>, vector<128x32xbf16>, vector<512x32xf32> -> vector<512x32xf32>
    %3 = arith.truncf %2 : vector<512x32xf32> to vector<512x32xbf16>
    %c0_3 = arith.constant 0 : index
    %c0_4 = arith.constant 0 : index
    %4 = vector.load %arg3[%c0_3, %c0_4] : memref<512x32xbf16, #tpu.memory_space<vmem>>, vector<512x32xbf16>
    tpu.vector_store %arg3[%c0_3, %c0_4], %3 {strides = array<i32>} : memref<512x32xbf16, #tpu.memory_space<vmem>>, vector<512x32xbf16>,
    %cst_5 = arith.constant dense<0.000000e+00> : vector<32xf32>
    %5 = vector.multi_reduction <add>, %2, %cst_5 [0] : vector<512x32xf32> to vector<32xf32>
    %6 = vector.shape_cast %5 : vector<32xf32> to vector<1x32xf32>
    %7 = arith.mulf %2, %2 : vector<512x32xf32>
    %cst_6 = arith.constant dense<0.000000e+00> : vector<32xf32>
    %8 = vector.multi_reduction <add>, %7, %cst_6 [0] : vector<512x32xf32> to vector<32xf32>
    %9 = vector.shape_cast %8 : vector<32xf32> to vector<1x32xf32>
    %10 = tpu.concatenate %6, %9 in 0 : vector<1x32xf32>, vector<1x32xf32> -> vector<2x32xf32>
    %11 = vector.shape_cast %10 : vector<2x32xf32> to vector<1x2x32xf32>
    %c0_7 = arith.constant 0 : index
    %c0_8 = arith.constant 0 : index
    %c0_9 = arith.constant 0 : index
    %12 = vector.load %arg4[%c0_7, %c0_8, %c0_9] : memref<1x2x32xf32, #tpu.memory_space<vmem>>, vector<1x2x32xf32>
    tpu.vector_store %arg4[%c0_7, %c0_8, %c0_9], %11 {strides = array<i32>} : memref<1x2x32xf32, #tpu.memory_space<vmem>>, vector<1x2x32xf32>,
    return
  }
  func.func @transform_0(%arg0: i32) -> (i32, i32) {
    %c0_i32 = arith.constant 0 : i32
    %c0_i32_0 = arith.constant 0 : i32
    return %arg0, %c0_i32 : i32, i32
  }
  func.func @transform_1(%arg0: i32) -> (i32, i32) {
    %c0_i32 = arith.constant 0 : i32
    %c0_i32_0 = arith.constant 0 : i32
    %c0_i32_1 = arith.constant 0 : i32
    return %c0_i32, %c0_i32_0 : i32, i32
  }
  func.func @transform_2(%arg0: i32) -> (i32, i32) {
    %c0_i32 = arith.constant 0 : i32
    %c0_i32_0 = arith.constant 0 : i32
    return %arg0, %c0_i32 : i32, i32
  }
  func.func @transform_3(%arg0: i32) -> (i32, i32, i32) {
    %c0_i32 = arith.constant 0 : i32
    %c0_i32_0 = arith.constant 0 : i32
    %c0_i32_1 = arith.constant 0 : i32
    return %arg0, %c0_i32, %c0_i32_0 : i32, i32, i32
  }
}

module attributes {stable_mosaic.version = 11 : i64} {
  func.func @_bn_relu_conv3x3_stats_kernel(%arg0: i32, %arg1: memref<256x32xbf16, #tpu.memory_space<vmem>>, %arg2: memref<288x32xbf16, #tpu.memory_space<vmem>>, %arg3: memref<1x32xf32, #tpu.memory_space<vmem>>, %arg4: memref<1x32xf32, #tpu.memory_space<vmem>>, %arg5: memref<256x32xbf16, #tpu.memory_space<vmem>>, %arg6: memref<1x2x32xf32, #tpu.memory_space<vmem>>, %arg7: memref<328x32xbf16, #tpu.memory_space<vmem>>, %arg8: memref<256x288xbf16, #tpu.memory_space<vmem>>) attributes {dimension_semantics = [#tpu.dimension_semantics<parallel>], iteration_bounds = array<i64: 2>, scalar_prefetch = 0 : i64, scratch_operands = 2 : i64, tpu.core_type = #tpu.core_type<tc>, window_params = [{transform_indices = @transform_0, window_bounds = array<i64: 256, 32>}, {pipeline_mode = #tpu.pipeline_mode<synchronous>, transform_indices = @transform_1, window_bounds = array<i64: 288, 32>}, {pipeline_mode = #tpu.pipeline_mode<synchronous>, transform_indices = @transform_2, window_bounds = array<i64: 1, 32>}, {pipeline_mode = #tpu.pipeline_mode<synchronous>, transform_indices = @transform_3, window_bounds = array<i64: 1, 32>}, {transform_indices = @transform_4, window_bounds = array<i64: 256, 32>}, {transform_indices = @transform_5, window_bounds = array<i64: 1, 2, 32>}]} {
    %cst = arith.constant 0.000000e+00 : bf16
    %0 = vector.broadcast %cst : bf16 to vector<34x32xbf16>
    %c0 = arith.constant 0 : index
    %c0_0 = arith.constant 0 : index
    %1 = vector.load %arg7[%c0, %c0_0] : memref<328x32xbf16, #tpu.memory_space<vmem>>, vector<34x32xbf16>
    tpu.vector_store %arg7[%c0, %c0_0], %0 {strides = array<i32>} : memref<328x32xbf16, #tpu.memory_space<vmem>>, vector<34x32xbf16>,
    %cst_1 = arith.constant 0.000000e+00 : bf16
    %2 = vector.broadcast %cst_1 : bf16 to vector<38x32xbf16>
    %c290 = arith.constant 290 : index
    %c0_2 = arith.constant 0 : index
    %3 = vector.load %arg7[%c290, %c0_2] : memref<328x32xbf16, #tpu.memory_space<vmem>>, vector<38x32xbf16>
    tpu.vector_store %arg7[%c290, %c0_2], %2 {strides = array<i32>} : memref<328x32xbf16, #tpu.memory_space<vmem>>, vector<38x32xbf16>,
    %c0_3 = arith.constant 0 : index
    %c0_4 = arith.constant 0 : index
    %4 = vector.load %arg1[%c0_3, %c0_4] : memref<256x32xbf16, #tpu.memory_space<vmem>>, vector<256x32xbf16>
    %5 = arith.extf %4 : vector<256x32xbf16> to vector<256x32xf32>
    %c0_5 = arith.constant 0 : index
    %c0_6 = arith.constant 0 : index
    %6 = vector.load %arg3[%c0_5, %c0_6] : memref<1x32xf32, #tpu.memory_space<vmem>>, vector<1x32xf32>
    %7 = vector.broadcast %6 : vector<1x32xf32> to vector<256x32xf32>
    %8 = arith.mulf %5, %7 : vector<256x32xf32>
    %c0_7 = arith.constant 0 : index
    %c0_8 = arith.constant 0 : index
    %9 = vector.load %arg4[%c0_7, %c0_8] : memref<1x32xf32, #tpu.memory_space<vmem>>, vector<1x32xf32>
    %10 = vector.broadcast %9 : vector<1x32xf32> to vector<256x32xf32>
    %11 = arith.addf %8, %10 : vector<256x32xf32>
    %cst_9 = arith.constant 0.000000e+00 : f32
    %12 = vector.broadcast %cst_9 : f32 to vector<256x32xf32>
    %13 = arith.maximumf %11, %12 : vector<256x32xf32>
    %14 = arith.truncf %13 : vector<256x32xf32> to vector<256x32xbf16>
    %c34 = arith.constant 34 : index
    %c0_10 = arith.constant 0 : index
    %15 = vector.load %arg7[%c34, %c0_10] : memref<328x32xbf16, #tpu.memory_space<vmem>>, vector<256x32xbf16>
    tpu.vector_store %arg7[%c34, %c0_10], %14 {strides = array<i32>} : memref<328x32xbf16, #tpu.memory_space<vmem>>, vector<256x32xbf16>,
    %16 = tpu.iota {dimensions = array<i32: 0>} : vector<256x1xi32>
    %c16_i32 = arith.constant 16 : i32
    %c0_i32 = arith.constant 0 : i32
    %17 = arith.cmpi eq, %c16_i32, %c0_i32 : i32
    %c1_i32 = arith.constant 1 : i32
    %18 = arith.select %17, %c1_i32, %c16_i32 : i32
    %19 = vector.broadcast %18 : i32 to vector<256x1xi32>
    %20 = arith.remsi %16, %19 : vector<256x1xi32>
    %c0_i32_11 = arith.constant 0 : i32
    %21 = vector.broadcast %c0_i32_11 : i32 to vector<256x1xi32>
    %22 = arith.cmpi ne, %20, %21 : vector<256x1xi32>
    %c0_i32_12 = arith.constant 0 : i32
    %23 = vector.broadcast %c0_i32_12 : i32 to vector<256x1xi32>
    %24 = arith.cmpi slt, %20, %23 : vector<256x1xi32>
    %c0_i32_13 = arith.constant 0 : i32
    %25 = arith.cmpi slt, %18, %c0_i32_13 : i32
    %26 = vector.broadcast %25 : i1 to vector<256x1xi1>
    %27 = vector.broadcast %26 : vector<256x1xi1> to vector<256x1xi1>
    %28 = arith.xori %24, %27 : vector<256x1xi1>
    %29 = arith.andi %28, %22 : vector<256x1xi1>
    %30 = vector.broadcast %18 : i32 to vector<256x1xi32>
    %31 = arith.addi %20, %30 : vector<256x1xi32>
    %32 = arith.select %29, %31, %20 : vector<256x1xi1>, vector<256x1xi32>
    %c2_i32 = arith.constant 2 : i32
    %33 = vector.broadcast %c2_i32 : i32 to vector<256x1xi32>
    %34 = arith.cmpi sge, %32, %33 : vector<256x1xi32>
    %c14_i32 = arith.constant 14 : i32
    %35 = vector.broadcast %c14_i32 : i32 to vector<256x1xi32>
    %36 = arith.cmpi slt, %32, %35 : vector<256x1xi32>
    %c0_14 = arith.constant 0 : index
    %c0_15 = arith.constant 0 : index
    %37 = vector.load %arg7[%c0_14, %c0_15] : memref<328x32xbf16, #tpu.memory_space<vmem>>, vector<256x32xbf16>
    %cst_16 = arith.constant 0.000000e+00 : bf16
    %38 = vector.broadcast %cst_16 : bf16 to vector<256x32xbf16>
    %39 = vector.shape_cast %34 : vector<256x1xi1> to vector<256x1xi1>
    %40 = vector.broadcast %39 : vector<256x1xi1> to vector<256x32xi1>
    %41 = arith.select %40, %37, %38 : vector<256x32xi1>, vector<256x32xbf16>
    %c0_17 = arith.constant 0 : index
    %c0_18 = arith.constant 0 : index
    %42 = vector.load %arg8[%c0_17, %c0_18] : memref<256x288xbf16, #tpu.memory_space<vmem>>, vector<256x32xbf16>
    tpu.vector_store %arg8[%c0_17, %c0_18], %41 {strides = array<i32>} : memref<256x288xbf16, #tpu.memory_space<vmem>>, vector<256x32xbf16>,
    %c2 = arith.constant 2 : index
    %c0_19 = arith.constant 0 : index
    %43 = vector.load %arg7[%c2, %c0_19] : memref<328x32xbf16, #tpu.memory_space<vmem>>, vector<256x32xbf16>
    %c0_20 = arith.constant 0 : index
    %c32 = arith.constant 32 : index
    %44 = vector.load %arg8[%c0_20, %c32] : memref<256x288xbf16, #tpu.memory_space<vmem>>, vector<256x32xbf16>
    tpu.vector_store %arg8[%c0_20, %c32], %43 {strides = array<i32>} : memref<256x288xbf16, #tpu.memory_space<vmem>>, vector<256x32xbf16>,
    %c4 = arith.constant 4 : index
    %c0_21 = arith.constant 0 : index
    %45 = vector.load %arg7[%c4, %c0_21] : memref<328x32xbf16, #tpu.memory_space<vmem>>, vector<256x32xbf16>
    %cst_22 = arith.constant 0.000000e+00 : bf16
    %46 = vector.broadcast %cst_22 : bf16 to vector<256x32xbf16>
    %47 = vector.shape_cast %36 : vector<256x1xi1> to vector<256x1xi1>
    %48 = vector.broadcast %47 : vector<256x1xi1> to vector<256x32xi1>
    %49 = arith.select %48, %45, %46 : vector<256x32xi1>, vector<256x32xbf16>
    %c0_23 = arith.constant 0 : index
    %c64 = arith.constant 64 : index
    %50 = vector.load %arg8[%c0_23, %c64] : memref<256x288xbf16, #tpu.memory_space<vmem>>, vector<256x32xbf16>
    tpu.vector_store %arg8[%c0_23, %c64], %49 {strides = array<i32>} : memref<256x288xbf16, #tpu.memory_space<vmem>>, vector<256x32xbf16>,
    %c32_24 = arith.constant 32 : index
    %c0_25 = arith.constant 0 : index
    %51 = vector.load %arg7[%c32_24, %c0_25] : memref<328x32xbf16, #tpu.memory_space<vmem>>, vector<256x32xbf16>
    %cst_26 = arith.constant 0.000000e+00 : bf16
    %52 = vector.broadcast %cst_26 : bf16 to vector<256x32xbf16>
    %53 = vector.shape_cast %34 : vector<256x1xi1> to vector<256x1xi1>
    %54 = vector.broadcast %53 : vector<256x1xi1> to vector<256x32xi1>
    %55 = arith.select %54, %51, %52 : vector<256x32xi1>, vector<256x32xbf16>
    %c0_27 = arith.constant 0 : index
    %c96 = arith.constant 96 : index
    %56 = vector.load %arg8[%c0_27, %c96] : memref<256x288xbf16, #tpu.memory_space<vmem>>, vector<256x32xbf16>
    tpu.vector_store %arg8[%c0_27, %c96], %55 {strides = array<i32>} : memref<256x288xbf16, #tpu.memory_space<vmem>>, vector<256x32xbf16>,
    %c34_28 = arith.constant 34 : index
    %c0_29 = arith.constant 0 : index
    %57 = vector.load %arg7[%c34_28, %c0_29] : memref<328x32xbf16, #tpu.memory_space<vmem>>, vector<256x32xbf16>
    %c0_30 = arith.constant 0 : index
    %c128 = arith.constant 128 : index
    %58 = vector.load %arg8[%c0_30, %c128] : memref<256x288xbf16, #tpu.memory_space<vmem>>, vector<256x32xbf16>
    tpu.vector_store %arg8[%c0_30, %c128], %57 {strides = array<i32>} : memref<256x288xbf16, #tpu.memory_space<vmem>>, vector<256x32xbf16>,
    %c36 = arith.constant 36 : index
    %c0_31 = arith.constant 0 : index
    %59 = vector.load %arg7[%c36, %c0_31] : memref<328x32xbf16, #tpu.memory_space<vmem>>, vector<256x32xbf16>
    %cst_32 = arith.constant 0.000000e+00 : bf16
    %60 = vector.broadcast %cst_32 : bf16 to vector<256x32xbf16>
    %61 = vector.shape_cast %36 : vector<256x1xi1> to vector<256x1xi1>
    %62 = vector.broadcast %61 : vector<256x1xi1> to vector<256x32xi1>
    %63 = arith.select %62, %59, %60 : vector<256x32xi1>, vector<256x32xbf16>
    %c0_33 = arith.constant 0 : index
    %c160 = arith.constant 160 : index
    %64 = vector.load %arg8[%c0_33, %c160] : memref<256x288xbf16, #tpu.memory_space<vmem>>, vector<256x32xbf16>
    tpu.vector_store %arg8[%c0_33, %c160], %63 {strides = array<i32>} : memref<256x288xbf16, #tpu.memory_space<vmem>>, vector<256x32xbf16>,
    %c64_34 = arith.constant 64 : index
    %c0_35 = arith.constant 0 : index
    %65 = vector.load %arg7[%c64_34, %c0_35] : memref<328x32xbf16, #tpu.memory_space<vmem>>, vector<256x32xbf16>
    %cst_36 = arith.constant 0.000000e+00 : bf16
    %66 = vector.broadcast %cst_36 : bf16 to vector<256x32xbf16>
    %67 = vector.shape_cast %34 : vector<256x1xi1> to vector<256x1xi1>
    %68 = vector.broadcast %67 : vector<256x1xi1> to vector<256x32xi1>
    %69 = arith.select %68, %65, %66 : vector<256x32xi1>, vector<256x32xbf16>
    %c0_37 = arith.constant 0 : index
    %c192 = arith.constant 192 : index
    %70 = vector.load %arg8[%c0_37, %c192] : memref<256x288xbf16, #tpu.memory_space<vmem>>, vector<256x32xbf16>
    tpu.vector_store %arg8[%c0_37, %c192], %69 {strides = array<i32>} : memref<256x288xbf16, #tpu.memory_space<vmem>>, vector<256x32xbf16>,
    %c66 = arith.constant 66 : index
    %c0_38 = arith.constant 0 : index
    %71 = vector.load %arg7[%c66, %c0_38] : memref<328x32xbf16, #tpu.memory_space<vmem>>, vector<256x32xbf16>
    %c0_39 = arith.constant 0 : index
    %c224 = arith.constant 224 : index
    %72 = vector.load %arg8[%c0_39, %c224] : memref<256x288xbf16, #tpu.memory_space<vmem>>, vector<256x32xbf16>
    tpu.vector_store %arg8[%c0_39, %c224], %71 {strides = array<i32>} : memref<256x288xbf16, #tpu.memory_space<vmem>>, vector<256x32xbf16>,
    %c68 = arith.constant 68 : index
    %c0_40 = arith.constant 0 : index
    %73 = vector.load %arg7[%c68, %c0_40] : memref<328x32xbf16, #tpu.memory_space<vmem>>, vector<256x32xbf16>
    %cst_41 = arith.constant 0.000000e+00 : bf16
    %74 = vector.broadcast %cst_41 : bf16 to vector<256x32xbf16>
    %75 = vector.shape_cast %36 : vector<256x1xi1> to vector<256x1xi1>
    %76 = vector.broadcast %75 : vector<256x1xi1> to vector<256x32xi1>
    %77 = arith.select %76, %73, %74 : vector<256x32xi1>, vector<256x32xbf16>
    %c0_42 = arith.constant 0 : index
    %c256 = arith.constant 256 : index
    %78 = vector.load %arg8[%c0_42, %c256] : memref<256x288xbf16, #tpu.memory_space<vmem>>, vector<256x32xbf16>
    tpu.vector_store %arg8[%c0_42, %c256], %77 {strides = array<i32>} : memref<256x288xbf16, #tpu.memory_space<vmem>>, vector<256x32xbf16>,
    %c0_43 = arith.constant 0 : index
    %c0_44 = arith.constant 0 : index
    %79 = vector.load %arg8[%c0_43, %c0_44] : memref<256x288xbf16, #tpu.memory_space<vmem>>, vector<256x288xbf16>
    %c0_45 = arith.constant 0 : index
    %c0_46 = arith.constant 0 : index
    %80 = vector.load %arg2[%c0_45, %c0_46] : memref<288x32xbf16, #tpu.memory_space<vmem>>, vector<288x32xbf16>
    %cst_47 = arith.constant dense<0.000000e+00> : vector<256x32xf32>
    %81 = tpu.matmul %79, %80, %cst_47 {dimension_numbers = #tpu.dot_dimension_numbers<[1], [0], [0], [1], [0, 0, 1, 1], [], []>} : vector<256x288xbf16>, vector<288x32xbf16>, vector<256x32xf32> -> vector<256x32xf32>
    %82 = arith.truncf %81 : vector<256x32xf32> to vector<256x32xbf16>
    %c0_48 = arith.constant 0 : index
    %c0_49 = arith.constant 0 : index
    %83 = vector.load %arg5[%c0_48, %c0_49] : memref<256x32xbf16, #tpu.memory_space<vmem>>, vector<256x32xbf16>
    tpu.vector_store %arg5[%c0_48, %c0_49], %82 {strides = array<i32>} : memref<256x32xbf16, #tpu.memory_space<vmem>>, vector<256x32xbf16>,
    %cst_50 = arith.constant dense<0.000000e+00> : vector<32xf32>
    %84 = vector.multi_reduction <add>, %81, %cst_50 [0] : vector<256x32xf32> to vector<32xf32>
    %85 = vector.shape_cast %84 : vector<32xf32> to vector<1x32xf32>
    %86 = arith.mulf %81, %81 : vector<256x32xf32>
    %cst_51 = arith.constant dense<0.000000e+00> : vector<32xf32>
    %87 = vector.multi_reduction <add>, %86, %cst_51 [0] : vector<256x32xf32> to vector<32xf32>
    %88 = vector.shape_cast %87 : vector<32xf32> to vector<1x32xf32>
    %89 = tpu.concatenate %85, %88 in 0 : vector<1x32xf32>, vector<1x32xf32> -> vector<2x32xf32>
    %90 = vector.shape_cast %89 : vector<2x32xf32> to vector<1x2x32xf32>
    %c0_52 = arith.constant 0 : index
    %c0_53 = arith.constant 0 : index
    %c0_54 = arith.constant 0 : index
    %91 = vector.load %arg6[%c0_52, %c0_53, %c0_54] : memref<1x2x32xf32, #tpu.memory_space<vmem>>, vector<1x2x32xf32>
    tpu.vector_store %arg6[%c0_52, %c0_53, %c0_54], %90 {strides = array<i32>} : memref<1x2x32xf32, #tpu.memory_space<vmem>>, vector<1x2x32xf32>,
    return
  }
  func.func @transform_0(%arg0: i32) -> (i32, i32) {
    %c0_i32 = arith.constant 0 : i32
    %c0_i32_0 = arith.constant 0 : i32
    return %arg0, %c0_i32 : i32, i32
  }
  func.func @transform_1(%arg0: i32) -> (i32, i32) {
    %c0_i32 = arith.constant 0 : i32
    %c0_i32_0 = arith.constant 0 : i32
    %c0_i32_1 = arith.constant 0 : i32
    return %c0_i32, %c0_i32_0 : i32, i32
  }
  func.func @transform_2(%arg0: i32) -> (i32, i32) {
    %c0_i32 = arith.constant 0 : i32
    %c0_i32_0 = arith.constant 0 : i32
    %c0_i32_1 = arith.constant 0 : i32
    return %c0_i32, %c0_i32_0 : i32, i32
  }
  func.func @transform_3(%arg0: i32) -> (i32, i32) {
    %c0_i32 = arith.constant 0 : i32
    %c0_i32_0 = arith.constant 0 : i32
    %c0_i32_1 = arith.constant 0 : i32
    return %c0_i32, %c0_i32_0 : i32, i32
  }
  func.func @transform_4(%arg0: i32) -> (i32, i32) {
    %c0_i32 = arith.constant 0 : i32
    %c0_i32_0 = arith.constant 0 : i32
    return %arg0, %c0_i32 : i32, i32
  }
  func.func @transform_5(%arg0: i32) -> (i32, i32, i32) {
    %c0_i32 = arith.constant 0 : i32
    %c0_i32_0 = arith.constant 0 : i32
    %c0_i32_1 = arith.constant 0 : i32
    return %arg0, %c0_i32, %c0_i32_0 : i32, i32, i32
  }
}

module attributes {stable_mosaic.version = 11 : i64} {
  func.func @_bn_relu_conv1x1_stats_kernel(%arg0: i32, %arg1: memref<512x32xbf16, #tpu.memory_space<vmem>>, %arg2: memref<32x128xbf16, #tpu.memory_space<vmem>>, %arg3: memref<1x32xf32, #tpu.memory_space<vmem>>, %arg4: memref<1x32xf32, #tpu.memory_space<vmem>>, %arg5: memref<512x128xbf16, #tpu.memory_space<vmem>>, %arg6: memref<1x2x128xf32, #tpu.memory_space<vmem>>) attributes {dimension_semantics = [#tpu.dimension_semantics<parallel>], iteration_bounds = array<i64: 1>, scalar_prefetch = 0 : i64, scratch_operands = 0 : i64, tpu.core_type = #tpu.core_type<tc>, window_params = [{transform_indices = @transform_0, window_bounds = array<i64: 512, 32>}, {pipeline_mode = #tpu.pipeline_mode<synchronous>, transform_indices = @transform_1, window_bounds = array<i64: 32, 128>}, {pipeline_mode = #tpu.pipeline_mode<synchronous>, transform_indices = @transform_2, window_bounds = array<i64: 1, 32>}, {pipeline_mode = #tpu.pipeline_mode<synchronous>, transform_indices = @transform_3, window_bounds = array<i64: 1, 32>}, {transform_indices = @transform_4, window_bounds = array<i64: 512, 128>}, {transform_indices = @transform_5, window_bounds = array<i64: 1, 2, 128>}]} {
    %c0 = arith.constant 0 : index
    %c0_0 = arith.constant 0 : index
    %0 = vector.load %arg1[%c0, %c0_0] : memref<512x32xbf16, #tpu.memory_space<vmem>>, vector<512x32xbf16>
    %1 = arith.extf %0 : vector<512x32xbf16> to vector<512x32xf32>
    %c0_1 = arith.constant 0 : index
    %c0_2 = arith.constant 0 : index
    %2 = vector.load %arg3[%c0_1, %c0_2] : memref<1x32xf32, #tpu.memory_space<vmem>>, vector<1x32xf32>
    %3 = vector.broadcast %2 : vector<1x32xf32> to vector<512x32xf32>
    %4 = arith.mulf %1, %3 : vector<512x32xf32>
    %c0_3 = arith.constant 0 : index
    %c0_4 = arith.constant 0 : index
    %5 = vector.load %arg4[%c0_3, %c0_4] : memref<1x32xf32, #tpu.memory_space<vmem>>, vector<1x32xf32>
    %6 = vector.broadcast %5 : vector<1x32xf32> to vector<512x32xf32>
    %7 = arith.addf %4, %6 : vector<512x32xf32>
    %cst = arith.constant 0.000000e+00 : f32
    %8 = vector.broadcast %cst : f32 to vector<512x32xf32>
    %9 = arith.maximumf %7, %8 : vector<512x32xf32>
    %10 = arith.truncf %9 : vector<512x32xf32> to vector<512x32xbf16>
    %c0_5 = arith.constant 0 : index
    %c0_6 = arith.constant 0 : index
    %11 = vector.load %arg2[%c0_5, %c0_6] : memref<32x128xbf16, #tpu.memory_space<vmem>>, vector<32x128xbf16>
    %cst_7 = arith.constant dense<0.000000e+00> : vector<512x128xf32>
    %12 = tpu.matmul %10, %11, %cst_7 {dimension_numbers = #tpu.dot_dimension_numbers<[1], [0], [0], [1], [0, 0, 1, 1], [], []>} : vector<512x32xbf16>, vector<32x128xbf16>, vector<512x128xf32> -> vector<512x128xf32>
    %13 = arith.truncf %12 : vector<512x128xf32> to vector<512x128xbf16>
    %c0_8 = arith.constant 0 : index
    %c0_9 = arith.constant 0 : index
    %14 = vector.load %arg5[%c0_8, %c0_9] : memref<512x128xbf16, #tpu.memory_space<vmem>>, vector<512x128xbf16>
    tpu.vector_store %arg5[%c0_8, %c0_9], %13 {strides = array<i32>} : memref<512x128xbf16, #tpu.memory_space<vmem>>, vector<512x128xbf16>,
    %cst_10 = arith.constant dense<0.000000e+00> : vector<128xf32>
    %15 = vector.multi_reduction <add>, %12, %cst_10 [0] : vector<512x128xf32> to vector<128xf32>
    %16 = vector.shape_cast %15 : vector<128xf32> to vector<1x128xf32>
    %17 = arith.mulf %12, %12 : vector<512x128xf32>
    %cst_11 = arith.constant dense<0.000000e+00> : vector<128xf32>
    %18 = vector.multi_reduction <add>, %17, %cst_11 [0] : vector<512x128xf32> to vector<128xf32>
    %19 = vector.shape_cast %18 : vector<128xf32> to vector<1x128xf32>
    %20 = tpu.concatenate %16, %19 in 0 : vector<1x128xf32>, vector<1x128xf32> -> vector<2x128xf32>
    %21 = vector.shape_cast %20 : vector<2x128xf32> to vector<1x2x128xf32>
    %c0_12 = arith.constant 0 : index
    %c0_13 = arith.constant 0 : index
    %c0_14 = arith.constant 0 : index
    %22 = vector.load %arg6[%c0_12, %c0_13, %c0_14] : memref<1x2x128xf32, #tpu.memory_space<vmem>>, vector<1x2x128xf32>
    tpu.vector_store %arg6[%c0_12, %c0_13, %c0_14], %21 {strides = array<i32>} : memref<1x2x128xf32, #tpu.memory_space<vmem>>, vector<1x2x128xf32>,
    return
  }
  func.func @transform_0(%arg0: i32) -> (i32, i32) {
    %c0_i32 = arith.constant 0 : i32
    %c0_i32_0 = arith.constant 0 : i32
    return %arg0, %c0_i32 : i32, i32
  }
  func.func @transform_1(%arg0: i32) -> (i32, i32) {
    %c0_i32 = arith.constant 0 : i32
    %c0_i32_0 = arith.constant 0 : i32
    %c0_i32_1 = arith.constant 0 : i32
    return %c0_i32, %c0_i32_0 : i32, i32
  }
  func.func @transform_2(%arg0: i32) -> (i32, i32) {
    %c0_i32 = arith.constant 0 : i32
    %c0_i32_0 = arith.constant 0 : i32
    %c0_i32_1 = arith.constant 0 : i32
    return %c0_i32, %c0_i32_0 : i32, i32
  }
  func.func @transform_3(%arg0: i32) -> (i32, i32) {
    %c0_i32 = arith.constant 0 : i32
    %c0_i32_0 = arith.constant 0 : i32
    %c0_i32_1 = arith.constant 0 : i32
    return %c0_i32, %c0_i32_0 : i32, i32
  }
  func.func @transform_4(%arg0: i32) -> (i32, i32) {
    %c0_i32 = arith.constant 0 : i32
    %c0_i32_0 = arith.constant 0 : i32
    return %arg0, %c0_i32 : i32, i32
  }
  func.func @transform_5(%arg0: i32) -> (i32, i32, i32) {
    %c0_i32 = arith.constant 0 : i32
    %c0_i32_0 = arith.constant 0 : i32
    %c0_i32_1 = arith.constant 0 : i32
    return %arg0, %c0_i32, %c0_i32_0 : i32, i32, i32
  }
}

module attributes {stable_mosaic.version = 11 : i64} {
  func.func @_bn_residual_relu_kernel(%arg0: i32, %arg1: memref<512x128xbf16, #tpu.memory_space<vmem>>, %arg2: memref<512x128xf32, #tpu.memory_space<vmem>>, %arg3: memref<1x128xf32, #tpu.memory_space<vmem>>, %arg4: memref<1x128xf32, #tpu.memory_space<vmem>>, %arg5: memref<512x128xf32, #tpu.memory_space<vmem>>) attributes {dimension_semantics = [#tpu.dimension_semantics<parallel>], iteration_bounds = array<i64: 1>, scalar_prefetch = 0 : i64, scratch_operands = 0 : i64, tpu.core_type = #tpu.core_type<tc>, window_params = [{transform_indices = @transform_0, window_bounds = array<i64: 512, 128>}, {transform_indices = @transform_1, window_bounds = array<i64: 512, 128>}, {pipeline_mode = #tpu.pipeline_mode<synchronous>, transform_indices = @transform_2, window_bounds = array<i64: 1, 128>}, {pipeline_mode = #tpu.pipeline_mode<synchronous>, transform_indices = @transform_3, window_bounds = array<i64: 1, 128>}, {transform_indices = @transform_4, window_bounds = array<i64: 512, 128>}]} {
    %c0 = arith.constant 0 : index
    %c0_0 = arith.constant 0 : index
    %0 = vector.load %arg1[%c0, %c0_0] : memref<512x128xbf16, #tpu.memory_space<vmem>>, vector<512x128xbf16>
    %1 = arith.extf %0 : vector<512x128xbf16> to vector<512x128xf32>
    %c0_1 = arith.constant 0 : index
    %c0_2 = arith.constant 0 : index
    %2 = vector.load %arg3[%c0_1, %c0_2] : memref<1x128xf32, #tpu.memory_space<vmem>>, vector<1x128xf32>
    %3 = vector.broadcast %2 : vector<1x128xf32> to vector<512x128xf32>
    %4 = arith.mulf %1, %3 : vector<512x128xf32>
    %c0_3 = arith.constant 0 : index
    %c0_4 = arith.constant 0 : index
    %5 = vector.load %arg4[%c0_3, %c0_4] : memref<1x128xf32, #tpu.memory_space<vmem>>, vector<1x128xf32>
    %6 = vector.broadcast %5 : vector<1x128xf32> to vector<512x128xf32>
    %7 = arith.addf %4, %6 : vector<512x128xf32>
    %c0_5 = arith.constant 0 : index
    %c0_6 = arith.constant 0 : index
    %8 = vector.load %arg2[%c0_5, %c0_6] : memref<512x128xf32, #tpu.memory_space<vmem>>, vector<512x128xf32>
    %9 = arith.addf %7, %8 : vector<512x128xf32>
    %cst = arith.constant 0.000000e+00 : f32
    %10 = vector.broadcast %cst : f32 to vector<512x128xf32>
    %11 = arith.maximumf %9, %10 : vector<512x128xf32>
    %c0_7 = arith.constant 0 : index
    %c0_8 = arith.constant 0 : index
    %12 = vector.load %arg5[%c0_7, %c0_8] : memref<512x128xf32, #tpu.memory_space<vmem>>, vector<512x128xf32>
    tpu.vector_store %arg5[%c0_7, %c0_8], %11 {strides = array<i32>} : memref<512x128xf32, #tpu.memory_space<vmem>>, vector<512x128xf32>,
    return
  }
  func.func @transform_0(%arg0: i32) -> (i32, i32) {
    %c0_i32 = arith.constant 0 : i32
    %c0_i32_0 = arith.constant 0 : i32
    return %arg0, %c0_i32 : i32, i32
  }
  func.func @transform_1(%arg0: i32) -> (i32, i32) {
    %c0_i32 = arith.constant 0 : i32
    %c0_i32_0 = arith.constant 0 : i32
    return %arg0, %c0_i32 : i32, i32
  }
  func.func @transform_2(%arg0: i32) -> (i32, i32) {
    %c0_i32 = arith.constant 0 : i32
    %c0_i32_0 = arith.constant 0 : i32
    %c0_i32_1 = arith.constant 0 : i32
    return %c0_i32, %c0_i32_0 : i32, i32
  }
  func.func @transform_3(%arg0: i32) -> (i32, i32) {
    %c0_i32 = arith.constant 0 : i32
    %c0_i32_0 = arith.constant 0 : i32
    %c0_i32_1 = arith.constant 0 : i32
    return %c0_i32, %c0_i32_0 : i32, i32
  }
  func.func @transform_4(%arg0: i32) -> (i32, i32) {
    %c0_i32 = arith.constant 0 : i32
    %c0_i32_0 = arith.constant 0 : i32
    return %arg0, %c0_i32 : i32, i32
  }
}

</mosaic_0001>

<llo_original>
// kernel: bottleneck_forward.7
$region0: #{bottleneck_forward.7}
  #allocation0 [shape = 'u32[]', space=smem, size = 0x4, offset = 0x4, fixed_abs, tag = 'smem constant byte address 0x4 - core index']
  #allocation1 [shape = 'u32[144,128]{1,0:T(1,128)}', space=vmem, size = 0x12000, scoped, tag = 'internal scratch']
  %s0 = inlined_call_operand.vmem [shape: bf16[512,128], index: 0, kind: input, shape index: {}]
  %s1 = inlined_call_operand.vmem [shape: f32[512,128], index: 1, kind: input, shape index: {}]
  %s2 = inlined_call_operand.vmem [shape: f32[1,128], index: 2, kind: input, shape index: {}]
  %s3 = inlined_call_operand.vmem [shape: f32[1,128], index: 3, kind: input, shape index: {}]
  %s4 = inlined_call_operand.hbm [shape: f32[512,128], index: 4, kind: output, shape index: {}]
  %s5 = sld [smem:[#allocation0]]
  $region26: #{bottleneck_forward.7} parent=0
    _
  %s7 = ssub.s32 1, %s5
  %s8 = scalar_select 0, %s7, %s5
  $region1: #{bottleneck_forward.7} parent=0
    #allocation2 [shape = 'u8[262144]{0}', space=vmem, size = 0x40000, scoped, tag = 'output window, operand 0, single buffered']
    #allocation3 [shape = 's32[1]{0}', space=sflag, size = 0x4, scoped, tag = 'scoped memory for bottleneck_forward.7']
    %9 = vsyncpa [#allocation3], 0
    // Predicated region
    $region2: #{bottleneck_forward.7} parent=1 // pred_check
      _
    $region3: #{bottleneck_forward.7} parent=1 // pred_check_branch
      %11 = sbr.rel (0) target = $region5
    $region4: #{bottleneck_forward.7} parent=1 // pred_region
      _
    $region5: #{bottleneck_forward.7} parent=1 // pred_fallthru
      _
    // Predicated region
    $region6: #{bottleneck_forward.7} parent=1 // pred_check
      _
    $region7: #{bottleneck_forward.7} parent=1 // pred_check_branch
      %13 = sbr.rel (0) target = $region9
    $region8: #{bottleneck_forward.7} parent=1 // pred_region
      _
    $region9: #{bottleneck_forward.7} parent=1 // pred_fallthru
      _
    // Predicated region
    $region10: #{bottleneck_forward.7} parent=1 // pred_check
      _
    $region11: #{bottleneck_forward.7} parent=1 // pred_check_branch
      %15 = sbr.rel (0) target = $region13
    $region12: #{bottleneck_forward.7} parent=1 // pred_region
      _
    $region13: #{bottleneck_forward.7} parent=1 // pred_fallthru
      _
    // Predicated region
    $region14: #{bottleneck_forward.7} parent=1 // pred_check
      _
    $region15: #{bottleneck_forward.7} parent=1 // pred_check_branch
      %17 = sbr.rel (0) target = $region17
    $region16: #{bottleneck_forward.7} parent=1 // pred_region
      _
    $region17: #{bottleneck_forward.7} parent=1 // pred_fallthru
      _
    %v18 = vld [vmem:[%s0] sm:$0xf]
    %v19 = vld [vmem:[%s0 + $0x4] sm:$0xf]
    %v20 = vld [vmem:[%s0 + $0x8] sm:$0xf]
    %v21 = vld [vmem:[%s0 + $0xc] sm:$0xf]
    %v22 = vld [vmem:[%s0 + $0x10] sm:$0xf]
    %v23 = vld [vmem:[%s0 + $0x14] sm:$0xf]
    %v24 = vld [vmem:[%s0 + $0x18] sm:$0xf]
    %v25 = vld [vmem:[%s0 + $0x1c] sm:$0xf]
    %v26 = vld [vmem:[%s0 + $0x20] sm:$0xf]
    %v27 = vld [vmem:[%s0 + $0x24] sm:$0xf]
    %v28 = vld [vmem:[%s0 + $0x28] sm:$0xf]
    %v29 = vld [vmem:[%s0 + $0x2c] sm:$0xf]
    %v30 = vld [vmem:[%s0 + $0x30] sm:$0xf]
    %v31 = vld [vmem:[%s0 + $0x34] sm:$0xf]
    %v32 = vld [vmem:[%s0 + $0x38] sm:$0xf]
    %v33 = vld [vmem:[%s0 + $0x3c] sm:$0xf]
    %v34 = vld [vmem:[%s0 + $0x40] sm:$0xf]
    %v35 = vld [vmem:[%s0 + $0x44] sm:$0xf]
    %v36 = vld [vmem:[%s0 + $0x48] sm:$0xf]
    %v37 = vld [vmem:[%s0 + $0x4c] sm:$0xf]
    %v38 = vld [vmem:[%s0 + $0x50] sm:$0xf]
    %v39 = vld [vmem:[%s0 + $0x54] sm:$0xf]
    %v40 = vld [vmem:[%s0 + $0x58] sm:$0xf]
    %v41 = vld [vmem:[%s0 + $0x5c] sm:$0xf]
    %v42 = vld [vmem:[%s0 + $0x60] sm:$0xf]
    %v43 = vld [vmem:[%s0 + $0x64] sm:$0xf]
    %v44 = vld [vmem:[%s0 + $0x68] sm:$0xf]
    %v45 = vld [vmem:[%s0 + $0x6c] sm:$0xf]
    %v46 = vld [vmem:[%s0 + $0x70] sm:$0xf]
    %v47 = vld [vmem:[%s0 + $0x74] sm:$0xf]
    %v48 = vld [vmem:[%s0 + $0x78] sm:$0xf]
    %v49 = vld [vmem:[%s0 + $0x7c] sm:$0xf]
    %v50 = vld [vmem:[%s0 + $0x80] sm:$0xf]
    %v51 = vld [vmem:[%s0 + $0x84] sm:$0xf]
    %v52 = vld [vmem:[%s0 + $0x88] sm:$0xf]
    %v53 = vld [vmem:[%s0 + $0x8c] sm:$0xf]
    %v54 = vld [vmem:[%s0 + $0x90] sm:$0xf]
    %v55 = vld [vmem:[%s0 + $0x94] sm:$0xf]
    %v56 = vld [vmem:[%s0 + $0x98] sm:$0xf]
    %v57 = vld [vmem:[%s0 + $0x9c] sm:$0xf]
    %v58 = vld [vmem:[%s0 + $0xa0] sm:$0xf]
    %v59 = vld [vmem:[%s0 + $0xa4] sm:$0xf]
    %v60 = vld [vmem:[%s0 + $0xa8] sm:$0xf]
    %v61 = vld [vmem:[%s0 + $0xac] sm:$0xf]
    %v62 = vld [vmem:[%s0 + $0xb0] sm:$0xf]
    %v63 = vld [vmem:[%s0 + $0xb4] sm:$0xf]
    %v64 = vld [vmem:[%s0 + $0xb8] sm:$0xf]
    %v65 = vld [vmem:[%s0 + $0xbc] sm:$0xf]
    %v66 = vld [vmem:[%s0 + $0xc0] sm:$0xf]
    %v67 = vld [vmem:[%s0 + $0xc4] sm:$0xf]
    %v68 = vld [vmem:[%s0 + $0xc8] sm:$0xf]
    %v69 = vld [vmem:[%s0 + $0xcc] sm:$0xf]
    %v70 = vld [vmem:[%s0 + $0xd0] sm:$0xf]
    %v71 = vld [vmem:[%s0 + $0xd4] sm:$0xf]
    %v72 = vld [vmem:[%s0 + $0xd8] sm:$0xf]
    %v73 = vld [vmem:[%s0 + $0xdc] sm:$0xf]
    %v74 = vld [vmem:[%s0 + $0xe0] sm:$0xf]
    %v75 = vld [vmem:[%s0 + $0xe4] sm:$0xf]
    %v76 = vld [vmem:[%s0 + $0xe8] sm:$0xf]
    %v77 = vld [vmem:[%s0 + $0xec] sm:$0xf]
    %v78 = vld [vmem:[%s0 + $0xf0] sm:$0xf]
    %v79 = vld [vmem:[%s0 + $0xf4] sm:$0xf]
    %v80 = vld [vmem:[%s0 + $0xf8] sm:$0xf]
    %v81 = vld [vmem:[%s0 + $0xfc] sm:$0xf]
    %v82 = vunpack.c.l.bf16 %v18
    %v83 = vunpack.c.l.bf16 %v19
    %v84 = vunpack.c.l.bf16 %v20
    %v85 = vunpack.c.l.bf16 %v21
    %v86 = vunpack.c.l.bf16 %v22
    %v87 = vunpack.c.l.bf16 %v23
    %v88 = vunpack.c.l.bf16 %v24
    %v89 = vunpack.c.l.bf16 %v25
    %v90 = vunpack.c.l.bf16 %v26
    %v91 = vunpack.c.l.bf16 %v27
    %v92 = vunpack.c.l.bf16 %v28
    %v93 = vunpack.c.l.bf16 %v29
    %v94 = vunpack.c.l.bf16 %v30
    %v95 = vunpack.c.l.bf16 %v31
    %v96 = vunpack.c.l.bf16 %v32
    %v97 = vunpack.c.l.bf16 %v33
    %v98 = vunpack.c.l.bf16 %v34
    %v99 = vunpack.c.l.bf16 %v35
    %v100 = vunpack.c.l.bf16 %v36
    %v101 = vunpack.c.l.bf16 %v37
    %v102 = vunpack.c.l.bf16 %v38
    %v103 = vunpack.c.l.bf16 %v39
    %v104 = vunpack.c.l.bf16 %v40
    %v105 = vunpack.c.l.bf16 %v41
    %v106 = vunpack.c.l.bf16 %v42
    %v107 = vunpack.c.l.bf16 %v43
    %v108 = vunpack.c.l.bf16 %v44
    %v109 = vunpack.c.l.bf16 %v45
    %v110 = vunpack.c.l.bf16 %v46
    %v111 = vunpack.c.l.bf16 %v47
    %v112 = vunpack.c.l.bf16 %v48
    %v113 = vunpack.c.l.bf16 %v49
    %v114 = vunpack.c.l.bf16 %v50
    %v115 = vunpack.c.l.bf16 %v51
    %v116 = vunpack.c.l.bf16 %v52
    %v117 = vunpack.c.l.bf16 %v53
    %v118 = vunpack.c.l.bf16 %v54
    %v119 = vunpack.c.l.bf16 %v55
    %v120 = vunpack.c.l.bf16 %v56
    %v121 = vunpack.c.l.bf16 %v57
    %v122 = vunpack.c.l.bf16 %v58
    %v123 = vunpack.c.l.bf16 %v59
    %v124 = vunpack.c.l.bf16 %v60
    %v125 = vunpack.c.l.bf16 %v61
    %v126 = vunpack.c.l.bf16 %v62
    %v127 = vunpack.c.l.bf16 %v63
    %v128 = vunpack.c.l.bf16 %v64
    %v129 = vunpack.c.l.bf16 %v65
    %v130 = vunpack.c.l.bf16 %v66
    %v131 = vunpack.c.l.bf16 %v67
    %v132 = vunpack.c.l.bf16 %v68
    %v133 = vunpack.c.l.bf16 %v69
    %v134 = vunpack.c.l.bf16 %v70
    %v135 = vunpack.c.l.bf16 %v71
    %v136 = vunpack.c.l.bf16 %v72
    %v137 = vunpack.c.l.bf16 %v73
    %v138 = vunpack.c.l.bf16 %v74
    %v139 = vunpack.c.l.bf16 %v75
    %v140 = vunpack.c.l.bf16 %v76
    %v141 = vunpack.c.l.bf16 %v77
    %v142 = vunpack.c.l.bf16 %v78
    %v143 = vunpack.c.l.bf16 %v79
    %v144 = vunpack.c.l.bf16 %v80
    %v145 = vunpack.c.l.bf16 %v81
    %v146 = vld [vmem:[%s2] sm:$0x1]
    %v148 = vlaneseq
    %v149 = vshrl.u32 %v148, 7
    %v150 = vsub.s32 0, %v149
    %v151 = vrot.slane %v146, %v150
    %v153 = vmul.f32 %v82, %v151
    %v154 = vmul.f32 %v83, %v151
    %v155 = vmul.f32 %v84, %v151
    %v156 = vmul.f32 %v85, %v151
    %v157 = vmul.f32 %v86, %v151
    %v158 = vmul.f32 %v87, %v151
    %v159 = vmul.f32 %v88, %v151
    %v160 = vmul.f32 %v89, %v151
    %v161 = vmul.f32 %v90, %v151
    %v162 = vmul.f32 %v91, %v151
    %v163 = vmul.f32 %v92, %v151
    %v164 = vmul.f32 %v93, %v151
    %v165 = vmul.f32 %v94, %v151
    %v166 = vmul.f32 %v95, %v151
    %v167 = vmul.f32 %v96, %v151
    %v168 = vmul.f32 %v97, %v151
    %v169 = vmul.f32 %v98, %v151
    %v170 = vmul.f32 %v99, %v151
    %v171 = vmul.f32 %v100, %v151
    %v172 = vmul.f32 %v101, %v151
    %v173 = vmul.f32 %v102, %v151
    %v174 = vmul.f32 %v103, %v151
    %v175 = vmul.f32 %v104, %v151
    %v176 = vmul.f32 %v105, %v151
    %v177 = vmul.f32 %v106, %v151
    %v178 = vmul.f32 %v107, %v151
    %v179 = vmul.f32 %v108, %v151
    %v180 = vmul.f32 %v109, %v151
    %v181 = vmul.f32 %v110, %v151
    %v182 = vmul.f32 %v111, %v151
    %v183 = vmul.f32 %v112, %v151
    %v184 = vmul.f32 %v113, %v151
    %v185 = vmul.f32 %v114, %v151
    %v186 = vmul.f32 %v115, %v151
    %v187 = vmul.f32 %v116, %v151
    %v188 = vmul.f32 %v117, %v151
    %v189 = vmul.f32 %v118, %v151
    %v190 = vmul.f32 %v119, %v151
    %v191 = vmul.f32 %v120, %v151
    %v192 = vmul.f32 %v121, %v151
    %v193 = vmul.f32 %v122, %v151
    %v194 = vmul.f32 %v123, %v151
    %v195 = vmul.f32 %v124, %v151
    %v196 = vmul.f32 %v125, %v151
    %v197 = vmul.f32 %v126, %v151
    %v198 = vmul.f32 %v127, %v151
    %v199 = vmul.f32 %v128, %v151
    %v200 = vmul.f32 %v129, %v151
    %v201 = vmul.f32 %v130, %v151
    %v202 = vmul.f32 %v131, %v151
    %v203 = vmul.f32 %v132, %v151
    %v204 = vmul.f32 %v133, %v151
    %v205 = vmul.f32 %v134, %v151
    %v206 = vmul.f32 %v135, %v151
    %v207 = vmul.f32 %v136, %v151
    %v208 = vmul.f32 %v137, %v151
    %v209 = vmul.f32 %v138, %v151
    %v210 = vmul.f32 %v139, %v151
    %v211 = vmul.f32 %v140, %v151
    %v212 = vmul.f32 %v141, %v151
    %v213 = vmul.f32 %v142, %v151
    %v214 = vmul.f32 %v143, %v151
    %v215 = vmul.f32 %v144, %v151
    %v216 = vmul.f32 %v145, %v151
    %v217 = vld [vmem:[%s3] sm:$0x1]
    %v219 = vlaneseq
    %v220 = vshrl.u32 %v219, 7
    %v221 = vsub.s32 0, %v220
    %v222 = vrot.slane %v217, %v221
    %v224 = vadd.f32 %v153, %v222
    %v225 = vadd.f32 %v154, %v222
    %v226 = vadd.f32 %v155, %v222
    %v227 = vadd.f32 %v156, %v222
    %v228 = vadd.f32 %v157, %v222
    %v229 = vadd.f32 %v158, %v222
    %v230 = vadd.f32 %v159, %v222
    %v231 = vadd.f32 %v160, %v222
    %v232 = vadd.f32 %v161, %v222
    %v233 = vadd.f32 %v162, %v222
    %v234 = vadd.f32 %v163, %v222
    %v235 = vadd.f32 %v164, %v222
    %v236 = vadd.f32 %v165, %v222
    %v237 = vadd.f32 %v166, %v222
    %v238 = vadd.f32 %v167, %v222
    %v239 = vadd.f32 %v168, %v222
    %v240 = vadd.f32 %v169, %v222
    %v241 = vadd.f32 %v170, %v222
    %v242 = vadd.f32 %v171, %v222
    %v243 = vadd.f32 %v172, %v222
    %v244 = vadd.f32 %v173, %v222
    %v245 = vadd.f32 %v174, %v222
    %v246 = vadd.f32 %v175, %v222
    %v247 = vadd.f32 %v176, %v222
    %v248 = vadd.f32 %v177, %v222
    %v249 = vadd.f32 %v178, %v222
    %v250 = vadd.f32 %v179, %v222
    %v251 = vadd.f32 %v180, %v222
    %v252 = vadd.f32 %v181, %v222
    %v253 = vadd.f32 %v182, %v222
    %v254 = vadd.f32 %v183, %v222
    %v255 = vadd.f32 %v184, %v222
    %v256 = vadd.f32 %v185, %v222
    %v257 = vadd.f32 %v186, %v222
    %v258 = vadd.f32 %v187, %v222
    %v259 = vadd.f32 %v188, %v222
    %v260 = vadd.f32 %v189, %v222
    %v261 = vadd.f32 %v190, %v222
    %v262 = vadd.f32 %v191, %v222
    %v263 = vadd.f32 %v192, %v222
    %v264 = vadd.f32 %v193, %v222
    %v265 = vadd.f32 %v194, %v222
    %v266 = vadd.f32 %v195, %v222
    %v267 = vadd.f32 %v196, %v222
    %v268 = vadd.f32 %v197, %v222
    %v269 = vadd.f32 %v198, %v222
    %v270 = vadd.f32 %v199, %v222
    %v271 = vadd.f32 %v200, %v222
    %v272 = vadd.f32 %v201, %v222
    %v273 = vadd.f32 %v202, %v222
    %v274 = vadd.f32 %v203, %v222
    %v275 = vadd.f32 %v204, %v222
    %v276 = vadd.f32 %v205, %v222
    %v277 = vadd.f32 %v206, %v222
    %v278 = vadd.f32 %v207, %v222
    %v279 = vadd.f32 %v208, %v222
    %v280 = vadd.f32 %v209, %v222
    %v281 = vadd.f32 %v210, %v222
    %v282 = vadd.f32 %v211, %v222
    %v283 = vadd.f32 %v212, %v222
    %v284 = vadd.f32 %v213, %v222
    %v285 = vadd.f32 %v214, %v222
    %v286 = vadd.f32 %v215, %v222
    %v287 = vadd.f32 %v216, %v222
    %v288 = vld [vmem:[%s1] sm:$0xff]
    %v289 = vld [vmem:[%s1 + $0x8] sm:$0xff]
    %v290 = vld [vmem:[%s1 + $0x10] sm:$0xff]
    %v291 = vld [vmem:[%s1 + $0x18] sm:$0xff]
    %v292 = vld [vmem:[%s1 + $0x20] sm:$0xff]
    %v293 = vld [vmem:[%s1 + $0x28] sm:$0xff]
    %v294 = vld [vmem:[%s1 + $0x30] sm:$0xff]
    %v295 = vld [vmem:[%s1 + $0x38] sm:$0xff]
    %v296 = vld [vmem:[%s1 + $0x40] sm:$0xff]
    %v297 = vld [vmem:[%s1 + $0x48] sm:$0xff]
    %v298 = vld [vmem:[%s1 + $0x50] sm:$0xff]
    %v299 = vld [vmem:[%s1 + $0x58] sm:$0xff]
    %v300 = vld [vmem:[%s1 + $0x60] sm:$0xff]
    %v301 = vld [vmem:[%s1 + $0x68] sm:$0xff]
    %v302 = vld [vmem:[%s1 + $0x70] sm:$0xff]
    %v303 = vld [vmem:[%s1 + $0x78] sm:$0xff]
    %v304 = vld [vmem:[%s1 + $0x80] sm:$0xff]
    %v305 = vld [vmem:[%s1 + $0x88] sm:$0xff]
    %v306 = vld [vmem:[%s1 + $0x90] sm:$0xff]
    %v307 = vld [vmem:[%s1 + $0x98] sm:$0xff]
    %v308 = vld [vmem:[%s1 + $0xa0] sm:$0xff]
    %v309 = vld [vmem:[%s1 + $0xa8] sm:$0xff]
    %v310 = vld [vmem:[%s1 + $0xb0] sm:$0xff]
    %v311 = vld [vmem:[%s1 + $0xb8] sm:$0xff]
    %v312 = vld [vmem:[%s1 + $0xc0] sm:$0xff]
    %v313 = vld [vmem:[%s1 + $0xc8] sm:$0xff]
    %v314 = vld [vmem:[%s1 + $0xd0] sm:$0xff]
    %v315 = vld [vmem:[%s1 + $0xd8] sm:$0xff]
    %v316 = vld [vmem:[%s1 + $0xe0] sm:$0xff]
    %v317 = vld [vmem:[%s1 + $0xe8] sm:$0xff]
    %v318 = vld [vmem:[%s1 + $0xf0] sm:$0xff]
    %v319 = vld [vmem:[%s1 + $0xf8] sm:$0xff]
    %v320 = vld [vmem:[%s1 + $0x100] sm:$0xff]
    %v321 = vld [vmem:[%s1 + $0x108] sm:$0xff]
    %v322 = vld [vmem:[%s1 + $0x110] sm:$0xff]
    %v323 = vld [vmem:[%s1 + $0x118] sm:$0xff]
    %v324 = vld [vmem:[%s1 + $0x120] sm:$0xff]
    %v325 = vld [vmem:[%s1 + $0x128] sm:$0xff]
    %v326 = vld [vmem:[%s1 + $0x130] sm:$0xff]
    %v327 = vld [vmem:[%s1 + $0x138] sm:$0xff]
    %v328 = vld [vmem:[%s1 + $0x140] sm:$0xff]
    %v329 = vld [vmem:[%s1 + $0x148] sm:$0xff]
    %v330 = vld [vmem:[%s1 + $0x150] sm:$0xff]
    %v331 = vld [vmem:[%s1 + $0x158] sm:$0xff]
    %v332 = vld [vmem:[%s1 + $0x160] sm:$0xff]
    %v333 = vld [vmem:[%s1 + $0x168] sm:$0xff]
    %v334 = vld [vmem:[%s1 + $0x170] sm:$0xff]
    %v335 = vld [vmem:[%s1 + $0x178] sm:$0xff]
    %v336 = vld [vmem:[%s1 + $0x180] sm:$0xff]
    %v337 = vld [vmem:[%s1 + $0x188] sm:$0xff]
    %v338 = vld [vmem:[%s1 + $0x190] sm:$0xff]
    %v339 = vld [vmem:[%s1 + $0x198] sm:$0xff]
    %v340 = vld [vmem:[%s1 + $0x1a0] sm:$0xff]
    %v341 = vld [vmem:[%s1 + $0x1a8] sm:$0xff]
    %v342 = vld [vmem:[%s1 + $0x1b0] sm:$0xff]
    %v343 = vld [vmem:[%s1 + $0x1b8] sm:$0xff]
    %v344 = vld [vmem:[%s1 + $0x1c0] sm:$0xff]
    %v345 = vld [vmem:[%s1 + $0x1c8] sm:$0xff]
    %v346 = vld [vmem:[%s1 + $0x1d0] sm:$0xff]
    %v347 = vld [vmem:[%s1 + $0x1d8] sm:$0xff]
    %v348 = vld [vmem:[%s1 + $0x1e0] sm:$0xff]
    %v349 = vld [vmem:[%s1 + $0x1e8] sm:$0xff]
    %v350 = vld [vmem:[%s1 + $0x1f0] sm:$0xff]
    %v351 = vld [vmem:[%s1 + $0x1f8] sm:$0xff]
    %v352 = vadd.f32 %v224, %v288
    %v353 = vadd.f32 %v225, %v289
    %v354 = vadd.f32 %v226, %v290
    %v355 = vadd.f32 %v227, %v291
    %v356 = vadd.f32 %v228, %v292
    %v357 = vadd.f32 %v229, %v293
    %v358 = vadd.f32 %v230, %v294
    %v359 = vadd.f32 %v231, %v295
    %v360 = vadd.f32 %v232, %v296
    %v361 = vadd.f32 %v233, %v297
    %v362 = vadd.f32 %v234, %v298
    %v363 = vadd.f32 %v235, %v299
    %v364 = vadd.f32 %v236, %v300
    %v365 = vadd.f32 %v237, %v301
    %v366 = vadd.f32 %v238, %v302
    %v367 = vadd.f32 %v239, %v303
    %v368 = vadd.f32 %v240, %v304
    %v369 = vadd.f32 %v241, %v305
    %v370 = vadd.f32 %v242, %v306
    %v371 = vadd.f32 %v243, %v307
    %v372 = vadd.f32 %v244, %v308
    %v373 = vadd.f32 %v245, %v309
    %v374 = vadd.f32 %v246, %v310
    %v375 = vadd.f32 %v247, %v311
    %v376 = vadd.f32 %v248, %v312
    %v377 = vadd.f32 %v249, %v313
    %v378 = vadd.f32 %v250, %v314
    %v379 = vadd.f32 %v251, %v315
    %v380 = vadd.f32 %v252, %v316
    %v381 = vadd.f32 %v253, %v317
    %v382 = vadd.f32 %v254, %v318
    %v383 = vadd.f32 %v255, %v319
    %v384 = vadd.f32 %v256, %v320
    %v385 = vadd.f32 %v257, %v321
    %v386 = vadd.f32 %v258, %v322
    %v387 = vadd.f32 %v259, %v323
    %v388 = vadd.f32 %v260, %v324
    %v389 = vadd.f32 %v261, %v325
    %v390 = vadd.f32 %v262, %v326
    %v391 = vadd.f32 %v263, %v327
    %v392 = vadd.f32 %v264, %v328
    %v393 = vadd.f32 %v265, %v329
    %v394 = vadd.f32 %v266, %v330
    %v395 = vadd.f32 %v267, %v331
    %v396 = vadd.f32 %v268, %v332
    %v397 = vadd.f32 %v269, %v333
    %v398 = vadd.f32 %v270, %v334
    %v399 = vadd.f32 %v271, %v335
    %v400 = vadd.f32 %v272, %v336
    %v401 = vadd.f32 %v273, %v337
    %v402 = vadd.f32 %v274, %v338
    %v403 = vadd.f32 %v275, %v339
    %v404 = vadd.f32 %v276, %v340
    %v405 = vadd.f32 %v277, %v341
    %v406 = vadd.f32 %v278, %v342
    %v407 = vadd.f32 %v279, %v343
    %v408 = vadd.f32 %v280, %v344
    %v409 = vadd.f32 %v281, %v345
    %v410 = vadd.f32 %v282, %v346
    %v411 = vadd.f32 %v283, %v347
    %v412 = vadd.f32 %v284, %v348
    %v413 = vadd.f32 %v285, %v349
    %v414 = vadd.f32 %v286, %v350
    %v415 = vadd.f32 %v287, %v351
    %v416 = vmax.f32 %v352, 0.0
    %v417 = vmax.f32 %v353, 0.0
    %v418 = vmax.f32 %v354, 0.0
    %v419 = vmax.f32 %v355, 0.0
    %v420 = vmax.f32 %v356, 0.0
    %v421 = vmax.f32 %v357, 0.0
    %v422 = vmax.f32 %v358, 0.0
    %v423 = vmax.f32 %v359, 0.0
    %v424 = vmax.f32 %v360, 0.0
    %v425 = vmax.f32 %v361, 0.0
    %v426 = vmax.f32 %v362, 0.0
    %v427 = vmax.f32 %v363, 0.0
    %v428 = vmax.f32 %v364, 0.0
    %v429 = vmax.f32 %v365, 0.0
    %v430 = vmax.f32 %v366, 0.0
    %v431 = vmax.f32 %v367, 0.0
    %v432 = vmax.f32 %v368, 0.0
    %v433 = vmax.f32 %v369, 0.0
    %v434 = vmax.f32 %v370, 0.0
    %v435 = vmax.f32 %v371, 0.0
    %v436 = vmax.f32 %v372, 0.0
    %v437 = vmax.f32 %v373, 0.0
    %v438 = vmax.f32 %v374, 0.0
    %v439 = vmax.f32 %v375, 0.0
    %v440 = vmax.f32 %v376, 0.0
    %v441 = vmax.f32 %v377, 0.0
    %v442 = vmax.f32 %v378, 0.0
    %v443 = vmax.f32 %v379, 0.0
    %v444 = vmax.f32 %v380, 0.0
    %v445 = vmax.f32 %v381, 0.0
    %v446 = vmax.f32 %v382, 0.0
    %v447 = vmax.f32 %v383, 0.0
    %v448 = vmax.f32 %v384, 0.0
    %v449 = vmax.f32 %v385, 0.0
    %v450 = vmax.f32 %v386, 0.0
    %v451 = vmax.f32 %v387, 0.0
    %v452 = vmax.f32 %v388, 0.0
    %v453 = vmax.f32 %v389, 0.0
    %v454 = vmax.f32 %v390, 0.0
    %v455 = vmax.f32 %v391, 0.0
    %v456 = vmax.f32 %v392, 0.0
    %v457 = vmax.f32 %v393, 0.0
    %v458 = vmax.f32 %v394, 0.0
    %v459 = vmax.f32 %v395, 0.0
    %v460 = vmax.f32 %v396, 0.0
    %v461 = vmax.f32 %v397, 0.0
    %v462 = vmax.f32 %v398, 0.0
    %v463 = vmax.f32 %v399, 0.0
    %v464 = vmax.f32 %v400, 0.0
    %v465 = vmax.f32 %v401, 0.0
    %v466 = vmax.f32 %v402, 0.0
    %v467 = vmax.f32 %v403, 0.0
    %v468 = vmax.f32 %v404, 0.0
    %v469 = vmax.f32 %v405, 0.0
    %v470 = vmax.f32 %v406, 0.0
    %v471 = vmax.f32 %v407, 0.0
    %v472 = vmax.f32 %v408, 0.0
    %v473 = vmax.f32 %v409, 0.0
    %v474 = vmax.f32 %v410, 0.0
    %v475 = vmax.f32 %v411, 0.0
    %v476 = vmax.f32 %v412, 0.0
    %v477 = vmax.f32 %v413, 0.0
    %v478 = vmax.f32 %v414, 0.0
    %v479 = vmax.f32 %v415, 0.0
    %480 = vst [vmem:[#allocation2] sm:$0xff] %v416
    %481 = vst [vmem:[#allocation2 + $0x8] sm:$0xff] %v417
    %482 = vst [vmem:[#allocation2 + $0x10] sm:$0xff] %v418
    %483 = vst [vmem:[#allocation2 + $0x18] sm:$0xff] %v419
    %484 = vst [vmem:[#allocation2 + $0x20] sm:$0xff] %v420
    %485 = vst [vmem:[#allocation2 + $0x28] sm:$0xff] %v421
    %486 = vst [vmem:[#allocation2 + $0x30] sm:$0xff] %v422
    %487 = vst [vmem:[#allocation2 + $0x38] sm:$0xff] %v423
    %488 = vst [vmem:[#allocation2 + $0x40] sm:$0xff] %v424
    %489 = vst [vmem:[#allocation2 + $0x48] sm:$0xff] %v425
    %490 = vst [vmem:[#allocation2 + $0x50] sm:$0xff] %v426
    %491 = vst [vmem:[#allocation2 + $0x58] sm:$0xff] %v427
    %492 = vst [vmem:[#allocation2 + $0x60] sm:$0xff] %v428
    %493 = vst [vmem:[#allocation2 + $0x68] sm:$0xff] %v429
    %494 = vst [vmem:[#allocation2 + $0x70] sm:$0xff] %v430
    %495 = vst [vmem:[#allocation2 + $0x78] sm:$0xff] %v431
    %496 = vst [vmem:[#allocation2 + $0x80] sm:$0xff] %v432
    %497 = vst [vmem:[#allocation2 + $0x88] sm:$0xff] %v433
    %498 = vst [vmem:[#allocation2 + $0x90] sm:$0xff] %v434
    %499 = vst [vmem:[#allocation2 + $0x98] sm:$0xff] %v435
    %500 = vst [vmem:[#allocation2 + $0xa0] sm:$0xff] %v436
    %501 = vst [vmem:[#allocation2 + $0xa8] sm:$0xff] %v437
    %502 = vst [vmem:[#allocation2 + $0xb0] sm:$0xff] %v438
    %503 = vst [vmem:[#allocation2 + $0xb8] sm:$0xff] %v439
    %504 = vst [vmem:[#allocation2 + $0xc0] sm:$0xff] %v440
    %505 = vst [vmem:[#allocation2 + $0xc8] sm:$0xff] %v441
    %506 = vst [vmem:[#allocation2 + $0xd0] sm:$0xff] %v442
    %507 = vst [vmem:[#allocation2 + $0xd8] sm:$0xff] %v443
    %508 = vst [vmem:[#allocation2 + $0xe0] sm:$0xff] %v444
    %509 = vst [vmem:[#allocation2 + $0xe8] sm:$0xff] %v445
    %510 = vst [vmem:[#allocation2 + $0xf0] sm:$0xff] %v446
    %511 = vst [vmem:[#allocation2 + $0xf8] sm:$0xff] %v447
    %512 = vst [vmem:[#allocation2 + $0x100] sm:$0xff] %v448
    %513 = vst [vmem:[#allocation2 + $0x108] sm:$0xff] %v449
    %514 = vst [vmem:[#allocation2 + $0x110] sm:$0xff] %v450
    %515 = vst [vmem:[#allocation2 + $0x118] sm:$0xff] %v451
    %516 = vst [vmem:[#allocation2 + $0x120] sm:$0xff] %v452
    %517 = vst [vmem:[#allocation2 + $0x128] sm:$0xff] %v453
    %518 = vst [vmem:[#allocation2 + $0x130] sm:$0xff] %v454
    %519 = vst [vmem:[#allocation2 + $0x138] sm:$0xff] %v455
    %520 = vst [vmem:[#allocation2 + $0x140] sm:$0xff] %v456
    %521 = vst [vmem:[#allocation2 + $0x148] sm:$0xff] %v457
    %522 = vst [vmem:[#allocation2 + $0x150] sm:$0xff] %v458
    %523 = vst [vmem:[#allocation2 + $0x158] sm:$0xff] %v459
    %524 = vst [vmem:[#allocation2 + $0x160] sm:$0xff] %v460
    %525 = vst [vmem:[#allocation2 + $0x168] sm:$0xff] %v461
    %526 = vst [vmem:[#allocation2 + $0x170] sm:$0xff] %v462
    %527 = vst [vmem:[#allocation2 + $0x178] sm:$0xff] %v463
    %528 = vst [vmem:[#allocation2 + $0x180] sm:$0xff] %v464
    %529 = vst [vmem:[#allocation2 + $0x188] sm:$0xff] %v465
    %530 = vst [vmem:[#allocation2 + $0x190] sm:$0xff] %v466
    %531 = vst [vmem:[#allocation2 + $0x198] sm:$0xff] %v467
    %532 = vst [vmem:[#allocation2 + $0x1a0] sm:$0xff] %v468
    %533 = vst [vmem:[#allocation2 + $0x1a8] sm:$0xff] %v469
    %534 = vst [vmem:[#allocation2 + $0x1b0] sm:$0xff] %v470
    %535 = vst [vmem:[#allocation2 + $0x1b8] sm:$0xff] %v471
    %536 = vst [vmem:[#allocation2 + $0x1c0] sm:$0xff] %v472
    %537 = vst [vmem:[#allocation2 + $0x1c8] sm:$0xff] %v473
    %538 = vst [vmem:[#allocation2 + $0x1d0] sm:$0xff] %v474
    %539 = vst [vmem:[#allocation2 + $0x1d8] sm:$0xff] %v475
    %540 = vst [vmem:[#allocation2 + $0x1e0] sm:$0xff] %v476
    %541 = vst [vmem:[#allocation2 + $0x1e8] sm:$0xff] %v477
    %542 = vst [vmem:[#allocation2 + $0x1f0] sm:$0xff] %v478
    %543 = vst [vmem:[#allocation2 + $0x1f8] sm:$0xff] %v479
    // Predicated region
    $region18: #{bottleneck_forward.7} parent=1 // pred_check
      _
    $region19: #{bottleneck_forward.7} parent=1 // pred_check_branch
      %545 = sbr.rel (0) target = $region21
    $region20: #{bottleneck_forward.7} parent=1 // pred_region
      %s547 = ssub.s32 8192, 8192
      %548 = vsyncadd [#allocation3], %s547
      %s549 = sshll.u32 [#allocation2], 4
      %s550 = int_to_ptr.vmem [resolvable:$true] %s549
      %555 = dma.vmem_to_hbm [thread:$0]  %s550, 8192, %s4, [#allocation3], 128, 128, 8
    $region21: #{bottleneck_forward.7} parent=1 // pred_fallthru
      _
    // Predicated region
    $region22: #{bottleneck_forward.7} parent=1 // pred_check
      _
    $region23: #{bottleneck_forward.7} parent=1 // pred_check_branch
      %557 = sbr.rel (0) target = $region25
    $region24: #{bottleneck_forward.7} parent=1 // pred_region
      %558 = dma.done [#allocation3], 8192
    $region25: #{bottleneck_forward.7} parent=1 // pred_fallthru
      _
    %559 = vsyncpa [#allocation3], 1

// kernel: bottleneck_forward.6
$region0: #{bottleneck_forward.6}
  #allocation0 [shape = 'u32[]', space=smem, size = 0x4, offset = 0x4, fixed_abs, tag = 'smem constant byte address 0x4 - core index']
  #allocation1 [shape = 'u32[144,128]{1,0:T(1,128)}', space=vmem, size = 0x12000, scoped, tag = 'internal scratch']
  %s0 = inlined_call_operand.vmem [shape: bf16[512,32], index: 0, kind: input, shape index: {}]
  %s1 = inlined_call_operand.vmem [shape: bf16[32,128], index: 1, kind: input, shape index: {}]
  %s2 = inlined_call_operand.vmem [shape: f32[1,32], index: 2, kind: input, shape index: {}]
  %s3 = inlined_call_operand.vmem [shape: f32[1,32], index: 3, kind: input, shape index: {}]
  %s4 = inlined_call_operand.vmem [shape: bf16[512,128], index: 4, kind: output, shape index: {0}]
  %s5 = inlined_call_operand.vmem [shape: f32[1,2,128], index: 5, kind: output, shape index: {1}]
  %6 = xla_tuple %s4, %s5
  %s7 = sld [smem:[#allocation0]]
  $region34: #{bottleneck_forward.6} parent=0
    _
  %s9 = ssub.s32 1, %s7
  %s10 = scalar_select 0, %s9, %s7
  // Predicated region
  $region2: #{bottleneck_forward.6} parent=0 // pred_check
    _
  $region3: #{bottleneck_forward.6} parent=0 // pred_check_branch
    %12 = sbr.rel (0) target = $region5
  $region4: #{bottleneck_forward.6} parent=0 // pred_region
    _
  $region5: #{bottleneck_forward.6} parent=0 // pred_fallthru
    _
  // Predicated region
  $region6: #{bottleneck_forward.6} parent=0 // pred_check
    _
  $region7: #{bottleneck_forward.6} parent=0 // pred_check_branch
    %14 = sbr.rel (0) target = $region9
  $region8: #{bottleneck_forward.6} parent=0 // pred_region
    _
  $region9: #{bottleneck_forward.6} parent=0 // pred_fallthru
    _
  // Predicated region
  $region10: #{bottleneck_forward.6} parent=0 // pred_check
    _
  $region11: #{bottleneck_forward.6} parent=0 // pred_check_branch
    %16 = sbr.rel (0) target = $region13
  $region12: #{bottleneck_forward.6} parent=0 // pred_region
    _
  $region13: #{bottleneck_forward.6} parent=0 // pred_fallthru
    _
  // Predicated region
  $region14: #{bottleneck_forward.6} parent=0 // pred_check
    _
  $region15: #{bottleneck_forward.6} parent=0 // pred_check_branch
    %18 = sbr.rel (0) target = $region17
  $region16: #{bottleneck_forward.6} parent=0 // pred_region
    _
  $region17: #{bottleneck_forward.6} parent=0 // pred_fallthru
    _
  %v20 = vld [vmem:[%s0] sm:$0xf]
  %v21 = vld [vmem:[%s0 + $0x4] sm:$0xf]
  %v22 = vld [vmem:[%s0 + $0x8] sm:$0xf]
  %v23 = vld [vmem:[%s0 + $0xc] sm:$0xf]
  %v24 = vld [vmem:[%s0 + $0x10] sm:$0xf]
  %v25 = vld [vmem:[%s0 + $0x14] sm:$0xf]
  %v26 = vld [vmem:[%s0 + $0x18] sm:$0xf]
  %v27 = vld [vmem:[%s0 + $0x1c] sm:$0xf]
  %v28 = vld [vmem:[%s0 + $0x20] sm:$0xf]
  %v29 = vld [vmem:[%s0 + $0x24] sm:$0xf]
  %v30 = vld [vmem:[%s0 + $0x28] sm:$0xf]
  %v31 = vld [vmem:[%s0 + $0x2c] sm:$0xf]
  %v32 = vld [vmem:[%s0 + $0x30] sm:$0xf]
  %v33 = vld [vmem:[%s0 + $0x34] sm:$0xf]
  %v34 = vld [vmem:[%s0 + $0x38] sm:$0xf]
  %v35 = vld [vmem:[%s0 + $0x3c] sm:$0xf]
  %v36 = vld [vmem:[%s0 + $0x40] sm:$0xf]
  %v37 = vld [vmem:[%s0 + $0x44] sm:$0xf]
  %v38 = vld [vmem:[%s0 + $0x48] sm:$0xf]
  %v39 = vld [vmem:[%s0 + $0x4c] sm:$0xf]
  %v40 = vld [vmem:[%s0 + $0x50] sm:$0xf]
  %v41 = vld [vmem:[%s0 + $0x54] sm:$0xf]
  %v42 = vld [vmem:[%s0 + $0x58] sm:$0xf]
  %v43 = vld [vmem:[%s0 + $0x5c] sm:$0xf]
  %v44 = vld [vmem:[%s0 + $0x60] sm:$0xf]
  %v45 = vld [vmem:[%s0 + $0x64] sm:$0xf]
  %v46 = vld [vmem:[%s0 + $0x68] sm:$0xf]
  %v47 = vld [vmem:[%s0 + $0x6c] sm:$0xf]
  %v48 = vld [vmem:[%s0 + $0x70] sm:$0xf]
  %v49 = vld [vmem:[%s0 + $0x74] sm:$0xf]
  %v50 = vld [vmem:[%s0 + $0x78] sm:$0xf]
  %v51 = vld [vmem:[%s0 + $0x7c] sm:$0xf]
  %v52 = vld [vmem:[%s0 + $0x80] sm:$0xf]
  %v53 = vld [vmem:[%s0 + $0x84] sm:$0xf]
  %v54 = vld [vmem:[%s0 + $0x88] sm:$0xf]
  %v55 = vld [vmem:[%s0 + $0x8c] sm:$0xf]
  %v56 = vld [vmem:[%s0 + $0x90] sm:$0xf]
  %v57 = vld [vmem:[%s0 + $0x94] sm:$0xf]
  %v58 = vld [vmem:[%s0 + $0x98] sm:$0xf]
  %v59 = vld [vmem:[%s0 + $0x9c] sm:$0xf]
  %v60 = vld [vmem:[%s0 + $0xa0] sm:$0xf]
  %v61 = vld [vmem:[%s0 + $0xa4] sm:$0xf]
  %v62 = vld [vmem:[%s0 + $0xa8] sm:$0xf]
  %v63 = vld [vmem:[%s0 + $0xac] sm:$0xf]
  %v64 = vld [vmem:[%s0 + $0xb0] sm:$0xf]
  %v65 = vld [vmem:[%s0 + $0xb4] sm:$0xf]
  %v66 = vld [vmem:[%s0 + $0xb8] sm:$0xf]
  %v67 = vld [vmem:[%s0 + $0xbc] sm:$0xf]
  %v68 = vld [vmem:[%s0 + $0xc0] sm:$0xf]
  %v69 = vld [vmem:[%s0 + $0xc4] sm:$0xf]
  %v70 = vld [vmem:[%s0 + $0xc8] sm:$0xf]
  %v71 = vld [vmem:[%s0 + $0xcc] sm:$0xf]
  %v72 = vld [vmem:[%s0 + $0xd0] sm:$0xf]
  %v73 = vld [vmem:[%s0 + $0xd4] sm:$0xf]
  %v74 = vld [vmem:[%s0 + $0xd8] sm:$0xf]
  %v75 = vld [vmem:[%s0 + $0xdc] sm:$0xf]
  %v76 = vld [vmem:[%s0 + $0xe0] sm:$0xf]
  %v77 = vld [vmem:[%s0 + $0xe4] sm:$0xf]
  %v78 = vld [vmem:[%s0 + $0xe8] sm:$0xf]
  %v79 = vld [vmem:[%s0 + $0xec] sm:$0xf]
  %v80 = vld [vmem:[%s0 + $0xf0] sm:$0xf]
  %v81 = vld [vmem:[%s0 + $0xf4] sm:$0xf]
  %v82 = vld [vmem:[%s0 + $0xf8] sm:$0xf]
  %v83 = vld [vmem:[%s0 + $0xfc] sm:$0xf]
  %v84 = vunpack.c.l.bf16 %v20
  %v85 = vunpack.c.l.bf16 %v21
  %v86 = vunpack.c.l.bf16 %v22
  %v87 = vunpack.c.l.bf16 %v23
  %v88 = vunpack.c.l.bf16 %v24
  %v89 = vunpack.c.l.bf16 %v25
  %v90 = vunpack.c.l.bf16 %v26
  %v91 = vunpack.c.l.bf16 %v27
  %v92 = vunpack.c.l.bf16 %v28
  %v93 = vunpack.c.l.bf16 %v29
  %v94 = vunpack.c.l.bf16 %v30
  %v95 = vunpack.c.l.bf16 %v31
  %v96 = vunpack.c.l.bf16 %v32
  %v97 = vunpack.c.l.bf16 %v33
  %v98 = vunpack.c.l.bf16 %v34
  %v99 = vunpack.c.l.bf16 %v35
  %v100 = vunpack.c.l.bf16 %v36
  %v101 = vunpack.c.l.bf16 %v37
  %v102 = vunpack.c.l.bf16 %v38
  %v103 = vunpack.c.l.bf16 %v39
  %v104 = vunpack.c.l.bf16 %v40
  %v105 = vunpack.c.l.bf16 %v41
  %v106 = vunpack.c.l.bf16 %v42
  %v107 = vunpack.c.l.bf16 %v43
  %v108 = vunpack.c.l.bf16 %v44
  %v109 = vunpack.c.l.bf16 %v45
  %v110 = vunpack.c.l.bf16 %v46
  %v111 = vunpack.c.l.bf16 %v47
  %v112 = vunpack.c.l.bf16 %v48
  %v113 = vunpack.c.l.bf16 %v49
  %v114 = vunpack.c.l.bf16 %v50
  %v115 = vunpack.c.l.bf16 %v51
  %v116 = vunpack.c.l.bf16 %v52
  %v117 = vunpack.c.l.bf16 %v53
  %v118 = vunpack.c.l.bf16 %v54
  %v119 = vunpack.c.l.bf16 %v55
  %v120 = vunpack.c.l.bf16 %v56
  %v121 = vunpack.c.l.bf16 %v57
  %v122 = vunpack.c.l.bf16 %v58
  %v123 = vunpack.c.l.bf16 %v59
  %v124 = vunpack.c.l.bf16 %v60
  %v125 = vunpack.c.l.bf16 %v61
  %v126 = vunpack.c.l.bf16 %v62
  %v127 = vunpack.c.l.bf16 %v63
  %v128 = vunpack.c.l.bf16 %v64
  %v129 = vunpack.c.l.bf16 %v65
  %v130 = vunpack.c.l.bf16 %v66
  %v131 = vunpack.c.l.bf16 %v67
  %v132 = vunpack.c.l.bf16 %v68
  %v133 = vunpack.c.l.bf16 %v69
  %v134 = vunpack.c.l.bf16 %v70
  %v135 = vunpack.c.l.bf16 %v71
  %v136 = vunpack.c.l.bf16 %v72
  %v137 = vunpack.c.l.bf16 %v73
  %v138 = vunpack.c.l.bf16 %v74
  %v139 = vunpack.c.l.bf16 %v75
  %v140 = vunpack.c.l.bf16 %v76
  %v141 = vunpack.c.l.bf16 %v77
  %v142 = vunpack.c.l.bf16 %v78
  %v143 = vunpack.c.l.bf16 %v79
  %v144 = vunpack.c.l.bf16 %v80
  %v145 = vunpack.c.l.bf16 %v81
  %v146 = vunpack.c.l.bf16 %v82
  %v147 = vunpack.c.l.bf16 %v83
  %v148 = vld [vmem:[%s2] sm:$0x1]
  %v150 = vlaneseq
  %v151 = vshrl.u32 %v150, 7
  %v152 = vsub.s32 0, %v151
  %v153 = vrot.slane %v148, %v152
  %v155 = vmul.f32 %v84, %v153
  %v156 = vmul.f32 %v85, %v153
  %v157 = vmul.f32 %v86, %v153
  %v158 = vmul.f32 %v87, %v153
  %v159 = vmul.f32 %v88, %v153
  %v160 = vmul.f32 %v89, %v153
  %v161 = vmul.f32 %v90, %v153
  %v162 = vmul.f32 %v91, %v153
  %v163 = vmul.f32 %v92, %v153
  %v164 = vmul.f32 %v93, %v153
  %v165 = vmul.f32 %v94, %v153
  %v166 = vmul.f32 %v95, %v153
  %v167 = vmul.f32 %v96, %v153
  %v168 = vmul.f32 %v97, %v153
  %v169 = vmul.f32 %v98, %v153
  %v170 = vmul.f32 %v99, %v153
  %v171 = vmul.f32 %v100, %v153
  %v172 = vmul.f32 %v101, %v153
  %v173 = vmul.f32 %v102, %v153
  %v174 = vmul.f32 %v103, %v153
  %v175 = vmul.f32 %v104, %v153
  %v176 = vmul.f32 %v105, %v153
  %v177 = vmul.f32 %v106, %v153
  %v178 = vmul.f32 %v107, %v153
  %v179 = vmul.f32 %v108, %v153
  %v180 = vmul.f32 %v109, %v153
  %v181 = vmul.f32 %v110, %v153
  %v182 = vmul.f32 %v111, %v153
  %v183 = vmul.f32 %v112, %v153
  %v184 = vmul.f32 %v113, %v153
  %v185 = vmul.f32 %v114, %v153
  %v186 = vmul.f32 %v115, %v153
  %v187 = vmul.f32 %v116, %v153
  %v188 = vmul.f32 %v117, %v153
  %v189 = vmul.f32 %v118, %v153
  %v190 = vmul.f32 %v119, %v153
  %v191 = vmul.f32 %v120, %v153
  %v192 = vmul.f32 %v121, %v153
  %v193 = vmul.f32 %v122, %v153
  %v194 = vmul.f32 %v123, %v153
  %v195 = vmul.f32 %v124, %v153
  %v196 = vmul.f32 %v125, %v153
  %v197 = vmul.f32 %v126, %v153
  %v198 = vmul.f32 %v127, %v153
  %v199 = vmul.f32 %v128, %v153
  %v200 = vmul.f32 %v129, %v153
  %v201 = vmul.f32 %v130, %v153
  %v202 = vmul.f32 %v131, %v153
  %v203 = vmul.f32 %v132, %v153
  %v204 = vmul.f32 %v133, %v153
  %v205 = vmul.f32 %v134, %v153
  %v206 = vmul.f32 %v135, %v153
  %v207 = vmul.f32 %v136, %v153
  %v208 = vmul.f32 %v137, %v153
  %v209 = vmul.f32 %v138, %v153
  %v210 = vmul.f32 %v139, %v153
  %v211 = vmul.f32 %v140, %v153
  %v212 = vmul.f32 %v141, %v153
  %v213 = vmul.f32 %v142, %v153
  %v214 = vmul.f32 %v143, %v153
  %v215 = vmul.f32 %v144, %v153
  %v216 = vmul.f32 %v145, %v153
  %v217 = vmul.f32 %v146, %v153
  %v218 = vmul.f32 %v147, %v153
  %v219 = vld [vmem:[%s3] sm:$0x1]
  %v221 = vlaneseq
  %v222 = vshrl.u32 %v221, 7
  %v223 = vsub.s32 0, %v222
  %v224 = vrot.slane %v219, %v223
  %v226 = vadd.f32 %v155, %v224
  %v227 = vadd.f32 %v156, %v224
  %v228 = vadd.f32 %v157, %v224
  %v229 = vadd.f32 %v158, %v224
  %v230 = vadd.f32 %v159, %v224
  %v231 = vadd.f32 %v160, %v224
  %v232 = vadd.f32 %v161, %v224
  %v233 = vadd.f32 %v162, %v224
  %v234 = vadd.f32 %v163, %v224
  %v235 = vadd.f32 %v164, %v224
  %v236 = vadd.f32 %v165, %v224
  %v237 = vadd.f32 %v166, %v224
  %v238 = vadd.f32 %v167, %v224
  %v239 = vadd.f32 %v168, %v224
  %v240 = vadd.f32 %v169, %v224
  %v241 = vadd.f32 %v170, %v224
  %v242 = vadd.f32 %v171, %v224
  %v243 = vadd.f32 %v172, %v224
  %v244 = vadd.f32 %v173, %v224
  %v245 = vadd.f32 %v174, %v224
  %v246 = vadd.f32 %v175, %v224
  %v247 = vadd.f32 %v176, %v224
  %v248 = vadd.f32 %v177, %v224
  %v249 = vadd.f32 %v178, %v224
  %v250 = vadd.f32 %v179, %v224
  %v251 = vadd.f32 %v180, %v224
  %v252 = vadd.f32 %v181, %v224
  %v253 = vadd.f32 %v182, %v224
  %v254 = vadd.f32 %v183, %v224
  %v255 = vadd.f32 %v184, %v224
  %v256 = vadd.f32 %v185, %v224
  %v257 = vadd.f32 %v186, %v224
  %v258 = vadd.f32 %v187, %v224
  %v259 = vadd.f32 %v188, %v224
  %v260 = vadd.f32 %v189, %v224
  %v261 = vadd.f32 %v190, %v224
  %v262 = vadd.f32 %v191, %v224
  %v263 = vadd.f32 %v192, %v224
  %v264 = vadd.f32 %v193, %v224
  %v265 = vadd.f32 %v194, %v224
  %v266 = vadd.f32 %v195, %v224
  %v267 = vadd.f32 %v196, %v224
  %v268 = vadd.f32 %v197, %v224
  %v269 = vadd.f32 %v198, %v224
  %v270 = vadd.f32 %v199, %v224
  %v271 = vadd.f32 %v200, %v224
  %v272 = vadd.f32 %v201, %v224
  %v273 = vadd.f32 %v202, %v224
  %v274 = vadd.f32 %v203, %v224
  %v275 = vadd.f32 %v204, %v224
  %v276 = vadd.f32 %v205, %v224
  %v277 = vadd.f32 %v206, %v224
  %v278 = vadd.f32 %v207, %v224
  %v279 = vadd.f32 %v208, %v224
  %v280 = vadd.f32 %v209, %v224
  %v281 = vadd.f32 %v210, %v224
  %v282 = vadd.f32 %v211, %v224
  %v283 = vadd.f32 %v212, %v224
  %v284 = vadd.f32 %v213, %v224
  %v285 = vadd.f32 %v214, %v224
  %v286 = vadd.f32 %v215, %v224
  %v287 = vadd.f32 %v216, %v224
  %v288 = vadd.f32 %v217, %v224
  %v289 = vadd.f32 %v218, %v224
  %v290 = vmax.f32 %v226, 0.0
  %v291 = vmax.f32 %v227, 0.0
  %v292 = vmax.f32 %v228, 0.0
  %v293 = vmax.f32 %v229, 0.0
  %v294 = vmax.f32 %v230, 0.0
  %v295 = vmax.f32 %v231, 0.0
  %v296 = vmax.f32 %v232, 0.0
  %v297 = vmax.f32 %v233, 0.0
  %v298 = vmax.f32 %v234, 0.0
  %v299 = vmax.f32 %v235, 0.0
  %v300 = vmax.f32 %v236, 0.0
  %v301 = vmax.f32 %v237, 0.0
  %v302 = vmax.f32 %v238, 0.0
  %v303 = vmax.f32 %v239, 0.0
  %v304 = vmax.f32 %v240, 0.0
  %v305 = vmax.f32 %v241, 0.0
  %v306 = vmax.f32 %v242, 0.0
  %v307 = vmax.f32 %v243, 0.0
  %v308 = vmax.f32 %v244, 0.0
  %v309 = vmax.f32 %v245, 0.0
  %v310 = vmax.f32 %v246, 0.0
  %v311 = vmax.f32 %v247, 0.0
  %v312 = vmax.f32 %v248, 0.0
  %v313 = vmax.f32 %v249, 0.0
  %v314 = vmax.f32 %v250, 0.0
  %v315 = vmax.f32 %v251, 0.0
  %v316 = vmax.f32 %v252, 0.0
  %v317 = vmax.f32 %v253, 0.0
  %v318 = vmax.f32 %v254, 0.0
  %v319 = vmax.f32 %v255, 0.0
  %v320 = vmax.f32 %v256, 0.0
  %v321 = vmax.f32 %v257, 0.0
  %v322 = vmax.f32 %v258, 0.0
  %v323 = vmax.f32 %v259, 0.0
  %v324 = vmax.f32 %v260, 0.0
  %v325 = vmax.f32 %v261, 0.0
  %v326 = vmax.f32 %v262, 0.0
  %v327 = vmax.f32 %v263, 0.0
  %v328 = vmax.f32 %v264, 0.0
  %v329 = vmax.f32 %v265, 0.0
  %v330 = vmax.f32 %v266, 0.0
  %v331 = vmax.f32 %v267, 0.0
  %v332 = vmax.f32 %v268, 0.0
  %v333 = vmax.f32 %v269, 0.0
  %v334 = vmax.f32 %v270, 0.0
  %v335 = vmax.f32 %v271, 0.0
  %v336 = vmax.f32 %v272, 0.0
  %v337 = vmax.f32 %v273, 0.0
  %v338 = vmax.f32 %v274, 0.0
  %v339 = vmax.f32 %v275, 0.0
  %v340 = vmax.f32 %v276, 0.0
  %v341 = vmax.f32 %v277, 0.0
  %v342 = vmax.f32 %v278, 0.0
  %v343 = vmax.f32 %v279, 0.0
  %v344 = vmax.f32 %v280, 0.0
  %v345 = vmax.f32 %v281, 0.0
  %v346 = vmax.f32 %v282, 0.0
  %v347 = vmax.f32 %v283, 0.0
  %v348 = vmax.f32 %v284, 0.0
  %v349 = vmax.f32 %v285, 0.0
  %v350 = vmax.f32 %v286, 0.0
  %v351 = vmax.f32 %v287, 0.0
  %v352 = vmax.f32 %v288, 0.0
  %v353 = vmax.f32 %v289, 0.0
  %v354 = vpack.c.bf16 %v291, %v290
  %v355 = vpack.c.bf16 %v293, %v292
  %v356 = vpack.c.bf16 %v295, %v294
  %v357 = vpack.c.bf16 %v297, %v296
  %v358 = vpack.c.bf16 %v299, %v298
  %v359 = vpack.c.bf16 %v301, %v300
  %v360 = vpack.c.bf16 %v303, %v302
  %v361 = vpack.c.bf16 %v305, %v304
  %v362 = vpack.c.bf16 %v307, %v306
  %v363 = vpack.c.bf16 %v309, %v308
  %v364 = vpack.c.bf16 %v311, %v310
  %v365 = vpack.c.bf16 %v313, %v312
  %v366 = vpack.c.bf16 %v315, %v314
  %v367 = vpack.c.bf16 %v317, %v316
  %v368 = vpack.c.bf16 %v319, %v318
  %v369 = vpack.c.bf16 %v321, %v320
  %v370 = vpack.c.bf16 %v323, %v322
  %v371 = vpack.c.bf16 %v325, %v324
  %v372 = vpack.c.bf16 %v327, %v326
  %v373 = vpack.c.bf16 %v329, %v328
  %v374 = vpack.c.bf16 %v331, %v330
  %v375 = vpack.c.bf16 %v333, %v332
  %v376 = vpack.c.bf16 %v335, %v334
  %v377 = vpack.c.bf16 %v337, %v336
  %v378 = vpack.c.bf16 %v339, %v338
  %v379 = vpack.c.bf16 %v341, %v340
  %v380 = vpack.c.bf16 %v343, %v342
  %v381 = vpack.c.bf16 %v345, %v344
  %v382 = vpack.c.bf16 %v347, %v346
  %v383 = vpack.c.bf16 %v349, %v348
  %v384 = vpack.c.bf16 %v351, %v350
  %v385 = vpack.c.bf16 %v353, %v352
  %v386 = vld [vmem:[%s1] sm:$0xf]
  %v387 = vld [vmem:[%s1 + $0x4] sm:$0xf]
  %v388 = vld [vmem:[%s1 + $0x8] sm:$0xf]
  %v389 = vld [vmem:[%s1 + $0xc] sm:$0xf]
  %v394 = vunpack.c.l.b16 %v386
  %v395 = vunpack.c.l.b16 %v387
  %v396 = vunpack.c.l.b16 %v388
  %v397 = vunpack.c.l.b16 %v389
  %v398 = vpack.c.b16 %v395, %v394
  %v399 = vpack.c.b16 %v397, %v396
  %vm402 = vcmask 261120
  %v404 = vsel %vm402, %v354, 0
  %v407 = vsel %vm402, %v355, 0
  %v410 = vsel %vm402, %v356, 0
  %v413 = vsel %vm402, %v357, 0
  %v416 = vsel %vm402, %v358, 0
  %v419 = vsel %vm402, %v359, 0
  %v422 = vsel %vm402, %v360, 0
  %v425 = vsel %vm402, %v361, 0
  %v428 = vsel %vm402, %v362, 0
  %v431 = vsel %vm402, %v363, 0
  %v434 = vsel %vm402, %v364, 0
  %v437 = vsel %vm402, %v365, 0
  %v440 = vsel %vm402, %v366, 0
  %v443 = vsel %vm402, %v367, 0
  %v446 = vsel %vm402, %v368, 0
  %v449 = vsel %vm402, %v369, 0
  %v452 = vsel %vm402, %v370, 0
  %v455 = vsel %vm402, %v371, 0
  %v458 = vsel %vm402, %v372, 0
  %v461 = vsel %vm402, %v373, 0
  %v464 = vsel %vm402, %v374, 0
  %v467 = vsel %vm402, %v375, 0
  %v470 = vsel %vm402, %v376, 0
  %v473 = vsel %vm402, %v377, 0
  %v476 = vsel %vm402, %v378, 0
  %v479 = vsel %vm402, %v379, 0
  %v482 = vsel %vm402, %v380, 0
  %v485 = vsel %vm402, %v381, 0
  %v488 = vsel %vm402, %v382, 0
  %v491 = vsel %vm402, %v383, 0
  %v494 = vsel %vm402, %v384, 0
  %v497 = vsel %vm402, %v385, 0
  %499 = vmatprep.subr.bf16.mxu0 0
  %500 = vmatpush1.bf16.msra.mxu0 0
  %501 = vmatprep.subr.bf16.mxu0 0
  %502 = vmatpush1.bf16.msra.mxu0 0
  %503 = vmatprep.subr.bf16.mxu0 0
  %504 = vmatpush1.bf16.msra.mxu0 0
  %505 = vmatprep.subr.bf16.mxu0 0
  %506 = vmatpush1.bf16.msra.mxu0 0
  %507 = vmatprep.subr.bf16.mxu0 0
  %508 = vmatpush1.bf16.msra.mxu0 0
  %509 = vmatprep.subr.bf16.mxu0 0
  %510 = vmatpush1.bf16.msra.mxu0 0
  %511 = vmatprep.subr.bf16.mxu0 0
  %512 = vmatpush1.bf16.msra.mxu0 %v399
  %513 = vmatprep.subr.bf16.mxu0 0
  %514 = vmatpush1.bf16.msra.mxu0 %v398
  %515 = vmatprep.subr.bf16.mxu0 0
  %516 = vmatpush2.bf16.msra.mxu0 0
  %517 = vmatprep.subr.bf16.mxu0 0
  %518 = vmatpush2.bf16.msra.mxu0 0
  %519 = vmatprep.subr.bf16.mxu0 0
  %520 = vmatpush2.bf16.msra.mxu0 0
  %521 = vmatprep.subr.bf16.mxu0 0
  %522 = vmatpush2.bf16.msra.mxu0 0
  %523 = vmatprep.subr.bf16.mxu0 0
  %524 = vmatpush2.bf16.msra.mxu0 0
  %525 = vmatprep.subr.bf16.mxu0 0
  %526 = vmatpush2.bf16.msra.mxu0 0
  %527 = vmatprep.subr.bf16.mxu0 0
  %528 = vmatpush2.bf16.msra.mxu0 0
  %529 = vmatprep.subr.bf16.mxu0 0
  %530 = vmatpush2.bf16.msra.mxu0 0
  %531 = vmatprep.mubr.bf16.mxu0 0
  %532 = vmatmul.mubr.bf16.gmra.mxu0 %v404
  %v533 = vpop.f32.mrf.mxu0
  %v534 = vadd.f32 0.0, %v533
  %v535 = vpop.f32.mrf.mxu0
  %v536 = vpop.f32.mrf.mxu0
  %v537 = vadd.f32 0.0, %v536
  %v538 = vpop.f32.mrf.mxu0
  %539 = vmatprep.mubr.bf16.mxu0 0
  %540 = vmatmul.mubr.bf16.gmra.mxu0 %v407
  %v541 = vpop.f32.mrf.mxu0
  %v542 = vadd.f32 0.0, %v541
  %v543 = vpop.f32.mrf.mxu0
  %v544 = vpop.f32.mrf.mxu0
  %v545 = vadd.f32 0.0, %v544
  %v546 = vpop.f32.mrf.mxu0
  %547 = vmatprep.mubr.bf16.mxu0 0
  %548 = vmatmul.mubr.bf16.gmra.mxu0 %v410
  %v549 = vpop.f32.mrf.mxu0
  %v550 = vadd.f32 0.0, %v549
  %v551 = vpop.f32.mrf.mxu0
  %v552 = vpop.f32.mrf.mxu0
  %v553 = vadd.f32 0.0, %v552
  %v554 = vpop.f32.mrf.mxu0
  %555 = vmatprep.mubr.bf16.mxu0 0
  %556 = vmatmul.mubr.bf16.gmra.mxu0 %v413
  %v557 = vpop.f32.mrf.mxu0
  %v558 = vadd.f32 0.0, %v557
  %v559 = vpop.f32.mrf.mxu0
  %v560 = vpop.f32.mrf.mxu0
  %v561 = vadd.f32 0.0, %v560
  %v562 = vpop.f32.mrf.mxu0
  %563 = vmatprep.mubr.bf16.mxu0 0
  %564 = vmatmul.mubr.bf16.gmra.mxu0 %v416
  %v565 = vpop.f32.mrf.mxu0
  %v566 = vadd.f32 0.0, %v565
  %v567 = vpop.f32.mrf.mxu0
  %v568 = vpop.f32.mrf.mxu0
  %v569 = vadd.f32 0.0, %v568
  %v570 = vpop.f32.mrf.mxu0
  %571 = vmatprep.mubr.bf16.mxu0 0
  %572 = vmatmul.mubr.bf16.gmra.mxu0 %v419
  %v573 = vpop.f32.mrf.mxu0
  %v574 = vadd.f32 0.0, %v573
  %v575 = vpop.f32.mrf.mxu0
  %v576 = vpop.f32.mrf.mxu0
  %v577 = vadd.f32 0.0, %v576
  %v578 = vpop.f32.mrf.mxu0
  %579 = vmatprep.mubr.bf16.mxu0 0
  %580 = vmatmul.mubr.bf16.gmra.mxu0 %v422
  %v581 = vpop.f32.mrf.mxu0
  %v582 = vadd.f32 0.0, %v581
  %v583 = vpop.f32.mrf.mxu0
  %v584 = vpop.f32.mrf.mxu0
  %v585 = vadd.f32 0.0, %v584
  %v586 = vpop.f32.mrf.mxu0
  %587 = vmatprep.mubr.bf16.mxu0 0
  %588 = vmatmul.mubr.bf16.gmra.mxu0 %v425
  %v589 = vpop.f32.mrf.mxu0
  %v590 = vadd.f32 0.0, %v589
  %v591 = vpop.f32.mrf.mxu0
  %v592 = vpop.f32.mrf.mxu0
  %v593 = vadd.f32 0.0, %v592
  %v594 = vpop.f32.mrf.mxu0
  %595 = vmatprep.mubr.bf16.mxu0 0
  %596 = vmatmul.mubr.bf16.gmra.mxu0 %v428
  %v597 = vpop.f32.mrf.mxu0
  %v598 = vadd.f32 0.0, %v597
  %v599 = vpop.f32.mrf.mxu0
  %v600 = vpop.f32.mrf.mxu0
  %v601 = vadd.f32 0.0, %v600
  %v602 = vpop.f32.mrf.mxu0
  %603 = vmatprep.mubr.bf16.mxu0 0
  %604 = vmatmul.mubr.bf16.gmra.mxu0 %v431
  %v605 = vpop.f32.mrf.mxu0
  %v606 = vadd.f32 0.0, %v605
  %v607 = vpop.f32.mrf.mxu0
  %v608 = vpop.f32.mrf.mxu0
  %v609 = vadd.f32 0.0, %v608
  %v610 = vpop.f32.mrf.mxu0
  %611 = vmatprep.mubr.bf16.mxu0 0
  %612 = vmatmul.mubr.bf16.gmra.mxu0 %v434
  %v613 = vpop.f32.mrf.mxu0
  %v614 = vadd.f32 0.0, %v613
  %v615 = vpop.f32.mrf.mxu0
  %v616 = vpop.f32.mrf.mxu0
  %v617 = vadd.f32 0.0, %v616
  %v618 = vpop.f32.mrf.mxu0
  %619 = vmatprep.mubr.bf16.mxu0 0
  %620 = vmatmul.mubr.bf16.gmra.mxu0 %v437
  %v621 = vpop.f32.mrf.mxu0
  %v622 = vadd.f32 0.0, %v621
  %v623 = vpop.f32.mrf.mxu0
  %v624 = vpop.f32.mrf.mxu0
  %v625 = vadd.f32 0.0, %v624
  %v626 = vpop.f32.mrf.mxu0
  %627 = vmatprep.mubr.bf16.mxu0 0
  %628 = vmatmul.mubr.bf16.gmra.mxu0 %v440
  %v629 = vpop.f32.mrf.mxu0
  %v630 = vadd.f32 0.0, %v629
  %v631 = vpop.f32.mrf.mxu0
  %v632 = vpop.f32.mrf.mxu0
  %v633 = vadd.f32 0.0, %v632
  %v634 = vpop.f32.mrf.mxu0
  %635 = vmatprep.mubr.bf16.mxu0 0
  %636 = vmatmul.mubr.bf16.gmra.mxu0 %v443
  %v637 = vpop.f32.mrf.mxu0
  %v638 = vadd.f32 0.0, %v637
  %v639 = vpop.f32.mrf.mxu0
  %v640 = vpop.f32.mrf.mxu0
  %v641 = vadd.f32 0.0, %v640
  %v642 = vpop.f32.mrf.mxu0
  %643 = vmatprep.mubr.bf16.mxu0 0
  %644 = vmatmul.mubr.bf16.gmra.mxu0 %v446
  %v645 = vpop.f32.mrf.mxu0
  %v646 = vadd.f32 0.0, %v645
  %v647 = vpop.f32.mrf.mxu0
  %v648 = vpop.f32.mrf.mxu0
  %v649 = vadd.f32 0.0, %v648
  %v650 = vpop.f32.mrf.mxu0
  %651 = vmatprep.mubr.bf16.mxu0 0
  %652 = vmatmul.mubr.bf16.gmra.mxu0 %v449
  %v653 = vpop.f32.mrf.mxu0
  %v654 = vadd.f32 0.0, %v653
  %v655 = vpop.f32.mrf.mxu0
  %v656 = vpop.f32.mrf.mxu0
  %v657 = vadd.f32 0.0, %v656
  %v658 = vpop.f32.mrf.mxu0
  %659 = vmatprep.mubr.bf16.mxu0 0
  %660 = vmatmul.mubr.bf16.gmra.mxu0 %v452
  %v661 = vpop.f32.mrf.mxu0
  %v662 = vadd.f32 0.0, %v661
  %v663 = vpop.f32.mrf.mxu0
  %v664 = vpop.f32.mrf.mxu0
  %v665 = vadd.f32 0.0, %v664
  %v666 = vpop.f32.mrf.mxu0
  %667 = vmatprep.mubr.bf16.mxu0 0
  %668 = vmatmul.mubr.bf16.gmra.mxu0 %v455
  %v669 = vpop.f32.mrf.mxu0
  %v670 = vadd.f32 0.0, %v669
  %v671 = vpop.f32.mrf.mxu0
  %v672 = vpop.f32.mrf.mxu0
  %v673 = vadd.f32 0.0, %v672
  %v674 = vpop.f32.mrf.mxu0
  %675 = vmatprep.mubr.bf16.mxu0 0
  %676 = vmatmul.mubr.bf16.gmra.mxu0 %v458
  %v677 = vpop.f32.mrf.mxu0
  %v678 = vadd.f32 0.0, %v677
  %v679 = vpop.f32.mrf.mxu0
  %v680 = vpop.f32.mrf.mxu0
  %v681 = vadd.f32 0.0, %v680
  %v682 = vpop.f32.mrf.mxu0
  %683 = vmatprep.mubr.bf16.mxu0 0
  %684 = vmatmul.mubr.bf16.gmra.mxu0 %v461
  %v685 = vpop.f32.mrf.mxu0
  %v686 = vadd.f32 0.0, %v685
  %v687 = vpop.f32.mrf.mxu0
  %v688 = vpop.f32.mrf.mxu0
  %v689 = vadd.f32 0.0, %v688
  %v690 = vpop.f32.mrf.mxu0
  %691 = vmatprep.mubr.bf16.mxu0 0
  %692 = vmatmul.mubr.bf16.gmra.mxu0 %v464
  %v693 = vpop.f32.mrf.mxu0
  %v694 = vadd.f32 0.0, %v693
  %v695 = vpop.f32.mrf.mxu0
  %v696 = vpop.f32.mrf.mxu0
  %v697 = vadd.f32 0.0, %v696
  %v698 = vpop.f32.mrf.mxu0
  %699 = vmatprep.mubr.bf16.mxu0 0
  %700 = vmatmul.mubr.bf16.gmra.mxu0 %v467
  %v701 = vpop.f32.mrf.mxu0
  %v702 = vadd.f32 0.0, %v701
  %v703 = vpop.f32.mrf.mxu0
  %v704 = vpop.f32.mrf.mxu0
  %v705 = vadd.f32 0.0, %v704
  %v706 = vpop.f32.mrf.mxu0
  %707 = vmatprep.mubr.bf16.mxu0 0
  %708 = vmatmul.mubr.bf16.gmra.mxu0 %v470
  %v709 = vpop.f32.mrf.mxu0
  %v710 = vadd.f32 0.0, %v709
  %v711 = vpop.f32.mrf.mxu0
  %v712 = vpop.f32.mrf.mxu0
  %v713 = vadd.f32 0.0, %v712
  %v714 = vpop.f32.mrf.mxu0
  %715 = vmatprep.mubr.bf16.mxu0 0
  %716 = vmatmul.mubr.bf16.gmra.mxu0 %v473
  %v717 = vpop.f32.mrf.mxu0
  %v718 = vadd.f32 0.0, %v717
  %v719 = vpop.f32.mrf.mxu0
  %v720 = vpop.f32.mrf.mxu0
  %v721 = vadd.f32 0.0, %v720
  %v722 = vpop.f32.mrf.mxu0
  %723 = vmatprep.mubr.bf16.mxu0 0
  %724 = vmatmul.mubr.bf16.gmra.mxu0 %v476
  %v725 = vpop.f32.mrf.mxu0
  %v726 = vadd.f32 0.0, %v725
  %v727 = vpop.f32.mrf.mxu0
  %v728 = vpop.f32.mrf.mxu0
  %v729 = vadd.f32 0.0, %v728
  %v730 = vpop.f32.mrf.mxu0
  %731 = vmatprep.mubr.bf16.mxu0 0
  %732 = vmatmul.mubr.bf16.gmra.mxu0 %v479
  %v733 = vpop.f32.mrf.mxu0
  %v734 = vadd.f32 0.0, %v733
  %v735 = vpop.f32.mrf.mxu0
  %v736 = vpop.f32.mrf.mxu0
  %v737 = vadd.f32 0.0, %v736
  %v738 = vpop.f32.mrf.mxu0
  %739 = vmatprep.mubr.bf16.mxu0 0
  %740 = vmatmul.mubr.bf16.gmra.mxu0 %v482
  %v741 = vpop.f32.mrf.mxu0
  %v742 = vadd.f32 0.0, %v741
  %v743 = vpop.f32.mrf.mxu0
  %v744 = vpop.f32.mrf.mxu0
  %v745 = vadd.f32 0.0, %v744
  %v746 = vpop.f32.mrf.mxu0
  %747 = vmatprep.mubr.bf16.mxu0 0
  %748 = vmatmul.mubr.bf16.gmra.mxu0 %v485
  %v749 = vpop.f32.mrf.mxu0
  %v750 = vadd.f32 0.0, %v749
  %v751 = vpop.f32.mrf.mxu0
  %v752 = vpop.f32.mrf.mxu0
  %v753 = vadd.f32 0.0, %v752
  %v754 = vpop.f32.mrf.mxu0
  %755 = vmatprep.mubr.bf16.mxu0 0
  %756 = vmatmul.mubr.bf16.gmra.mxu0 %v488
  %v757 = vpop.f32.mrf.mxu0
  %v758 = vadd.f32 0.0, %v757
  %v759 = vpop.f32.mrf.mxu0
  %v760 = vpop.f32.mrf.mxu0
  %v761 = vadd.f32 0.0, %v760
  %v762 = vpop.f32.mrf.mxu0
  %763 = vmatprep.mubr.bf16.mxu0 0
  %764 = vmatmul.mubr.bf16.gmra.mxu0 %v491
  %v765 = vpop.f32.mrf.mxu0
  %v766 = vadd.f32 0.0, %v765
  %v767 = vpop.f32.mrf.mxu0
  %v768 = vpop.f32.mrf.mxu0
  %v769 = vadd.f32 0.0, %v768
  %v770 = vpop.f32.mrf.mxu0
  %771 = vmatprep.mubr.bf16.mxu0 0
  %772 = vmatmul.mubr.bf16.gmra.mxu0 %v494
  %v773 = vpop.f32.mrf.mxu0
  %v774 = vadd.f32 0.0, %v773
  %v775 = vpop.f32.mrf.mxu0
  %v776 = vpop.f32.mrf.mxu0
  %v777 = vadd.f32 0.0, %v776
  %v778 = vpop.f32.mrf.mxu0
  %779 = vmatprep.mubr.bf16.mxu0 0
  %780 = vmatmul.mubr.bf16.gmra.mxu0 %v497
  %v781 = vpop.f32.mrf.mxu0
  %v782 = vadd.f32 0.0, %v781
  %v783 = vpop.f32.mrf.mxu0
  %v784 = vpop.f32.mrf.mxu0
  %v785 = vadd.f32 0.0, %v784
  %v786 = vpop.f32.mrf.mxu0
  %787 = vdwg.mxu0
  %v788 = vpack.c.bf16 %v537, %v534
  %v789 = vpack.c.bf16 %v545, %v542
  %v790 = vpack.c.bf16 %v553, %v550
  %v791 = vpack.c.bf16 %v561, %v558
  %v792 = vpack.c.bf16 %v569, %v566
  %v793 = vpack.c.bf16 %v577, %v574
  %v794 = vpack.c.bf16 %v585, %v582
  %v795 = vpack.c.bf16 %v593, %v590
  %v796 = vpack.c.bf16 %v601, %v598
  %v797 = vpack.c.bf16 %v609, %v606
  %v798 = vpack.c.bf16 %v617, %v614
  %v799 = vpack.c.bf16 %v625, %v622
  %v800 = vpack.c.bf16 %v633, %v630
  %v801 = vpack.c.bf16 %v641, %v638
  %v802 = vpack.c.bf16 %v649, %v646
  %v803 = vpack.c.bf16 %v657, %v654
  %v804 = vpack.c.bf16 %v665, %v662
  %v805 = vpack.c.bf16 %v673, %v670
  %v806 = vpack.c.bf16 %v681, %v678
  %v807 = vpack.c.bf16 %v689, %v686
  %v808 = vpack.c.bf16 %v697, %v694
  %v809 = vpack.c.bf16 %v705, %v702
  %v810 = vpack.c.bf16 %v713, %v710
  %v811 = vpack.c.bf16 %v721, %v718
  %v812 = vpack.c.bf16 %v729, %v726
  %v813 = vpack.c.bf16 %v737, %v734
  %v814 = vpack.c.bf16 %v745, %v742
  %v815 = vpack.c.bf16 %v753, %v750
  %v816 = vpack.c.bf16 %v761, %v758
  %v817 = vpack.c.bf16 %v769, %v766
  %v818 = vpack.c.bf16 %v777, %v774
  %v819 = vpack.c.bf16 %v785, %v782
  %v852 = vunpack.c.l.b16 %v788
  %v853 = vunpack.c.h.b16 %v788
  %v854 = vunpack.c.l.b16 %v789
  %v855 = vunpack.c.h.b16 %v789
  %v856 = vunpack.c.l.b16 %v790
  %v857 = vunpack.c.h.b16 %v790
  %v858 = vunpack.c.l.b16 %v791
  %v859 = vunpack.c.h.b16 %v791
  %v860 = vunpack.c.l.b16 %v792
  %v861 = vunpack.c.h.b16 %v792
  %v862 = vunpack.c.l.b16 %v793
  %v863 = vunpack.c.h.b16 %v793
  %v864 = vunpack.c.l.b16 %v794
  %v865 = vunpack.c.h.b16 %v794
  %v866 = vunpack.c.l.b16 %v795
  %v867 = vunpack.c.h.b16 %v795
  %v868 = vunpack.c.l.b16 %v796
  %v869 = vunpack.c.h.b16 %v796
  %v870 = vunpack.c.l.b16 %v797
  %v871 = vunpack.c.h.b16 %v797
  %v872 = vunpack.c.l.b16 %v798
  %v873 = vunpack.c.h.b16 %v798
  %v874 = vunpack.c.l.b16 %v799
  %v875 = vunpack.c.h.b16 %v799
  %v876 = vunpack.c.l.b16 %v800
  %v877 = vunpack.c.h.b16 %v800
  %v878 = vunpack.c.l.b16 %v801
  %v879 = vunpack.c.h.b16 %v801
  %v880 = vunpack.c.l.b16 %v802
  %v881 = vunpack.c.h.b16 %v802
  %v882 = vunpack.c.l.b16 %v803
  %v883 = vunpack.c.h.b16 %v803
  %v884 = vunpack.c.l.b16 %v804
  %v885 = vunpack.c.h.b16 %v804
  %v886 = vunpack.c.l.b16 %v805
  %v887 = vunpack.c.h.b16 %v805
  %v888 = vunpack.c.l.b16 %v806
  %v889 = vunpack.c.h.b16 %v806
  %v890 = vunpack.c.l.b16 %v807
  %v891 = vunpack.c.h.b16 %v807
  %v892 = vunpack.c.l.b16 %v808
  %v893 = vunpack.c.h.b16 %v808
  %v894 = vunpack.c.l.b16 %v809
  %v895 = vunpack.c.h.b16 %v809
  %v896 = vunpack.c.l.b16 %v810
  %v897 = vunpack.c.h.b16 %v810
  %v898 = vunpack.c.l.b16 %v811
  %v899 = vunpack.c.h.b16 %v811
  %v900 = vunpack.c.l.b16 %v812
  %v901 = vunpack.c.h.b16 %v812
  %v902 = vunpack.c.l.b16 %v813
  %v903 = vunpack.c.h.b16 %v813
  %v904 = vunpack.c.l.b16 %v814
  %v905 = vunpack.c.h.b16 %v814
  %v906 = vunpack.c.l.b16 %v815
  %v907 = vunpack.c.h.b16 %v815
  %v908 = vunpack.c.l.b16 %v816
  %v909 = vunpack.c.h.b16 %v816
  %v910 = vunpack.c.l.b16 %v817
  %v911 = vunpack.c.h.b16 %v817
  %v912 = vunpack.c.l.b16 %v818
  %v913 = vunpack.c.h.b16 %v818
  %v914 = vunpack.c.l.b16 %v819
  %v915 = vunpack.c.h.b16 %v819
  %v916 = vpack.c.b16 %v852, %v852
  %v917 = vpack.c.b16 %v853, %v853
  %v918 = vpack.c.b16 %v854, %v854
  %v919 = vpack.c.b16 %v855, %v855
  %v920 = vpack.c.b16 %v856, %v856
  %v921 = vpack.c.b16 %v857, %v857
  %v922 = vpack.c.b16 %v858, %v858
  %v923 = vpack.c.b16 %v859, %v859
  %v924 = vpack.c.b16 %v860, %v860
  %v925 = vpack.c.b16 %v861, %v861
  %v926 = vpack.c.b16 %v862, %v862
  %v927 = vpack.c.b16 %v863, %v863
  %v928 = vpack.c.b16 %v864, %v864
  %v929 = vpack.c.b16 %v865, %v865
  %v930 = vpack.c.b16 %v866, %v866
  %v931 = vpack.c.b16 %v867, %v867
  %v932 = vpack.c.b16 %v868, %v868
  %v933 = vpack.c.b16 %v869, %v869
  %v934 = vpack.c.b16 %v870, %v870
  %v935 = vpack.c.b16 %v871, %v871
  %v936 = vpack.c.b16 %v872, %v872
  %v937 = vpack.c.b16 %v873, %v873
  %v938 = vpack.c.b16 %v874, %v874
  %v939 = vpack.c.b16 %v875, %v875
  %v940 = vpack.c.b16 %v876, %v876
  %v941 = vpack.c.b16 %v877, %v877
  %v942 = vpack.c.b16 %v878, %v878
  %v943 = vpack.c.b16 %v879, %v879
  %v944 = vpack.c.b16 %v880, %v880
  %v945 = vpack.c.b16 %v881, %v881
  %v946 = vpack.c.b16 %v882, %v882
  %v947 = vpack.c.b16 %v883, %v883
  %v948 = vpack.c.b16 %v884, %v884
  %v949 = vpack.c.b16 %v885, %v885
  %v950 = vpack.c.b16 %v886, %v886
  %v951 = vpack.c.b16 %v887, %v887
  %v952 = vpack.c.b16 %v888, %v888
  %v953 = vpack.c.b16 %v889, %v889
  %v954 = vpack.c.b16 %v890, %v890
  %v955 = vpack.c.b16 %v891, %v891
  %v956 = vpack.c.b16 %v892, %v892
  %v957 = vpack.c.b16 %v893, %v893
  %v958 = vpack.c.b16 %v894, %v894
  %v959 = vpack.c.b16 %v895, %v895
  %v960 = vpack.c.b16 %v896, %v896
  %v961 = vpack.c.b16 %v897, %v897
  %v962 = vpack.c.b16 %v898, %v898
  %v963 = vpack.c.b16 %v899, %v899
  %v964 = vpack.c.b16 %v900, %v900
  %v965 = vpack.c.b16 %v901, %v901
  %v966 = vpack.c.b16 %v902, %v902
  %v967 = vpack.c.b16 %v903, %v903
  %v968 = vpack.c.b16 %v904, %v904
  %v969 = vpack.c.b16 %v905, %v905
  %v970 = vpack.c.b16 %v906, %v906
  %v971 = vpack.c.b16 %v907, %v907
  %v972 = vpack.c.b16 %v908, %v908
  %v973 = vpack.c.b16 %v909, %v909
  %v974 = vpack.c.b16 %v910, %v910
  %v975 = vpack.c.b16 %v911, %v911
  %v976 = vpack.c.b16 %v912, %v912
  %v977 = vpack.c.b16 %v913, %v913
  %v978 = vpack.c.b16 %v914, %v914
  %v979 = vpack.c.b16 %v915, %v915
  %1044 = vst [vmem:[%s4] sm:$0xf] %v916
  %1045 = vst [vmem:[%s4 + $0x4] sm:$0xf] %v917
  %1046 = vst [vmem:[%s4 + $0x8] sm:$0xf] %v918
  %1047 = vst [vmem:[%s4 + $0xc] sm:$0xf] %v919
  %1048 = vst [vmem:[%s4 + $0x10] sm:$0xf] %v920
  %1049 = vst [vmem:[%s4 + $0x14] sm:$0xf] %v921
  %1050 = vst [vmem:[%s4 + $0x18] sm:$0xf] %v922
  %1051 = vst [vmem:[%s4 + $0x1c] sm:$0xf] %v923
  %1052 = vst [vmem:[%s4 + $0x20] sm:$0xf] %v924
  %1053 = vst [vmem:[%s4 + $0x24] sm:$0xf] %v925
  %1054 = vst [vmem:[%s4 + $0x28] sm:$0xf] %v926
  %1055 = vst [vmem:[%s4 + $0x2c] sm:$0xf] %v927
  %1056 = vst [vmem:[%s4 + $0x30] sm:$0xf] %v928
  %1057 = vst [vmem:[%s4 + $0x34] sm:$0xf] %v929
  %1058 = vst [vmem:[%s4 + $0x38] sm:$0xf] %v930
  %1059 = vst [vmem:[%s4 + $0x3c] sm:$0xf] %v931
  %1060 = vst [vmem:[%s4 + $0x40] sm:$0xf] %v932
  %1061 = vst [vmem:[%s4 + $0x44] sm:$0xf] %v933
  %1062 = vst [vmem:[%s4 + $0x48] sm:$0xf] %v934
  %1063 = vst [vmem:[%s4 + $0x4c] sm:$0xf] %v935
  %1064 = vst [vmem:[%s4 + $0x50] sm:$0xf] %v936
  %1065 = vst [vmem:[%s4 + $0x54] sm:$0xf] %v937
  %1066 = vst [vmem:[%s4 + $0x58] sm:$0xf] %v938
  %1067 = vst [vmem:[%s4 + $0x5c] sm:$0xf] %v939
  %1068 = vst [vmem:[%s4 + $0x60] sm:$0xf] %v940
  %1069 = vst [vmem:[%s4 + $0x64] sm:$0xf] %v941
  %1070 = vst [vmem:[%s4 + $0x68] sm:$0xf] %v942
  %1071 = vst [vmem:[%s4 + $0x6c] sm:$0xf] %v943
  %1072 = vst [vmem:[%s4 + $0x70] sm:$0xf] %v944
  %1073 = vst [vmem:[%s4 + $0x74] sm:$0xf] %v945
  %1074 = vst [vmem:[%s4 + $0x78] sm:$0xf] %v946
  %1075 = vst [vmem:[%s4 + $0x7c] sm:$0xf] %v947
  %1076 = vst [vmem:[%s4 + $0x80] sm:$0xf] %v948
  %1077 = vst [vmem:[%s4 + $0x84] sm:$0xf] %v949
  %1078 = vst [vmem:[%s4 + $0x88] sm:$0xf] %v950
  %1079 = vst [vmem:[%s4 + $0x8c] sm:$0xf] %v951
  %1080 = vst [vmem:[%s4 + $0x90] sm:$0xf] %v952
  %1081 = vst [vmem:[%s4 + $0x94] sm:$0xf] %v953
  %1082 = vst [vmem:[%s4 + $0x98] sm:$0xf] %v954
  %1083 = vst [vmem:[%s4 + $0x9c] sm:$0xf] %v955
  %1084 = vst [vmem:[%s4 + $0xa0] sm:$0xf] %v956
  %1085 = vst [vmem:[%s4 + $0xa4] sm:$0xf] %v957
  %1086 = vst [vmem:[%s4 + $0xa8] sm:$0xf] %v958
  %1087 = vst [vmem:[%s4 + $0xac] sm:$0xf] %v959
  %1088 = vst [vmem:[%s4 + $0xb0] sm:$0xf] %v960
  %1089 = vst [vmem:[%s4 + $0xb4] sm:$0xf] %v961
  %1090 = vst [vmem:[%s4 + $0xb8] sm:$0xf] %v962
  %1091 = vst [vmem:[%s4 + $0xbc] sm:$0xf] %v963
  %1092 = vst [vmem:[%s4 + $0xc0] sm:$0xf] %v964
  %1093 = vst [vmem:[%s4 + $0xc4] sm:$0xf] %v965
  %1094 = vst [vmem:[%s4 + $0xc8] sm:$0xf] %v966
  %1095 = vst [vmem:[%s4 + $0xcc] sm:$0xf] %v967
  %1096 = vst [vmem:[%s4 + $0xd0] sm:$0xf] %v968
  %1097 = vst [vmem:[%s4 + $0xd4] sm:$0xf] %v969
  %1098 = vst [vmem:[%s4 + $0xd8] sm:$0xf] %v970
  %1099 = vst [vmem:[%s4 + $0xdc] sm:$0xf] %v971
  %1100 = vst [vmem:[%s4 + $0xe0] sm:$0xf] %v972
  %1101 = vst [vmem:[%s4 + $0xe4] sm:$0xf] %v973
  %1102 = vst [vmem:[%s4 + $0xe8] sm:$0xf] %v974
  %1103 = vst [vmem:[%s4 + $0xec] sm:$0xf] %v975
  %1104 = vst [vmem:[%s4 + $0xf0] sm:$0xf] %v976
  %1105 = vst [vmem:[%s4 + $0xf4] sm:$0xf] %v977
  %1106 = vst [vmem:[%s4 + $0xf8] sm:$0xf] %v978
  %1107 = vst [vmem:[%s4 + $0xfc] sm:$0xf] %v979
  %v1108 = vadd.f32 %v534, %v537
  %v1109 = vadd.f32 %v1108, %v542
  %v1110 = vadd.f32 %v1109, %v545
  %v1111 = vadd.f32 %v1110, %v550
  %v1112 = vadd.f32 %v1111, %v553
  %v1113 = vadd.f32 %v1112, %v558
  %v1114 = vadd.f32 %v1113, %v561
  %v1115 = vadd.f32 %v1114, %v566
  %v1116 = vadd.f32 %v1115, %v569
  %v1117 = vadd.f32 %v1116, %v574
  %v1118 = vadd.f32 %v1117, %v577
  %v1119 = vadd.f32 %v1118, %v582
  %v1120 = vadd.f32 %v1119, %v585
  %v1121 = vadd.f32 %v1120, %v590
  %v1122 = vadd.f32 %v1121, %v593
  %v1123 = vadd.f32 %v1122, %v598
  %v1124 = vadd.f32 %v1123, %v601
  %v1125 = vadd.f32 %v1124, %v606
  %v1126 = vadd.f32 %v1125, %v609
  %v1127 = vadd.f32 %v1126, %v614
  %v1128 = vadd.f32 %v1127, %v617
  %v1129 = vadd.f32 %v1128, %v622
  %v1130 = vadd.f32 %v1129, %v625
  %v1131 = vadd.f32 %v1130, %v630
  %v1132 = vadd.f32 %v1131, %v633
  %v1133 = vadd.f32 %v1132, %v638
  %v1134 = vadd.f32 %v1133, %v641
  %v1135 = vadd.f32 %v1134, %v646
  %v1136 = vadd.f32 %v1135, %v649
  %v1137 = vadd.f32 %v1136, %v654
  %v1138 = vadd.f32 %v1137, %v657
  %v1139 = vadd.f32 %v1138, %v662
  %v1140 = vadd.f32 %v1139, %v665
  %v1141 = vadd.f32 %v1140, %v670
  %v1142 = vadd.f32 %v1141, %v673
  %v1143 = vadd.f32 %v1142, %v678
  %v1144 = vadd.f32 %v1143, %v681
  %v1145 = vadd.f32 %v1144, %v686
  %v1146 = vadd.f32 %v1145, %v689
  %v1147 = vadd.f32 %v1146, %v694
  %v1148 = vadd.f32 %v1147, %v697
  %v1149 = vadd.f32 %v1148, %v702
  %v1150 = vadd.f32 %v1149, %v705
  %v1151 = vadd.f32 %v1150, %v710
  %v1152 = vadd.f32 %v1151, %v713
  %v1153 = vadd.f32 %v1152, %v718
  %v1154 = vadd.f32 %v1153, %v721
  %v1155 = vadd.f32 %v1154, %v726
  %v1156 = vadd.f32 %v1155, %v729
  %v1157 = vadd.f32 %v1156, %v734
  %v1158 = vadd.f32 %v1157, %v737
  %v1159 = vadd.f32 %v1158, %v742
  %v1160 = vadd.f32 %v1159, %v745
  %v1161 = vadd.f32 %v1160, %v750
  %v1162 = vadd.f32 %v1161, %v753
  %v1163 = vadd.f32 %v1162, %v758
  %v1164 = vadd.f32 %v1163, %v761
  %v1165 = vadd.f32 %v1164, %v766
  %v1166 = vadd.f32 %v1165, %v769
  %v1167 = vadd.f32 %v1166, %v774
  %v1168 = vadd.f32 %v1167, %v777
  %v1169 = vadd.f32 %v1168, %v782
  %v1170 = vadd.f32 %v1169, %v785
  %v1171 = vrot.slane %v1170, 4
  %v1172 = vadd.f32 %v1170, %v1171
  %v1173 = vrot.slane %v1172, 2
  %v1174 = vadd.f32 %v1172, %v1173
  %v1175 = vrot.slane %v1174, 1
  %v1176 = vadd.f32 %v1174, %v1175
  %v1177 = vmul.f32 %v534, %v534
  %v1178 = vmul.f32 %v537, %v537
  %v1179 = vmul.f32 %v542, %v542
  %v1180 = vmul.f32 %v545, %v545
  %v1181 = vmul.f32 %v550, %v550
  %v1182 = vmul.f32 %v553, %v553
  %v1183 = vmul.f32 %v558, %v558
  %v1184 = vmul.f32 %v561, %v561
  %v1185 = vmul.f32 %v566, %v566
  %v1186 = vmul.f32 %v569, %v569
  %v1187 = vmul.f32 %v574, %v574
  %v1188 = vmul.f32 %v577, %v577
  %v1189 = vmul.f32 %v582, %v582
  %v1190 = vmul.f32 %v585, %v585
  %v1191 = vmul.f32 %v590, %v590
  %v1192 = vmul.f32 %v593, %v593
  %v1193 = vmul.f32 %v598, %v598
  %v1194 = vmul.f32 %v601, %v601
  %v1195 = vmul.f32 %v606, %v606
  %v1196 = vmul.f32 %v609, %v609
  %v1197 = vmul.f32 %v614, %v614
  %v1198 = vmul.f32 %v617, %v617
  %v1199 = vmul.f32 %v622, %v622
  %v1200 = vmul.f32 %v625, %v625
  %v1201 = vmul.f32 %v630, %v630
  %v1202 = vmul.f32 %v633, %v633
  %v1203 = vmul.f32 %v638, %v638
  %v1204 = vmul.f32 %v641, %v641
  %v1205 = vmul.f32 %v646, %v646
  %v1206 = vmul.f32 %v649, %v649
  %v1207 = vmul.f32 %v654, %v654
  %v1208 = vmul.f32 %v657, %v657
  %v1209 = vmul.f32 %v662, %v662
  %v1210 = vmul.f32 %v665, %v665
  %v1211 = vmul.f32 %v670, %v670
  %v1212 = vmul.f32 %v673, %v673
  %v1213 = vmul.f32 %v678, %v678
  %v1214 = vmul.f32 %v681, %v681
  %v1215 = vmul.f32 %v686, %v686
  %v1216 = vmul.f32 %v689, %v689
  %v1217 = vmul.f32 %v694, %v694
  %v1218 = vmul.f32 %v697, %v697
  %v1219 = vmul.f32 %v702, %v702
  %v1220 = vmul.f32 %v705, %v705
  %v1221 = vmul.f32 %v710, %v710
  %v1222 = vmul.f32 %v713, %v713
  %v1223 = vmul.f32 %v718, %v718
  %v1224 = vmul.f32 %v721, %v721
  %v1225 = vmul.f32 %v726, %v726
  %v1226 = vmul.f32 %v729, %v729
  %v1227 = vmul.f32 %v734, %v734
  %v1228 = vmul.f32 %v737, %v737
  %v1229 = vmul.f32 %v742, %v742
  %v1230 = vmul.f32 %v745, %v745
  %v1231 = vmul.f32 %v750, %v750
  %v1232 = vmul.f32 %v753, %v753
  %v1233 = vmul.f32 %v758, %v758
  %v1234 = vmul.f32 %v761, %v761
  %v1235 = vmul.f32 %v766, %v766
  %v1236 = vmul.f32 %v769, %v769
  %v1237 = vmul.f32 %v774, %v774
  %v1238 = vmul.f32 %v777, %v777
  %v1239 = vmul.f32 %v782, %v782
  %v1240 = vmul.f32 %v785, %v785
  %v1241 = vadd.f32 %v1177, %v1178
  %v1242 = vadd.f32 %v1241, %v1179
  %v1243 = vadd.f32 %v1242, %v1180
  %v1244 = vadd.f32 %v1243, %v1181
  %v1245 = vadd.f32 %v1244, %v1182
  %v1246 = vadd.f32 %v1245, %v1183
  %v1247 = vadd.f32 %v1246, %v1184
  %v1248 = vadd.f32 %v1247, %v1185
  %v1249 = vadd.f32 %v1248, %v1186
  %v1250 = vadd.f32 %v1249, %v1187
  %v1251 = vadd.f32 %v1250, %v1188
  %v1252 = vadd.f32 %v1251, %v1189
  %v1253 = vadd.f32 %v1252, %v1190
  %v1254 = vadd.f32 %v1253, %v1191
  %v1255 = vadd.f32 %v1254, %v1192
  %v1256 = vadd.f32 %v1255, %v1193
  %v1257 = vadd.f32 %v1256, %v1194
  %v1258 = vadd.f32 %v1257, %v1195
  %v1259 = vadd.f32 %v1258, %v1196
  %v1260 = vadd.f32 %v1259, %v1197
  %v1261 = vadd.f32 %v1260, %v1198
  %v1262 = vadd.f32 %v1261, %v1199
  %v1263 = vadd.f32 %v1262, %v1200
  %v1264 = vadd.f32 %v1263, %v1201
  %v1265 = vadd.f32 %v1264, %v1202
  %v1266 = vadd.f32 %v1265, %v1203
  %v1267 = vadd.f32 %v1266, %v1204
  %v1268 = vadd.f32 %v1267, %v1205
  %v1269 = vadd.f32 %v1268, %v1206
  %v1270 = vadd.f32 %v1269, %v1207
  %v1271 = vadd.f32 %v1270, %v1208
  %v1272 = vadd.f32 %v1271, %v1209
  %v1273 = vadd.f32 %v1272, %v1210
  %v1274 = vadd.f32 %v1273, %v1211
  %v1275 = vadd.f32 %v1274, %v1212
  %v1276 = vadd.f32 %v1275, %v1213
  %v1277 = vadd.f32 %v1276, %v1214
  %v1278 = vadd.f32 %v1277, %v1215
  %v1279 = vadd.f32 %v1278, %v1216
  %v1280 = vadd.f32 %v1279, %v1217
  %v1281 = vadd.f32 %v1280, %v1218
  %v1282 = vadd.f32 %v1281, %v1219
  %v1283 = vadd.f32 %v1282, %v1220
  %v1284 = vadd.f32 %v1283, %v1221
  %v1285 = vadd.f32 %v1284, %v1222
  %v1286 = vadd.f32 %v1285, %v1223
  %v1287 = vadd.f32 %v1286, %v1224
  %v1288 = vadd.f32 %v1287, %v1225
  %v1289 = vadd.f32 %v1288, %v1226
  %v1290 = vadd.f32 %v1289, %v1227
  %v1291 = vadd.f32 %v1290, %v1228
  %v1292 = vadd.f32 %v1291, %v1229
  %v1293 = vadd.f32 %v1292, %v1230
  %v1294 = vadd.f32 %v1293, %v1231
  %v1295 = vadd.f32 %v1294, %v1232
  %v1296 = vadd.f32 %v1295, %v1233
  %v1297 = vadd.f32 %v1296, %v1234
  %v1298 = vadd.f32 %v1297, %v1235
  %v1299 = vadd.f32 %v1298, %v1236
  %v1300 = vadd.f32 %v1299, %v1237
  %v1301 = vadd.f32 %v1300, %v1238
  %v1302 = vadd.f32 %v1301, %v1239
  %v1303 = vadd.f32 %v1302, %v1240
  %v1304 = vrot.slane %v1303, 4
  %v1305 = vadd.f32 %v1303, %v1304
  %v1306 = vrot.slane %v1305, 2
  %v1307 = vadd.f32 %v1305, %v1306
  %v1308 = vrot.slane %v1307, 1
  %v1309 = vadd.f32 %v1307, %v1308
  %vm1310 = vcmask 1040384
  %v1311 = vsel %vm1310, %v1176, %v1309
  %1312 = vst [vmem:[%s5] sm:$0x3] %v1311
  // Predicated region
  $region18: #{bottleneck_forward.6} parent=0 // pred_check
    _
  $region19: #{bottleneck_forward.6} parent=0 // pred_check_branch
    %1314 = sbr.rel (0) target = $region21
  $region20: #{bottleneck_forward.6} parent=0 // pred_region
    _
  $region21: #{bottleneck_forward.6} parent=0 // pred_fallthru
    _
  // Predicated region
  $region22: #{bottleneck_forward.6} parent=0 // pred_check
    _
  $region23: #{bottleneck_forward.6} parent=0 // pred_check_branch
    %1316 = sbr.rel (0) target = $region25
  $region24: #{bottleneck_forward.6} parent=0 // pred_region
    _
  $region25: #{bottleneck_forward.6} parent=0 // pred_fallthru
    _
  // Predicated region
  $region26: #{bottleneck_forward.6} parent=0 // pred_check
    _
  $region27: #{bottleneck_forward.6} parent=0 // pred_check_branch
    %1318 = sbr.rel (0) target = $region29
  $region28: #{bottleneck_forward.6} parent=0 // pred_region
    _
  $region29: #{bottleneck_forward.6} parent=0 // pred_fallthru
    _
  // Predicated region
  $region30: #{bottleneck_forward.6} parent=0 // pred_check
    _
  $region31: #{bottleneck_forward.6} parent=0 // pred_check_branch
    %1320 = sbr.rel (0) target = $region33
  $region32: #{bottleneck_forward.6} parent=0 // pred_region
    _
  $region33: #{bottleneck_forward.6} parent=0 // pred_fallthru
    _

// kernel: bottleneck_forward.4
$region0: #{bottleneck_forward.4}
  #allocation0 [shape = 'u32[]', space=smem, size = 0x4, offset = 0x4, fixed_abs, tag = 'smem constant byte address 0x4 - core index']
  #allocation1 [shape = 'u32[144,128]{1,0:T(1,128)}', space=vmem, size = 0x12000, scoped, tag = 'internal scratch']
  %s0 = inlined_call_operand.vmem [shape: bf16[512,128], index: 0, kind: input, shape index: {}]
  %s1 = inlined_call_operand.vmem [shape: bf16[128,32], index: 1, kind: input, shape index: {}]
  %s2 = inlined_call_operand.vmem [shape: bf16[512,32], index: 2, kind: output, shape index: {0}]
  %s3 = inlined_call_operand.vmem [shape: f32[1,2,32], index: 3, kind: output, shape index: {1}]
  %4 = xla_tuple %s2, %s3
  %s5 = sld [smem:[#allocation0]]
  $region26: #{bottleneck_forward.4} parent=0
    _
  %s7 = ssub.s32 1, %s5
  %s8 = scalar_select 0, %s7, %s5
  // Predicated region
  $region2: #{bottleneck_forward.4} parent=0 // pred_check
    _
  $region3: #{bottleneck_forward.4} parent=0 // pred_check_branch
    %10 = sbr.rel (0) target = $region5
  $region4: #{bottleneck_forward.4} parent=0 // pred_region
    _
  $region5: #{bottleneck_forward.4} parent=0 // pred_fallthru
    _
  // Predicated region
  $region6: #{bottleneck_forward.4} parent=0 // pred_check
    _
  $region7: #{bottleneck_forward.4} parent=0 // pred_check_branch
    %12 = sbr.rel (0) target = $region9
  $region8: #{bottleneck_forward.4} parent=0 // pred_region
    _
  $region9: #{bottleneck_forward.4} parent=0 // pred_fallthru
    _
  %v14 = vld [vmem:[%s0] sm:$0xf]
  %v15 = vld [vmem:[%s0 + $0x4] sm:$0xf]
  %v16 = vld [vmem:[%s0 + $0x8] sm:$0xf]
  %v17 = vld [vmem:[%s0 + $0xc] sm:$0xf]
  %v18 = vld [vmem:[%s0 + $0x10] sm:$0xf]
  %v19 = vld [vmem:[%s0 + $0x14] sm:$0xf]
  %v20 = vld [vmem:[%s0 + $0x18] sm:$0xf]
  %v21 = vld [vmem:[%s0 + $0x1c] sm:$0xf]
  %v22 = vld [vmem:[%s0 + $0x20] sm:$0xf]
  %v23 = vld [vmem:[%s0 + $0x24] sm:$0xf]
  %v24 = vld [vmem:[%s0 + $0x28] sm:$0xf]
  %v25 = vld [vmem:[%s0 + $0x2c] sm:$0xf]
  %v26 = vld [vmem:[%s0 + $0x30] sm:$0xf]
  %v27 = vld [vmem:[%s0 + $0x34] sm:$0xf]
  %v28 = vld [vmem:[%s0 + $0x38] sm:$0xf]
  %v29 = vld [vmem:[%s0 + $0x3c] sm:$0xf]
  %v30 = vld [vmem:[%s0 + $0x40] sm:$0xf]
  %v31 = vld [vmem:[%s0 + $0x44] sm:$0xf]
  %v32 = vld [vmem:[%s0 + $0x48] sm:$0xf]
  %v33 = vld [vmem:[%s0 + $0x4c] sm:$0xf]
  %v34 = vld [vmem:[%s0 + $0x50] sm:$0xf]
  %v35 = vld [vmem:[%s0 + $0x54] sm:$0xf]
  %v36 = vld [vmem:[%s0 + $0x58] sm:$0xf]
  %v37 = vld [vmem:[%s0 + $0x5c] sm:$0xf]
  %v38 = vld [vmem:[%s0 + $0x60] sm:$0xf]
  %v39 = vld [vmem:[%s0 + $0x64] sm:$0xf]
  %v40 = vld [vmem:[%s0 + $0x68] sm:$0xf]
  %v41 = vld [vmem:[%s0 + $0x6c] sm:$0xf]
  %v42 = vld [vmem:[%s0 + $0x70] sm:$0xf]
  %v43 = vld [vmem:[%s0 + $0x74] sm:$0xf]
  %v44 = vld [vmem:[%s0 + $0x78] sm:$0xf]
  %v45 = vld [vmem:[%s0 + $0x7c] sm:$0xf]
  %v46 = vld [vmem:[%s0 + $0x80] sm:$0xf]
  %v47 = vld [vmem:[%s0 + $0x84] sm:$0xf]
  %v48 = vld [vmem:[%s0 + $0x88] sm:$0xf]
  %v49 = vld [vmem:[%s0 + $0x8c] sm:$0xf]
  %v50 = vld [vmem:[%s0 + $0x90] sm:$0xf]
  %v51 = vld [vmem:[%s0 + $0x94] sm:$0xf]
  %v52 = vld [vmem:[%s0 + $0x98] sm:$0xf]
  %v53 = vld [vmem:[%s0 + $0x9c] sm:$0xf]
  %v54 = vld [vmem:[%s0 + $0xa0] sm:$0xf]
  %v55 = vld [vmem:[%s0 + $0xa4] sm:$0xf]
  %v56 = vld [vmem:[%s0 + $0xa8] sm:$0xf]
  %v57 = vld [vmem:[%s0 + $0xac] sm:$0xf]
  %v58 = vld [vmem:[%s0 + $0xb0] sm:$0xf]
  %v59 = vld [vmem:[%s0 + $0xb4] sm:$0xf]
  %v60 = vld [vmem:[%s0 + $0xb8] sm:$0xf]
  %v61 = vld [vmem:[%s0 + $0xbc] sm:$0xf]
  %v62 = vld [vmem:[%s0 + $0xc0] sm:$0xf]
  %v63 = vld [vmem:[%s0 + $0xc4] sm:$0xf]
  %v64 = vld [vmem:[%s0 + $0xc8] sm:$0xf]
  %v65 = vld [vmem:[%s0 + $0xcc] sm:$0xf]
  %v66 = vld [vmem:[%s0 + $0xd0] sm:$0xf]
  %v67 = vld [vmem:[%s0 + $0xd4] sm:$0xf]
  %v68 = vld [vmem:[%s0 + $0xd8] sm:$0xf]
  %v69 = vld [vmem:[%s0 + $0xdc] sm:$0xf]
  %v70 = vld [vmem:[%s0 + $0xe0] sm:$0xf]
  %v71 = vld [vmem:[%s0 + $0xe4] sm:$0xf]
  %v72 = vld [vmem:[%s0 + $0xe8] sm:$0xf]
  %v73 = vld [vmem:[%s0 + $0xec] sm:$0xf]
  %v74 = vld [vmem:[%s0 + $0xf0] sm:$0xf]
  %v75 = vld [vmem:[%s0 + $0xf4] sm:$0xf]
  %v76 = vld [vmem:[%s0 + $0xf8] sm:$0xf]
  %v77 = vld [vmem:[%s0 + $0xfc] sm:$0xf]
  %v78 = vld [vmem:[%s1] sm:$0xf]
  %v79 = vld [vmem:[%s1 + $0x4] sm:$0xf]
  %v80 = vld [vmem:[%s1 + $0x8] sm:$0xf]
  %v81 = vld [vmem:[%s1 + $0xc] sm:$0xf]
  %v82 = vld [vmem:[%s1 + $0x10] sm:$0xf]
  %v83 = vld [vmem:[%s1 + $0x14] sm:$0xf]
  %v84 = vld [vmem:[%s1 + $0x18] sm:$0xf]
  %v85 = vld [vmem:[%s1 + $0x1c] sm:$0xf]
  %v86 = vld [vmem:[%s1 + $0x20] sm:$0xf]
  %v87 = vld [vmem:[%s1 + $0x24] sm:$0xf]
  %v88 = vld [vmem:[%s1 + $0x28] sm:$0xf]
  %v89 = vld [vmem:[%s1 + $0x2c] sm:$0xf]
  %v90 = vld [vmem:[%s1 + $0x30] sm:$0xf]
  %v91 = vld [vmem:[%s1 + $0x34] sm:$0xf]
  %v92 = vld [vmem:[%s1 + $0x38] sm:$0xf]
  %v93 = vld [vmem:[%s1 + $0x3c] sm:$0xf]
  %v158 = vunpack.c.l.b16 %v14
  %v159 = vunpack.c.l.b16 %v15
  %v160 = vunpack.c.l.b16 %v16
  %v161 = vunpack.c.l.b16 %v17
  %v162 = vunpack.c.l.b16 %v18
  %v163 = vunpack.c.l.b16 %v19
  %v164 = vunpack.c.l.b16 %v20
  %v165 = vunpack.c.l.b16 %v21
  %v166 = vunpack.c.l.b16 %v22
  %v167 = vunpack.c.l.b16 %v23
  %v168 = vunpack.c.l.b16 %v24
  %v169 = vunpack.c.l.b16 %v25
  %v170 = vunpack.c.l.b16 %v26
  %v171 = vunpack.c.l.b16 %v27
  %v172 = vunpack.c.l.b16 %v28
  %v173 = vunpack.c.l.b16 %v29
  %v174 = vunpack.c.l.b16 %v30
  %v175 = vunpack.c.l.b16 %v31
  %v176 = vunpack.c.l.b16 %v32
  %v177 = vunpack.c.l.b16 %v33
  %v178 = vunpack.c.l.b16 %v34
  %v179 = vunpack.c.l.b16 %v35
  %v180 = vunpack.c.l.b16 %v36
  %v181 = vunpack.c.l.b16 %v37
  %v182 = vunpack.c.l.b16 %v38
  %v183 = vunpack.c.l.b16 %v39
  %v184 = vunpack.c.l.b16 %v40
  %v185 = vunpack.c.l.b16 %v41
  %v186 = vunpack.c.l.b16 %v42
  %v187 = vunpack.c.l.b16 %v43
  %v188 = vunpack.c.l.b16 %v44
  %v189 = vunpack.c.l.b16 %v45
  %v190 = vunpack.c.l.b16 %v46
  %v191 = vunpack.c.l.b16 %v47
  %v192 = vunpack.c.l.b16 %v48
  %v193 = vunpack.c.l.b16 %v49
  %v194 = vunpack.c.l.b16 %v50
  %v195 = vunpack.c.l.b16 %v51
  %v196 = vunpack.c.l.b16 %v52
  %v197 = vunpack.c.l.b16 %v53
  %v198 = vunpack.c.l.b16 %v54
  %v199 = vunpack.c.l.b16 %v55
  %v200 = vunpack.c.l.b16 %v56
  %v201 = vunpack.c.l.b16 %v57
  %v202 = vunpack.c.l.b16 %v58
  %v203 = vunpack.c.l.b16 %v59
  %v204 = vunpack.c.l.b16 %v60
  %v205 = vunpack.c.l.b16 %v61
  %v206 = vunpack.c.l.b16 %v62
  %v207 = vunpack.c.l.b16 %v63
  %v208 = vunpack.c.l.b16 %v64
  %v209 = vunpack.c.l.b16 %v65
  %v210 = vunpack.c.l.b16 %v66
  %v211 = vunpack.c.l.b16 %v67
  %v212 = vunpack.c.l.b16 %v68
  %v213 = vunpack.c.l.b16 %v69
  %v214 = vunpack.c.l.b16 %v70
  %v215 = vunpack.c.l.b16 %v71
  %v216 = vunpack.c.l.b16 %v72
  %v217 = vunpack.c.l.b16 %v73
  %v218 = vunpack.c.l.b16 %v74
  %v219 = vunpack.c.l.b16 %v75
  %v220 = vunpack.c.l.b16 %v76
  %v221 = vunpack.c.l.b16 %v77
  %v222 = vpack.c.b16 %v159, %v158
  %v223 = vpack.c.b16 %v161, %v160
  %v224 = vpack.c.b16 %v163, %v162
  %v225 = vpack.c.b16 %v165, %v164
  %v226 = vpack.c.b16 %v167, %v166
  %v227 = vpack.c.b16 %v169, %v168
  %v228 = vpack.c.b16 %v171, %v170
  %v229 = vpack.c.b16 %v173, %v172
  %v230 = vpack.c.b16 %v175, %v174
  %v231 = vpack.c.b16 %v177, %v176
  %v232 = vpack.c.b16 %v179, %v178
  %v233 = vpack.c.b16 %v181, %v180
  %v234 = vpack.c.b16 %v183, %v182
  %v235 = vpack.c.b16 %v185, %v184
  %v236 = vpack.c.b16 %v187, %v186
  %v237 = vpack.c.b16 %v189, %v188
  %v238 = vpack.c.b16 %v191, %v190
  %v239 = vpack.c.b16 %v193, %v192
  %v240 = vpack.c.b16 %v195, %v194
  %v241 = vpack.c.b16 %v197, %v196
  %v242 = vpack.c.b16 %v199, %v198
  %v243 = vpack.c.b16 %v201, %v200
  %v244 = vpack.c.b16 %v203, %v202
  %v245 = vpack.c.b16 %v205, %v204
  %v246 = vpack.c.b16 %v207, %v206
  %v247 = vpack.c.b16 %v209, %v208
  %v248 = vpack.c.b16 %v211, %v210
  %v249 = vpack.c.b16 %v213, %v212
  %v250 = vpack.c.b16 %v215, %v214
  %v251 = vpack.c.b16 %v217, %v216
  %v252 = vpack.c.b16 %v219, %v218
  %v253 = vpack.c.b16 %v221, %v220
  %v302 = vunpack.c.l.b16 %v78
  %v303 = vunpack.c.l.b16 %v79
  %v304 = vunpack.c.l.b16 %v80
  %v305 = vunpack.c.l.b16 %v81
  %v306 = vunpack.c.l.b16 %v82
  %v307 = vunpack.c.l.b16 %v83
  %v308 = vunpack.c.l.b16 %v84
  %v309 = vunpack.c.l.b16 %v85
  %v310 = vunpack.c.l.b16 %v86
  %v311 = vunpack.c.l.b16 %v87
  %v312 = vunpack.c.l.b16 %v88
  %v313 = vunpack.c.l.b16 %v89
  %v314 = vunpack.c.l.b16 %v90
  %v315 = vunpack.c.l.b16 %v91
  %v316 = vunpack.c.l.b16 %v92
  %v317 = vunpack.c.l.b16 %v93
  %v318 = vpack.c.b16 %v303, %v302
  %v319 = vpack.c.b16 %v305, %v304
  %v320 = vpack.c.b16 %v307, %v306
  %v321 = vpack.c.b16 %v309, %v308
  %v322 = vpack.c.b16 %v311, %v310
  %v323 = vpack.c.b16 %v313, %v312
  %v324 = vpack.c.b16 %v315, %v314
  %v325 = vpack.c.b16 %v317, %v316
  %334 = vmatprep.subr.bf16.mxu0 0
  %335 = vmatpush1.bf16.msra.mxu0 %v325
  %336 = vmatprep.subr.bf16.mxu0 0
  %337 = vmatpush1.bf16.msra.mxu0 %v324
  %338 = vmatprep.subr.bf16.mxu0 0
  %339 = vmatpush1.bf16.msra.mxu0 %v323
  %340 = vmatprep.subr.bf16.mxu0 0
  %341 = vmatpush1.bf16.msra.mxu0 %v322
  %342 = vmatprep.subr.bf16.mxu0 0
  %343 = vmatpush1.bf16.msra.mxu0 %v321
  %344 = vmatprep.subr.bf16.mxu0 0
  %345 = vmatpush1.bf16.msra.mxu0 %v320
  %346 = vmatprep.subr.bf16.mxu0 0
  %347 = vmatpush1.bf16.msra.mxu0 %v319
  %348 = vmatprep.subr.bf16.mxu0 0
  %349 = vmatpush1.bf16.msra.mxu0 %v318
  %350 = vmatprep.subr.bf16.mxu0 0
  %351 = vmatpush2.bf16.msra.mxu0 0
  %352 = vmatprep.subr.bf16.mxu0 0
  %353 = vmatpush2.bf16.msra.mxu0 0
  %354 = vmatprep.subr.bf16.mxu0 0
  %355 = vmatpush2.bf16.msra.mxu0 0
  %356 = vmatprep.subr.bf16.mxu0 0
  %357 = vmatpush2.bf16.msra.mxu0 0
  %358 = vmatprep.subr.bf16.mxu0 0
  %359 = vmatpush2.bf16.msra.mxu0 0
  %360 = vmatprep.subr.bf16.mxu0 0
  %361 = vmatpush2.bf16.msra.mxu0 0
  %362 = vmatprep.subr.bf16.mxu0 0
  %363 = vmatpush2.bf16.msra.mxu0 0
  %364 = vmatprep.subr.bf16.mxu0 0
  %365 = vmatpush2.bf16.msra.mxu0 0
  %366 = vmatprep.mubr.bf16.mxu0 0
  %367 = vmatmul.mubr.bf16.gmra.mxu0 %v222
  %v368 = vpop.f32.mrf.mxu0
  %v369 = vadd.f32 0.0, %v368
  %v370 = vpop.f32.mrf.mxu0
  %v371 = vpop.f32.mrf.mxu0
  %v372 = vadd.f32 0.0, %v371
  %v373 = vpop.f32.mrf.mxu0
  %374 = vmatprep.mubr.bf16.mxu0 0
  %375 = vmatmul.mubr.bf16.gmra.mxu0 %v223
  %v376 = vpop.f32.mrf.mxu0
  %v377 = vadd.f32 0.0, %v376
  %v378 = vpop.f32.mrf.mxu0
  %v379 = vpop.f32.mrf.mxu0
  %v380 = vadd.f32 0.0, %v379
  %v381 = vpop.f32.mrf.mxu0
  %382 = vmatprep.mubr.bf16.mxu0 0
  %383 = vmatmul.mubr.bf16.gmra.mxu0 %v224
  %v384 = vpop.f32.mrf.mxu0
  %v385 = vadd.f32 0.0, %v384
  %v386 = vpop.f32.mrf.mxu0
  %v387 = vpop.f32.mrf.mxu0
  %v388 = vadd.f32 0.0, %v387
  %v389 = vpop.f32.mrf.mxu0
  %390 = vmatprep.mubr.bf16.mxu0 0
  %391 = vmatmul.mubr.bf16.gmra.mxu0 %v225
  %v392 = vpop.f32.mrf.mxu0
  %v393 = vadd.f32 0.0, %v392
  %v394 = vpop.f32.mrf.mxu0
  %v395 = vpop.f32.mrf.mxu0
  %v396 = vadd.f32 0.0, %v395
  %v397 = vpop.f32.mrf.mxu0
  %398 = vmatprep.mubr.bf16.mxu0 0
  %399 = vmatmul.mubr.bf16.gmra.mxu0 %v226
  %v400 = vpop.f32.mrf.mxu0
  %v401 = vadd.f32 0.0, %v400
  %v402 = vpop.f32.mrf.mxu0
  %v403 = vpop.f32.mrf.mxu0
  %v404 = vadd.f32 0.0, %v403
  %v405 = vpop.f32.mrf.mxu0
  %406 = vmatprep.mubr.bf16.mxu0 0
  %407 = vmatmul.mubr.bf16.gmra.mxu0 %v227
  %v408 = vpop.f32.mrf.mxu0
  %v409 = vadd.f32 0.0, %v408
  %v410 = vpop.f32.mrf.mxu0
  %v411 = vpop.f32.mrf.mxu0
  %v412 = vadd.f32 0.0, %v411
  %v413 = vpop.f32.mrf.mxu0
  %414 = vmatprep.mubr.bf16.mxu0 0
  %415 = vmatmul.mubr.bf16.gmra.mxu0 %v228
  %v416 = vpop.f32.mrf.mxu0
  %v417 = vadd.f32 0.0, %v416
  %v418 = vpop.f32.mrf.mxu0
  %v419 = vpop.f32.mrf.mxu0
  %v420 = vadd.f32 0.0, %v419
  %v421 = vpop.f32.mrf.mxu0
  %422 = vmatprep.mubr.bf16.mxu0 0
  %423 = vmatmul.mubr.bf16.gmra.mxu0 %v229
  %v424 = vpop.f32.mrf.mxu0
  %v425 = vadd.f32 0.0, %v424
  %v426 = vpop.f32.mrf.mxu0
  %v427 = vpop.f32.mrf.mxu0
  %v428 = vadd.f32 0.0, %v427
  %v429 = vpop.f32.mrf.mxu0
  %430 = vmatprep.mubr.bf16.mxu0 0
  %431 = vmatmul.mubr.bf16.gmra.mxu0 %v230
  %v432 = vpop.f32.mrf.mxu0
  %v433 = vadd.f32 0.0, %v432
  %v434 = vpop.f32.mrf.mxu0
  %v435 = vpop.f32.mrf.mxu0
  %v436 = vadd.f32 0.0, %v435
  %v437 = vpop.f32.mrf.mxu0
  %438 = vmatprep.mubr.bf16.mxu0 0
  %439 = vmatmul.mubr.bf16.gmra.mxu0 %v231
  %v440 = vpop.f32.mrf.mxu0
  %v441 = vadd.f32 0.0, %v440
  %v442 = vpop.f32.mrf.mxu0
  %v443 = vpop.f32.mrf.mxu0
  %v444 = vadd.f32 0.0, %v443
  %v445 = vpop.f32.mrf.mxu0
  %446 = vmatprep.mubr.bf16.mxu0 0
  %447 = vmatmul.mubr.bf16.gmra.mxu0 %v232
  %v448 = vpop.f32.mrf.mxu0
  %v449 = vadd.f32 0.0, %v448
  %v450 = vpop.f32.mrf.mxu0
  %v451 = vpop.f32.mrf.mxu0
  %v452 = vadd.f32 0.0, %v451
  %v453 = vpop.f32.mrf.mxu0
  %454 = vmatprep.mubr.bf16.mxu0 0
  %455 = vmatmul.mubr.bf16.gmra.mxu0 %v233
  %v456 = vpop.f32.mrf.mxu0
  %v457 = vadd.f32 0.0, %v456
  %v458 = vpop.f32.mrf.mxu0
  %v459 = vpop.f32.mrf.mxu0
  %v460 = vadd.f32 0.0, %v459
  %v461 = vpop.f32.mrf.mxu0
  %462 = vmatprep.mubr.bf16.mxu0 0
  %463 = vmatmul.mubr.bf16.gmra.mxu0 %v234
  %v464 = vpop.f32.mrf.mxu0
  %v465 = vadd.f32 0.0, %v464
  %v466 = vpop.f32.mrf.mxu0
  %v467 = vpop.f32.mrf.mxu0
  %v468 = vadd.f32 0.0, %v467
  %v469 = vpop.f32.mrf.mxu0
  %470 = vmatprep.mubr.bf16.mxu0 0
  %471 = vmatmul.mubr.bf16.gmra.mxu0 %v235
  %v472 = vpop.f32.mrf.mxu0
  %v473 = vadd.f32 0.0, %v472
  %v474 = vpop.f32.mrf.mxu0
  %v475 = vpop.f32.mrf.mxu0
  %v476 = vadd.f32 0.0, %v475
  %v477 = vpop.f32.mrf.mxu0
  %478 = vmatprep.mubr.bf16.mxu0 0
  %479 = vmatmul.mubr.bf16.gmra.mxu0 %v236
  %v480 = vpop.f32.mrf.mxu0
  %v481 = vadd.f32 0.0, %v480
  %v482 = vpop.f32.mrf.mxu0
  %v483 = vpop.f32.mrf.mxu0
  %v484 = vadd.f32 0.0, %v483
  %v485 = vpop.f32.mrf.mxu0
  %486 = vmatprep.mubr.bf16.mxu0 0
  %487 = vmatmul.mubr.bf16.gmra.mxu0 %v237
  %v488 = vpop.f32.mrf.mxu0
  %v489 = vadd.f32 0.0, %v488
  %v490 = vpop.f32.mrf.mxu0
  %v491 = vpop.f32.mrf.mxu0
  %v492 = vadd.f32 0.0, %v491
  %v493 = vpop.f32.mrf.mxu0
  %494 = vmatprep.mubr.bf16.mxu0 0
  %495 = vmatmul.mubr.bf16.gmra.mxu0 %v238
  %v496 = vpop.f32.mrf.mxu0
  %v497 = vadd.f32 0.0, %v496
  %v498 = vpop.f32.mrf.mxu0
  %v499 = vpop.f32.mrf.mxu0
  %v500 = vadd.f32 0.0, %v499
  %v501 = vpop.f32.mrf.mxu0
  %502 = vmatprep.mubr.bf16.mxu0 0
  %503 = vmatmul.mubr.bf16.gmra.mxu0 %v239
  %v504 = vpop.f32.mrf.mxu0
  %v505 = vadd.f32 0.0, %v504
  %v506 = vpop.f32.mrf.mxu0
  %v507 = vpop.f32.mrf.mxu0
  %v508 = vadd.f32 0.0, %v507
  %v509 = vpop.f32.mrf.mxu0
  %510 = vmatprep.mubr.bf16.mxu0 0
  %511 = vmatmul.mubr.bf16.gmra.mxu0 %v240
  %v512 = vpop.f32.mrf.mxu0
  %v513 = vadd.f32 0.0, %v512
  %v514 = vpop.f32.mrf.mxu0
  %v515 = vpop.f32.mrf.mxu0
  %v516 = vadd.f32 0.0, %v515
  %v517 = vpop.f32.mrf.mxu0
  %518 = vmatprep.mubr.bf16.mxu0 0
  %519 = vmatmul.mubr.bf16.gmra.mxu0 %v241
  %v520 = vpop.f32.mrf.mxu0
  %v521 = vadd.f32 0.0, %v520
  %v522 = vpop.f32.mrf.mxu0
  %v523 = vpop.f32.mrf.mxu0
  %v524 = vadd.f32 0.0, %v523
  %v525 = vpop.f32.mrf.mxu0
  %526 = vmatprep.mubr.bf16.mxu0 0
  %527 = vmatmul.mubr.bf16.gmra.mxu0 %v242
  %v528 = vpop.f32.mrf.mxu0
  %v529 = vadd.f32 0.0, %v528
  %v530 = vpop.f32.mrf.mxu0
  %v531 = vpop.f32.mrf.mxu0
  %v532 = vadd.f32 0.0, %v531
  %v533 = vpop.f32.mrf.mxu0
  %534 = vmatprep.mubr.bf16.mxu0 0
  %535 = vmatmul.mubr.bf16.gmra.mxu0 %v243
  %v536 = vpop.f32.mrf.mxu0
  %v537 = vadd.f32 0.0, %v536
  %v538 = vpop.f32.mrf.mxu0
  %v539 = vpop.f32.mrf.mxu0
  %v540 = vadd.f32 0.0, %v539
  %v541 = vpop.f32.mrf.mxu0
  %542 = vmatprep.mubr.bf16.mxu0 0
  %543 = vmatmul.mubr.bf16.gmra.mxu0 %v244
  %v544 = vpop.f32.mrf.mxu0
  %v545 = vadd.f32 0.0, %v544
  %v546 = vpop.f32.mrf.mxu0
  %v547 = vpop.f32.mrf.mxu0
  %v548 = vadd.f32 0.0, %v547
  %v549 = vpop.f32.mrf.mxu0
  %550 = vmatprep.mubr.bf16.mxu0 0
  %551 = vmatmul.mubr.bf16.gmra.mxu0 %v245
  %v552 = vpop.f32.mrf.mxu0
  %v553 = vadd.f32 0.0, %v552
  %v554 = vpop.f32.mrf.mxu0
  %v555 = vpop.f32.mrf.mxu0
  %v556 = vadd.f32 0.0, %v555
  %v557 = vpop.f32.mrf.mxu0
  %558 = vmatprep.mubr.bf16.mxu0 0
  %559 = vmatmul.mubr.bf16.gmra.mxu0 %v246
  %v560 = vpop.f32.mrf.mxu0
  %v561 = vadd.f32 0.0, %v560
  %v562 = vpop.f32.mrf.mxu0
  %v563 = vpop.f32.mrf.mxu0
  %v564 = vadd.f32 0.0, %v563
  %v565 = vpop.f32.mrf.mxu0
  %566 = vmatprep.mubr.bf16.mxu0 0
  %567 = vmatmul.mubr.bf16.gmra.mxu0 %v247
  %v568 = vpop.f32.mrf.mxu0
  %v569 = vadd.f32 0.0, %v568
  %v570 = vpop.f32.mrf.mxu0
  %v571 = vpop.f32.mrf.mxu0
  %v572 = vadd.f32 0.0, %v571
  %v573 = vpop.f32.mrf.mxu0
  %574 = vmatprep.mubr.bf16.mxu0 0
  %575 = vmatmul.mubr.bf16.gmra.mxu0 %v248
  %v576 = vpop.f32.mrf.mxu0
  %v577 = vadd.f32 0.0, %v576
  %v578 = vpop.f32.mrf.mxu0
  %v579 = vpop.f32.mrf.mxu0
  %v580 = vadd.f32 0.0, %v579
  %v581 = vpop.f32.mrf.mxu0
  %582 = vmatprep.mubr.bf16.mxu0 0
  %583 = vmatmul.mubr.bf16.gmra.mxu0 %v249
  %v584 = vpop.f32.mrf.mxu0
  %v585 = vadd.f32 0.0, %v584
  %v586 = vpop.f32.mrf.mxu0
  %v587 = vpop.f32.mrf.mxu0
  %v588 = vadd.f32 0.0, %v587
  %v589 = vpop.f32.mrf.mxu0
  %590 = vmatprep.mubr.bf16.mxu0 0
  %591 = vmatmul.mubr.bf16.gmra.mxu0 %v250
  %v592 = vpop.f32.mrf.mxu0
  %v593 = vadd.f32 0.0, %v592
  %v594 = vpop.f32.mrf.mxu0
  %v595 = vpop.f32.mrf.mxu0
  %v596 = vadd.f32 0.0, %v595
  %v597 = vpop.f32.mrf.mxu0
  %598 = vmatprep.mubr.bf16.mxu0 0
  %599 = vmatmul.mubr.bf16.gmra.mxu0 %v251
  %v600 = vpop.f32.mrf.mxu0
  %v601 = vadd.f32 0.0, %v600
  %v602 = vpop.f32.mrf.mxu0
  %v603 = vpop.f32.mrf.mxu0
  %v604 = vadd.f32 0.0, %v603
  %v605 = vpop.f32.mrf.mxu0
  %606 = vmatprep.mubr.bf16.mxu0 0
  %607 = vmatmul.mubr.bf16.gmra.mxu0 %v252
  %v608 = vpop.f32.mrf.mxu0
  %v609 = vadd.f32 0.0, %v608
  %v610 = vpop.f32.mrf.mxu0
  %v611 = vpop.f32.mrf.mxu0
  %v612 = vadd.f32 0.0, %v611
  %v613 = vpop.f32.mrf.mxu0
  %614 = vmatprep.mubr.bf16.mxu0 0
  %615 = vmatmul.mubr.bf16.gmra.mxu0 %v253
  %v616 = vpop.f32.mrf.mxu0
  %v617 = vadd.f32 0.0, %v616
  %v618 = vpop.f32.mrf.mxu0
  %v619 = vpop.f32.mrf.mxu0
  %v620 = vadd.f32 0.0, %v619
  %v621 = vpop.f32.mrf.mxu0
  %622 = vdwg.mxu0
  %v623 = vpack.c.bf16 %v372, %v369
  %v624 = vpack.c.bf16 %v380, %v377
  %v625 = vpack.c.bf16 %v388, %v385
  %v626 = vpack.c.bf16 %v396, %v393
  %v627 = vpack.c.bf16 %v404, %v401
  %v628 = vpack.c.bf16 %v412, %v409
  %v629 = vpack.c.bf16 %v420, %v417
  %v630 = vpack.c.bf16 %v428, %v425
  %v631 = vpack.c.bf16 %v436, %v433
  %v632 = vpack.c.bf16 %v444, %v441
  %v633 = vpack.c.bf16 %v452, %v449
  %v634 = vpack.c.bf16 %v460, %v457
  %v635 = vpack.c.bf16 %v468, %v465
  %v636 = vpack.c.bf16 %v476, %v473
  %v637 = vpack.c.bf16 %v484, %v481
  %v638 = vpack.c.bf16 %v492, %v489
  %v639 = vpack.c.bf16 %v500, %v497
  %v640 = vpack.c.bf16 %v508, %v505
  %v641 = vpack.c.bf16 %v516, %v513
  %v642 = vpack.c.bf16 %v524, %v521
  %v643 = vpack.c.bf16 %v532, %v529
  %v644 = vpack.c.bf16 %v540, %v537
  %v645 = vpack.c.bf16 %v548, %v545
  %v646 = vpack.c.bf16 %v556, %v553
  %v647 = vpack.c.bf16 %v564, %v561
  %v648 = vpack.c.bf16 %v572, %v569
  %v649 = vpack.c.bf16 %v580, %v577
  %v650 = vpack.c.bf16 %v588, %v585
  %v651 = vpack.c.bf16 %v596, %v593
  %v652 = vpack.c.bf16 %v604, %v601
  %v653 = vpack.c.bf16 %v612, %v609
  %v654 = vpack.c.bf16 %v620, %v617
  %v687 = vunpack.c.l.b16 %v623
  %v688 = vunpack.c.h.b16 %v623
  %v689 = vunpack.c.l.b16 %v624
  %v690 = vunpack.c.h.b16 %v624
  %v691 = vunpack.c.l.b16 %v625
  %v692 = vunpack.c.h.b16 %v625
  %v693 = vunpack.c.l.b16 %v626
  %v694 = vunpack.c.h.b16 %v626
  %v695 = vunpack.c.l.b16 %v627
  %v696 = vunpack.c.h.b16 %v627
  %v697 = vunpack.c.l.b16 %v628
  %v698 = vunpack.c.h.b16 %v628
  %v699 = vunpack.c.l.b16 %v629
  %v700 = vunpack.c.h.b16 %v629
  %v701 = vunpack.c.l.b16 %v630
  %v702 = vunpack.c.h.b16 %v630
  %v703 = vunpack.c.l.b16 %v631
  %v704 = vunpack.c.h.b16 %v631
  %v705 = vunpack.c.l.b16 %v632
  %v706 = vunpack.c.h.b16 %v632
  %v707 = vunpack.c.l.b16 %v633
  %v708 = vunpack.c.h.b16 %v633
  %v709 = vunpack.c.l.b16 %v634
  %v710 = vunpack.c.h.b16 %v634
  %v711 = vunpack.c.l.b16 %v635
  %v712 = vunpack.c.h.b16 %v635
  %v713 = vunpack.c.l.b16 %v636
  %v714 = vunpack.c.h.b16 %v636
  %v715 = vunpack.c.l.b16 %v637
  %v716 = vunpack.c.h.b16 %v637
  %v717 = vunpack.c.l.b16 %v638
  %v718 = vunpack.c.h.b16 %v638
  %v719 = vunpack.c.l.b16 %v639
  %v720 = vunpack.c.h.b16 %v639
  %v721 = vunpack.c.l.b16 %v640
  %v722 = vunpack.c.h.b16 %v640
  %v723 = vunpack.c.l.b16 %v641
  %v724 = vunpack.c.h.b16 %v641
  %v725 = vunpack.c.l.b16 %v642
  %v726 = vunpack.c.h.b16 %v642
  %v727 = vunpack.c.l.b16 %v643
  %v728 = vunpack.c.h.b16 %v643
  %v729 = vunpack.c.l.b16 %v644
  %v730 = vunpack.c.h.b16 %v644
  %v731 = vunpack.c.l.b16 %v645
  %v732 = vunpack.c.h.b16 %v645
  %v733 = vunpack.c.l.b16 %v646
  %v734 = vunpack.c.h.b16 %v646
  %v735 = vunpack.c.l.b16 %v647
  %v736 = vunpack.c.h.b16 %v647
  %v737 = vunpack.c.l.b16 %v648
  %v738 = vunpack.c.h.b16 %v648
  %v739 = vunpack.c.l.b16 %v649
  %v740 = vunpack.c.h.b16 %v649
  %v741 = vunpack.c.l.b16 %v650
  %v742 = vunpack.c.h.b16 %v650
  %v743 = vunpack.c.l.b16 %v651
  %v744 = vunpack.c.h.b16 %v651
  %v745 = vunpack.c.l.b16 %v652
  %v746 = vunpack.c.h.b16 %v652
  %v747 = vunpack.c.l.b16 %v653
  %v748 = vunpack.c.h.b16 %v653
  %v749 = vunpack.c.l.b16 %v654
  %v750 = vunpack.c.h.b16 %v654
  %v751 = vpack.c.b16 %v687, %v687
  %v752 = vpack.c.b16 %v688, %v688
  %v753 = vpack.c.b16 %v689, %v689
  %v754 = vpack.c.b16 %v690, %v690
  %v755 = vpack.c.b16 %v691, %v691
  %v756 = vpack.c.b16 %v692, %v692
  %v757 = vpack.c.b16 %v693, %v693
  %v758 = vpack.c.b16 %v694, %v694
  %v759 = vpack.c.b16 %v695, %v695
  %v760 = vpack.c.b16 %v696, %v696
  %v761 = vpack.c.b16 %v697, %v697
  %v762 = vpack.c.b16 %v698, %v698
  %v763 = vpack.c.b16 %v699, %v699
  %v764 = vpack.c.b16 %v700, %v700
  %v765 = vpack.c.b16 %v701, %v701
  %v766 = vpack.c.b16 %v702, %v702
  %v767 = vpack.c.b16 %v703, %v703
  %v768 = vpack.c.b16 %v704, %v704
  %v769 = vpack.c.b16 %v705, %v705
  %v770 = vpack.c.b16 %v706, %v706
  %v771 = vpack.c.b16 %v707, %v707
  %v772 = vpack.c.b16 %v708, %v708
  %v773 = vpack.c.b16 %v709, %v709
  %v774 = vpack.c.b16 %v710, %v710
  %v775 = vpack.c.b16 %v711, %v711
  %v776 = vpack.c.b16 %v712, %v712
  %v777 = vpack.c.b16 %v713, %v713
  %v778 = vpack.c.b16 %v714, %v714
  %v779 = vpack.c.b16 %v715, %v715
  %v780 = vpack.c.b16 %v716, %v716
  %v781 = vpack.c.b16 %v717, %v717
  %v782 = vpack.c.b16 %v718, %v718
  %v783 = vpack.c.b16 %v719, %v719
  %v784 = vpack.c.b16 %v720, %v720
  %v785 = vpack.c.b16 %v721, %v721
  %v786 = vpack.c.b16 %v722, %v722
  %v787 = vpack.c.b16 %v723, %v723
  %v788 = vpack.c.b16 %v724, %v724
  %v789 = vpack.c.b16 %v725, %v725
  %v790 = vpack.c.b16 %v726, %v726
  %v791 = vpack.c.b16 %v727, %v727
  %v792 = vpack.c.b16 %v728, %v728
  %v793 = vpack.c.b16 %v729, %v729
  %v794 = vpack.c.b16 %v730, %v730
  %v795 = vpack.c.b16 %v731, %v731
  %v796 = vpack.c.b16 %v732, %v732
  %v797 = vpack.c.b16 %v733, %v733
  %v798 = vpack.c.b16 %v734, %v734
  %v799 = vpack.c.b16 %v735, %v735
  %v800 = vpack.c.b16 %v736, %v736
  %v801 = vpack.c.b16 %v737, %v737
  %v802 = vpack.c.b16 %v738, %v738
  %v803 = vpack.c.b16 %v739, %v739
  %v804 = vpack.c.b16 %v740, %v740
  %v805 = vpack.c.b16 %v741, %v741
  %v806 = vpack.c.b16 %v742, %v742
  %v807 = vpack.c.b16 %v743, %v743
  %v808 = vpack.c.b16 %v744, %v744
  %v809 = vpack.c.b16 %v745, %v745
  %v810 = vpack.c.b16 %v746, %v746
  %v811 = vpack.c.b16 %v747, %v747
  %v812 = vpack.c.b16 %v748, %v748
  %v813 = vpack.c.b16 %v749, %v749
  %v814 = vpack.c.b16 %v750, %v750
  %vm879 = vcmask 257024
  %880 = vst.msk [vmem:[%s2] sm:$0xf] %vm879, %v751
  %881 = vst.msk [vmem:[%s2 + $0x4] sm:$0xf] %vm879, %v752
  %882 = vst.msk [vmem:[%s2 + $0x8] sm:$0xf] %vm879, %v753
  %883 = vst.msk [vmem:[%s2 + $0xc] sm:$0xf] %vm879, %v754
  %884 = vst.msk [vmem:[%s2 + $0x10] sm:$0xf] %vm879, %v755
  %885 = vst.msk [vmem:[%s2 + $0x14] sm:$0xf] %vm879, %v756
  %886 = vst.msk [vmem:[%s2 + $0x18] sm:$0xf] %vm879, %v757
  %887 = vst.msk [vmem:[%s2 + $0x1c] sm:$0xf] %vm879, %v758
  %888 = vst.msk [vmem:[%s2 + $0x20] sm:$0xf] %vm879, %v759
  %889 = vst.msk [vmem:[%s2 + $0x24] sm:$0xf] %vm879, %v760
  %890 = vst.msk [vmem:[%s2 + $0x28] sm:$0xf] %vm879, %v761
  %891 = vst.msk [vmem:[%s2 + $0x2c] sm:$0xf] %vm879, %v762
  %892 = vst.msk [vmem:[%s2 + $0x30] sm:$0xf] %vm879, %v763
  %893 = vst.msk [vmem:[%s2 + $0x34] sm:$0xf] %vm879, %v764
  %894 = vst.msk [vmem:[%s2 + $0x38] sm:$0xf] %vm879, %v765
  %895 = vst.msk [vmem:[%s2 + $0x3c] sm:$0xf] %vm879, %v766
  %896 = vst.msk [vmem:[%s2 + $0x40] sm:$0xf] %vm879, %v767
  %897 = vst.msk [vmem:[%s2 + $0x44] sm:$0xf] %vm879, %v768
  %898 = vst.msk [vmem:[%s2 + $0x48] sm:$0xf] %vm879, %v769
  %899 = vst.msk [vmem:[%s2 + $0x4c] sm:$0xf] %vm879, %v770
  %900 = vst.msk [vmem:[%s2 + $0x50] sm:$0xf] %vm879, %v771
  %901 = vst.msk [vmem:[%s2 + $0x54] sm:$0xf] %vm879, %v772
  %902 = vst.msk [vmem:[%s2 + $0x58] sm:$0xf] %vm879, %v773
  %903 = vst.msk [vmem:[%s2 + $0x5c] sm:$0xf] %vm879, %v774
  %904 = vst.msk [vmem:[%s2 + $0x60] sm:$0xf] %vm879, %v775
  %905 = vst.msk [vmem:[%s2 + $0x64] sm:$0xf] %vm879, %v776
  %906 = vst.msk [vmem:[%s2 + $0x68] sm:$0xf] %vm879, %v777
  %907 = vst.msk [vmem:[%s2 + $0x6c] sm:$0xf] %vm879, %v778
  %908 = vst.msk [vmem:[%s2 + $0x70] sm:$0xf] %vm879, %v779
  %909 = vst.msk [vmem:[%s2 + $0x74] sm:$0xf] %vm879, %v780
  %910 = vst.msk [vmem:[%s2 + $0x78] sm:$0xf] %vm879, %v781
  %911 = vst.msk [vmem:[%s2 + $0x7c] sm:$0xf] %vm879, %v782
  %912 = vst.msk [vmem:[%s2 + $0x80] sm:$0xf] %vm879, %v783
  %913 = vst.msk [vmem:[%s2 + $0x84] sm:$0xf] %vm879, %v784
  %914 = vst.msk [vmem:[%s2 + $0x88] sm:$0xf] %vm879, %v785
  %915 = vst.msk [vmem:[%s2 + $0x8c] sm:$0xf] %vm879, %v786
  %916 = vst.msk [vmem:[%s2 + $0x90] sm:$0xf] %vm879, %v787
  %917 = vst.msk [vmem:[%s2 + $0x94] sm:$0xf] %vm879, %v788
  %918 = vst.msk [vmem:[%s2 + $0x98] sm:$0xf] %vm879, %v789
  %919 = vst.msk [vmem:[%s2 + $0x9c] sm:$0xf] %vm879, %v790
  %920 = vst.msk [vmem:[%s2 + $0xa0] sm:$0xf] %vm879, %v791
  %921 = vst.msk [vmem:[%s2 + $0xa4] sm:$0xf] %vm879, %v792
  %922 = vst.msk [vmem:[%s2 + $0xa8] sm:$0xf] %vm879, %v793
  %923 = vst.msk [vmem:[%s2 + $0xac] sm:$0xf] %vm879, %v794
  %924 = vst.msk [vmem:[%s2 + $0xb0] sm:$0xf] %vm879, %v795
  %925 = vst.msk [vmem:[%s2 + $0xb4] sm:$0xf] %vm879, %v796
  %926 = vst.msk [vmem:[%s2 + $0xb8] sm:$0xf] %vm879, %v797
  %927 = vst.msk [vmem:[%s2 + $0xbc] sm:$0xf] %vm879, %v798
  %928 = vst.msk [vmem:[%s2 + $0xc0] sm:$0xf] %vm879, %v799
  %929 = vst.msk [vmem:[%s2 + $0xc4] sm:$0xf] %vm879, %v800
  %930 = vst.msk [vmem:[%s2 + $0xc8] sm:$0xf] %vm879, %v801
  %931 = vst.msk [vmem:[%s2 + $0xcc] sm:$0xf] %vm879, %v802
  %932 = vst.msk [vmem:[%s2 + $0xd0] sm:$0xf] %vm879, %v803
  %933 = vst.msk [vmem:[%s2 + $0xd4] sm:$0xf] %vm879, %v804
  %934 = vst.msk [vmem:[%s2 + $0xd8] sm:$0xf] %vm879, %v805
  %935 = vst.msk [vmem:[%s2 + $0xdc] sm:$0xf] %vm879, %v806
  %936 = vst.msk [vmem:[%s2 + $0xe0] sm:$0xf] %vm879, %v807
  %937 = vst.msk [vmem:[%s2 + $0xe4] sm:$0xf] %vm879, %v808
  %938 = vst.msk [vmem:[%s2 + $0xe8] sm:$0xf] %vm879, %v809
  %939 = vst.msk [vmem:[%s2 + $0xec] sm:$0xf] %vm879, %v810
  %940 = vst.msk [vmem:[%s2 + $0xf0] sm:$0xf] %vm879, %v811
  %941 = vst.msk [vmem:[%s2 + $0xf4] sm:$0xf] %vm879, %v812
  %942 = vst.msk [vmem:[%s2 + $0xf8] sm:$0xf] %vm879, %v813
  %943 = vst.msk [vmem:[%s2 + $0xfc] sm:$0xf] %vm879, %v814
  %vm944 = vcmask 261120
  %v945 = vsel %vm944, %v369, 0.0
  %v946 = vsel %vm944, %v372, 0.0
  %v947 = vadd.f32 %v945, %v946
  %v948 = vsel %vm944, %v377, 0.0
  %v949 = vadd.f32 %v947, %v948
  %v950 = vsel %vm944, %v380, 0.0
  %v951 = vadd.f32 %v949, %v950
  %v952 = vsel %vm944, %v385, 0.0
  %v953 = vadd.f32 %v951, %v952
  %v954 = vsel %vm944, %v388, 0.0
  %v955 = vadd.f32 %v953, %v954
  %v956 = vsel %vm944, %v393, 0.0
  %v957 = vadd.f32 %v955, %v956
  %v958 = vsel %vm944, %v396, 0.0
  %v959 = vadd.f32 %v957, %v958
  %v960 = vsel %vm944, %v401, 0.0
  %v961 = vadd.f32 %v959, %v960
  %v962 = vsel %vm944, %v404, 0.0
  %v963 = vadd.f32 %v961, %v962
  %v964 = vsel %vm944, %v409, 0.0
  %v965 = vadd.f32 %v963, %v964
  %v966 = vsel %vm944, %v412, 0.0
  %v967 = vadd.f32 %v965, %v966
  %v968 = vsel %vm944, %v417, 0.0
  %v969 = vadd.f32 %v967, %v968
  %v970 = vsel %vm944, %v420, 0.0
  %v971 = vadd.f32 %v969, %v970
  %v972 = vsel %vm944, %v425, 0.0
  %v973 = vadd.f32 %v971, %v972
  %v974 = vsel %vm944, %v428, 0.0
  %v975 = vadd.f32 %v973, %v974
  %v976 = vsel %vm944, %v433, 0.0
  %v977 = vadd.f32 %v975, %v976
  %v978 = vsel %vm944, %v436, 0.0
  %v979 = vadd.f32 %v977, %v978
  %v980 = vsel %vm944, %v441, 0.0
  %v981 = vadd.f32 %v979, %v980
  %v982 = vsel %vm944, %v444, 0.0
  %v983 = vadd.f32 %v981, %v982
  %v984 = vsel %vm944, %v449, 0.0
  %v985 = vadd.f32 %v983, %v984
  %v986 = vsel %vm944, %v452, 0.0
  %v987 = vadd.f32 %v985, %v986
  %v988 = vsel %vm944, %v457, 0.0
  %v989 = vadd.f32 %v987, %v988
  %v990 = vsel %vm944, %v460, 0.0
  %v991 = vadd.f32 %v989, %v990
  %v992 = vsel %vm944, %v465, 0.0
  %v993 = vadd.f32 %v991, %v992
  %v994 = vsel %vm944, %v468, 0.0
  %v995 = vadd.f32 %v993, %v994
  %v996 = vsel %vm944, %v473, 0.0
  %v997 = vadd.f32 %v995, %v996
  %v998 = vsel %vm944, %v476, 0.0
  %v999 = vadd.f32 %v997, %v998
  %v1000 = vsel %vm944, %v481, 0.0
  %v1001 = vadd.f32 %v999, %v1000
  %v1002 = vsel %vm944, %v484, 0.0
  %v1003 = vadd.f32 %v1001, %v1002
  %v1004 = vsel %vm944, %v489, 0.0
  %v1005 = vadd.f32 %v1003, %v1004
  %v1006 = vsel %vm944, %v492, 0.0
  %v1007 = vadd.f32 %v1005, %v1006
  %v1008 = vsel %vm944, %v497, 0.0
  %v1009 = vadd.f32 %v1007, %v1008
  %v1010 = vsel %vm944, %v500, 0.0
  %v1011 = vadd.f32 %v1009, %v1010
  %v1012 = vsel %vm944, %v505, 0.0
  %v1013 = vadd.f32 %v1011, %v1012
  %v1014 = vsel %vm944, %v508, 0.0
  %v1015 = vadd.f32 %v1013, %v1014
  %v1016 = vsel %vm944, %v513, 0.0
  %v1017 = vadd.f32 %v1015, %v1016
  %v1018 = vsel %vm944, %v516, 0.0
  %v1019 = vadd.f32 %v1017, %v1018
  %v1020 = vsel %vm944, %v521, 0.0
  %v1021 = vadd.f32 %v1019, %v1020
  %v1022 = vsel %vm944, %v524, 0.0
  %v1023 = vadd.f32 %v1021, %v1022
  %v1024 = vsel %vm944, %v529, 0.0
  %v1025 = vadd.f32 %v1023, %v1024
  %v1026 = vsel %vm944, %v532, 0.0
  %v1027 = vadd.f32 %v1025, %v1026
  %v1028 = vsel %vm944, %v537, 0.0
  %v1029 = vadd.f32 %v1027, %v1028
  %v1030 = vsel %vm944, %v540, 0.0
  %v1031 = vadd.f32 %v1029, %v1030
  %v1032 = vsel %vm944, %v545, 0.0
  %v1033 = vadd.f32 %v1031, %v1032
  %v1034 = vsel %vm944, %v548, 0.0
  %v1035 = vadd.f32 %v1033, %v1034
  %v1036 = vsel %vm944, %v553, 0.0
  %v1037 = vadd.f32 %v1035, %v1036
  %v1038 = vsel %vm944, %v556, 0.0
  %v1039 = vadd.f32 %v1037, %v1038
  %v1040 = vsel %vm944, %v561, 0.0
  %v1041 = vadd.f32 %v1039, %v1040
  %v1042 = vsel %vm944, %v564, 0.0
  %v1043 = vadd.f32 %v1041, %v1042
  %v1044 = vsel %vm944, %v569, 0.0
  %v1045 = vadd.f32 %v1043, %v1044
  %v1046 = vsel %vm944, %v572, 0.0
  %v1047 = vadd.f32 %v1045, %v1046
  %v1048 = vsel %vm944, %v577, 0.0
  %v1049 = vadd.f32 %v1047, %v1048
  %v1050 = vsel %vm944, %v580, 0.0
  %v1051 = vadd.f32 %v1049, %v1050
  %v1052 = vsel %vm944, %v585, 0.0
  %v1053 = vadd.f32 %v1051, %v1052
  %v1054 = vsel %vm944, %v588, 0.0
  %v1055 = vadd.f32 %v1053, %v1054
  %v1056 = vsel %vm944, %v593, 0.0
  %v1057 = vadd.f32 %v1055, %v1056
  %v1058 = vsel %vm944, %v596, 0.0
  %v1059 = vadd.f32 %v1057, %v1058
  %v1060 = vsel %vm944, %v601, 0.0
  %v1061 = vadd.f32 %v1059, %v1060
  %v1062 = vsel %vm944, %v604, 0.0
  %v1063 = vadd.f32 %v1061, %v1062
  %v1064 = vsel %vm944, %v609, 0.0
  %v1065 = vadd.f32 %v1063, %v1064
  %v1066 = vsel %vm944, %v612, 0.0
  %v1067 = vadd.f32 %v1065, %v1066
  %v1068 = vsel %vm944, %v617, 0.0
  %v1069 = vadd.f32 %v1067, %v1068
  %v1070 = vsel %vm944, %v620, 0.0
  %v1071 = vadd.f32 %v1069, %v1070
  %v1072 = vrot.slane %v1071, 4
  %v1073 = vadd.f32 %v1071, %v1072
  %v1074 = vrot.slane %v1073, 2
  %v1075 = vadd.f32 %v1073, %v1074
  %v1076 = vrot.slane %v1075, 1
  %v1077 = vadd.f32 %v1075, %v1076
  %v1078 = vmul.f32 %v369, %v369
  %v1079 = vmul.f32 %v372, %v372
  %v1080 = vmul.f32 %v377, %v377
  %v1081 = vmul.f32 %v380, %v380
  %v1082 = vmul.f32 %v385, %v385
  %v1083 = vmul.f32 %v388, %v388
  %v1084 = vmul.f32 %v393, %v393
  %v1085 = vmul.f32 %v396, %v396
  %v1086 = vmul.f32 %v401, %v401
  %v1087 = vmul.f32 %v404, %v404
  %v1088 = vmul.f32 %v409, %v409
  %v1089 = vmul.f32 %v412, %v412
  %v1090 = vmul.f32 %v417, %v417
  %v1091 = vmul.f32 %v420, %v420
  %v1092 = vmul.f32 %v425, %v425
  %v1093 = vmul.f32 %v428, %v428
  %v1094 = vmul.f32 %v433, %v433
  %v1095 = vmul.f32 %v436, %v436
  %v1096 = vmul.f32 %v441, %v441
  %v1097 = vmul.f32 %v444, %v444
  %v1098 = vmul.f32 %v449, %v449
  %v1099 = vmul.f32 %v452, %v452
  %v1100 = vmul.f32 %v457, %v457
  %v1101 = vmul.f32 %v460, %v460
  %v1102 = vmul.f32 %v465, %v465
  %v1103 = vmul.f32 %v468, %v468
  %v1104 = vmul.f32 %v473, %v473
  %v1105 = vmul.f32 %v476, %v476
  %v1106 = vmul.f32 %v481, %v481
  %v1107 = vmul.f32 %v484, %v484
  %v1108 = vmul.f32 %v489, %v489
  %v1109 = vmul.f32 %v492, %v492
  %v1110 = vmul.f32 %v497, %v497
  %v1111 = vmul.f32 %v500, %v500
  %v1112 = vmul.f32 %v505, %v505
  %v1113 = vmul.f32 %v508, %v508
  %v1114 = vmul.f32 %v513, %v513
  %v1115 = vmul.f32 %v516, %v516
  %v1116 = vmul.f32 %v521, %v521
  %v1117 = vmul.f32 %v524, %v524
  %v1118 = vmul.f32 %v529, %v529
  %v1119 = vmul.f32 %v532, %v532
  %v1120 = vmul.f32 %v537, %v537
  %v1121 = vmul.f32 %v540, %v540
  %v1122 = vmul.f32 %v545, %v545
  %v1123 = vmul.f32 %v548, %v548
  %v1124 = vmul.f32 %v553, %v553
  %v1125 = vmul.f32 %v556, %v556
  %v1126 = vmul.f32 %v561, %v561
  %v1127 = vmul.f32 %v564, %v564
  %v1128 = vmul.f32 %v569, %v569
  %v1129 = vmul.f32 %v572, %v572
  %v1130 = vmul.f32 %v577, %v577
  %v1131 = vmul.f32 %v580, %v580
  %v1132 = vmul.f32 %v585, %v585
  %v1133 = vmul.f32 %v588, %v588
  %v1134 = vmul.f32 %v593, %v593
  %v1135 = vmul.f32 %v596, %v596
  %v1136 = vmul.f32 %v601, %v601
  %v1137 = vmul.f32 %v604, %v604
  %v1138 = vmul.f32 %v609, %v609
  %v1139 = vmul.f32 %v612, %v612
  %v1140 = vmul.f32 %v617, %v617
  %v1141 = vmul.f32 %v620, %v620
  %v1142 = vsel %vm944, %v1078, 0.0
  %v1143 = vsel %vm944, %v1079, 0.0
  %v1144 = vadd.f32 %v1142, %v1143
  %v1145 = vsel %vm944, %v1080, 0.0
  %v1146 = vadd.f32 %v1144, %v1145
  %v1147 = vsel %vm944, %v1081, 0.0
  %v1148 = vadd.f32 %v1146, %v1147
  %v1149 = vsel %vm944, %v1082, 0.0
  %v1150 = vadd.f32 %v1148, %v1149
  %v1151 = vsel %vm944, %v1083, 0.0
  %v1152 = vadd.f32 %v1150, %v1151
  %v1153 = vsel %vm944, %v1084, 0.0
  %v1154 = vadd.f32 %v1152, %v1153
  %v1155 = vsel %vm944, %v1085, 0.0
  %v1156 = vadd.f32 %v1154, %v1155
  %v1157 = vsel %vm944, %v1086, 0.0
  %v1158 = vadd.f32 %v1156, %v1157
  %v1159 = vsel %vm944, %v1087, 0.0
  %v1160 = vadd.f32 %v1158, %v1159
  %v1161 = vsel %vm944, %v1088, 0.0
  %v1162 = vadd.f32 %v1160, %v1161
  %v1163 = vsel %vm944, %v1089, 0.0
  %v1164 = vadd.f32 %v1162, %v1163
  %v1165 = vsel %vm944, %v1090, 0.0
  %v1166 = vadd.f32 %v1164, %v1165
  %v1167 = vsel %vm944, %v1091, 0.0
  %v1168 = vadd.f32 %v1166, %v1167
  %v1169 = vsel %vm944, %v1092, 0.0
  %v1170 = vadd.f32 %v1168, %v1169
  %v1171 = vsel %vm944, %v1093, 0.0
  %v1172 = vadd.f32 %v1170, %v1171
  %v1173 = vsel %vm944, %v1094, 0.0
  %v1174 = vadd.f32 %v1172, %v1173
  %v1175 = vsel %vm944, %v1095, 0.0
  %v1176 = vadd.f32 %v1174, %v1175
  %v1177 = vsel %vm944, %v1096, 0.0
  %v1178 = vadd.f32 %v1176, %v1177
  %v1179 = vsel %vm944, %v1097, 0.0
  %v1180 = vadd.f32 %v1178, %v1179
  %v1181 = vsel %vm944, %v1098, 0.0
  %v1182 = vadd.f32 %v1180, %v1181
  %v1183 = vsel %vm944, %v1099, 0.0
  %v1184 = vadd.f32 %v1182, %v1183
  %v1185 = vsel %vm944, %v1100, 0.0
  %v1186 = vadd.f32 %v1184, %v1185
  %v1187 = vsel %vm944, %v1101, 0.0
  %v1188 = vadd.f32 %v1186, %v1187
  %v1189 = vsel %vm944, %v1102, 0.0
  %v1190 = vadd.f32 %v1188, %v1189
  %v1191 = vsel %vm944, %v1103, 0.0
  %v1192 = vadd.f32 %v1190, %v1191
  %v1193 = vsel %vm944, %v1104, 0.0
  %v1194 = vadd.f32 %v1192, %v1193
  %v1195 = vsel %vm944, %v1105, 0.0
  %v1196 = vadd.f32 %v1194, %v1195
  %v1197 = vsel %vm944, %v1106, 0.0
  %v1198 = vadd.f32 %v1196, %v1197
  %v1199 = vsel %vm944, %v1107, 0.0
  %v1200 = vadd.f32 %v1198, %v1199
  %v1201 = vsel %vm944, %v1108, 0.0
  %v1202 = vadd.f32 %v1200, %v1201
  %v1203 = vsel %vm944, %v1109, 0.0
  %v1204 = vadd.f32 %v1202, %v1203
  %v1205 = vsel %vm944, %v1110, 0.0
  %v1206 = vadd.f32 %v1204, %v1205
  %v1207 = vsel %vm944, %v1111, 0.0
  %v1208 = vadd.f32 %v1206, %v1207
  %v1209 = vsel %vm944, %v1112, 0.0
  %v1210 = vadd.f32 %v1208, %v1209
  %v1211 = vsel %vm944, %v1113, 0.0
  %v1212 = vadd.f32 %v1210, %v1211
  %v1213 = vsel %vm944, %v1114, 0.0
  %v1214 = vadd.f32 %v1212, %v1213
  %v1215 = vsel %vm944, %v1115, 0.0
  %v1216 = vadd.f32 %v1214, %v1215
  %v1217 = vsel %vm944, %v1116, 0.0
  %v1218 = vadd.f32 %v1216, %v1217
  %v1219 = vsel %vm944, %v1117, 0.0
  %v1220 = vadd.f32 %v1218, %v1219
  %v1221 = vsel %vm944, %v1118, 0.0
  %v1222 = vadd.f32 %v1220, %v1221
  %v1223 = vsel %vm944, %v1119, 0.0
  %v1224 = vadd.f32 %v1222, %v1223
  %v1225 = vsel %vm944, %v1120, 0.0
  %v1226 = vadd.f32 %v1224, %v1225
  %v1227 = vsel %vm944, %v1121, 0.0
  %v1228 = vadd.f32 %v1226, %v1227
  %v1229 = vsel %vm944, %v1122, 0.0
  %v1230 = vadd.f32 %v1228, %v1229
  %v1231 = vsel %vm944, %v1123, 0.0
  %v1232 = vadd.f32 %v1230, %v1231
  %v1233 = vsel %vm944, %v1124, 0.0
  %v1234 = vadd.f32 %v1232, %v1233
  %v1235 = vsel %vm944, %v1125, 0.0
  %v1236 = vadd.f32 %v1234, %v1235
  %v1237 = vsel %vm944, %v1126, 0.0
  %v1238 = vadd.f32 %v1236, %v1237
  %v1239 = vsel %vm944, %v1127, 0.0
  %v1240 = vadd.f32 %v1238, %v1239
  %v1241 = vsel %vm944, %v1128, 0.0
  %v1242 = vadd.f32 %v1240, %v1241
  %v1243 = vsel %vm944, %v1129, 0.0
  %v1244 = vadd.f32 %v1242, %v1243
  %v1245 = vsel %vm944, %v1130, 0.0
  %v1246 = vadd.f32 %v1244, %v1245
  %v1247 = vsel %vm944, %v1131, 0.0
  %v1248 = vadd.f32 %v1246, %v1247
  %v1249 = vsel %vm944, %v1132, 0.0
  %v1250 = vadd.f32 %v1248, %v1249
  %v1251 = vsel %vm944, %v1133, 0.0
  %v1252 = vadd.f32 %v1250, %v1251
  %v1253 = vsel %vm944, %v1134, 0.0
  %v1254 = vadd.f32 %v1252, %v1253
  %v1255 = vsel %vm944, %v1135, 0.0
  %v1256 = vadd.f32 %v1254, %v1255
  %v1257 = vsel %vm944, %v1136, 0.0
  %v1258 = vadd.f32 %v1256, %v1257
  %v1259 = vsel %vm944, %v1137, 0.0
  %v1260 = vadd.f32 %v1258, %v1259
  %v1261 = vsel %vm944, %v1138, 0.0
  %v1262 = vadd.f32 %v1260, %v1261
  %v1263 = vsel %vm944, %v1139, 0.0
  %v1264 = vadd.f32 %v1262, %v1263
  %v1265 = vsel %vm944, %v1140, 0.0
  %v1266 = vadd.f32 %v1264, %v1265
  %v1267 = vsel %vm944, %v1141, 0.0
  %v1268 = vadd.f32 %v1266, %v1267
  %v1269 = vrot.slane %v1268, 4
  %v1270 = vadd.f32 %v1268, %v1269
  %v1271 = vrot.slane %v1270, 2
  %v1272 = vadd.f32 %v1270, %v1271
  %v1273 = vrot.slane %v1272, 1
  %v1274 = vadd.f32 %v1272, %v1273
  %vm1275 = vcmask 1040384
  %v1276 = vsel %vm1275, %v1077, %v1274
  %vm1277 = vcmask 254976
  %1278 = vst.msk [vmem:[%s3] sm:$0x3] %vm1277, %v1276
  // Predicated region
  $region10: #{bottleneck_forward.4} parent=0 // pred_check
    _
  $region11: #{bottleneck_forward.4} parent=0 // pred_check_branch
    %1280 = sbr.rel (0) target = $region13
  $region12: #{bottleneck_forward.4} parent=0 // pred_region
    _
  $region13: #{bottleneck_forward.4} parent=0 // pred_fallthru
    _
  // Predicated region
  $region14: #{bottleneck_forward.4} parent=0 // pred_check
    _
  $region15: #{bottleneck_forward.4} parent=0 // pred_check_branch
    %1282 = sbr.rel (0) target = $region17
  $region16: #{bottleneck_forward.4} parent=0 // pred_region
    _
  $region17: #{bottleneck_forward.4} parent=0 // pred_fallthru
    _
  // Predicated region
  $region18: #{bottleneck_forward.4} parent=0 // pred_check
    _
  $region19: #{bottleneck_forward.4} parent=0 // pred_check_branch
    %1284 = sbr.rel (0) target = $region21
  $region20: #{bottleneck_forward.4} parent=0 // pred_region
    _
  $region21: #{bottleneck_forward.4} parent=0 // pred_fallthru
    _
  // Predicated region
  $region22: #{bottleneck_forward.4} parent=0 // pred_check
    _
  $region23: #{bottleneck_forward.4} parent=0 // pred_check_branch
    %1286 = sbr.rel (0) target = $region25
  $region24: #{bottleneck_forward.4} parent=0 // pred_region
    _
  $region25: #{bottleneck_forward.4} parent=0 // pred_fallthru
    _

// kernel: bottleneck_forward.5
$region0: #{bottleneck_forward.5}
  #allocation0 [shape = 'u32[]', space=smem, size = 0x4, offset = 0x4, fixed_abs, tag = 'smem constant byte address 0x4 - core index']
  #allocation1 [shape = 'u32[144,128]{1,0:T(1,128)}', space=vmem, size = 0x12000, scoped, tag = 'internal scratch']
  #allocation2 [shape = 'bf16[328,32]{1,0:T(8,128)(2,1)}', space=vmem, size = 0x14800, scoped, tag = 'scratch operand']
  #allocation3 [shape = 'bf16[256,288]{1,0:T(8,128)(2,1)}', space=vmem, size = 0x30000, scoped, tag = 'scratch operand']
  %s0 = inlined_call_operand.vmem [shape: bf16[512,32], index: 0, kind: input, shape index: {}]
  %s1 = inlined_call_operand.vmem [shape: bf16[288,32], index: 1, kind: input, shape index: {}]
  %s2 = inlined_call_operand.vmem [shape: f32[1,32], index: 2, kind: input, shape index: {}]
  %s3 = inlined_call_operand.vmem [shape: f32[1,32], index: 3, kind: input, shape index: {}]
  %s4 = inlined_call_operand.vmem [shape: bf16[512,32], index: 4, kind: output, shape index: {0}]
  %s5 = inlined_call_operand.vmem [shape: f32[2,2,32], index: 5, kind: output, shape index: {1}]
  %6 = xla_tuple %s4, %s5
  %s7 = sld [smem:[#allocation0]]
  $region57: #{bottleneck_forward.5} parent=0
    _
  %s9 = ssub.s32 1, %s7
  %s10 = scalar_select 0, %s9, %s7
  loop: start=0, step=1, limit=4
  $region2: #{bottleneck_forward.5} parent=0 // loop_pre_header
    _
  $region3: #{bottleneck_forward.5} parent=0 // loop_header
    %s12 = sphi 0, %s16
    %p13 = scmp.ge.s32.totalorder %s12, 4
    %s22 = sphi 0, %s24
    %s25 = sphi 0, %s22
    %s26 = sphi 0, %s25
    %s42 = sphi 0, %s26
    %s46 = sphi 0, %s46
    %s48 = sphi 0, %s46
    %s49 = sphi 0, %s48
    %s63 = sphi 0, %s49
    %s67 = sphi 0, %s67
    %s69 = sphi 0, %s67
    %s70 = sphi 0, %s69
    %s84 = sphi 0, %s70
    %s88 = sphi 0, %s88
    %s90 = sphi 0, %s88
    %s91 = sphi 0, %s90
    %s105 = sphi 0, %s91
    %s111 = sphi 0, %s113
    %s114 = sphi 0, %s111
    %s115 = sphi 0, %s114
    %s131 = sphi 0, %s115
    %s137 = sphi 0, %s139
    %s140 = sphi 0, %s137
    %s141 = sphi 0, %s140
    %s157 = sphi 0, %s141
  $region4: #{bottleneck_forward.5} parent=0 // loop_header_branch
    %15 = sbr.rel (%p13) target = $region8
  $region5: #{bottleneck_forward.5} parent=0 // loop_body
    %s17 = ssub.s32 %s12, 1
    %s18 = ssub.s32 %s12, 2
    %s19 = sadd.s32 %s12, 1
    %s20 = ssub.s32 %s12, %s19
    %p21 = scmp.eq.s32.totalorder %s20, 0
    %s23 = sadd.s32 %s22, 1
    %s24 = scalar_select %p21, %s22, %s23
    %p27 = pneg %p21
    %p28 = scmp.eq.s32.totalorder %s12, 1
    %p29 = por %p27, %p28
    %p30 = scmp.ne.s32.totalorder %s22, %s25
    %p31 = scmp.eq.s32.totalorder %s12, 0
    %p32 = por %p30, %p31
    %p33 = scmp.ne.s32.totalorder %s22, %s25
    %p34 = scmp.eq.s32.totalorder %s17, 1
    %p35 = por %p33, %p34
    %p36 = scmp.ne.s32.totalorder %s25, %s26
    %p37 = scmp.eq.s32.totalorder %s17, 0
    %p38 = por %p36, %p37
    %p39 = scmp.ne.s32.totalorder %s25, %s26
    %p40 = scmp.eq.s32.totalorder %s18, 1
    %p41 = por %p39, %p40
    %p43 = scmp.ne.s32.totalorder %s26, %s42
    %p44 = scmp.eq.s32.totalorder %s18, 0
    %p45 = por %p43, %p44
    %s47 = sadd.s32 %s46, 1
    %p50 = scmp.eq.s32.totalorder %s12, 1
    %p51 = scmp.ne.s32.totalorder %s46, %s48
    %p52 = scmp.eq.s32.totalorder %s12, 0
    %p53 = por %p51, %p52
    %p54 = scmp.ne.s32.totalorder %s46, %s48
    %p55 = scmp.eq.s32.totalorder %s17, 1
    %p56 = por %p54, %p55
    %p57 = scmp.ne.s32.totalorder %s48, %s49
    %p58 = scmp.eq.s32.totalorder %s17, 0
    %p59 = por %p57, %p58
    %p60 = scmp.ne.s32.totalorder %s48, %s49
    %p61 = scmp.eq.s32.totalorder %s18, 1
    %p62 = por %p60, %p61
    %p64 = scmp.ne.s32.totalorder %s49, %s63
    %p65 = scmp.eq.s32.totalorder %s18, 0
    %p66 = por %p64, %p65
    %s68 = sadd.s32 %s67, 1
    %p71 = scmp.eq.s32.totalorder %s12, 1
    %p72 = scmp.ne.s32.totalorder %s67, %s69
    %p73 = scmp.eq.s32.totalorder %s12, 0
    %p74 = por %p72, %p73
    %p75 = scmp.ne.s32.totalorder %s67, %s69
    %p76 = scmp.eq.s32.totalorder %s17, 1
    %p77 = por %p75, %p76
    %p78 = scmp.ne.s32.totalorder %s69, %s70
    %p79 = scmp.eq.s32.totalorder %s17, 0
    %p80 = por %p78, %p79
    %p81 = scmp.ne.s32.totalorder %s69, %s70
    %p82 = scmp.eq.s32.totalorder %s18, 1
    %p83 = por %p81, %p82
    %p85 = scmp.ne.s32.totalorder %s70, %s84
    %p86 = scmp.eq.s32.totalorder %s18, 0
    %p87 = por %p85, %p86
    %s89 = sadd.s32 %s88, 1
    %p92 = scmp.eq.s32.totalorder %s12, 1
    %p93 = scmp.ne.s32.totalorder %s88, %s90
    %p94 = scmp.eq.s32.totalorder %s12, 0
    %p95 = por %p93, %p94
    %p96 = scmp.ne.s32.totalorder %s88, %s90
    %p97 = scmp.eq.s32.totalorder %s17, 1
    %p98 = por %p96, %p97
    %p99 = scmp.ne.s32.totalorder %s90, %s91
    %p100 = scmp.eq.s32.totalorder %s17, 0
    %p101 = por %p99, %p100
    %p102 = scmp.ne.s32.totalorder %s90, %s91
    %p103 = scmp.eq.s32.totalorder %s18, 1
    %p104 = por %p102, %p103
    %p106 = scmp.ne.s32.totalorder %s91, %s105
    %p107 = scmp.eq.s32.totalorder %s18, 0
    %p108 = por %p106, %p107
    %s109 = ssub.s32 %s12, %s19
    %p110 = scmp.eq.s32.totalorder %s109, 0
    %s112 = sadd.s32 %s111, 1
    %s113 = scalar_select %p110, %s111, %s112
    %p116 = pneg %p110
    %p117 = scmp.eq.s32.totalorder %s12, 1
    %p118 = por %p116, %p117
    %p119 = scmp.ne.s32.totalorder %s111, %s114
    %p120 = scmp.eq.s32.totalorder %s12, 0
    %p121 = por %p119, %p120
    %p122 = scmp.ne.s32.totalorder %s111, %s114
    %p123 = scmp.eq.s32.totalorder %s17, 1
    %p124 = por %p122, %p123
    %p125 = scmp.ne.s32.totalorder %s114, %s115
    %p126 = scmp.eq.s32.totalorder %s17, 0
    %p127 = por %p125, %p126
    %p128 = scmp.ne.s32.totalorder %s114, %s115
    %p129 = scmp.eq.s32.totalorder %s18, 1
    %p130 = por %p128, %p129
    %p132 = scmp.ne.s32.totalorder %s115, %s131
    %p133 = scmp.eq.s32.totalorder %s18, 0
    %p134 = por %p132, %p133
    %s135 = ssub.s32 %s12, %s19
    %p136 = scmp.eq.s32.totalorder %s135, 0
    %s138 = sadd.s32 %s137, 1
    %s139 = scalar_select %p136, %s137, %s138
    %p142 = pneg %p136
    %p143 = scmp.eq.s32.totalorder %s12, 1
    %p144 = por %p142, %p143
    %p145 = scmp.ne.s32.totalorder %s137, %s140
    %p146 = scmp.eq.s32.totalorder %s12, 0
    %p147 = por %p145, %p146
    %p148 = scmp.ne.s32.totalorder %s137, %s140
    %p149 = scmp.eq.s32.totalorder %s17, 1
    %p150 = por %p148, %p149
    %p151 = scmp.ne.s32.totalorder %s140, %s141
    %p152 = scmp.eq.s32.totalorder %s17, 0
    %p153 = por %p151, %p152
    %p154 = scmp.ne.s32.totalorder %s140, %s141
    %p155 = scmp.eq.s32.totalorder %s18, 1
    %p156 = por %p154, %p155
    %p158 = scmp.ne.s32.totalorder %s141, %s157
    %p159 = scmp.eq.s32.totalorder %s18, 0
    %p160 = por %p158, %p159
    %p161 = scmp.le.s32.totalorder 1, %s12
    %p162 = scmp.lt.s32.totalorder %s12, 3
    %p163 = pnand %p161, %p162
    %p164 = pneg %p163
    // Predicated region
    $region9: #{bottleneck_forward.5} parent=5 // pred_check
      _
    $region10: #{bottleneck_forward.5} parent=5 // pred_check_branch
      %166 = sbr.rel (%p163) target = $region12
    $region11: #{bottleneck_forward.5} parent=5 // pred_region
      %s167 = ssub.s32 %s12, 1
      // Predicated region
      $region13: #{bottleneck_forward.5} parent=11 // pred_check
        %p168 = pneg %p59
      $region14: #{bottleneck_forward.5} parent=11 // pred_check_branch
        %170 = sbr.rel (%p168) target = $region16
      $region15: #{bottleneck_forward.5} parent=11 // pred_region
        _
      $region16: #{bottleneck_forward.5} parent=11 // pred_fallthru
        _
      // Predicated region
      $region17: #{bottleneck_forward.5} parent=11 // pred_check
        %p171 = pneg %p80
      $region18: #{bottleneck_forward.5} parent=11 // pred_check_branch
        %173 = sbr.rel (%p171) target = $region20
      $region19: #{bottleneck_forward.5} parent=11 // pred_region
        _
      $region20: #{bottleneck_forward.5} parent=11 // pred_fallthru
        _
      // Predicated region
      $region21: #{bottleneck_forward.5} parent=11 // pred_check
        %p174 = pneg %p101
      $region22: #{bottleneck_forward.5} parent=11 // pred_check_branch
        %176 = sbr.rel (%p174) target = $region24
      $region23: #{bottleneck_forward.5} parent=11 // pred_region
        _
      $region24: #{bottleneck_forward.5} parent=11 // pred_fallthru
        _
    $region12: #{bottleneck_forward.5} parent=5 // pred_fallthru
      _
    %p177 = scmp.lt.s32.totalorder %s12, 2
    // Predicated region
    $region25: #{bottleneck_forward.5} parent=5 // pred_check
      %p178 = pneg %p177
    $region26: #{bottleneck_forward.5} parent=5 // pred_check_branch
      %180 = sbr.rel (%p178) target = $region28
    $region27: #{bottleneck_forward.5} parent=5 // pred_region
      // Predicated region
      $region29: #{bottleneck_forward.5} parent=27 // pred_check
        %p181 = pneg %p32
      $region30: #{bottleneck_forward.5} parent=27 // pred_check_branch
        %183 = sbr.rel (%p181) target = $region32
      $region31: #{bottleneck_forward.5} parent=27 // pred_region
        %s184 = smul.u32 32, %s12
        %p185 = scmp.lt.s32.totalorder %s184, 63
        %s186 = scalar_select %p185, %s184, 63
        %s187 = smul.addr %s186, 4
        %s188 = scalar_lea.vmem %s0, %s187
        %s189 = smul.u32 32, %s12
      $region32: #{bottleneck_forward.5} parent=27 // pred_fallthru
        _
    $region28: #{bottleneck_forward.5} parent=5 // pred_fallthru
      _
    %p190 = scmp.le.s32.totalorder 1, %s12
    %p191 = scmp.lt.s32.totalorder %s12, 3
    %p192 = pnand %p190, %p191
    %p193 = pneg %p192
    // Predicated region
    $region33: #{bottleneck_forward.5} parent=5 // pred_check
      _
    $region34: #{bottleneck_forward.5} parent=5 // pred_check_branch
      %195 = sbr.rel (%p192) target = $region36
    $region35: #{bottleneck_forward.5} parent=5 // pred_region
      %s196 = ssub.s32 %s12, 1
      %s197 = smul.u32 32, %s17
      %p198 = scmp.lt.s32.totalorder %s197, 63
      %s199 = scalar_select %p198, %s197, 63
      %s200 = smul.addr %s199, 4
      %s201 = scalar_lea.vmem %s0, %s200
      %p202 = pneg %p38
      %p203 = pneg %p35
      %p204 = pneg %p59
      %p205 = pneg %p56
      %p206 = pneg %p80
      %p207 = pneg %p77
      %p208 = pneg %p101
      %p209 = pneg %p98
      %p210 = pneg %p127
      %p211 = pneg %p124
      %s212 = smul.u32 32, %s17
      %p213 = scmp.lt.s32.totalorder %s212, 63
      %s214 = scalar_select %p213, %s212, 63
      %s215 = smul.addr %s214, 4
      %s216 = scalar_lea.vmem %s4, %s215
      %p217 = pneg %p153
      %p218 = pneg %p150
      %p219 = scmp.lt.s32.totalorder %s17, 1
      %s220 = scalar_select %p219, %s17, 1
      %s221 = smul.addr %s220, 2
      %s222 = scalar_lea.vmem %s5, %s221
      %s223 = smul.u32 32, %s17
      %p224 = scmp.lt.s32.totalorder %s223, 63
      %s225 = scalar_select %p224, %s223, 63
      %s226 = smul.addr %s225, 4
      %s227 = scalar_lea.vmem %s0, %s226
      %s228 = smul.u32 32, %s17
      %s229 = smul.u32 32, %s17
      %p230 = scmp.lt.s32.totalorder %s229, 63
      %s231 = scalar_select %p230, %s229, 63
      %s232 = smul.addr %s231, 4
      %s233 = scalar_lea.vmem %s4, %s232
      %s234 = smul.u32 32, %s17
      %p235 = scmp.lt.s32.totalorder %s17, 1
      %s236 = scalar_select %p235, %s17, 1
      %s237 = smul.addr %s236, 2
      %s238 = scalar_lea.vmem %s5, %s237
      %vm242 = vcmask 257024
      %243 = vst.msk [vmem:[#allocation2] sm:$0xf] %vm242, 0
      %244 = vst.msk [vmem:[#allocation2 + $0x4] sm:$0xf] %vm242, 0
      %245 = vst.msk [vmem:[#allocation2 + $0x8] sm:$0xf] %vm242, 0
      %246 = vst.msk [vmem:[#allocation2 + $0xc] sm:$0xf] %vm242, 0
      %vm247 = vcmask 253952
      %248 = vst.msk [vmem:[#allocation2 + $0x10] sm:$0x1] %vm247, 0
      %vm249 = vcmask 257025
      %250 = vst.msk [vmem:[#allocation2 + $0x90] sm:$0xe] %vm249, 0
      %251 = vst.msk [vmem:[#allocation2 + $0x94] sm:$0xf] %vm242, 0
      %252 = vst.msk [vmem:[#allocation2 + $0x98] sm:$0xf] %vm242, 0
      %253 = vst.msk [vmem:[#allocation2 + $0x9c] sm:$0xf] %vm242, 0
      %254 = vst.msk [vmem:[#allocation2 + $0xa0] sm:$0xf] %vm242, 0
      %v255 = vld [vmem:[%s227] sm:$0xf]
      %v256 = vld [vmem:[%s227 + $0x4] sm:$0xf]
      %v257 = vld [vmem:[%s227 + $0x8] sm:$0xf]
      %v258 = vld [vmem:[%s227 + $0xc] sm:$0xf]
      %v259 = vld [vmem:[%s227 + $0x10] sm:$0xf]
      %v260 = vld [vmem:[%s227 + $0x14] sm:$0xf]
      %v261 = vld [vmem:[%s227 + $0x18] sm:$0xf]
      %v262 = vld [vmem:[%s227 + $0x1c] sm:$0xf]
      %v263 = vld [vmem:[%s227 + $0x20] sm:$0xf]
      %v264 = vld [vmem:[%s227 + $0x24] sm:$0xf]
      %v265 = vld [vmem:[%s227 + $0x28] sm:$0xf]
      %v266 = vld [vmem:[%s227 + $0x2c] sm:$0xf]
      %v267 = vld [vmem:[%s227 + $0x30] sm:$0xf]
      %v268 = vld [vmem:[%s227 + $0x34] sm:$0xf]
      %v269 = vld [vmem:[%s227 + $0x38] sm:$0xf]
      %v270 = vld [vmem:[%s227 + $0x3c] sm:$0xf]
      %v271 = vld [vmem:[%s227 + $0x40] sm:$0xf]
      %v272 = vld [vmem:[%s227 + $0x44] sm:$0xf]
      %v273 = vld [vmem:[%s227 + $0x48] sm:$0xf]
      %v274 = vld [vmem:[%s227 + $0x4c] sm:$0xf]
      %v275 = vld [vmem:[%s227 + $0x50] sm:$0xf]
      %v276 = vld [vmem:[%s227 + $0x54] sm:$0xf]
      %v277 = vld [vmem:[%s227 + $0x58] sm:$0xf]
      %v278 = vld [vmem:[%s227 + $0x5c] sm:$0xf]
      %v279 = vld [vmem:[%s227 + $0x60] sm:$0xf]
      %v280 = vld [vmem:[%s227 + $0x64] sm:$0xf]
      %v281 = vld [vmem:[%s227 + $0x68] sm:$0xf]
      %v282 = vld [vmem:[%s227 + $0x6c] sm:$0xf]
      %v283 = vld [vmem:[%s227 + $0x70] sm:$0xf]
      %v284 = vld [vmem:[%s227 + $0x74] sm:$0xf]
      %v285 = vld [vmem:[%s227 + $0x78] sm:$0xf]
      %v286 = vld [vmem:[%s227 + $0x7c] sm:$0xf]
      %v287 = vunpack.c.l.bf16 %v255
      %v288 = vunpack.c.l.bf16 %v256
      %v289 = vunpack.c.l.bf16 %v257
      %v290 = vunpack.c.l.bf16 %v258
      %v291 = vunpack.c.l.bf16 %v259
      %v292 = vunpack.c.l.bf16 %v260
      %v293 = vunpack.c.l.bf16 %v261
      %v294 = vunpack.c.l.bf16 %v262
      %v295 = vunpack.c.l.bf16 %v263
      %v296 = vunpack.c.l.bf16 %v264
      %v297 = vunpack.c.l.bf16 %v265
      %v298 = vunpack.c.l.bf16 %v266
      %v299 = vunpack.c.l.bf16 %v267
      %v300 = vunpack.c.l.bf16 %v268
      %v301 = vunpack.c.l.bf16 %v269
      %v302 = vunpack.c.l.bf16 %v270
      %v303 = vunpack.c.l.bf16 %v271
      %v304 = vunpack.c.l.bf16 %v272
      %v305 = vunpack.c.l.bf16 %v273
      %v306 = vunpack.c.l.bf16 %v274
      %v307 = vunpack.c.l.bf16 %v275
      %v308 = vunpack.c.l.bf16 %v276
      %v309 = vunpack.c.l.bf16 %v277
      %v310 = vunpack.c.l.bf16 %v278
      %v311 = vunpack.c.l.bf16 %v279
      %v312 = vunpack.c.l.bf16 %v280
      %v313 = vunpack.c.l.bf16 %v281
      %v314 = vunpack.c.l.bf16 %v282
      %v315 = vunpack.c.l.bf16 %v283
      %v316 = vunpack.c.l.bf16 %v284
      %v317 = vunpack.c.l.bf16 %v285
      %v318 = vunpack.c.l.bf16 %v286
      %v319 = vld [vmem:[%s2] sm:$0x1]
      %v321 = vlaneseq
      %v322 = vshrl.u32 %v321, 7
      %v323 = vsub.s32 0, %v322
      %v324 = vrot.slane %v319, %v323
      %v326 = vmul.f32 %v287, %v324
      %v327 = vmul.f32 %v288, %v324
      %v328 = vmul.f32 %v289, %v324
      %v329 = vmul.f32 %v290, %v324
      %v330 = vmul.f32 %v291, %v324
      %v331 = vmul.f32 %v292, %v324
      %v332 = vmul.f32 %v293, %v324
      %v333 = vmul.f32 %v294, %v324
      %v334 = vmul.f32 %v295, %v324
      %v335 = vmul.f32 %v296, %v324
      %v336 = vmul.f32 %v297, %v324
      %v337 = vmul.f32 %v298, %v324
      %v338 = vmul.f32 %v299, %v324
      %v339 = vmul.f32 %v300, %v324
      %v340 = vmul.f32 %v301, %v324
      %v341 = vmul.f32 %v302, %v324
      %v342 = vmul.f32 %v303, %v324
      %v343 = vmul.f32 %v304, %v324
      %v344 = vmul.f32 %v305, %v324
      %v345 = vmul.f32 %v306, %v324
      %v346 = vmul.f32 %v307, %v324
      %v347 = vmul.f32 %v308, %v324
      %v348 = vmul.f32 %v309, %v324
      %v349 = vmul.f32 %v310, %v324
      %v350 = vmul.f32 %v311, %v324
      %v351 = vmul.f32 %v312, %v324
      %v352 = vmul.f32 %v313, %v324
      %v353 = vmul.f32 %v314, %v324
      %v354 = vmul.f32 %v315, %v324
      %v355 = vmul.f32 %v316, %v324
      %v356 = vmul.f32 %v317, %v324
      %v357 = vmul.f32 %v318, %v324
      %v358 = vld [vmem:[%s3] sm:$0x1]
      %v360 = vlaneseq
      %v361 = vshrl.u32 %v360, 7
      %v362 = vsub.s32 0, %v361
      %v363 = vrot.slane %v358, %v362
      %v365 = vadd.f32 %v326, %v363
      %v366 = vadd.f32 %v327, %v363
      %v367 = vadd.f32 %v328, %v363
      %v368 = vadd.f32 %v329, %v363
      %v369 = vadd.f32 %v330, %v363
      %v370 = vadd.f32 %v331, %v363
      %v371 = vadd.f32 %v332, %v363
      %v372 = vadd.f32 %v333, %v363
      %v373 = vadd.f32 %v334, %v363
      %v374 = vadd.f32 %v335, %v363
      %v375 = vadd.f32 %v336, %v363
      %v376 = vadd.f32 %v337, %v363
      %v377 = vadd.f32 %v338, %v363
      %v378 = vadd.f32 %v339, %v363
      %v379 = vadd.f32 %v340, %v363
      %v380 = vadd.f32 %v341, %v363
      %v381 = vadd.f32 %v342, %v363
      %v382 = vadd.f32 %v343, %v363
      %v383 = vadd.f32 %v344, %v363
      %v384 = vadd.f32 %v345, %v363
      %v385 = vadd.f32 %v346, %v363
      %v386 = vadd.f32 %v347, %v363
      %v387 = vadd.f32 %v348, %v363
      %v388 = vadd.f32 %v349, %v363
      %v389 = vadd.f32 %v350, %v363
      %v390 = vadd.f32 %v351, %v363
      %v391 = vadd.f32 %v352, %v363
      %v392 = vadd.f32 %v353, %v363
      %v393 = vadd.f32 %v354, %v363
      %v394 = vadd.f32 %v355, %v363
      %v395 = vadd.f32 %v356, %v363
      %v396 = vadd.f32 %v357, %v363
      %v397 = vmax.f32 %v365, 0.0
      %v398 = vmax.f32 %v366, 0.0
      %v399 = vmax.f32 %v367, 0.0
      %v400 = vmax.f32 %v368, 0.0
      %v401 = vmax.f32 %v369, 0.0
      %v402 = vmax.f32 %v370, 0.0
      %v403 = vmax.f32 %v371, 0.0
      %v404 = vmax.f32 %v372, 0.0
      %v405 = vmax.f32 %v373, 0.0
      %v406 = vmax.f32 %v374, 0.0
      %v407 = vmax.f32 %v375, 0.0
      %v408 = vmax.f32 %v376, 0.0
      %v409 = vmax.f32 %v377, 0.0
      %v410 = vmax.f32 %v378, 0.0
      %v411 = vmax.f32 %v379, 0.0
      %v412 = vmax.f32 %v380, 0.0
      %v413 = vmax.f32 %v381, 0.0
      %v414 = vmax.f32 %v382, 0.0
      %v415 = vmax.f32 %v383, 0.0
      %v416 = vmax.f32 %v384, 0.0
      %v417 = vmax.f32 %v385, 0.0
      %v418 = vmax.f32 %v386, 0.0
      %v419 = vmax.f32 %v387, 0.0
      %v420 = vmax.f32 %v388, 0.0
      %v421 = vmax.f32 %v389, 0.0
      %v422 = vmax.f32 %v390, 0.0
      %v423 = vmax.f32 %v391, 0.0
      %v424 = vmax.f32 %v392, 0.0
      %v425 = vmax.f32 %v393, 0.0
      %v426 = vmax.f32 %v394, 0.0
      %v427 = vmax.f32 %v395, 0.0
      %v428 = vmax.f32 %v396, 0.0
      %v429 = vpack.c.bf16 %v398, %v397
      %v430 = vpack.c.bf16 %v400, %v399
      %v431 = vpack.c.bf16 %v402, %v401
      %v432 = vpack.c.bf16 %v404, %v403
      %v433 = vpack.c.bf16 %v406, %v405
      %v434 = vpack.c.bf16 %v408, %v407
      %v435 = vpack.c.bf16 %v410, %v409
      %v436 = vpack.c.bf16 %v412, %v411
      %v437 = vpack.c.bf16 %v414, %v413
      %v438 = vpack.c.bf16 %v416, %v415
      %v439 = vpack.c.bf16 %v418, %v417
      %v440 = vpack.c.bf16 %v420, %v419
      %v441 = vpack.c.bf16 %v422, %v421
      %v442 = vpack.c.bf16 %v424, %v423
      %v443 = vpack.c.bf16 %v426, %v425
      %v444 = vpack.c.bf16 %v428, %v427
      %v461 = vunpack.c.l.b16 %v429
      %v462 = vunpack.c.h.b16 %v429
      %v463 = vunpack.c.l.b16 %v430
      %v464 = vunpack.c.h.b16 %v430
      %v465 = vunpack.c.l.b16 %v431
      %v466 = vunpack.c.h.b16 %v431
      %v467 = vunpack.c.l.b16 %v432
      %v468 = vunpack.c.h.b16 %v432
      %v469 = vunpack.c.l.b16 %v433
      %v470 = vunpack.c.h.b16 %v433
      %v471 = vunpack.c.l.b16 %v434
      %v472 = vunpack.c.h.b16 %v434
      %v473 = vunpack.c.l.b16 %v435
      %v474 = vunpack.c.h.b16 %v435
      %v475 = vunpack.c.l.b16 %v436
      %v476 = vunpack.c.h.b16 %v436
      %v477 = vunpack.c.l.b16 %v437
      %v478 = vunpack.c.h.b16 %v437
      %v479 = vunpack.c.l.b16 %v438
      %v480 = vunpack.c.h.b16 %v438
      %v481 = vunpack.c.l.b16 %v439
      %v482 = vunpack.c.h.b16 %v439
      %v483 = vunpack.c.l.b16 %v440
      %v484 = vunpack.c.h.b16 %v440
      %v485 = vunpack.c.l.b16 %v441
      %v486 = vunpack.c.h.b16 %v441
      %v487 = vunpack.c.l.b16 %v442
      %v488 = vunpack.c.h.b16 %v442
      %v489 = vunpack.c.l.b16 %v443
      %v490 = vunpack.c.h.b16 %v443
      %v491 = vunpack.c.l.b16 %v444
      %v492 = vunpack.c.h.b16 %v444
      %v493 = vpack.c.b16 %v461, %v461
      %v494 = vpack.c.b16 %v462, %v462
      %v495 = vpack.c.b16 %v463, %v463
      %v496 = vpack.c.b16 %v464, %v464
      %v497 = vpack.c.b16 %v465, %v465
      %v498 = vpack.c.b16 %v466, %v466
      %v499 = vpack.c.b16 %v467, %v467
      %v500 = vpack.c.b16 %v468, %v468
      %v501 = vpack.c.b16 %v469, %v469
      %v502 = vpack.c.b16 %v470, %v470
      %v503 = vpack.c.b16 %v471, %v471
      %v504 = vpack.c.b16 %v472, %v472
      %v505 = vpack.c.b16 %v473, %v473
      %v506 = vpack.c.b16 %v474, %v474
      %v507 = vpack.c.b16 %v475, %v475
      %v508 = vpack.c.b16 %v476, %v476
      %v509 = vpack.c.b16 %v477, %v477
      %v510 = vpack.c.b16 %v478, %v478
      %v511 = vpack.c.b16 %v479, %v479
      %v512 = vpack.c.b16 %v480, %v480
      %v513 = vpack.c.b16 %v481, %v481
      %v514 = vpack.c.b16 %v482, %v482
      %v515 = vpack.c.b16 %v483, %v483
      %v516 = vpack.c.b16 %v484, %v484
      %v517 = vpack.c.b16 %v485, %v485
      %v518 = vpack.c.b16 %v486, %v486
      %v519 = vpack.c.b16 %v487, %v487
      %v520 = vpack.c.b16 %v488, %v488
      %v521 = vpack.c.b16 %v489, %v489
      %v522 = vpack.c.b16 %v490, %v490
      %v523 = vpack.c.b16 %v491, %v491
      %v524 = vpack.c.b16 %v492, %v492
      %vm525 = vcmask 1040384
      %vm526 = vcmask 1044484
      %vm527 = vmor %vm525, %vm526
      %v528 = vrot.slane %v493, 7
      %v529 = vrot.slane %v528, 4
      %v530 = vrot.slane %v494, 7
      %v531 = vsel %vm527, %v529, %v530
      %v532 = vrot.slane %v530, 4
      %v533 = vrot.slane %v495, 7
      %v534 = vsel %vm527, %v532, %v533
      %v535 = vrot.slane %v533, 4
      %v536 = vrot.slane %v496, 7
      %v537 = vsel %vm527, %v535, %v536
      %v538 = vrot.slane %v536, 4
      %v539 = vrot.slane %v497, 7
      %v540 = vsel %vm527, %v538, %v539
      %v541 = vrot.slane %v539, 4
      %v542 = vrot.slane %v498, 7
      %v543 = vsel %vm527, %v541, %v542
      %v544 = vrot.slane %v542, 4
      %v545 = vrot.slane %v499, 7
      %v546 = vsel %vm527, %v544, %v545
      %v547 = vrot.slane %v545, 4
      %v548 = vrot.slane %v500, 7
      %v549 = vsel %vm527, %v547, %v548
      %v550 = vrot.slane %v548, 4
      %v551 = vrot.slane %v501, 7
      %v552 = vsel %vm527, %v550, %v551
      %v553 = vrot.slane %v551, 4
      %v554 = vrot.slane %v502, 7
      %v555 = vsel %vm527, %v553, %v554
      %v556 = vrot.slane %v554, 4
      %v557 = vrot.slane %v503, 7
      %v558 = vsel %vm527, %v556, %v557
      %v559 = vrot.slane %v557, 4
      %v560 = vrot.slane %v504, 7
      %v561 = vsel %vm527, %v559, %v560
      %v562 = vrot.slane %v560, 4
      %v563 = vrot.slane %v505, 7
      %v564 = vsel %vm527, %v562, %v563
      %v565 = vrot.slane %v563, 4
      %v566 = vrot.slane %v506, 7
      %v567 = vsel %vm527, %v565, %v566
      %v568 = vrot.slane %v566, 4
      %v569 = vrot.slane %v507, 7
      %v570 = vsel %vm527, %v568, %v569
      %v571 = vrot.slane %v569, 4
      %v572 = vrot.slane %v508, 7
      %v573 = vsel %vm527, %v571, %v572
      %v574 = vrot.slane %v572, 4
      %v575 = vrot.slane %v509, 7
      %v576 = vsel %vm527, %v574, %v575
      %v577 = vrot.slane %v575, 4
      %v578 = vrot.slane %v510, 7
      %v579 = vsel %vm527, %v577, %v578
      %v580 = vrot.slane %v578, 4
      %v581 = vrot.slane %v511, 7
      %v582 = vsel %vm527, %v580, %v581
      %v583 = vrot.slane %v581, 4
      %v584 = vrot.slane %v512, 7
      %v585 = vsel %vm527, %v583, %v584
      %v586 = vrot.slane %v584, 4
      %v587 = vrot.slane %v513, 7
      %v588 = vsel %vm527, %v586, %v587
      %v589 = vrot.slane %v587, 4
      %v590 = vrot.slane %v514, 7
      %v591 = vsel %vm527, %v589, %v590
      %v592 = vrot.slane %v590, 4
      %v593 = vrot.slane %v515, 7
      %v594 = vsel %vm527, %v592, %v593
      %v595 = vrot.slane %v593, 4
      %v596 = vrot.slane %v516, 7
      %v597 = vsel %vm527, %v595, %v596
      %v598 = vrot.slane %v596, 4
      %v599 = vrot.slane %v517, 7
      %v600 = vsel %vm527, %v598, %v599
      %v601 = vrot.slane %v599, 4
      %v602 = vrot.slane %v518, 7
      %v603 = vsel %vm527, %v601, %v602
      %v604 = vrot.slane %v602, 4
      %v605 = vrot.slane %v519, 7
      %v606 = vsel %vm527, %v604, %v605
      %v607 = vrot.slane %v605, 4
      %v608 = vrot.slane %v520, 7
      %v609 = vsel %vm527, %v607, %v608
      %v610 = vrot.slane %v608, 4
      %v611 = vrot.slane %v521, 7
      %v612 = vsel %vm527, %v610, %v611
      %v613 = vrot.slane %v611, 4
      %v614 = vrot.slane %v522, 7
      %v615 = vsel %vm527, %v613, %v614
      %v616 = vrot.slane %v614, 4
      %v617 = vrot.slane %v523, 7
      %v618 = vsel %vm527, %v616, %v617
      %v619 = vrot.slane %v617, 4
      %v620 = vrot.slane %v524, 7
      %v621 = vsel %vm527, %v619, %v620
      %v622 = vrot.slane %v620, 4
      %656 = vst.msk [vmem:[#allocation2 + $0x10] sm:$0xe] %vm249, %v528
      %657 = vst.msk [vmem:[#allocation2 + $0x14] sm:$0xf] %vm242, %v531
      %658 = vst.msk [vmem:[#allocation2 + $0x18] sm:$0xf] %vm242, %v534
      %659 = vst.msk [vmem:[#allocation2 + $0x1c] sm:$0xf] %vm242, %v537
      %660 = vst.msk [vmem:[#allocation2 + $0x20] sm:$0xf] %vm242, %v540
      %661 = vst.msk [vmem:[#allocation2 + $0x24] sm:$0xf] %vm242, %v543
      %662 = vst.msk [vmem:[#allocation2 + $0x28] sm:$0xf] %vm242, %v546
      %663 = vst.msk [vmem:[#allocation2 + $0x2c] sm:$0xf] %vm242, %v549
      %664 = vst.msk [vmem:[#allocation2 + $0x30] sm:$0xf] %vm242, %v552
      %665 = vst.msk [vmem:[#allocation2 + $0x34] sm:$0xf] %vm242, %v555
      %666 = vst.msk [vmem:[#allocation2 + $0x38] sm:$0xf] %vm242, %v558
      %667 = vst.msk [vmem:[#allocation2 + $0x3c] sm:$0xf] %vm242, %v561
      %668 = vst.msk [vmem:[#allocation2 + $0x40] sm:$0xf] %vm242, %v564
      %669 = vst.msk [vmem:[#allocation2 + $0x44] sm:$0xf] %vm242, %v567
      %670 = vst.msk [vmem:[#allocation2 + $0x48] sm:$0xf] %vm242, %v570
      %671 = vst.msk [vmem:[#allocation2 + $0x4c] sm:$0xf] %vm242, %v573
      %672 = vst.msk [vmem:[#allocation2 + $0x50] sm:$0xf] %vm242, %v576
      %673 = vst.msk [vmem:[#allocation2 + $0x54] sm:$0xf] %vm242, %v579
      %674 = vst.msk [vmem:[#allocation2 + $0x58] sm:$0xf] %vm242, %v582
      %675 = vst.msk [vmem:[#allocation2 + $0x5c] sm:$0xf] %vm242, %v585
      %676 = vst.msk [vmem:[#allocation2 + $0x60] sm:$0xf] %vm242, %v588
      %677 = vst.msk [vmem:[#allocation2 + $0x64] sm:$0xf] %vm242, %v591
      %678 = vst.msk [vmem:[#allocation2 + $0x68] sm:$0xf] %vm242, %v594
      %679 = vst.msk [vmem:[#allocation2 + $0x6c] sm:$0xf] %vm242, %v597
      %680 = vst.msk [vmem:[#allocation2 + $0x70] sm:$0xf] %vm242, %v600
      %681 = vst.msk [vmem:[#allocation2 + $0x74] sm:$0xf] %vm242, %v603
      %682 = vst.msk [vmem:[#allocation2 + $0x78] sm:$0xf] %vm242, %v606
      %683 = vst.msk [vmem:[#allocation2 + $0x7c] sm:$0xf] %vm242, %v609
      %684 = vst.msk [vmem:[#allocation2 + $0x80] sm:$0xf] %vm242, %v612
      %685 = vst.msk [vmem:[#allocation2 + $0x84] sm:$0xf] %vm242, %v615
      %686 = vst.msk [vmem:[#allocation2 + $0x88] sm:$0xf] %vm242, %v618
      %687 = vst.msk [vmem:[#allocation2 + $0x8c] sm:$0xf] %vm242, %v621
      %688 = vst.msk [vmem:[#allocation2 + $0x90] sm:$0x1] %vm247, %v622
      %v689 = vlaneseq
      %v690 = vshrl.u32 %v689, 7
      %v691 = vadd.s32 %v690, 8
      %v692 = vadd.s32 %v690, 16
      %v693 = vadd.s32 %v690, 24
      %v694 = vadd.s32 %v690, 32
      %v695 = vadd.s32 %v690, 40
      %v696 = vadd.s32 %v690, 48
      %v697 = vadd.s32 %v690, 56
      %v698 = vadd.s32 %v690, 64
      %v699 = vadd.s32 %v690, 72
      %v700 = vadd.s32 %v690, 80
      %v701 = vadd.s32 %v690, 88
      %v702 = vadd.s32 %v690, 96
      %v703 = vadd.s32 %v690, 104
      %v704 = vadd.s32 %v690, 112
      %v705 = vadd.s32 %v690, 120
      %v706 = vadd.s32 %v690, 128
      %v707 = vadd.s32 %v690, 136
      %v708 = vadd.s32 %v690, 144
      %v709 = vadd.s32 %v690, 152
      %v710 = vadd.s32 %v690, 160
      %v711 = vadd.s32 %v690, 168
      %v712 = vadd.s32 %v690, 176
      %v713 = vadd.s32 %v690, 184
      %v714 = vadd.s32 %v690, 192
      %v715 = vadd.s32 %v690, 200
      %v716 = vadd.s32 %v690, 208
      %v717 = vadd.s32 %v690, 216
      %v718 = vadd.s32 %v690, 224
      %v719 = vadd.s32 %v690, 232
      %v720 = vadd.s32 %v690, 240
      %v721 = vadd.s32 %v690, 248
      %vm722 = vcmp.lt.s32.totalorder %v690, 0
      %v723 = vsub.s32 0, %v690
      %v724 = vsel %vm722, %v723, %v690
      %v725 = vshrl.u32 %v724, 4
      %v726 = vand.u32 %v724, 15
      %v727 = vsub.s32 0, %v726
      %v728 = vsel %vm722, %v727, %v726
      %vm729 = vcmp.lt.s32.totalorder %v691, 0
      %v730 = vsub.s32 0, %v691
      %v731 = vsel %vm729, %v730, %v691
      %v732 = vshrl.u32 %v731, 4
      %v733 = vand.u32 %v731, 15
      %v734 = vsub.s32 0, %v733
      %v735 = vsel %vm729, %v734, %v733
      %vm736 = vcmp.lt.s32.totalorder %v692, 0
      %v737 = vsub.s32 0, %v692
      %v738 = vsel %vm736, %v737, %v692
      %v739 = vshrl.u32 %v738, 4
      %v740 = vand.u32 %v738, 15
      %v741 = vsub.s32 0, %v740
      %v742 = vsel %vm736, %v741, %v740
      %vm743 = vcmp.lt.s32.totalorder %v693, 0
      %v744 = vsub.s32 0, %v693
      %v745 = vsel %vm743, %v744, %v693
      %v746 = vshrl.u32 %v745, 4
      %v747 = vand.u32 %v745, 15
      %v748 = vsub.s32 0, %v747
      %v749 = vsel %vm743, %v748, %v747
      %vm750 = vcmp.lt.s32.totalorder %v694, 0
      %v751 = vsub.s32 0, %v694
      %v752 = vsel %vm750, %v751, %v694
      %v753 = vshrl.u32 %v752, 4
      %v754 = vand.u32 %v752, 15
      %v755 = vsub.s32 0, %v754
      %v756 = vsel %vm750, %v755, %v754
      %vm757 = vcmp.lt.s32.totalorder %v695, 0
      %v758 = vsub.s32 0, %v695
      %v759 = vsel %vm757, %v758, %v695
      %v760 = vshrl.u32 %v759, 4
      %v761 = vand.u32 %v759, 15
      %v762 = vsub.s32 0, %v761
      %v763 = vsel %vm757, %v762, %v761
      %vm764 = vcmp.lt.s32.totalorder %v696, 0
      %v765 = vsub.s32 0, %v696
      %v766 = vsel %vm764, %v765, %v696
      %v767 = vshrl.u32 %v766, 4
      %v768 = vand.u32 %v766, 15
      %v769 = vsub.s32 0, %v768
      %v770 = vsel %vm764, %v769, %v768
      %vm771 = vcmp.lt.s32.totalorder %v697, 0
      %v772 = vsub.s32 0, %v697
      %v773 = vsel %vm771, %v772, %v697
      %v774 = vshrl.u32 %v773, 4
      %v775 = vand.u32 %v773, 15
      %v776 = vsub.s32 0, %v775
      %v777 = vsel %vm771, %v776, %v775
      %vm778 = vcmp.lt.s32.totalorder %v698, 0
      %v779 = vsub.s32 0, %v698
      %v780 = vsel %vm778, %v779, %v698
      %v781 = vshrl.u32 %v780, 4
      %v782 = vand.u32 %v780, 15
      %v783 = vsub.s32 0, %v782
      %v784 = vsel %vm778, %v783, %v782
      %vm785 = vcmp.lt.s32.totalorder %v699, 0
      %v786 = vsub.s32 0, %v699
      %v787 = vsel %vm785, %v786, %v699
      %v788 = vshrl.u32 %v787, 4
      %v789 = vand.u32 %v787, 15
      %v790 = vsub.s32 0, %v789
      %v791 = vsel %vm785, %v790, %v789
      %vm792 = vcmp.lt.s32.totalorder %v700, 0
      %v793 = vsub.s32 0, %v700
      %v794 = vsel %vm792, %v793, %v700
      %v795 = vshrl.u32 %v794, 4
      %v796 = vand.u32 %v794, 15
      %v797 = vsub.s32 0, %v796
      %v798 = vsel %vm792, %v797, %v796
      %vm799 = vcmp.lt.s32.totalorder %v701, 0
      %v800 = vsub.s32 0, %v701
      %v801 = vsel %vm799, %v800, %v701
      %v802 = vshrl.u32 %v801, 4
      %v803 = vand.u32 %v801, 15
      %v804 = vsub.s32 0, %v803
      %v805 = vsel %vm799, %v804, %v803
      %vm806 = vcmp.lt.s32.totalorder %v702, 0
      %v807 = vsub.s32 0, %v702
      %v808 = vsel %vm806, %v807, %v702
      %v809 = vshrl.u32 %v808, 4
      %v810 = vand.u32 %v808, 15
      %v811 = vsub.s32 0, %v810
      %v812 = vsel %vm806, %v811, %v810
      %vm813 = vcmp.lt.s32.totalorder %v703, 0
      %v814 = vsub.s32 0, %v703
      %v815 = vsel %vm813, %v814, %v703
      %v816 = vshrl.u32 %v815, 4
      %v817 = vand.u32 %v815, 15
      %v818 = vsub.s32 0, %v817
      %v819 = vsel %vm813, %v818, %v817
      %vm820 = vcmp.lt.s32.totalorder %v704, 0
      %v821 = vsub.s32 0, %v704
      %v822 = vsel %vm820, %v821, %v704
      %v823 = vshrl.u32 %v822, 4
      %v824 = vand.u32 %v822, 15
      %v825 = vsub.s32 0, %v824
      %v826 = vsel %vm820, %v825, %v824
      %vm827 = vcmp.lt.s32.totalorder %v705, 0
      %v828 = vsub.s32 0, %v705
      %v829 = vsel %vm827, %v828, %v705
      %v830 = vshrl.u32 %v829, 4
      %v831 = vand.u32 %v829, 15
      %v832 = vsub.s32 0, %v831
      %v833 = vsel %vm827, %v832, %v831
      %vm834 = vcmp.lt.s32.totalorder %v706, 0
      %v835 = vsub.s32 0, %v706
      %v836 = vsel %vm834, %v835, %v706
      %v837 = vshrl.u32 %v836, 4
      %v838 = vand.u32 %v836, 15
      %v839 = vsub.s32 0, %v838
      %v840 = vsel %vm834, %v839, %v838
      %vm841 = vcmp.lt.s32.totalorder %v707, 0
      %v842 = vsub.s32 0, %v707
      %v843 = vsel %vm841, %v842, %v707
      %v844 = vshrl.u32 %v843, 4
      %v845 = vand.u32 %v843, 15
      %v846 = vsub.s32 0, %v845
      %v847 = vsel %vm841, %v846, %v845
      %vm848 = vcmp.lt.s32.totalorder %v708, 0
      %v849 = vsub.s32 0, %v708
      %v850 = vsel %vm848, %v849, %v708
      %v851 = vshrl.u32 %v850, 4
      %v852 = vand.u32 %v850, 15
      %v853 = vsub.s32 0, %v852
      %v854 = vsel %vm848, %v853, %v852
      %vm855 = vcmp.lt.s32.totalorder %v709, 0
      %v856 = vsub.s32 0, %v709
      %v857 = vsel %vm855, %v856, %v709
      %v858 = vshrl.u32 %v857, 4
      %v859 = vand.u32 %v857, 15
      %v860 = vsub.s32 0, %v859
      %v861 = vsel %vm855, %v860, %v859
      %vm862 = vcmp.lt.s32.totalorder %v710, 0
      %v863 = vsub.s32 0, %v710
      %v864 = vsel %vm862, %v863, %v710
      %v865 = vshrl.u32 %v864, 4
      %v866 = vand.u32 %v864, 15
      %v867 = vsub.s32 0, %v866
      %v868 = vsel %vm862, %v867, %v866
      %vm869 = vcmp.lt.s32.totalorder %v711, 0
      %v870 = vsub.s32 0, %v711
      %v871 = vsel %vm869, %v870, %v711
      %v872 = vshrl.u32 %v871, 4
      %v873 = vand.u32 %v871, 15
      %v874 = vsub.s32 0, %v873
      %v875 = vsel %vm869, %v874, %v873
      %vm876 = vcmp.lt.s32.totalorder %v712, 0
      %v877 = vsub.s32 0, %v712
      %v878 = vsel %vm876, %v877, %v712
      %v879 = vshrl.u32 %v878, 4
      %v880 = vand.u32 %v878, 15
      %v881 = vsub.s32 0, %v880
      %v882 = vsel %vm876, %v881, %v880
      %vm883 = vcmp.lt.s32.totalorder %v713, 0
      %v884 = vsub.s32 0, %v713
      %v885 = vsel %vm883, %v884, %v713
      %v886 = vshrl.u32 %v885, 4
      %v887 = vand.u32 %v885, 15
      %v888 = vsub.s32 0, %v887
      %v889 = vsel %vm883, %v888, %v887
      %vm890 = vcmp.lt.s32.totalorder %v714, 0
      %v891 = vsub.s32 0, %v714
      %v892 = vsel %vm890, %v891, %v714
      %v893 = vshrl.u32 %v892, 4
      %v894 = vand.u32 %v892, 15
      %v895 = vsub.s32 0, %v894
      %v896 = vsel %vm890, %v895, %v894
      %vm897 = vcmp.lt.s32.totalorder %v715, 0
      %v898 = vsub.s32 0, %v715
      %v899 = vsel %vm897, %v898, %v715
      %v900 = vshrl.u32 %v899, 4
      %v901 = vand.u32 %v899, 15
      %v902 = vsub.s32 0, %v901
      %v903 = vsel %vm897, %v902, %v901
      %vm904 = vcmp.lt.s32.totalorder %v716, 0
      %v905 = vsub.s32 0, %v716
      %v906 = vsel %vm904, %v905, %v716
      %v907 = vshrl.u32 %v906, 4
      %v908 = vand.u32 %v906, 15
      %v909 = vsub.s32 0, %v908
      %v910 = vsel %vm904, %v909, %v908
      %vm911 = vcmp.lt.s32.totalorder %v717, 0
      %v912 = vsub.s32 0, %v717
      %v913 = vsel %vm911, %v912, %v717
      %v914 = vshrl.u32 %v913, 4
      %v915 = vand.u32 %v913, 15
      %v916 = vsub.s32 0, %v915
      %v917 = vsel %vm911, %v916, %v915
      %vm918 = vcmp.lt.s32.totalorder %v718, 0
      %v919 = vsub.s32 0, %v718
      %v920 = vsel %vm918, %v919, %v718
      %v921 = vshrl.u32 %v920, 4
      %v922 = vand.u32 %v920, 15
      %v923 = vsub.s32 0, %v922
      %v924 = vsel %vm918, %v923, %v922
      %vm925 = vcmp.lt.s32.totalorder %v719, 0
      %v926 = vsub.s32 0, %v719
      %v927 = vsel %vm925, %v926, %v719
      %v928 = vshrl.u32 %v927, 4
      %v929 = vand.u32 %v927, 15
      %v930 = vsub.s32 0, %v929
      %v931 = vsel %vm925, %v930, %v929
      %vm932 = vcmp.lt.s32.totalorder %v720, 0
      %v933 = vsub.s32 0, %v720
      %v934 = vsel %vm932, %v933, %v720
      %v935 = vshrl.u32 %v934, 4
      %v936 = vand.u32 %v934, 15
      %v937 = vsub.s32 0, %v936
      %v938 = vsel %vm932, %v937, %v936
      %vm939 = vcmp.lt.s32.totalorder %v721, 0
      %v940 = vsub.s32 0, %v721
      %v941 = vsel %vm939, %v940, %v721
      %v942 = vshrl.u32 %v941, 4
      %v943 = vand.u32 %v941, 15
      %v944 = vsub.s32 0, %v943
      %v945 = vsel %vm939, %v944, %v943
      %vm946 = vcmp.ne.s32.totalorder %v728, 0
      %vm947 = vcmp.ne.s32.totalorder %v735, 0
      %vm948 = vcmp.ne.s32.totalorder %v742, 0
      %vm949 = vcmp.ne.s32.totalorder %v749, 0
      %vm950 = vcmp.ne.s32.totalorder %v756, 0
      %vm951 = vcmp.ne.s32.totalorder %v763, 0
      %vm952 = vcmp.ne.s32.totalorder %v770, 0
      %vm953 = vcmp.ne.s32.totalorder %v777, 0
      %vm954 = vcmp.ne.s32.totalorder %v784, 0
      %vm955 = vcmp.ne.s32.totalorder %v791, 0
      %vm956 = vcmp.ne.s32.totalorder %v798, 0
      %vm957 = vcmp.ne.s32.totalorder %v805, 0
      %vm958 = vcmp.ne.s32.totalorder %v812, 0
      %vm959 = vcmp.ne.s32.totalorder %v819, 0
      %vm960 = vcmp.ne.s32.totalorder %v826, 0
      %vm961 = vcmp.ne.s32.totalorder %v833, 0
      %vm962 = vcmp.ne.s32.totalorder %v840, 0
      %vm963 = vcmp.ne.s32.totalorder %v847, 0
      %vm964 = vcmp.ne.s32.totalorder %v854, 0
      %vm965 = vcmp.ne.s32.totalorder %v861, 0
      %vm966 = vcmp.ne.s32.totalorder %v868, 0
      %vm967 = vcmp.ne.s32.totalorder %v875, 0
      %vm968 = vcmp.ne.s32.totalorder %v882, 0
      %vm969 = vcmp.ne.s32.totalorder %v889, 0
      %vm970 = vcmp.ne.s32.totalorder %v896, 0
      %vm971 = vcmp.ne.s32.totalorder %v903, 0
      %vm972 = vcmp.ne.s32.totalorder %v910, 0
      %vm973 = vcmp.ne.s32.totalorder %v917, 0
      %vm974 = vcmp.ne.s32.totalorder %v924, 0
      %vm975 = vcmp.ne.s32.totalorder %v931, 0
      %vm976 = vcmp.ne.s32.totalorder %v938, 0
      %vm977 = vcmp.ne.s32.totalorder %v945, 0
      %vm978 = vcmp.lt.s32.totalorder %v728, 0
      %vm979 = vcmp.lt.s32.totalorder %v735, 0
      %vm980 = vcmp.lt.s32.totalorder %v742, 0
      %vm981 = vcmp.lt.s32.totalorder %v749, 0
      %vm982 = vcmp.lt.s32.totalorder %v756, 0
      %vm983 = vcmp.lt.s32.totalorder %v763, 0
      %vm984 = vcmp.lt.s32.totalorder %v770, 0
      %vm985 = vcmp.lt.s32.totalorder %v777, 0
      %vm986 = vcmp.lt.s32.totalorder %v784, 0
      %vm987 = vcmp.lt.s32.totalorder %v791, 0
      %vm988 = vcmp.lt.s32.totalorder %v798, 0
      %vm989 = vcmp.lt.s32.totalorder %v805, 0
      %vm990 = vcmp.lt.s32.totalorder %v812, 0
      %vm991 = vcmp.lt.s32.totalorder %v819, 0
      %vm992 = vcmp.lt.s32.totalorder %v826, 0
      %vm993 = vcmp.lt.s32.totalorder %v833, 0
      %vm994 = vcmp.lt.s32.totalorder %v840, 0
      %vm995 = vcmp.lt.s32.totalorder %v847, 0
      %vm996 = vcmp.lt.s32.totalorder %v854, 0
      %vm997 = vcmp.lt.s32.totalorder %v861, 0
      %vm998 = vcmp.lt.s32.totalorder %v868, 0
      %vm999 = vcmp.lt.s32.totalorder %v875, 0
      %vm1000 = vcmp.lt.s32.totalorder %v882, 0
      %vm1001 = vcmp.lt.s32.totalorder %v889, 0
      %vm1002 = vcmp.lt.s32.totalorder %v896, 0
      %vm1003 = vcmp.lt.s32.totalorder %v903, 0
      %vm1004 = vcmp.lt.s32.totalorder %v910, 0
      %vm1005 = vcmp.lt.s32.totalorder %v917, 0
      %vm1006 = vcmp.lt.s32.totalorder %v924, 0
      %vm1007 = vcmp.lt.s32.totalorder %v931, 0
      %vm1008 = vcmp.lt.s32.totalorder %v938, 0
      %vm1009 = vcmp.lt.s32.totalorder %v945, 0
      %vm1010 = vmand %vm978, %vm946
      %vm1011 = vmand %vm979, %vm947
      %vm1012 = vmand %vm980, %vm948
      %vm1013 = vmand %vm981, %vm949
      %vm1014 = vmand %vm982, %vm950
      %vm1015 = vmand %vm983, %vm951
      %vm1016 = vmand %vm984, %vm952
      %vm1017 = vmand %vm985, %vm953
      %vm1018 = vmand %vm986, %vm954
      %vm1019 = vmand %vm987, %vm955
      %vm1020 = vmand %vm988, %vm956
      %vm1021 = vmand %vm989, %vm957
      %vm1022 = vmand %vm990, %vm958
      %vm1023 = vmand %vm991, %vm959
      %vm1024 = vmand %vm992, %vm960
      %vm1025 = vmand %vm993, %vm961
      %vm1026 = vmand %vm994, %vm962
      %vm1027 = vmand %vm995, %vm963
      %vm1028 = vmand %vm996, %vm964
      %vm1029 = vmand %vm997, %vm965
      %vm1030 = vmand %vm998, %vm966
      %vm1031 = vmand %vm999, %vm967
      %vm1032 = vmand %vm1000, %vm968
      %vm1033 = vmand %vm1001, %vm969
      %vm1034 = vmand %vm1002, %vm970
      %vm1035 = vmand %vm1003, %vm971
      %vm1036 = vmand %vm1004, %vm972
      %vm1037 = vmand %vm1005, %vm973
      %vm1038 = vmand %vm1006, %vm974
      %vm1039 = vmand %vm1007, %vm975
      %vm1040 = vmand %vm1008, %vm976
      %vm1041 = vmand %vm1009, %vm977
      %v1042 = vadd.s32 %v728, 16
      %v1043 = vadd.s32 %v735, 16
      %v1044 = vadd.s32 %v742, 16
      %v1045 = vadd.s32 %v749, 16
      %v1046 = vadd.s32 %v756, 16
      %v1047 = vadd.s32 %v763, 16
      %v1048 = vadd.s32 %v770, 16
      %v1049 = vadd.s32 %v777, 16
      %v1050 = vadd.s32 %v784, 16
      %v1051 = vadd.s32 %v791, 16
      %v1052 = vadd.s32 %v798, 16
      %v1053 = vadd.s32 %v805, 16
      %v1054 = vadd.s32 %v812, 16
      %v1055 = vadd.s32 %v819, 16
      %v1056 = vadd.s32 %v826, 16
      %v1057 = vadd.s32 %v833, 16
      %v1058 = vadd.s32 %v840, 16
      %v1059 = vadd.s32 %v847, 16
      %v1060 = vadd.s32 %v854, 16
      %v1061 = vadd.s32 %v861, 16
      %v1062 = vadd.s32 %v868, 16
      %v1063 = vadd.s32 %v875, 16
      %v1064 = vadd.s32 %v882, 16
      %v1065 = vadd.s32 %v889, 16
      %v1066 = vadd.s32 %v896, 16
      %v1067 = vadd.s32 %v903, 16
      %v1068 = vadd.s32 %v910, 16
      %v1069 = vadd.s32 %v917, 16
      %v1070 = vadd.s32 %v924, 16
      %v1071 = vadd.s32 %v931, 16
      %v1072 = vadd.s32 %v938, 16
      %v1073 = vadd.s32 %v945, 16
      %v1074 = vsel %vm1010, %v1042, %v728
      %v1075 = vsel %vm1011, %v1043, %v735
      %v1076 = vsel %vm1012, %v1044, %v742
      %v1077 = vsel %vm1013, %v1045, %v749
      %v1078 = vsel %vm1014, %v1046, %v756
      %v1079 = vsel %vm1015, %v1047, %v763
      %v1080 = vsel %vm1016, %v1048, %v770
      %v1081 = vsel %vm1017, %v1049, %v777
      %v1082 = vsel %vm1018, %v1050, %v784
      %v1083 = vsel %vm1019, %v1051, %v791
      %v1084 = vsel %vm1020, %v1052, %v798
      %v1085 = vsel %vm1021, %v1053, %v805
      %v1086 = vsel %vm1022, %v1054, %v812
      %v1087 = vsel %vm1023, %v1055, %v819
      %v1088 = vsel %vm1024, %v1056, %v826
      %v1089 = vsel %vm1025, %v1057, %v833
      %v1090 = vsel %vm1026, %v1058, %v840
      %v1091 = vsel %vm1027, %v1059, %v847
      %v1092 = vsel %vm1028, %v1060, %v854
      %v1093 = vsel %vm1029, %v1061, %v861
      %v1094 = vsel %vm1030, %v1062, %v868
      %v1095 = vsel %vm1031, %v1063, %v875
      %v1096 = vsel %vm1032, %v1064, %v882
      %v1097 = vsel %vm1033, %v1065, %v889
      %v1098 = vsel %vm1034, %v1066, %v896
      %v1099 = vsel %vm1035, %v1067, %v903
      %v1100 = vsel %vm1036, %v1068, %v910
      %v1101 = vsel %vm1037, %v1069, %v917
      %v1102 = vsel %vm1038, %v1070, %v924
      %v1103 = vsel %vm1039, %v1071, %v931
      %v1104 = vsel %vm1040, %v1072, %v938
      %v1105 = vsel %vm1041, %v1073, %v945
      %vm1106 = vcmp.ge.s32.totalorder %v1074, 2
      %vm1107 = vcmp.ge.s32.totalorder %v1075, 2
      %vm1108 = vcmp.ge.s32.totalorder %v1076, 2
      %vm1109 = vcmp.ge.s32.totalorder %v1077, 2
      %vm1110 = vcmp.ge.s32.totalorder %v1078, 2
      %vm1111 = vcmp.ge.s32.totalorder %v1079, 2
      %vm1112 = vcmp.ge.s32.totalorder %v1080, 2
      %vm1113 = vcmp.ge.s32.totalorder %v1081, 2
      %vm1114 = vcmp.ge.s32.totalorder %v1082, 2
      %vm1115 = vcmp.ge.s32.totalorder %v1083, 2
      %vm1116 = vcmp.ge.s32.totalorder %v1084, 2
      %vm1117 = vcmp.ge.s32.totalorder %v1085, 2
      %vm1118 = vcmp.ge.s32.totalorder %v1086, 2
      %vm1119 = vcmp.ge.s32.totalorder %v1087, 2
      %vm1120 = vcmp.ge.s32.totalorder %v1088, 2
      %vm1121 = vcmp.ge.s32.totalorder %v1089, 2
      %vm1122 = vcmp.ge.s32.totalorder %v1090, 2
      %vm1123 = vcmp.ge.s32.totalorder %v1091, 2
      %vm1124 = vcmp.ge.s32.totalorder %v1092, 2
      %vm1125 = vcmp.ge.s32.totalorder %v1093, 2
      %vm1126 = vcmp.ge.s32.totalorder %v1094, 2
      %vm1127 = vcmp.ge.s32.totalorder %v1095, 2
      %vm1128 = vcmp.ge.s32.totalorder %v1096, 2
      %vm1129 = vcmp.ge.s32.totalorder %v1097, 2
      %vm1130 = vcmp.ge.s32.totalorder %v1098, 2
      %vm1131 = vcmp.ge.s32.totalorder %v1099, 2
      %vm1132 = vcmp.ge.s32.totalorder %v1100, 2
      %vm1133 = vcmp.ge.s32.totalorder %v1101, 2
      %vm1134 = vcmp.ge.s32.totalorder %v1102, 2
      %vm1135 = vcmp.ge.s32.totalorder %v1103, 2
      %vm1136 = vcmp.ge.s32.totalorder %v1104, 2
      %vm1137 = vcmp.ge.s32.totalorder %v1105, 2
      %vm1138 = vcmp.lt.s32.totalorder %v1074, 14
      %vm1139 = vcmp.lt.s32.totalorder %v1075, 14
      %vm1140 = vcmp.lt.s32.totalorder %v1076, 14
      %vm1141 = vcmp.lt.s32.totalorder %v1077, 14
      %vm1142 = vcmp.lt.s32.totalorder %v1078, 14
      %vm1143 = vcmp.lt.s32.totalorder %v1079, 14
      %vm1144 = vcmp.lt.s32.totalorder %v1080, 14
      %vm1145 = vcmp.lt.s32.totalorder %v1081, 14
      %vm1146 = vcmp.lt.s32.totalorder %v1082, 14
      %vm1147 = vcmp.lt.s32.totalorder %v1083, 14
      %vm1148 = vcmp.lt.s32.totalorder %v1084, 14
      %vm1149 = vcmp.lt.s32.totalorder %v1085, 14
      %vm1150 = vcmp.lt.s32.totalorder %v1086, 14
      %vm1151 = vcmp.lt.s32.totalorder %v1087, 14
      %vm1152 = vcmp.lt.s32.totalorder %v1088, 14
      %vm1153 = vcmp.lt.s32.totalorder %v1089, 14
      %vm1154 = vcmp.lt.s32.totalorder %v1090, 14
      %vm1155 = vcmp.lt.s32.totalorder %v1091, 14
      %vm1156 = vcmp.lt.s32.totalorder %v1092, 14
      %vm1157 = vcmp.lt.s32.totalorder %v1093, 14
      %vm1158 = vcmp.lt.s32.totalorder %v1094, 14
      %vm1159 = vcmp.lt.s32.totalorder %v1095, 14
      %vm1160 = vcmp.lt.s32.totalorder %v1096, 14
      %vm1161 = vcmp.lt.s32.totalorder %v1097, 14
      %vm1162 = vcmp.lt.s32.totalorder %v1098, 14
      %vm1163 = vcmp.lt.s32.totalorder %v1099, 14
      %vm1164 = vcmp.lt.s32.totalorder %v1100, 14
      %vm1165 = vcmp.lt.s32.totalorder %v1101, 14
      %vm1166 = vcmp.lt.s32.totalorder %v1102, 14
      %vm1167 = vcmp.lt.s32.totalorder %v1103, 14
      %vm1168 = vcmp.lt.s32.totalorder %v1104, 14
      %vm1169 = vcmp.lt.s32.totalorder %v1105, 14
      %v1170 = vld [vmem:[#allocation2] sm:$0xf]
      %v1171 = vld [vmem:[#allocation2 + $0x4] sm:$0xf]
      %v1172 = vld [vmem:[#allocation2 + $0x8] sm:$0xf]
      %v1173 = vld [vmem:[#allocation2 + $0xc] sm:$0xf]
      %v1174 = vld [vmem:[#allocation2 + $0x10] sm:$0xf]
      %v1175 = vld [vmem:[#allocation2 + $0x14] sm:$0xf]
      %v1176 = vld [vmem:[#allocation2 + $0x18] sm:$0xf]
      %v1177 = vld [vmem:[#allocation2 + $0x1c] sm:$0xf]
      %v1178 = vld [vmem:[#allocation2 + $0x20] sm:$0xf]
      %v1179 = vld [vmem:[#allocation2 + $0x24] sm:$0xf]
      %v1180 = vld [vmem:[#allocation2 + $0x28] sm:$0xf]
      %v1181 = vld [vmem:[#allocation2 + $0x2c] sm:$0xf]
      %v1182 = vld [vmem:[#allocation2 + $0x30] sm:$0xf]
      %v1183 = vld [vmem:[#allocation2 + $0x34] sm:$0xf]
      %v1184 = vld [vmem:[#allocation2 + $0x38] sm:$0xf]
      %v1185 = vld [vmem:[#allocation2 + $0x3c] sm:$0xf]
      %v1186 = vld [vmem:[#allocation2 + $0x40] sm:$0xf]
      %v1187 = vld [vmem:[#allocation2 + $0x44] sm:$0xf]
      %v1188 = vld [vmem:[#allocation2 + $0x48] sm:$0xf]
      %v1189 = vld [vmem:[#allocation2 + $0x4c] sm:$0xf]
      %v1190 = vld [vmem:[#allocation2 + $0x50] sm:$0xf]
      %v1191 = vld [vmem:[#allocation2 + $0x54] sm:$0xf]
      %v1192 = vld [vmem:[#allocation2 + $0x58] sm:$0xf]
      %v1193 = vld [vmem:[#allocation2 + $0x5c] sm:$0xf]
      %v1194 = vld [vmem:[#allocation2 + $0x60] sm:$0xf]
      %v1195 = vld [vmem:[#allocation2 + $0x64] sm:$0xf]
      %v1196 = vld [vmem:[#allocation2 + $0x68] sm:$0xf]
      %v1197 = vld [vmem:[#allocation2 + $0x6c] sm:$0xf]
      %v1198 = vld [vmem:[#allocation2 + $0x70] sm:$0xf]
      %v1199 = vld [vmem:[#allocation2 + $0x74] sm:$0xf]
      %v1200 = vld [vmem:[#allocation2 + $0x78] sm:$0xf]
      %v1201 = vld [vmem:[#allocation2 + $0x7c] sm:$0xf]
      %v1202 = vsel %vm1106, 1, 0
      %v1203 = vsel %vm1107, 1, 0
      %v1204 = vsel %vm1108, 1, 0
      %v1205 = vsel %vm1109, 1, 0
      %v1206 = vsel %vm1110, 1, 0
      %v1207 = vsel %vm1111, 1, 0
      %v1208 = vsel %vm1112, 1, 0
      %v1209 = vsel %vm1113, 1, 0
      %v1210 = vsel %vm1114, 1, 0
      %v1211 = vsel %vm1115, 1, 0
      %v1212 = vsel %vm1116, 1, 0
      %v1213 = vsel %vm1117, 1, 0
      %v1214 = vsel %vm1118, 1, 0
      %v1215 = vsel %vm1119, 1, 0
      %v1216 = vsel %vm1120, 1, 0
      %v1217 = vsel %vm1121, 1, 0
      %v1218 = vsel %vm1122, 1, 0
      %v1219 = vsel %vm1123, 1, 0
      %v1220 = vsel %vm1124, 1, 0
      %v1221 = vsel %vm1125, 1, 0
      %v1222 = vsel %vm1126, 1, 0
      %v1223 = vsel %vm1127, 1, 0
      %v1224 = vsel %vm1128, 1, 0
      %v1225 = vsel %vm1129, 1, 0
      %v1226 = vsel %vm1130, 1, 0
      %v1227 = vsel %vm1131, 1, 0
      %v1228 = vsel %vm1132, 1, 0
      %v1229 = vsel %vm1133, 1, 0
      %v1230 = vsel %vm1134, 1, 0
      %v1231 = vsel %vm1135, 1, 0
      %v1232 = vsel %vm1136, 1, 0
      %v1233 = vsel %vm1137, 1, 0
      %vm1234 = vcmp.eq.s32.totalorder %v1202, 1
      %vm1235 = vcmp.eq.s32.totalorder %v1203, 1
      %vm1236 = vcmp.eq.s32.totalorder %v1204, 1
      %vm1237 = vcmp.eq.s32.totalorder %v1205, 1
      %vm1238 = vcmp.eq.s32.totalorder %v1206, 1
      %vm1239 = vcmp.eq.s32.totalorder %v1207, 1
      %vm1240 = vcmp.eq.s32.totalorder %v1208, 1
      %vm1241 = vcmp.eq.s32.totalorder %v1209, 1
      %vm1242 = vcmp.eq.s32.totalorder %v1210, 1
      %vm1243 = vcmp.eq.s32.totalorder %v1211, 1
      %vm1244 = vcmp.eq.s32.totalorder %v1212, 1
      %vm1245 = vcmp.eq.s32.totalorder %v1213, 1
      %vm1246 = vcmp.eq.s32.totalorder %v1214, 1
      %vm1247 = vcmp.eq.s32.totalorder %v1215, 1
      %vm1248 = vcmp.eq.s32.totalorder %v1216, 1
      %vm1249 = vcmp.eq.s32.totalorder %v1217, 1
      %vm1250 = vcmp.eq.s32.totalorder %v1218, 1
      %vm1251 = vcmp.eq.s32.totalorder %v1219, 1
      %vm1252 = vcmp.eq.s32.totalorder %v1220, 1
      %vm1253 = vcmp.eq.s32.totalorder %v1221, 1
      %vm1254 = vcmp.eq.s32.totalorder %v1222, 1
      %vm1255 = vcmp.eq.s32.totalorder %v1223, 1
      %vm1256 = vcmp.eq.s32.totalorder %v1224, 1
      %vm1257 = vcmp.eq.s32.totalorder %v1225, 1
      %vm1258 = vcmp.eq.s32.totalorder %v1226, 1
      %vm1259 = vcmp.eq.s32.totalorder %v1227, 1
      %vm1260 = vcmp.eq.s32.totalorder %v1228, 1
      %vm1261 = vcmp.eq.s32.totalorder %v1229, 1
      %vm1262 = vcmp.eq.s32.totalorder %v1230, 1
      %vm1263 = vcmp.eq.s32.totalorder %v1231, 1
      %vm1264 = vcmp.eq.s32.totalorder %v1232, 1
      %vm1265 = vcmp.eq.s32.totalorder %v1233, 1
      %vm1266 = vmpackc.low %vm1234, %vm1234
      %vm1267 = vmpackc.low %vm1235, %vm1235
      %vm1268 = vmpackc.low %vm1236, %vm1236
      %vm1269 = vmpackc.low %vm1237, %vm1237
      %vm1270 = vmpackc.low %vm1238, %vm1238
      %vm1271 = vmpackc.low %vm1239, %vm1239
      %vm1272 = vmpackc.low %vm1240, %vm1240
      %vm1273 = vmpackc.low %vm1241, %vm1241
      %vm1274 = vmpackc.low %vm1242, %vm1242
      %vm1275 = vmpackc.low %vm1243, %vm1243
      %vm1276 = vmpackc.low %vm1244, %vm1244
      %vm1277 = vmpackc.low %vm1245, %vm1245
      %vm1278 = vmpackc.low %vm1246, %vm1246
      %vm1279 = vmpackc.low %vm1247, %vm1247
      %vm1280 = vmpackc.low %vm1248, %vm1248
      %vm1281 = vmpackc.low %vm1249, %vm1249
      %vm1282 = vmpackc.low %vm1250, %vm1250
      %vm1283 = vmpackc.low %vm1251, %vm1251
      %vm1284 = vmpackc.low %vm1252, %vm1252
      %vm1285 = vmpackc.low %vm1253, %vm1253
      %vm1286 = vmpackc.low %vm1254, %vm1254
      %vm1287 = vmpackc.low %vm1255, %vm1255
      %vm1288 = vmpackc.low %vm1256, %vm1256
      %vm1289 = vmpackc.low %vm1257, %vm1257
      %vm1290 = vmpackc.low %vm1258, %vm1258
      %vm1291 = vmpackc.low %vm1259, %vm1259
      %vm1292 = vmpackc.low %vm1260, %vm1260
      %vm1293 = vmpackc.low %vm1261, %vm1261
      %vm1294 = vmpackc.low %vm1262, %vm1262
      %vm1295 = vmpackc.low %vm1263, %vm1263
      %vm1296 = vmpackc.low %vm1264, %vm1264
      %vm1297 = vmpackc.low %vm1265, %vm1265
      %v1298 = vsel %vm1266, %v1170, 0
      %v1299 = vsel %vm1267, %v1171, 0
      %v1300 = vsel %vm1268, %v1172, 0
      %v1301 = vsel %vm1269, %v1173, 0
      %v1302 = vsel %vm1270, %v1174, 0
      %v1303 = vsel %vm1271, %v1175, 0
      %v1304 = vsel %vm1272, %v1176, 0
      %v1305 = vsel %vm1273, %v1177, 0
      %v1306 = vsel %vm1274, %v1178, 0
      %v1307 = vsel %vm1275, %v1179, 0
      %v1308 = vsel %vm1276, %v1180, 0
      %v1309 = vsel %vm1277, %v1181, 0
      %v1310 = vsel %vm1278, %v1182, 0
      %v1311 = vsel %vm1279, %v1183, 0
      %v1312 = vsel %vm1280, %v1184, 0
      %v1313 = vsel %vm1281, %v1185, 0
      %v1314 = vsel %vm1282, %v1186, 0
      %v1315 = vsel %vm1283, %v1187, 0
      %v1316 = vsel %vm1284, %v1188, 0
      %v1317 = vsel %vm1285, %v1189, 0
      %v1318 = vsel %vm1286, %v1190, 0
      %v1319 = vsel %vm1287, %v1191, 0
      %v1320 = vsel %vm1288, %v1192, 0
      %v1321 = vsel %vm1289, %v1193, 0
      %v1322 = vsel %vm1290, %v1194, 0
      %v1323 = vsel %vm1291, %v1195, 0
      %v1324 = vsel %vm1292, %v1196, 0
      %v1325 = vsel %vm1293, %v1197, 0
      %v1326 = vsel %vm1294, %v1198, 0
      %v1327 = vsel %vm1295, %v1199, 0
      %v1328 = vsel %vm1296, %v1200, 0
      %v1329 = vsel %vm1297, %v1201, 0
      %1330 = vst.msk [vmem:[#allocation3] sm:$0xf] %vm242, %v1298
      %1331 = vst.msk [vmem:[#allocation3 + $0xc] sm:$0xf] %vm242, %v1299
      %1332 = vst.msk [vmem:[#allocation3 + $0x18] sm:$0xf] %vm242, %v1300
      %1333 = vst.msk [vmem:[#allocation3 + $0x24] sm:$0xf] %vm242, %v1301
      %1334 = vst.msk [vmem:[#allocation3 + $0x30] sm:$0xf] %vm242, %v1302
      %1335 = vst.msk [vmem:[#allocation3 + $0x3c] sm:$0xf] %vm242, %v1303
      %1336 = vst.msk [vmem:[#allocation3 + $0x48] sm:$0xf] %vm242, %v1304
      %1337 = vst.msk [vmem:[#allocation3 + $0x54] sm:$0xf] %vm242, %v1305
      %1338 = vst.msk [vmem:[#allocation3 + $0x60] sm:$0xf] %vm242, %v1306
      %1339 = vst.msk [vmem:[#allocation3 + $0x6c] sm:$0xf] %vm242, %v1307
      %1340 = vst.msk [vmem:[#allocation3 + $0x78] sm:$0xf] %vm242, %v1308
      %1341 = vst.msk [vmem:[#allocation3 + $0x84] sm:$0xf] %vm242, %v1309
      %1342 = vst.msk [vmem:[#allocation3 + $0x90] sm:$0xf] %vm242, %v1310
      %1343 = vst.msk [vmem:[#allocation3 + $0x9c] sm:$0xf] %vm242, %v1311
      %1344 = vst.msk [vmem:[#allocation3 + $0xa8] sm:$0xf] %vm242, %v1312
      %1345 = vst.msk [vmem:[#allocation3 + $0xb4] sm:$0xf] %vm242, %v1313
      %1346 = vst.msk [vmem:[#allocation3 + $0xc0] sm:$0xf] %vm242, %v1314
      %1347 = vst.msk [vmem:[#allocation3 + $0xcc] sm:$0xf] %vm242, %v1315
      %1348 = vst.msk [vmem:[#allocation3 + $0xd8] sm:$0xf] %vm242, %v1316
      %1349 = vst.msk [vmem:[#allocation3 + $0xe4] sm:$0xf] %vm242, %v1317
      %1350 = vst.msk [vmem:[#allocation3 + $0xf0] sm:$0xf] %vm242, %v1318
      %1351 = vst.msk [vmem:[#allocation3 + $0xfc] sm:$0xf] %vm242, %v1319
      %1352 = vst.msk [vmem:[#allocation3 + $0x108] sm:$0xf] %vm242, %v1320
      %1353 = vst.msk [vmem:[#allocation3 + $0x114] sm:$0xf] %vm242, %v1321
      %1354 = vst.msk [vmem:[#allocation3 + $0x120] sm:$0xf] %vm242, %v1322
      %1355 = vst.msk [vmem:[#allocation3 + $0x12c] sm:$0xf] %vm242, %v1323
      %1356 = vst.msk [vmem:[#allocation3 + $0x138] sm:$0xf] %vm242, %v1324
      %1357 = vst.msk [vmem:[#allocation3 + $0x144] sm:$0xf] %vm242, %v1325
      %1358 = vst.msk [vmem:[#allocation3 + $0x150] sm:$0xf] %vm242, %v1326
      %1359 = vst.msk [vmem:[#allocation3 + $0x15c] sm:$0xf] %vm242, %v1327
      %1360 = vst.msk [vmem:[#allocation3 + $0x168] sm:$0xf] %vm242, %v1328
      %1361 = vst.msk [vmem:[#allocation3 + $0x174] sm:$0xf] %vm242, %v1329
      %v1362 = vld [vmem:[#allocation2] sm:$0xe]
      %v1363 = vld [vmem:[#allocation2 + $0x4] sm:$0xf]
      %v1364 = vld [vmem:[#allocation2 + $0x8] sm:$0xf]
      %v1365 = vld [vmem:[#allocation2 + $0xc] sm:$0xf]
      %v1366 = vld [vmem:[#allocation2 + $0x10] sm:$0xf]
      %v1367 = vld [vmem:[#allocation2 + $0x14] sm:$0xf]
      %v1368 = vld [vmem:[#allocation2 + $0x18] sm:$0xf]
      %v1369 = vld [vmem:[#allocation2 + $0x1c] sm:$0xf]
      %v1370 = vld [vmem:[#allocation2 + $0x20] sm:$0xf]
      %v1371 = vld [vmem:[#allocation2 + $0x24] sm:$0xf]
      %v1372 = vld [vmem:[#allocation2 + $0x28] sm:$0xf]
      %v1373 = vld [vmem:[#allocation2 + $0x2c] sm:$0xf]
      %v1374 = vld [vmem:[#allocation2 + $0x30] sm:$0xf]
      %v1375 = vld [vmem:[#allocation2 + $0x34] sm:$0xf]
      %v1376 = vld [vmem:[#allocation2 + $0x38] sm:$0xf]
      %v1377 = vld [vmem:[#allocation2 + $0x3c] sm:$0xf]
      %v1378 = vld [vmem:[#allocation2 + $0x40] sm:$0xf]
      %v1379 = vld [vmem:[#allocation2 + $0x44] sm:$0xf]
      %v1380 = vld [vmem:[#allocation2 + $0x48] sm:$0xf]
      %v1381 = vld [vmem:[#allocation2 + $0x4c] sm:$0xf]
      %v1382 = vld [vmem:[#allocation2 + $0x50] sm:$0xf]
      %v1383 = vld [vmem:[#allocation2 + $0x54] sm:$0xf]
      %v1384 = vld [vmem:[#allocation2 + $0x58] sm:$0xf]
      %v1385 = vld [vmem:[#allocation2 + $0x5c] sm:$0xf]
      %v1386 = vld [vmem:[#allocation2 + $0x60] sm:$0xf]
      %v1387 = vld [vmem:[#allocation2 + $0x64] sm:$0xf]
      %v1388 = vld [vmem:[#allocation2 + $0x68] sm:$0xf]
      %v1389 = vld [vmem:[#allocation2 + $0x6c] sm:$0xf]
      %v1390 = vld [vmem:[#allocation2 + $0x70] sm:$0xf]
      %v1391 = vld [vmem:[#allocation2 + $0x74] sm:$0xf]
      %v1392 = vld [vmem:[#allocation2 + $0x78] sm:$0xf]
      %v1393 = vld [vmem:[#allocation2 + $0x7c] sm:$0xf]
      %v1394 = vld [vmem:[#allocation2 + $0x80] sm:$0x1]
      %vm1428 = vcmask 1042432
      %vm1429 = vcmask 1046532
      %vm1430 = vmor %vm1428, %vm1429
      %v1431 = vrot.slane %v1362, 5
      %v1432 = vrot.slane %v1431, 4
      %v1433 = vrot.slane %v1363, 5
      %v1434 = vsel %vm1430, %v1432, %v1433
      %v1435 = vrot.slane %v1433, 4
      %v1436 = vrot.slane %v1364, 5
      %v1437 = vsel %vm1430, %v1435, %v1436
      %v1438 = vrot.slane %v1436, 4
      %v1439 = vrot.slane %v1365, 5
      %v1440 = vsel %vm1430, %v1438, %v1439
      %v1441 = vrot.slane %v1439, 4
      %v1442 = vrot.slane %v1366, 5
      %v1443 = vsel %vm1430, %v1441, %v1442
      %v1444 = vrot.slane %v1442, 4
      %v1445 = vrot.slane %v1367, 5
      %v1446 = vsel %vm1430, %v1444, %v1445
      %v1447 = vrot.slane %v1445, 4
      %v1448 = vrot.slane %v1368, 5
      %v1449 = vsel %vm1430, %v1447, %v1448
      %v1450 = vrot.slane %v1448, 4
      %v1451 = vrot.slane %v1369, 5
      %v1452 = vsel %vm1430, %v1450, %v1451
      %v1453 = vrot.slane %v1451, 4
      %v1454 = vrot.slane %v1370, 5
      %v1455 = vsel %vm1430, %v1453, %v1454
      %v1456 = vrot.slane %v1454, 4
      %v1457 = vrot.slane %v1371, 5
      %v1458 = vsel %vm1430, %v1456, %v1457
      %v1459 = vrot.slane %v1457, 4
      %v1460 = vrot.slane %v1372, 5
      %v1461 = vsel %vm1430, %v1459, %v1460
      %v1462 = vrot.slane %v1460, 4
      %v1463 = vrot.slane %v1373, 5
      %v1464 = vsel %vm1430, %v1462, %v1463
      %v1465 = vrot.slane %v1463, 4
      %v1466 = vrot.slane %v1374, 5
      %v1467 = vsel %vm1430, %v1465, %v1466
      %v1468 = vrot.slane %v1466, 4
      %v1469 = vrot.slane %v1375, 5
      %v1470 = vsel %vm1430, %v1468, %v1469
      %v1471 = vrot.slane %v1469, 4
      %v1472 = vrot.slane %v1376, 5
      %v1473 = vsel %vm1430, %v1471, %v1472
      %v1474 = vrot.slane %v1472, 4
      %v1475 = vrot.slane %v1377, 5
      %v1476 = vsel %vm1430, %v1474, %v1475
      %v1477 = vrot.slane %v1475, 4
      %v1478 = vrot.slane %v1378, 5
      %v1479 = vsel %vm1430, %v1477, %v1478
      %v1480 = vrot.slane %v1478, 4
      %v1481 = vrot.slane %v1379, 5
      %v1482 = vsel %vm1430, %v1480, %v1481
      %v1483 = vrot.slane %v1481, 4
      %v1484 = vrot.slane %v1380, 5
      %v1485 = vsel %vm1430, %v1483, %v1484
      %v1486 = vrot.slane %v1484, 4
      %v1487 = vrot.slane %v1381, 5
      %v1488 = vsel %vm1430, %v1486, %v1487
      %v1489 = vrot.slane %v1487, 4
      %v1490 = vrot.slane %v1382, 5
      %v1491 = vsel %vm1430, %v1489, %v1490
      %v1492 = vrot.slane %v1490, 4
      %v1493 = vrot.slane %v1383, 5
      %v1494 = vsel %vm1430, %v1492, %v1493
      %v1495 = vrot.slane %v1493, 4
      %v1496 = vrot.slane %v1384, 5
      %v1497 = vsel %vm1430, %v1495, %v1496
      %v1498 = vrot.slane %v1496, 4
      %v1499 = vrot.slane %v1385, 5
      %v1500 = vsel %vm1430, %v1498, %v1499
      %v1501 = vrot.slane %v1499, 4
      %v1502 = vrot.slane %v1386, 5
      %v1503 = vsel %vm1430, %v1501, %v1502
      %v1504 = vrot.slane %v1502, 4
      %v1505 = vrot.slane %v1387, 5
      %v1506 = vsel %vm1430, %v1504, %v1505
      %v1507 = vrot.slane %v1505, 4
      %v1508 = vrot.slane %v1388, 5
      %v1509 = vsel %vm1430, %v1507, %v1508
      %v1510 = vrot.slane %v1508, 4
      %v1511 = vrot.slane %v1389, 5
      %v1512 = vsel %vm1430, %v1510, %v1511
      %v1513 = vrot.slane %v1511, 4
      %v1514 = vrot.slane %v1390, 5
      %v1515 = vsel %vm1430, %v1513, %v1514
      %v1516 = vrot.slane %v1514, 4
      %v1517 = vrot.slane %v1391, 5
      %v1518 = vsel %vm1430, %v1516, %v1517
      %v1519 = vrot.slane %v1517, 4
      %v1520 = vrot.slane %v1392, 5
      %v1521 = vsel %vm1430, %v1519, %v1520
      %v1522 = vrot.slane %v1520, 4
      %v1523 = vrot.slane %v1393, 5
      %v1524 = vsel %vm1430, %v1522, %v1523
      %v1525 = vrot.slane %v1523, 4
      %v1526 = vrot.slane %v1394, 5
      %v1527 = vsel %vm1430, %v1525, %v1526
      %1528 = vrot.lane.b32.xlu0 %v1434, 32
      %v1529 = vpop.permute.xlu0 %1528
      %1530 = vrot.lane.b32.xlu0 %v1437, 32
      %v1531 = vpop.permute.xlu0 %1530
      %1532 = vrot.lane.b32.xlu0 %v1440, 32
      %v1533 = vpop.permute.xlu0 %1532
      %1534 = vrot.lane.b32.xlu0 %v1443, 32
      %v1535 = vpop.permute.xlu0 %1534
      %1536 = vrot.lane.b32.xlu0 %v1446, 32
      %v1537 = vpop.permute.xlu0 %1536
      %1538 = vrot.lane.b32.xlu0 %v1449, 32
      %v1539 = vpop.permute.xlu0 %1538
      %1540 = vrot.lane.b32.xlu0 %v1452, 32
      %v1541 = vpop.permute.xlu0 %1540
      %1542 = vrot.lane.b32.xlu0 %v1455, 32
      %v1543 = vpop.permute.xlu0 %1542
      %1544 = vrot.lane.b32.xlu0 %v1458, 32
      %v1545 = vpop.permute.xlu0 %1544
      %1546 = vrot.lane.b32.xlu0 %v1461, 32
      %v1547 = vpop.permute.xlu0 %1546
      %1548 = vrot.lane.b32.xlu0 %v1464, 32
      %v1549 = vpop.permute.xlu0 %1548
      %1550 = vrot.lane.b32.xlu0 %v1467, 32
      %v1551 = vpop.permute.xlu0 %1550
      %1552 = vrot.lane.b32.xlu0 %v1470, 32
      %v1553 = vpop.permute.xlu0 %1552
      %1554 = vrot.lane.b32.xlu0 %v1473, 32
      %v1555 = vpop.permute.xlu0 %1554
      %1556 = vrot.lane.b32.xlu0 %v1476, 32
      %v1557 = vpop.permute.xlu0 %1556
      %1558 = vrot.lane.b32.xlu0 %v1479, 32
      %v1559 = vpop.permute.xlu0 %1558
      %1560 = vrot.lane.b32.xlu0 %v1482, 32
      %v1561 = vpop.permute.xlu0 %1560
      %1562 = vrot.lane.b32.xlu0 %v1485, 32
      %v1563 = vpop.permute.xlu0 %1562
      %1564 = vrot.lane.b32.xlu0 %v1488, 32
      %v1565 = vpop.permute.xlu0 %1564
      %1566 = vrot.lane.b32.xlu0 %v1491, 32
      %v1567 = vpop.permute.xlu0 %1566
      %1568 = vrot.lane.b32.xlu0 %v1494, 32
      %v1569 = vpop.permute.xlu0 %1568
      %1570 = vrot.lane.b32.xlu0 %v1497, 32
      %v1571 = vpop.permute.xlu0 %1570
      %1572 = vrot.lane.b32.xlu0 %v1500, 32
      %v1573 = vpop.permute.xlu0 %1572
      %1574 = vrot.lane.b32.xlu0 %v1503, 32
      %v1575 = vpop.permute.xlu0 %1574
      %1576 = vrot.lane.b32.xlu0 %v1506, 32
      %v1577 = vpop.permute.xlu0 %1576
      %1578 = vrot.lane.b32.xlu0 %v1509, 32
      %v1579 = vpop.permute.xlu0 %1578
      %1580 = vrot.lane.b32.xlu0 %v1512, 32
      %v1581 = vpop.permute.xlu0 %1580
      %1582 = vrot.lane.b32.xlu0 %v1515, 32
      %v1583 = vpop.permute.xlu0 %1582
      %1584 = vrot.lane.b32.xlu0 %v1518, 32
      %v1585 = vpop.permute.xlu0 %1584
      %1586 = vrot.lane.b32.xlu0 %v1521, 32
      %v1587 = vpop.permute.xlu0 %1586
      %1588 = vrot.lane.b32.xlu0 %v1524, 32
      %v1589 = vpop.permute.xlu0 %1588
      %1590 = vrot.lane.b32.xlu0 %v1527, 32
      %v1591 = vpop.permute.xlu0 %1590
      %vm1624 = vcmask 519424
      %1625 = vst.msk [vmem:[#allocation3] sm:$0xf] %vm1624, %v1529
      %1626 = vst.msk [vmem:[#allocation3 + $0xc] sm:$0xf] %vm1624, %v1531
      %1627 = vst.msk [vmem:[#allocation3 + $0x18] sm:$0xf] %vm1624, %v1533
      %1628 = vst.msk [vmem:[#allocation3 + $0x24] sm:$0xf] %vm1624, %v1535
      %1629 = vst.msk [vmem:[#allocation3 + $0x30] sm:$0xf] %vm1624, %v1537
      %1630 = vst.msk [vmem:[#allocation3 + $0x3c] sm:$0xf] %vm1624, %v1539
      %1631 = vst.msk [vmem:[#allocation3 + $0x48] sm:$0xf] %vm1624, %v1541
      %1632 = vst.msk [vmem:[#allocation3 + $0x54] sm:$0xf] %vm1624, %v1543
      %1633 = vst.msk [vmem:[#allocation3 + $0x60] sm:$0xf] %vm1624, %v1545
      %1634 = vst.msk [vmem:[#allocation3 + $0x6c] sm:$0xf] %vm1624, %v1547
      %1635 = vst.msk [vmem:[#allocation3 + $0x78] sm:$0xf] %vm1624, %v1549
      %1636 = vst.msk [vmem:[#allocation3 + $0x84] sm:$0xf] %vm1624, %v1551
      %1637 = vst.msk [vmem:[#allocation3 + $0x90] sm:$0xf] %vm1624, %v1553
      %1638 = vst.msk [vmem:[#allocation3 + $0x9c] sm:$0xf] %vm1624, %v1555
      %1639 = vst.msk [vmem:[#allocation3 + $0xa8] sm:$0xf] %vm1624, %v1557
      %1640 = vst.msk [vmem:[#allocation3 + $0xb4] sm:$0xf] %vm1624, %v1559
      %1641 = vst.msk [vmem:[#allocation3 + $0xc0] sm:$0xf] %vm1624, %v1561
      %1642 = vst.msk [vmem:[#allocation3 + $0xcc] sm:$0xf] %vm1624, %v1563
      %1643 = vst.msk [vmem:[#allocation3 + $0xd8] sm:$0xf] %vm1624, %v1565
      %1644 = vst.msk [vmem:[#allocation3 + $0xe4] sm:$0xf] %vm1624, %v1567
      %1645 = vst.msk [vmem:[#allocation3 + $0xf0] sm:$0xf] %vm1624, %v1569
      %1646 = vst.msk [vmem:[#allocation3 + $0xfc] sm:$0xf] %vm1624, %v1571
      %1647 = vst.msk [vmem:[#allocation3 + $0x108] sm:$0xf] %vm1624, %v1573
      %1648 = vst.msk [vmem:[#allocation3 + $0x114] sm:$0xf] %vm1624, %v1575
      %1649 = vst.msk [vmem:[#allocation3 + $0x120] sm:$0xf] %vm1624, %v1577
      %1650 = vst.msk [vmem:[#allocation3 + $0x12c] sm:$0xf] %vm1624, %v1579
      %1651 = vst.msk [vmem:[#allocation3 + $0x138] sm:$0xf] %vm1624, %v1581
      %1652 = vst.msk [vmem:[#allocation3 + $0x144] sm:$0xf] %vm1624, %v1583
      %1653 = vst.msk [vmem:[#allocation3 + $0x150] sm:$0xf] %vm1624, %v1585
      %1654 = vst.msk [vmem:[#allocation3 + $0x15c] sm:$0xf] %vm1624, %v1587
      %1655 = vst.msk [vmem:[#allocation3 + $0x168] sm:$0xf] %vm1624, %v1589
      %1656 = vst.msk [vmem:[#allocation3 + $0x174] sm:$0xf] %vm1624, %v1591
      %v1657 = vld [vmem:[#allocation2] sm:$0xc]
      %v1658 = vld [vmem:[#allocation2 + $0x4] sm:$0xf]
      %v1659 = vld [vmem:[#allocation2 + $0x8] sm:$0xf]
      %v1660 = vld [vmem:[#allocation2 + $0xc] sm:$0xf]
      %v1661 = vld [vmem:[#allocation2 + $0x10] sm:$0xf]
      %v1662 = vld [vmem:[#allocation2 + $0x14] sm:$0xf]
      %v1663 = vld [vmem:[#allocation2 + $0x18] sm:$0xf]
      %v1664 = vld [vmem:[#allocation2 + $0x1c] sm:$0xf]
      %v1665 = vld [vmem:[#allocation2 + $0x20] sm:$0xf]
      %v1666 = vld [vmem:[#allocation2 + $0x24] sm:$0xf]
      %v1667 = vld [vmem:[#allocation2 + $0x28] sm:$0xf]
      %v1668 = vld [vmem:[#allocation2 + $0x2c] sm:$0xf]
      %v1669 = vld [vmem:[#allocation2 + $0x30] sm:$0xf]
      %v1670 = vld [vmem:[#allocation2 + $0x34] sm:$0xf]
      %v1671 = vld [vmem:[#allocation2 + $0x38] sm:$0xf]
      %v1672 = vld [vmem:[#allocation2 + $0x3c] sm:$0xf]
      %v1673 = vld [vmem:[#allocation2 + $0x40] sm:$0xf]
      %v1674 = vld [vmem:[#allocation2 + $0x44] sm:$0xf]
      %v1675 = vld [vmem:[#allocation2 + $0x48] sm:$0xf]
      %v1676 = vld [vmem:[#allocation2 + $0x4c] sm:$0xf]
      %v1677 = vld [vmem:[#allocation2 + $0x50] sm:$0xf]
      %v1678 = vld [vmem:[#allocation2 + $0x54] sm:$0xf]
      %v1679 = vld [vmem:[#allocation2 + $0x58] sm:$0xf]
      %v1680 = vld [vmem:[#allocation2 + $0x5c] sm:$0xf]
      %v1681 = vld [vmem:[#allocation2 + $0x60] sm:$0xf]
      %v1682 = vld [vmem:[#allocation2 + $0x64] sm:$0xf]
      %v1683 = vld [vmem:[#allocation2 + $0x68] sm:$0xf]
      %v1684 = vld [vmem:[#allocation2 + $0x6c] sm:$0xf]
      %v1685 = vld [vmem:[#allocation2 + $0x70] sm:$0xf]
      %v1686 = vld [vmem:[#allocation2 + $0x74] sm:$0xf]
      %v1687 = vld [vmem:[#allocation2 + $0x78] sm:$0xf]
      %v1688 = vld [vmem:[#allocation2 + $0x7c] sm:$0xf]
      %v1689 = vld [vmem:[#allocation2 + $0x80] sm:$0x3]
      %v1690 = vsel %vm1138, 1, 0
      %v1691 = vsel %vm1139, 1, 0
      %v1692 = vsel %vm1140, 1, 0
      %v1693 = vsel %vm1141, 1, 0
      %v1694 = vsel %vm1142, 1, 0
      %v1695 = vsel %vm1143, 1, 0
      %v1696 = vsel %vm1144, 1, 0
      %v1697 = vsel %vm1145, 1, 0
      %v1698 = vsel %vm1146, 1, 0
      %v1699 = vsel %vm1147, 1, 0
      %v1700 = vsel %vm1148, 1, 0
      %v1701 = vsel %vm1149, 1, 0
      %v1702 = vsel %vm1150, 1, 0
      %v1703 = vsel %vm1151, 1, 0
      %v1704 = vsel %vm1152, 1, 0
      %v1705 = vsel %vm1153, 1, 0
      %v1706 = vsel %vm1154, 1, 0
      %v1707 = vsel %vm1155, 1, 0
      %v1708 = vsel %vm1156, 1, 0
      %v1709 = vsel %vm1157, 1, 0
      %v1710 = vsel %vm1158, 1, 0
      %v1711 = vsel %vm1159, 1, 0
      %v1712 = vsel %vm1160, 1, 0
      %v1713 = vsel %vm1161, 1, 0
      %v1714 = vsel %vm1162, 1, 0
      %v1715 = vsel %vm1163, 1, 0
      %v1716 = vsel %vm1164, 1, 0
      %v1717 = vsel %vm1165, 1, 0
      %v1718 = vsel %vm1166, 1, 0
      %v1719 = vsel %vm1167, 1, 0
      %v1720 = vsel %vm1168, 1, 0
      %v1721 = vsel %vm1169, 1, 0
      %vm1722 = vcmp.eq.s32.totalorder %v1690, 1
      %vm1723 = vcmp.eq.s32.totalorder %v1691, 1
      %vm1724 = vcmp.eq.s32.totalorder %v1692, 1
      %vm1725 = vcmp.eq.s32.totalorder %v1693, 1
      %vm1726 = vcmp.eq.s32.totalorder %v1694, 1
      %vm1727 = vcmp.eq.s32.totalorder %v1695, 1
      %vm1728 = vcmp.eq.s32.totalorder %v1696, 1
      %vm1729 = vcmp.eq.s32.totalorder %v1697, 1
      %vm1730 = vcmp.eq.s32.totalorder %v1698, 1
      %vm1731 = vcmp.eq.s32.totalorder %v1699, 1
      %vm1732 = vcmp.eq.s32.totalorder %v1700, 1
      %vm1733 = vcmp.eq.s32.totalorder %v1701, 1
      %vm1734 = vcmp.eq.s32.totalorder %v1702, 1
      %vm1735 = vcmp.eq.s32.totalorder %v1703, 1
      %vm1736 = vcmp.eq.s32.totalorder %v1704, 1
      %vm1737 = vcmp.eq.s32.totalorder %v1705, 1
      %vm1738 = vcmp.eq.s32.totalorder %v1706, 1
      %vm1739 = vcmp.eq.s32.totalorder %v1707, 1
      %vm1740 = vcmp.eq.s32.totalorder %v1708, 1
      %vm1741 = vcmp.eq.s32.totalorder %v1709, 1
      %vm1742 = vcmp.eq.s32.totalorder %v1710, 1
      %vm1743 = vcmp.eq.s32.totalorder %v1711, 1
      %vm1744 = vcmp.eq.s32.totalorder %v1712, 1
      %vm1745 = vcmp.eq.s32.totalorder %v1713, 1
      %vm1746 = vcmp.eq.s32.totalorder %v1714, 1
      %vm1747 = vcmp.eq.s32.totalorder %v1715, 1
      %vm1748 = vcmp.eq.s32.totalorder %v1716, 1
      %vm1749 = vcmp.eq.s32.totalorder %v1717, 1
      %vm1750 = vcmp.eq.s32.totalorder %v1718, 1
      %vm1751 = vcmp.eq.s32.totalorder %v1719, 1
      %vm1752 = vcmp.eq.s32.totalorder %v1720, 1
      %vm1753 = vcmp.eq.s32.totalorder %v1721, 1
      %vm1754 = vmpackc.low %vm1722, %vm1722
      %vm1755 = vmpackc.low %vm1723, %vm1723
      %vm1756 = vmpackc.low %vm1724, %vm1724
      %vm1757 = vmpackc.low %vm1725, %vm1725
      %vm1758 = vmpackc.low %vm1726, %vm1726
      %vm1759 = vmpackc.low %vm1727, %vm1727
      %vm1760 = vmpackc.low %vm1728, %vm1728
      %vm1761 = vmpackc.low %vm1729, %vm1729
      %vm1762 = vmpackc.low %vm1730, %vm1730
      %vm1763 = vmpackc.low %vm1731, %vm1731
      %vm1764 = vmpackc.low %vm1732, %vm1732
      %vm1765 = vmpackc.low %vm1733, %vm1733
      %vm1766 = vmpackc.low %vm1734, %vm1734
      %vm1767 = vmpackc.low %vm1735, %vm1735
      %vm1768 = vmpackc.low %vm1736, %vm1736
      %vm1769 = vmpackc.low %vm1737, %vm1737
      %vm1770 = vmpackc.low %vm1738, %vm1738
      %vm1771 = vmpackc.low %vm1739, %vm1739
      %vm1772 = vmpackc.low %vm1740, %vm1740
      %vm1773 = vmpackc.low %vm1741, %vm1741
      %vm1774 = vmpackc.low %vm1742, %vm1742
      %vm1775 = vmpackc.low %vm1743, %vm1743
      %vm1776 = vmpackc.low %vm1744, %vm1744
      %vm1777 = vmpackc.low %vm1745, %vm1745
      %vm1778 = vmpackc.low %vm1746, %vm1746
      %vm1779 = vmpackc.low %vm1747, %vm1747
      %vm1780 = vmpackc.low %vm1748, %vm1748
      %vm1781 = vmpackc.low %vm1749, %vm1749
      %vm1782 = vmpackc.low %vm1750, %vm1750
      %vm1783 = vmpackc.low %vm1751, %vm1751
      %vm1784 = vmpackc.low %vm1752, %vm1752
      %vm1785 = vmpackc.low %vm1753, %vm1753
      %v1786 = vsel %vm1754, 65537, 0
      %v1787 = vsel %vm1755, 65537, 0
      %v1788 = vsel %vm1756, 65537, 0
      %v1789 = vsel %vm1757, 65537, 0
      %v1790 = vsel %vm1758, 65537, 0
      %v1791 = vsel %vm1759, 65537, 0
      %v1792 = vsel %vm1760, 65537, 0
      %v1793 = vsel %vm1761, 65537, 0
      %v1794 = vsel %vm1762, 65537, 0
      %v1795 = vsel %vm1763, 65537, 0
      %v1796 = vsel %vm1764, 65537, 0
      %v1797 = vsel %vm1765, 65537, 0
      %v1798 = vsel %vm1766, 65537, 0
      %v1799 = vsel %vm1767, 65537, 0
      %v1800 = vsel %vm1768, 65537, 0
      %v1801 = vsel %vm1769, 65537, 0
      %v1802 = vsel %vm1770, 65537, 0
      %v1803 = vsel %vm1771, 65537, 0
      %v1804 = vsel %vm1772, 65537, 0
      %v1805 = vsel %vm1773, 65537, 0
      %v1806 = vsel %vm1774, 65537, 0
      %v1807 = vsel %vm1775, 65537, 0
      %v1808 = vsel %vm1776, 65537, 0
      %v1809 = vsel %vm1777, 65537, 0
      %v1810 = vsel %vm1778, 65537, 0
      %v1811 = vsel %vm1779, 65537, 0
      %v1812 = vsel %vm1780, 65537, 0
      %v1813 = vsel %vm1781, 65537, 0
      %v1814 = vsel %vm1782, 65537, 0
      %v1815 = vsel %vm1783, 65537, 0
      %v1816 = vsel %vm1784, 65537, 0
      %v1817 = vsel %vm1785, 65537, 0
      %vm1818 = vcmask 1041408
      %vm1819 = vcmask 1045508
      %vm1820 = vmor %vm1818, %vm1819
      %v1821 = vrot.slane %v1786, 6
      %v1822 = vrot.slane %v1821, 4
      %v1823 = vrot.slane %v1787, 6
      %v1824 = vsel %vm1820, %v1822, %v1823
      %v1825 = vrot.slane %v1823, 4
      %v1826 = vrot.slane %v1788, 6
      %v1827 = vsel %vm1820, %v1825, %v1826
      %v1828 = vrot.slane %v1826, 4
      %v1829 = vrot.slane %v1789, 6
      %v1830 = vsel %vm1820, %v1828, %v1829
      %v1831 = vrot.slane %v1829, 4
      %v1832 = vrot.slane %v1790, 6
      %v1833 = vsel %vm1820, %v1831, %v1832
      %v1834 = vrot.slane %v1832, 4
      %v1835 = vrot.slane %v1791, 6
      %v1836 = vsel %vm1820, %v1834, %v1835
      %v1837 = vrot.slane %v1835, 4
      %v1838 = vrot.slane %v1792, 6
      %v1839 = vsel %vm1820, %v1837, %v1838
      %v1840 = vrot.slane %v1838, 4
      %v1841 = vrot.slane %v1793, 6
      %v1842 = vsel %vm1820, %v1840, %v1841
      %v1843 = vrot.slane %v1841, 4
      %v1844 = vrot.slane %v1794, 6
      %v1845 = vsel %vm1820, %v1843, %v1844
      %v1846 = vrot.slane %v1844, 4
      %v1847 = vrot.slane %v1795, 6
      %v1848 = vsel %vm1820, %v1846, %v1847
      %v1849 = vrot.slane %v1847, 4
      %v1850 = vrot.slane %v1796, 6
      %v1851 = vsel %vm1820, %v1849, %v1850
      %v1852 = vrot.slane %v1850, 4
      %v1853 = vrot.slane %v1797, 6
      %v1854 = vsel %vm1820, %v1852, %v1853
      %v1855 = vrot.slane %v1853, 4
      %v1856 = vrot.slane %v1798, 6
      %v1857 = vsel %vm1820, %v1855, %v1856
      %v1858 = vrot.slane %v1856, 4
      %v1859 = vrot.slane %v1799, 6
      %v1860 = vsel %vm1820, %v1858, %v1859
      %v1861 = vrot.slane %v1859, 4
      %v1862 = vrot.slane %v1800, 6
      %v1863 = vsel %vm1820, %v1861, %v1862
      %v1864 = vrot.slane %v1862, 4
      %v1865 = vrot.slane %v1801, 6
      %v1866 = vsel %vm1820, %v1864, %v1865
      %v1867 = vrot.slane %v1865, 4
      %v1868 = vrot.slane %v1802, 6
      %v1869 = vsel %vm1820, %v1867, %v1868
      %v1870 = vrot.slane %v1868, 4
      %v1871 = vrot.slane %v1803, 6
      %v1872 = vsel %vm1820, %v1870, %v1871
      %v1873 = vrot.slane %v1871, 4
      %v1874 = vrot.slane %v1804, 6
      %v1875 = vsel %vm1820, %v1873, %v1874
      %v1876 = vrot.slane %v1874, 4
      %v1877 = vrot.slane %v1805, 6
      %v1878 = vsel %vm1820, %v1876, %v1877
      %v1879 = vrot.slane %v1877, 4
      %v1880 = vrot.slane %v1806, 6
      %v1881 = vsel %vm1820, %v1879, %v1880
      %v1882 = vrot.slane %v1880, 4
      %v1883 = vrot.slane %v1807, 6
      %v1884 = vsel %vm1820, %v1882, %v1883
      %v1885 = vrot.slane %v1883, 4
      %v1886 = vrot.slane %v1808, 6
      %v1887 = vsel %vm1820, %v1885, %v1886
      %v1888 = vrot.slane %v1886, 4
      %v1889 = vrot.slane %v1809, 6
      %v1890 = vsel %vm1820, %v1888, %v1889
      %v1891 = vrot.slane %v1889, 4
      %v1892 = vrot.slane %v1810, 6
      %v1893 = vsel %vm1820, %v1891, %v1892
      %v1894 = vrot.slane %v1892, 4
      %v1895 = vrot.slane %v1811, 6
      %v1896 = vsel %vm1820, %v1894, %v1895
      %v1897 = vrot.slane %v1895, 4
      %v1898 = vrot.slane %v1812, 6
      %v1899 = vsel %vm1820, %v1897, %v1898
      %v1900 = vrot.slane %v1898, 4
      %v1901 = vrot.slane %v1813, 6
      %v1902 = vsel %vm1820, %v1900, %v1901
      %v1903 = vrot.slane %v1901, 4
      %v1904 = vrot.slane %v1814, 6
      %v1905 = vsel %vm1820, %v1903, %v1904
      %v1906 = vrot.slane %v1904, 4
      %v1907 = vrot.slane %v1815, 6
      %v1908 = vsel %vm1820, %v1906, %v1907
      %v1909 = vrot.slane %v1907, 4
      %v1910 = vrot.slane %v1816, 6
      %v1911 = vsel %vm1820, %v1909, %v1910
      %v1912 = vrot.slane %v1910, 4
      %v1913 = vrot.slane %v1817, 6
      %v1914 = vsel %vm1820, %v1912, %v1913
      %v1915 = vrot.slane %v1913, 4
      %vm1916 = vcmp.ne.s16.totalorder %v1821, 0
      %vm1917 = vcmp.ne.s16.totalorder %v1824, 0
      %vm1918 = vcmp.ne.s16.totalorder %v1827, 0
      %vm1919 = vcmp.ne.s16.totalorder %v1830, 0
      %vm1920 = vcmp.ne.s16.totalorder %v1833, 0
      %vm1921 = vcmp.ne.s16.totalorder %v1836, 0
      %vm1922 = vcmp.ne.s16.totalorder %v1839, 0
      %vm1923 = vcmp.ne.s16.totalorder %v1842, 0
      %vm1924 = vcmp.ne.s16.totalorder %v1845, 0
      %vm1925 = vcmp.ne.s16.totalorder %v1848, 0
      %vm1926 = vcmp.ne.s16.totalorder %v1851, 0
      %vm1927 = vcmp.ne.s16.totalorder %v1854, 0
      %vm1928 = vcmp.ne.s16.totalorder %v1857, 0
      %vm1929 = vcmp.ne.s16.totalorder %v1860, 0
      %vm1930 = vcmp.ne.s16.totalorder %v1863, 0
      %vm1931 = vcmp.ne.s16.totalorder %v1866, 0
      %vm1932 = vcmp.ne.s16.totalorder %v1869, 0
      %vm1933 = vcmp.ne.s16.totalorder %v1872, 0
      %vm1934 = vcmp.ne.s16.totalorder %v1875, 0
      %vm1935 = vcmp.ne.s16.totalorder %v1878, 0
      %vm1936 = vcmp.ne.s16.totalorder %v1881, 0
      %vm1937 = vcmp.ne.s16.totalorder %v1884, 0
      %vm1938 = vcmp.ne.s16.totalorder %v1887, 0
      %vm1939 = vcmp.ne.s16.totalorder %v1890, 0
      %vm1940 = vcmp.ne.s16.totalorder %v1893, 0
      %vm1941 = vcmp.ne.s16.totalorder %v1896, 0
      %vm1942 = vcmp.ne.s16.totalorder %v1899, 0
      %vm1943 = vcmp.ne.s16.totalorder %v1902, 0
      %vm1944 = vcmp.ne.s16.totalorder %v1905, 0
      %vm1945 = vcmp.ne.s16.totalorder %v1908, 0
      %vm1946 = vcmp.ne.s16.totalorder %v1911, 0
      %vm1947 = vcmp.ne.s16.totalorder %v1914, 0
      %vm1948 = vcmp.ne.s16.totalorder %v1915, 0
      %v1949 = vsel %vm1916, %v1657, 0
      %v1950 = vsel %vm1917, %v1658, 0
      %v1951 = vsel %vm1918, %v1659, 0
      %v1952 = vsel %vm1919, %v1660, 0
      %v1953 = vsel %vm1920, %v1661, 0
      %v1954 = vsel %vm1921, %v1662, 0
      %v1955 = vsel %vm1922, %v1663, 0
      %v1956 = vsel %vm1923, %v1664, 0
      %v1957 = vsel %vm1924, %v1665, 0
      %v1958 = vsel %vm1925, %v1666, 0
      %v1959 = vsel %vm1926, %v1667, 0
      %v1960 = vsel %vm1927, %v1668, 0
      %v1961 = vsel %vm1928, %v1669, 0
      %v1962 = vsel %vm1929, %v1670, 0
      %v1963 = vsel %vm1930, %v1671, 0
      %v1964 = vsel %vm1931, %v1672, 0
      %v1965 = vsel %vm1932, %v1673, 0
      %v1966 = vsel %vm1933, %v1674, 0
      %v1967 = vsel %vm1934, %v1675, 0
      %v1968 = vsel %vm1935, %v1676, 0
      %v1969 = vsel %vm1936, %v1677, 0
      %v1970 = vsel %vm1937, %v1678, 0
      %v1971 = vsel %vm1938, %v1679, 0
      %v1972 = vsel %vm1939, %v1680, 0
      %v1973 = vsel %vm1940, %v1681, 0
      %v1974 = vsel %vm1941, %v1682, 0
      %v1975 = vsel %vm1942, %v1683, 0
      %v1976 = vsel %vm1943, %v1684, 0
      %v1977 = vsel %vm1944, %v1685, 0
      %v1978 = vsel %vm1945, %v1686, 0
      %v1979 = vsel %vm1946, %v1687, 0
      %v1980 = vsel %vm1947, %v1688, 0
      %v1981 = vsel %vm1948, %v1689, 0
      %v2015 = vrot.slane %v1949, 6
      %v2016 = vrot.slane %v2015, 4
      %v2017 = vrot.slane %v1950, 6
      %v2018 = vsel %vm1820, %v2016, %v2017
      %v2019 = vrot.slane %v2017, 4
      %v2020 = vrot.slane %v1951, 6
      %v2021 = vsel %vm1820, %v2019, %v2020
      %v2022 = vrot.slane %v2020, 4
      %v2023 = vrot.slane %v1952, 6
      %v2024 = vsel %vm1820, %v2022, %v2023
      %v2025 = vrot.slane %v2023, 4
      %v2026 = vrot.slane %v1953, 6
      %v2027 = vsel %vm1820, %v2025, %v2026
      %v2028 = vrot.slane %v2026, 4
      %v2029 = vrot.slane %v1954, 6
      %v2030 = vsel %vm1820, %v2028, %v2029
      %v2031 = vrot.slane %v2029, 4
      %v2032 = vrot.slane %v1955, 6
      %v2033 = vsel %vm1820, %v2031, %v2032
      %v2034 = vrot.slane %v2032, 4
      %v2035 = vrot.slane %v1956, 6
      %v2036 = vsel %vm1820, %v2034, %v2035
      %v2037 = vrot.slane %v2035, 4
      %v2038 = vrot.slane %v1957, 6
      %v2039 = vsel %vm1820, %v2037, %v2038
      %v2040 = vrot.slane %v2038, 4
      %v2041 = vrot.slane %v1958, 6
      %v2042 = vsel %vm1820, %v2040, %v2041
      %v2043 = vrot.slane %v2041, 4
      %v2044 = vrot.slane %v1959, 6
      %v2045 = vsel %vm1820, %v2043, %v2044
      %v2046 = vrot.slane %v2044, 4
      %v2047 = vrot.slane %v1960, 6
      %v2048 = vsel %vm1820, %v2046, %v2047
      %v2049 = vrot.slane %v2047, 4
      %v2050 = vrot.slane %v1961, 6
      %v2051 = vsel %vm1820, %v2049, %v2050
      %v2052 = vrot.slane %v2050, 4
      %v2053 = vrot.slane %v1962, 6
      %v2054 = vsel %vm1820, %v2052, %v2053
      %v2055 = vrot.slane %v2053, 4
      %v2056 = vrot.slane %v1963, 6
      %v2057 = vsel %vm1820, %v2055, %v2056
      %v2058 = vrot.slane %v2056, 4
      %v2059 = vrot.slane %v1964, 6
      %v2060 = vsel %vm1820, %v2058, %v2059
      %v2061 = vrot.slane %v2059, 4
      %v2062 = vrot.slane %v1965, 6
      %v2063 = vsel %vm1820, %v2061, %v2062
      %v2064 = vrot.slane %v2062, 4
      %v2065 = vrot.slane %v1966, 6
      %v2066 = vsel %vm1820, %v2064, %v2065
      %v2067 = vrot.slane %v2065, 4
      %v2068 = vrot.slane %v1967, 6
      %v2069 = vsel %vm1820, %v2067, %v2068
      %v2070 = vrot.slane %v2068, 4
      %v2071 = vrot.slane %v1968, 6
      %v2072 = vsel %vm1820, %v2070, %v2071
      %v2073 = vrot.slane %v2071, 4
      %v2074 = vrot.slane %v1969, 6
      %v2075 = vsel %vm1820, %v2073, %v2074
      %v2076 = vrot.slane %v2074, 4
      %v2077 = vrot.slane %v1970, 6
      %v2078 = vsel %vm1820, %v2076, %v2077
      %v2079 = vrot.slane %v2077, 4
      %v2080 = vrot.slane %v1971, 6
      %v2081 = vsel %vm1820, %v2079, %v2080
      %v2082 = vrot.slane %v2080, 4
      %v2083 = vrot.slane %v1972, 6
      %v2084 = vsel %vm1820, %v2082, %v2083
      %v2085 = vrot.slane %v2083, 4
      %v2086 = vrot.slane %v1973, 6
      %v2087 = vsel %vm1820, %v2085, %v2086
      %v2088 = vrot.slane %v2086, 4
      %v2089 = vrot.slane %v1974, 6
      %v2090 = vsel %vm1820, %v2088, %v2089
      %v2091 = vrot.slane %v2089, 4
      %v2092 = vrot.slane %v1975, 6
      %v2093 = vsel %vm1820, %v2091, %v2092
      %v2094 = vrot.slane %v2092, 4
      %v2095 = vrot.slane %v1976, 6
      %v2096 = vsel %vm1820, %v2094, %v2095
      %v2097 = vrot.slane %v2095, 4
      %v2098 = vrot.slane %v1977, 6
      %v2099 = vsel %vm1820, %v2097, %v2098
      %v2100 = vrot.slane %v2098, 4
      %v2101 = vrot.slane %v1978, 6
      %v2102 = vsel %vm1820, %v2100, %v2101
      %v2103 = vrot.slane %v2101, 4
      %v2104 = vrot.slane %v1979, 6
      %v2105 = vsel %vm1820, %v2103, %v2104
      %v2106 = vrot.slane %v2104, 4
      %v2107 = vrot.slane %v1980, 6
      %v2108 = vsel %vm1820, %v2106, %v2107
      %v2109 = vrot.slane %v2107, 4
      %v2110 = vrot.slane %v1981, 6
      %v2111 = vsel %vm1820, %v2109, %v2110
      %2112 = vrot.lane.b32.xlu0 %v2018, 64
      %v2113 = vpop.permute.xlu0 %2112
      %2114 = vrot.lane.b32.xlu0 %v2021, 64
      %v2115 = vpop.permute.xlu0 %2114
      %2116 = vrot.lane.b32.xlu0 %v2024, 64
      %v2117 = vpop.permute.xlu0 %2116
      %2118 = vrot.lane.b32.xlu0 %v2027, 64
      %v2119 = vpop.permute.xlu0 %2118
      %2120 = vrot.lane.b32.xlu0 %v2030, 64
      %v2121 = vpop.permute.xlu0 %2120
      %2122 = vrot.lane.b32.xlu0 %v2033, 64
      %v2123 = vpop.permute.xlu0 %2122
      %2124 = vrot.lane.b32.xlu0 %v2036, 64
      %v2125 = vpop.permute.xlu0 %2124
      %2126 = vrot.lane.b32.xlu0 %v2039, 64
      %v2127 = vpop.permute.xlu0 %2126
      %2128 = vrot.lane.b32.xlu0 %v2042, 64
      %v2129 = vpop.permute.xlu0 %2128
      %2130 = vrot.lane.b32.xlu0 %v2045, 64
      %v2131 = vpop.permute.xlu0 %2130
      %2132 = vrot.lane.b32.xlu0 %v2048, 64
      %v2133 = vpop.permute.xlu0 %2132
      %2134 = vrot.lane.b32.xlu0 %v2051, 64
      %v2135 = vpop.permute.xlu0 %2134
      %2136 = vrot.lane.b32.xlu0 %v2054, 64
      %v2137 = vpop.permute.xlu0 %2136
      %2138 = vrot.lane.b32.xlu0 %v2057, 64
      %v2139 = vpop.permute.xlu0 %2138
      %2140 = vrot.lane.b32.xlu0 %v2060, 64
      %v2141 = vpop.permute.xlu0 %2140
      %2142 = vrot.lane.b32.xlu0 %v2063, 64
      %v2143 = vpop.permute.xlu0 %2142
      %2144 = vrot.lane.b32.xlu0 %v2066, 64
      %v2145 = vpop.permute.xlu0 %2144
      %2146 = vrot.lane.b32.xlu0 %v2069, 64
      %v2147 = vpop.permute.xlu0 %2146
      %2148 = vrot.lane.b32.xlu0 %v2072, 64
      %v2149 = vpop.permute.xlu0 %2148
      %2150 = vrot.lane.b32.xlu0 %v2075, 64
      %v2151 = vpop.permute.xlu0 %2150
      %2152 = vrot.lane.b32.xlu0 %v2078, 64
      %v2153 = vpop.permute.xlu0 %2152
      %2154 = vrot.lane.b32.xlu0 %v2081, 64
      %v2155 = vpop.permute.xlu0 %2154
      %2156 = vrot.lane.b32.xlu0 %v2084, 64
      %v2157 = vpop.permute.xlu0 %2156
      %2158 = vrot.lane.b32.xlu0 %v2087, 64
      %v2159 = vpop.permute.xlu0 %2158
      %2160 = vrot.lane.b32.xlu0 %v2090, 64
      %v2161 = vpop.permute.xlu0 %2160
      %2162 = vrot.lane.b32.xlu0 %v2093, 64
      %v2163 = vpop.permute.xlu0 %2162
      %2164 = vrot.lane.b32.xlu0 %v2096, 64
      %v2165 = vpop.permute.xlu0 %2164
      %2166 = vrot.lane.b32.xlu0 %v2099, 64
      %v2167 = vpop.permute.xlu0 %2166
      %2168 = vrot.lane.b32.xlu0 %v2102, 64
      %v2169 = vpop.permute.xlu0 %2168
      %2170 = vrot.lane.b32.xlu0 %v2105, 64
      %v2171 = vpop.permute.xlu0 %2170
      %2172 = vrot.lane.b32.xlu0 %v2108, 64
      %v2173 = vpop.permute.xlu0 %2172
      %2174 = vrot.lane.b32.xlu0 %v2111, 64
      %v2175 = vpop.permute.xlu0 %2174
      %vm2208 = vcmask 781824
      %2209 = vst.msk [vmem:[#allocation3] sm:$0xf] %vm2208, %v2113
      %2210 = vst.msk [vmem:[#allocation3 + $0xc] sm:$0xf] %vm2208, %v2115
      %2211 = vst.msk [vmem:[#allocation3 + $0x18] sm:$0xf] %vm2208, %v2117
      %2212 = vst.msk [vmem:[#allocation3 + $0x24] sm:$0xf] %vm2208, %v2119
      %2213 = vst.msk [vmem:[#allocation3 + $0x30] sm:$0xf] %vm2208, %v2121
      %2214 = vst.msk [vmem:[#allocation3 + $0x3c] sm:$0xf] %vm2208, %v2123
      %2215 = vst.msk [vmem:[#allocation3 + $0x48] sm:$0xf] %vm2208, %v2125
      %2216 = vst.msk [vmem:[#allocation3 + $0x54] sm:$0xf] %vm2208, %v2127
      %2217 = vst.msk [vmem:[#allocation3 + $0x60] sm:$0xf] %vm2208, %v2129
      %2218 = vst.msk [vmem:[#allocation3 + $0x6c] sm:$0xf] %vm2208, %v2131
      %2219 = vst.msk [vmem:[#allocation3 + $0x78] sm:$0xf] %vm2208, %v2133
      %2220 = vst.msk [vmem:[#allocation3 + $0x84] sm:$0xf] %vm2208, %v2135
      %2221 = vst.msk [vmem:[#allocation3 + $0x90] sm:$0xf] %vm2208, %v2137
      %2222 = vst.msk [vmem:[#allocation3 + $0x9c] sm:$0xf] %vm2208, %v2139
      %2223 = vst.msk [vmem:[#allocation3 + $0xa8] sm:$0xf] %vm2208, %v2141
      %2224 = vst.msk [vmem:[#allocation3 + $0xb4] sm:$0xf] %vm2208, %v2143
      %2225 = vst.msk [vmem:[#allocation3 + $0xc0] sm:$0xf] %vm2208, %v2145
      %2226 = vst.msk [vmem:[#allocation3 + $0xcc] sm:$0xf] %vm2208, %v2147
      %2227 = vst.msk [vmem:[#allocation3 + $0xd8] sm:$0xf] %vm2208, %v2149
      %2228 = vst.msk [vmem:[#allocation3 + $0xe4] sm:$0xf] %vm2208, %v2151
      %2229 = vst.msk [vmem:[#allocation3 + $0xf0] sm:$0xf] %vm2208, %v2153
      %2230 = vst.msk [vmem:[#allocation3 + $0xfc] sm:$0xf] %vm2208, %v2155
      %2231 = vst.msk [vmem:[#allocation3 + $0x108] sm:$0xf] %vm2208, %v2157
      %2232 = vst.msk [vmem:[#allocation3 + $0x114] sm:$0xf] %vm2208, %v2159
      %2233 = vst.msk [vmem:[#allocation3 + $0x120] sm:$0xf] %vm2208, %v2161
      %2234 = vst.msk [vmem:[#allocation3 + $0x12c] sm:$0xf] %vm2208, %v2163
      %2235 = vst.msk [vmem:[#allocation3 + $0x138] sm:$0xf] %vm2208, %v2165
      %2236 = vst.msk [vmem:[#allocation3 + $0x144] sm:$0xf] %vm2208, %v2167
      %2237 = vst.msk [vmem:[#allocation3 + $0x150] sm:$0xf] %vm2208, %v2169
      %2238 = vst.msk [vmem:[#allocation3 + $0x15c] sm:$0xf] %vm2208, %v2171
      %2239 = vst.msk [vmem:[#allocation3 + $0x168] sm:$0xf] %vm2208, %v2173
      %2240 = vst.msk [vmem:[#allocation3 + $0x174] sm:$0xf] %vm2208, %v2175
      %v2241 = vld [vmem:[#allocation2 + $0x10] sm:$0xf]
      %v2242 = vld [vmem:[#allocation2 + $0x14] sm:$0xf]
      %v2243 = vld [vmem:[#allocation2 + $0x18] sm:$0xf]
      %v2244 = vld [vmem:[#allocation2 + $0x1c] sm:$0xf]
      %v2245 = vld [vmem:[#allocation2 + $0x20] sm:$0xf]
      %v2246 = vld [vmem:[#allocation2 + $0x24] sm:$0xf]
      %v2247 = vld [vmem:[#allocation2 + $0x28] sm:$0xf]
      %v2248 = vld [vmem:[#allocation2 + $0x2c] sm:$0xf]
      %v2249 = vld [vmem:[#allocation2 + $0x30] sm:$0xf]
      %v2250 = vld [vmem:[#allocation2 + $0x34] sm:$0xf]
      %v2251 = vld [vmem:[#allocation2 + $0x38] sm:$0xf]
      %v2252 = vld [vmem:[#allocation2 + $0x3c] sm:$0xf]
      %v2253 = vld [vmem:[#allocation2 + $0x40] sm:$0xf]
      %v2254 = vld [vmem:[#allocation2 + $0x44] sm:$0xf]
      %v2255 = vld [vmem:[#allocation2 + $0x48] sm:$0xf]
      %v2256 = vld [vmem:[#allocation2 + $0x4c] sm:$0xf]
      %v2257 = vld [vmem:[#allocation2 + $0x50] sm:$0xf]
      %v2258 = vld [vmem:[#allocation2 + $0x54] sm:$0xf]
      %v2259 = vld [vmem:[#allocation2 + $0x58] sm:$0xf]
      %v2260 = vld [vmem:[#allocation2 + $0x5c] sm:$0xf]
      %v2261 = vld [vmem:[#allocation2 + $0x60] sm:$0xf]
      %v2262 = vld [vmem:[#allocation2 + $0x64] sm:$0xf]
      %v2263 = vld [vmem:[#allocation2 + $0x68] sm:$0xf]
      %v2264 = vld [vmem:[#allocation2 + $0x6c] sm:$0xf]
      %v2265 = vld [vmem:[#allocation2 + $0x70] sm:$0xf]
      %v2266 = vld [vmem:[#allocation2 + $0x74] sm:$0xf]
      %v2267 = vld [vmem:[#allocation2 + $0x78] sm:$0xf]
      %v2268 = vld [vmem:[#allocation2 + $0x7c] sm:$0xf]
      %v2269 = vld [vmem:[#allocation2 + $0x80] sm:$0xf]
      %v2270 = vld [vmem:[#allocation2 + $0x84] sm:$0xf]
      %v2271 = vld [vmem:[#allocation2 + $0x88] sm:$0xf]
      %v2272 = vld [vmem:[#allocation2 + $0x8c] sm:$0xf]
      %v2273 = vsel %vm1266, %v2241, 0
      %v2274 = vsel %vm1267, %v2242, 0
      %v2275 = vsel %vm1268, %v2243, 0
      %v2276 = vsel %vm1269, %v2244, 0
      %v2277 = vsel %vm1270, %v2245, 0
      %v2278 = vsel %vm1271, %v2246, 0
      %v2279 = vsel %vm1272, %v2247, 0
      %v2280 = vsel %vm1273, %v2248, 0
      %v2281 = vsel %vm1274, %v2249, 0
      %v2282 = vsel %vm1275, %v2250, 0
      %v2283 = vsel %vm1276, %v2251, 0
      %v2284 = vsel %vm1277, %v2252, 0
      %v2285 = vsel %vm1278, %v2253, 0
      %v2286 = vsel %vm1279, %v2254, 0
      %v2287 = vsel %vm1280, %v2255, 0
      %v2288 = vsel %vm1281, %v2256, 0
      %v2289 = vsel %vm1282, %v2257, 0
      %v2290 = vsel %vm1283, %v2258, 0
      %v2291 = vsel %vm1284, %v2259, 0
      %v2292 = vsel %vm1285, %v2260, 0
      %v2293 = vsel %vm1286, %v2261, 0
      %v2294 = vsel %vm1287, %v2262, 0
      %v2295 = vsel %vm1288, %v2263, 0
      %v2296 = vsel %vm1289, %v2264, 0
      %v2297 = vsel %vm1290, %v2265, 0
      %v2298 = vsel %vm1291, %v2266, 0
      %v2299 = vsel %vm1292, %v2267, 0
      %v2300 = vsel %vm1293, %v2268, 0
      %v2301 = vsel %vm1294, %v2269, 0
      %v2302 = vsel %vm1295, %v2270, 0
      %v2303 = vsel %vm1296, %v2271, 0
      %v2304 = vsel %vm1297, %v2272, 0
      %2337 = vrot.lane.b32.xlu0 %v2273, 96
      %v2338 = vpop.permute.xlu0 %2337
      %2339 = vrot.lane.b32.xlu0 %v2274, 96
      %v2340 = vpop.permute.xlu0 %2339
      %2341 = vrot.lane.b32.xlu0 %v2275, 96
      %v2342 = vpop.permute.xlu0 %2341
      %2343 = vrot.lane.b32.xlu0 %v2276, 96
      %v2344 = vpop.permute.xlu0 %2343
      %2345 = vrot.lane.b32.xlu0 %v2277, 96
      %v2346 = vpop.permute.xlu0 %2345
      %2347 = vrot.lane.b32.xlu0 %v2278, 96
      %v2348 = vpop.permute.xlu0 %2347
      %2349 = vrot.lane.b32.xlu0 %v2279, 96
      %v2350 = vpop.permute.xlu0 %2349
      %2351 = vrot.lane.b32.xlu0 %v2280, 96
      %v2352 = vpop.permute.xlu0 %2351
      %2353 = vrot.lane.b32.xlu0 %v2281, 96
      %v2354 = vpop.permute.xlu0 %2353
      %2355 = vrot.lane.b32.xlu0 %v2282, 96
      %v2356 = vpop.permute.xlu0 %2355
      %2357 = vrot.lane.b32.xlu0 %v2283, 96
      %v2358 = vpop.permute.xlu0 %2357
      %2359 = vrot.lane.b32.xlu0 %v2284, 96
      %v2360 = vpop.permute.xlu0 %2359
      %2361 = vrot.lane.b32.xlu0 %v2285, 96
      %v2362 = vpop.permute.xlu0 %2361
      %2363 = vrot.lane.b32.xlu0 %v2286, 96
      %v2364 = vpop.permute.xlu0 %2363
      %2365 = vrot.lane.b32.xlu0 %v2287, 96
      %v2366 = vpop.permute.xlu0 %2365
      %2367 = vrot.lane.b32.xlu0 %v2288, 96
      %v2368 = vpop.permute.xlu0 %2367
      %2369 = vrot.lane.b32.xlu0 %v2289, 96
      %v2370 = vpop.permute.xlu0 %2369
      %2371 = vrot.lane.b32.xlu0 %v2290, 96
      %v2372 = vpop.permute.xlu0 %2371
      %2373 = vrot.lane.b32.xlu0 %v2291, 96
      %v2374 = vpop.permute.xlu0 %2373
      %2375 = vrot.lane.b32.xlu0 %v2292, 96
      %v2376 = vpop.permute.xlu0 %2375
      %2377 = vrot.lane.b32.xlu0 %v2293, 96
      %v2378 = vpop.permute.xlu0 %2377
      %2379 = vrot.lane.b32.xlu0 %v2294, 96
      %v2380 = vpop.permute.xlu0 %2379
      %2381 = vrot.lane.b32.xlu0 %v2295, 96
      %v2382 = vpop.permute.xlu0 %2381
      %2383 = vrot.lane.b32.xlu0 %v2296, 96
      %v2384 = vpop.permute.xlu0 %2383
      %2385 = vrot.lane.b32.xlu0 %v2297, 96
      %v2386 = vpop.permute.xlu0 %2385
      %2387 = vrot.lane.b32.xlu0 %v2298, 96
      %v2388 = vpop.permute.xlu0 %2387
      %2389 = vrot.lane.b32.xlu0 %v2299, 96
      %v2390 = vpop.permute.xlu0 %2389
      %2391 = vrot.lane.b32.xlu0 %v2300, 96
      %v2392 = vpop.permute.xlu0 %2391
      %2393 = vrot.lane.b32.xlu0 %v2301, 96
      %v2394 = vpop.permute.xlu0 %2393
      %2395 = vrot.lane.b32.xlu0 %v2302, 96
      %v2396 = vpop.permute.xlu0 %2395
      %2397 = vrot.lane.b32.xlu0 %v2303, 96
      %v2398 = vpop.permute.xlu0 %2397
      %2399 = vrot.lane.b32.xlu0 %v2304, 96
      %v2400 = vpop.permute.xlu0 %2399
      %vm2433 = vcmask 1044224
      %2434 = vst.msk [vmem:[#allocation3] sm:$0xf] %vm2433, %v2338
      %2435 = vst.msk [vmem:[#allocation3 + $0xc] sm:$0xf] %vm2433, %v2340
      %2436 = vst.msk [vmem:[#allocation3 + $0x18] sm:$0xf] %vm2433, %v2342
      %2437 = vst.msk [vmem:[#allocation3 + $0x24] sm:$0xf] %vm2433, %v2344
      %2438 = vst.msk [vmem:[#allocation3 + $0x30] sm:$0xf] %vm2433, %v2346
      %2439 = vst.msk [vmem:[#allocation3 + $0x3c] sm:$0xf] %vm2433, %v2348
      %2440 = vst.msk [vmem:[#allocation3 + $0x48] sm:$0xf] %vm2433, %v2350
      %2441 = vst.msk [vmem:[#allocation3 + $0x54] sm:$0xf] %vm2433, %v2352
      %2442 = vst.msk [vmem:[#allocation3 + $0x60] sm:$0xf] %vm2433, %v2354
      %2443 = vst.msk [vmem:[#allocation3 + $0x6c] sm:$0xf] %vm2433, %v2356
      %2444 = vst.msk [vmem:[#allocation3 + $0x78] sm:$0xf] %vm2433, %v2358
      %2445 = vst.msk [vmem:[#allocation3 + $0x84] sm:$0xf] %vm2433, %v2360
      %2446 = vst.msk [vmem:[#allocation3 + $0x90] sm:$0xf] %vm2433, %v2362
      %2447 = vst.msk [vmem:[#allocation3 + $0x9c] sm:$0xf] %vm2433, %v2364
      %2448 = vst.msk [vmem:[#allocation3 + $0xa8] sm:$0xf] %vm2433, %v2366
      %2449 = vst.msk [vmem:[#allocation3 + $0xb4] sm:$0xf] %vm2433, %v2368
      %2450 = vst.msk [vmem:[#allocation3 + $0xc0] sm:$0xf] %vm2433, %v2370
      %2451 = vst.msk [vmem:[#allocation3 + $0xcc] sm:$0xf] %vm2433, %v2372
      %2452 = vst.msk [vmem:[#allocation3 + $0xd8] sm:$0xf] %vm2433, %v2374
      %2453 = vst.msk [vmem:[#allocation3 + $0xe4] sm:$0xf] %vm2433, %v2376
      %2454 = vst.msk [vmem:[#allocation3 + $0xf0] sm:$0xf] %vm2433, %v2378
      %2455 = vst.msk [vmem:[#allocation3 + $0xfc] sm:$0xf] %vm2433, %v2380
      %2456 = vst.msk [vmem:[#allocation3 + $0x108] sm:$0xf] %vm2433, %v2382
      %2457 = vst.msk [vmem:[#allocation3 + $0x114] sm:$0xf] %vm2433, %v2384
      %2458 = vst.msk [vmem:[#allocation3 + $0x120] sm:$0xf] %vm2433, %v2386
      %2459 = vst.msk [vmem:[#allocation3 + $0x12c] sm:$0xf] %vm2433, %v2388
      %2460 = vst.msk [vmem:[#allocation3 + $0x138] sm:$0xf] %vm2433, %v2390
      %2461 = vst.msk [vmem:[#allocation3 + $0x144] sm:$0xf] %vm2433, %v2392
      %2462 = vst.msk [vmem:[#allocation3 + $0x150] sm:$0xf] %vm2433, %v2394
      %2463 = vst.msk [vmem:[#allocation3 + $0x15c] sm:$0xf] %vm2433, %v2396
      %2464 = vst.msk [vmem:[#allocation3 + $0x168] sm:$0xf] %vm2433, %v2398
      %2465 = vst.msk [vmem:[#allocation3 + $0x174] sm:$0xf] %vm2433, %v2400
      %v2466 = vld [vmem:[#allocation2 + $0x10] sm:$0xe]
      %v2467 = vld [vmem:[#allocation2 + $0x14] sm:$0xf]
      %v2468 = vld [vmem:[#allocation2 + $0x18] sm:$0xf]
      %v2469 = vld [vmem:[#allocation2 + $0x1c] sm:$0xf]
      %v2470 = vld [vmem:[#allocation2 + $0x20] sm:$0xf]
      %v2471 = vld [vmem:[#allocation2 + $0x24] sm:$0xf]
      %v2472 = vld [vmem:[#allocation2 + $0x28] sm:$0xf]
      %v2473 = vld [vmem:[#allocation2 + $0x2c] sm:$0xf]
      %v2474 = vld [vmem:[#allocation2 + $0x30] sm:$0xf]
      %v2475 = vld [vmem:[#allocation2 + $0x34] sm:$0xf]
      %v2476 = vld [vmem:[#allocation2 + $0x38] sm:$0xf]
      %v2477 = vld [vmem:[#allocation2 + $0x3c] sm:$0xf]
      %v2478 = vld [vmem:[#allocation2 + $0x40] sm:$0xf]
      %v2479 = vld [vmem:[#allocation2 + $0x44] sm:$0xf]
      %v2480 = vld [vmem:[#allocation2 + $0x48] sm:$0xf]
      %v2481 = vld [vmem:[#allocation2 + $0x4c] sm:$0xf]
      %v2482 = vld [vmem:[#allocation2 + $0x50] sm:$0xf]
      %v2483 = vld [vmem:[#allocation2 + $0x54] sm:$0xf]
      %v2484 = vld [vmem:[#allocation2 + $0x58] sm:$0xf]
      %v2485 = vld [vmem:[#allocation2 + $0x5c] sm:$0xf]
      %v2486 = vld [vmem:[#allocation2 + $0x60] sm:$0xf]
      %v2487 = vld [vmem:[#allocation2 + $0x64] sm:$0xf]
      %v2488 = vld [vmem:[#allocation2 + $0x68] sm:$0xf]
      %v2489 = vld [vmem:[#allocation2 + $0x6c] sm:$0xf]
      %v2490 = vld [vmem:[#allocation2 + $0x70] sm:$0xf]
      %v2491 = vld [vmem:[#allocation2 + $0x74] sm:$0xf]
      %v2492 = vld [vmem:[#allocation2 + $0x78] sm:$0xf]
      %v2493 = vld [vmem:[#allocation2 + $0x7c] sm:$0xf]
      %v2494 = vld [vmem:[#allocation2 + $0x80] sm:$0xf]
      %v2495 = vld [vmem:[#allocation2 + $0x84] sm:$0xf]
      %v2496 = vld [vmem:[#allocation2 + $0x88] sm:$0xf]
      %v2497 = vld [vmem:[#allocation2 + $0x8c] sm:$0xf]
      %v2498 = vld [vmem:[#allocation2 + $0x90] sm:$0x1]
      %v2532 = vrot.slane %v2466, 5
      %v2533 = vrot.slane %v2532, 4
      %v2534 = vrot.slane %v2467, 5
      %v2535 = vsel %vm1430, %v2533, %v2534
      %v2536 = vrot.slane %v2534, 4
      %v2537 = vrot.slane %v2468, 5
      %v2538 = vsel %vm1430, %v2536, %v2537
      %v2539 = vrot.slane %v2537, 4
      %v2540 = vrot.slane %v2469, 5
      %v2541 = vsel %vm1430, %v2539, %v2540
      %v2542 = vrot.slane %v2540, 4
      %v2543 = vrot.slane %v2470, 5
      %v2544 = vsel %vm1430, %v2542, %v2543
      %v2545 = vrot.slane %v2543, 4
      %v2546 = vrot.slane %v2471, 5
      %v2547 = vsel %vm1430, %v2545, %v2546
      %v2548 = vrot.slane %v2546, 4
      %v2549 = vrot.slane %v2472, 5
      %v2550 = vsel %vm1430, %v2548, %v2549
      %v2551 = vrot.slane %v2549, 4
      %v2552 = vrot.slane %v2473, 5
      %v2553 = vsel %vm1430, %v2551, %v2552
      %v2554 = vrot.slane %v2552, 4
      %v2555 = vrot.slane %v2474, 5
      %v2556 = vsel %vm1430, %v2554, %v2555
      %v2557 = vrot.slane %v2555, 4
      %v2558 = vrot.slane %v2475, 5
      %v2559 = vsel %vm1430, %v2557, %v2558
      %v2560 = vrot.slane %v2558, 4
      %v2561 = vrot.slane %v2476, 5
      %v2562 = vsel %vm1430, %v2560, %v2561
      %v2563 = vrot.slane %v2561, 4
      %v2564 = vrot.slane %v2477, 5
      %v2565 = vsel %vm1430, %v2563, %v2564
      %v2566 = vrot.slane %v2564, 4
      %v2567 = vrot.slane %v2478, 5
      %v2568 = vsel %vm1430, %v2566, %v2567
      %v2569 = vrot.slane %v2567, 4
      %v2570 = vrot.slane %v2479, 5
      %v2571 = vsel %vm1430, %v2569, %v2570
      %v2572 = vrot.slane %v2570, 4
      %v2573 = vrot.slane %v2480, 5
      %v2574 = vsel %vm1430, %v2572, %v2573
      %v2575 = vrot.slane %v2573, 4
      %v2576 = vrot.slane %v2481, 5
      %v2577 = vsel %vm1430, %v2575, %v2576
      %v2578 = vrot.slane %v2576, 4
      %v2579 = vrot.slane %v2482, 5
      %v2580 = vsel %vm1430, %v2578, %v2579
      %v2581 = vrot.slane %v2579, 4
      %v2582 = vrot.slane %v2483, 5
      %v2583 = vsel %vm1430, %v2581, %v2582
      %v2584 = vrot.slane %v2582, 4
      %v2585 = vrot.slane %v2484, 5
      %v2586 = vsel %vm1430, %v2584, %v2585
      %v2587 = vrot.slane %v2585, 4
      %v2588 = vrot.slane %v2485, 5
      %v2589 = vsel %vm1430, %v2587, %v2588
      %v2590 = vrot.slane %v2588, 4
      %v2591 = vrot.slane %v2486, 5
      %v2592 = vsel %vm1430, %v2590, %v2591
      %v2593 = vrot.slane %v2591, 4
      %v2594 = vrot.slane %v2487, 5
      %v2595 = vsel %vm1430, %v2593, %v2594
      %v2596 = vrot.slane %v2594, 4
      %v2597 = vrot.slane %v2488, 5
      %v2598 = vsel %vm1430, %v2596, %v2597
      %v2599 = vrot.slane %v2597, 4
      %v2600 = vrot.slane %v2489, 5
      %v2601 = vsel %vm1430, %v2599, %v2600
      %v2602 = vrot.slane %v2600, 4
      %v2603 = vrot.slane %v2490, 5
      %v2604 = vsel %vm1430, %v2602, %v2603
      %v2605 = vrot.slane %v2603, 4
      %v2606 = vrot.slane %v2491, 5
      %v2607 = vsel %vm1430, %v2605, %v2606
      %v2608 = vrot.slane %v2606, 4
      %v2609 = vrot.slane %v2492, 5
      %v2610 = vsel %vm1430, %v2608, %v2609
      %v2611 = vrot.slane %v2609, 4
      %v2612 = vrot.slane %v2493, 5
      %v2613 = vsel %vm1430, %v2611, %v2612
      %v2614 = vrot.slane %v2612, 4
      %v2615 = vrot.slane %v2494, 5
      %v2616 = vsel %vm1430, %v2614, %v2615
      %v2617 = vrot.slane %v2615, 4
      %v2618 = vrot.slane %v2495, 5
      %v2619 = vsel %vm1430, %v2617, %v2618
      %v2620 = vrot.slane %v2618, 4
      %v2621 = vrot.slane %v2496, 5
      %v2622 = vsel %vm1430, %v2620, %v2621
      %v2623 = vrot.slane %v2621, 4
      %v2624 = vrot.slane %v2497, 5
      %v2625 = vsel %vm1430, %v2623, %v2624
      %v2626 = vrot.slane %v2624, 4
      %v2627 = vrot.slane %v2498, 5
      %v2628 = vsel %vm1430, %v2626, %v2627
      %2661 = vst.msk [vmem:[#allocation3 + $0x4] sm:$0xf] %vm242, %v2535
      %2662 = vst.msk [vmem:[#allocation3 + $0x10] sm:$0xf] %vm242, %v2538
      %2663 = vst.msk [vmem:[#allocation3 + $0x1c] sm:$0xf] %vm242, %v2541
      %2664 = vst.msk [vmem:[#allocation3 + $0x28] sm:$0xf] %vm242, %v2544
      %2665 = vst.msk [vmem:[#allocation3 + $0x34] sm:$0xf] %vm242, %v2547
      %2666 = vst.msk [vmem:[#allocation3 + $0x40] sm:$0xf] %vm242, %v2550
      %2667 = vst.msk [vmem:[#allocation3 + $0x4c] sm:$0xf] %vm242, %v2553
      %2668 = vst.msk [vmem:[#allocation3 + $0x58] sm:$0xf] %vm242, %v2556
      %2669 = vst.msk [vmem:[#allocation3 + $0x64] sm:$0xf] %vm242, %v2559
      %2670 = vst.msk [vmem:[#allocation3 + $0x70] sm:$0xf] %vm242, %v2562
      %2671 = vst.msk [vmem:[#allocation3 + $0x7c] sm:$0xf] %vm242, %v2565
      %2672 = vst.msk [vmem:[#allocation3 + $0x88] sm:$0xf] %vm242, %v2568
      %2673 = vst.msk [vmem:[#allocation3 + $0x94] sm:$0xf] %vm242, %v2571
      %2674 = vst.msk [vmem:[#allocation3 + $0xa0] sm:$0xf] %vm242, %v2574
      %2675 = vst.msk [vmem:[#allocation3 + $0xac] sm:$0xf] %vm242, %v2577
      %2676 = vst.msk [vmem:[#allocation3 + $0xb8] sm:$0xf] %vm242, %v2580
      %2677 = vst.msk [vmem:[#allocation3 + $0xc4] sm:$0xf] %vm242, %v2583
      %2678 = vst.msk [vmem:[#allocation3 + $0xd0] sm:$0xf] %vm242, %v2586
      %2679 = vst.msk [vmem:[#allocation3 + $0xdc] sm:$0xf] %vm242, %v2589
      %2680 = vst.msk [vmem:[#allocation3 + $0xe8] sm:$0xf] %vm242, %v2592
      %2681 = vst.msk [vmem:[#allocation3 + $0xf4] sm:$0xf] %vm242, %v2595
      %2682 = vst.msk [vmem:[#allocation3 + $0x100] sm:$0xf] %vm242, %v2598
      %2683 = vst.msk [vmem:[#allocation3 + $0x10c] sm:$0xf] %vm242, %v2601
      %2684 = vst.msk [vmem:[#allocation3 + $0x118] sm:$0xf] %vm242, %v2604
      %2685 = vst.msk [vmem:[#allocation3 + $0x124] sm:$0xf] %vm242, %v2607
      %2686 = vst.msk [vmem:[#allocation3 + $0x130] sm:$0xf] %vm242, %v2610
      %2687 = vst.msk [vmem:[#allocation3 + $0x13c] sm:$0xf] %vm242, %v2613
      %2688 = vst.msk [vmem:[#allocation3 + $0x148] sm:$0xf] %vm242, %v2616
      %2689 = vst.msk [vmem:[#allocation3 + $0x154] sm:$0xf] %vm242, %v2619
      %2690 = vst.msk [vmem:[#allocation3 + $0x160] sm:$0xf] %vm242, %v2622
      %2691 = vst.msk [vmem:[#allocation3 + $0x16c] sm:$0xf] %vm242, %v2625
      %2692 = vst.msk [vmem:[#allocation3 + $0x178] sm:$0xf] %vm242, %v2628
      %v2693 = vld [vmem:[#allocation2 + $0x10] sm:$0xc]
      %v2694 = vld [vmem:[#allocation2 + $0x14] sm:$0xf]
      %v2695 = vld [vmem:[#allocation2 + $0x18] sm:$0xf]
      %v2696 = vld [vmem:[#allocation2 + $0x1c] sm:$0xf]
      %v2697 = vld [vmem:[#allocation2 + $0x20] sm:$0xf]
      %v2698 = vld [vmem:[#allocation2 + $0x24] sm:$0xf]
      %v2699 = vld [vmem:[#allocation2 + $0x28] sm:$0xf]
      %v2700 = vld [vmem:[#allocation2 + $0x2c] sm:$0xf]
      %v2701 = vld [vmem:[#allocation2 + $0x30] sm:$0xf]
      %v2702 = vld [vmem:[#allocation2 + $0x34] sm:$0xf]
      %v2703 = vld [vmem:[#allocation2 + $0x38] sm:$0xf]
      %v2704 = vld [vmem:[#allocation2 + $0x3c] sm:$0xf]
      %v2705 = vld [vmem:[#allocation2 + $0x40] sm:$0xf]
      %v2706 = vld [vmem:[#allocation2 + $0x44] sm:$0xf]
      %v2707 = vld [vmem:[#allocation2 + $0x48] sm:$0xf]
      %v2708 = vld [vmem:[#allocation2 + $0x4c] sm:$0xf]
      %v2709 = vld [vmem:[#allocation2 + $0x50] sm:$0xf]
      %v2710 = vld [vmem:[#allocation2 + $0x54] sm:$0xf]
      %v2711 = vld [vmem:[#allocation2 + $0x58] sm:$0xf]
      %v2712 = vld [vmem:[#allocation2 + $0x5c] sm:$0xf]
      %v2713 = vld [vmem:[#allocation2 + $0x60] sm:$0xf]
      %v2714 = vld [vmem:[#allocation2 + $0x64] sm:$0xf]
      %v2715 = vld [vmem:[#allocation2 + $0x68] sm:$0xf]
      %v2716 = vld [vmem:[#allocation2 + $0x6c] sm:$0xf]
      %v2717 = vld [vmem:[#allocation2 + $0x70] sm:$0xf]
      %v2718 = vld [vmem:[#allocation2 + $0x74] sm:$0xf]
      %v2719 = vld [vmem:[#allocation2 + $0x78] sm:$0xf]
      %v2720 = vld [vmem:[#allocation2 + $0x7c] sm:$0xf]
      %v2721 = vld [vmem:[#allocation2 + $0x80] sm:$0xf]
      %v2722 = vld [vmem:[#allocation2 + $0x84] sm:$0xf]
      %v2723 = vld [vmem:[#allocation2 + $0x88] sm:$0xf]
      %v2724 = vld [vmem:[#allocation2 + $0x8c] sm:$0xf]
      %v2725 = vld [vmem:[#allocation2 + $0x90] sm:$0x3]
      %v2726 = vsel %vm1916, %v2693, 0
      %v2727 = vsel %vm1917, %v2694, 0
      %v2728 = vsel %vm1918, %v2695, 0
      %v2729 = vsel %vm1919, %v2696, 0
      %v2730 = vsel %vm1920, %v2697, 0
      %v2731 = vsel %vm1921, %v2698, 0
      %v2732 = vsel %vm1922, %v2699, 0
      %v2733 = vsel %vm1923, %v2700, 0
      %v2734 = vsel %vm1924, %v2701, 0
      %v2735 = vsel %vm1925, %v2702, 0
      %v2736 = vsel %vm1926, %v2703, 0
      %v2737 = vsel %vm1927, %v2704, 0
      %v2738 = vsel %vm1928, %v2705, 0
      %v2739 = vsel %vm1929, %v2706, 0
      %v2740 = vsel %vm1930, %v2707, 0
      %v2741 = vsel %vm1931, %v2708, 0
      %v2742 = vsel %vm1932, %v2709, 0
      %v2743 = vsel %vm1933, %v2710, 0
      %v2744 = vsel %vm1934, %v2711, 0
      %v2745 = vsel %vm1935, %v2712, 0
      %v2746 = vsel %vm1936, %v2713, 0
      %v2747 = vsel %vm1937, %v2714, 0
      %v2748 = vsel %vm1938, %v2715, 0
      %v2749 = vsel %vm1939, %v2716, 0
      %v2750 = vsel %vm1940, %v2717, 0
      %v2751 = vsel %vm1941, %v2718, 0
      %v2752 = vsel %vm1942, %v2719, 0
      %v2753 = vsel %vm1943, %v2720, 0
      %v2754 = vsel %vm1944, %v2721, 0
      %v2755 = vsel %vm1945, %v2722, 0
      %v2756 = vsel %vm1946, %v2723, 0
      %v2757 = vsel %vm1947, %v2724, 0
      %v2758 = vsel %vm1948, %v2725, 0
      %v2792 = vrot.slane %v2726, 6
      %v2793 = vrot.slane %v2792, 4
      %v2794 = vrot.slane %v2727, 6
      %v2795 = vsel %vm1820, %v2793, %v2794
      %v2796 = vrot.slane %v2794, 4
      %v2797 = vrot.slane %v2728, 6
      %v2798 = vsel %vm1820, %v2796, %v2797
      %v2799 = vrot.slane %v2797, 4
      %v2800 = vrot.slane %v2729, 6
      %v2801 = vsel %vm1820, %v2799, %v2800
      %v2802 = vrot.slane %v2800, 4
      %v2803 = vrot.slane %v2730, 6
      %v2804 = vsel %vm1820, %v2802, %v2803
      %v2805 = vrot.slane %v2803, 4
      %v2806 = vrot.slane %v2731, 6
      %v2807 = vsel %vm1820, %v2805, %v2806
      %v2808 = vrot.slane %v2806, 4
      %v2809 = vrot.slane %v2732, 6
      %v2810 = vsel %vm1820, %v2808, %v2809
      %v2811 = vrot.slane %v2809, 4
      %v2812 = vrot.slane %v2733, 6
      %v2813 = vsel %vm1820, %v2811, %v2812
      %v2814 = vrot.slane %v2812, 4
      %v2815 = vrot.slane %v2734, 6
      %v2816 = vsel %vm1820, %v2814, %v2815
      %v2817 = vrot.slane %v2815, 4
      %v2818 = vrot.slane %v2735, 6
      %v2819 = vsel %vm1820, %v2817, %v2818
      %v2820 = vrot.slane %v2818, 4
      %v2821 = vrot.slane %v2736, 6
      %v2822 = vsel %vm1820, %v2820, %v2821
      %v2823 = vrot.slane %v2821, 4
      %v2824 = vrot.slane %v2737, 6
      %v2825 = vsel %vm1820, %v2823, %v2824
      %v2826 = vrot.slane %v2824, 4
      %v2827 = vrot.slane %v2738, 6
      %v2828 = vsel %vm1820, %v2826, %v2827
      %v2829 = vrot.slane %v2827, 4
      %v2830 = vrot.slane %v2739, 6
      %v2831 = vsel %vm1820, %v2829, %v2830
      %v2832 = vrot.slane %v2830, 4
      %v2833 = vrot.slane %v2740, 6
      %v2834 = vsel %vm1820, %v2832, %v2833
      %v2835 = vrot.slane %v2833, 4
      %v2836 = vrot.slane %v2741, 6
      %v2837 = vsel %vm1820, %v2835, %v2836
      %v2838 = vrot.slane %v2836, 4
      %v2839 = vrot.slane %v2742, 6
      %v2840 = vsel %vm1820, %v2838, %v2839
      %v2841 = vrot.slane %v2839, 4
      %v2842 = vrot.slane %v2743, 6
      %v2843 = vsel %vm1820, %v2841, %v2842
      %v2844 = vrot.slane %v2842, 4
      %v2845 = vrot.slane %v2744, 6
      %v2846 = vsel %vm1820, %v2844, %v2845
      %v2847 = vrot.slane %v2845, 4
      %v2848 = vrot.slane %v2745, 6
      %v2849 = vsel %vm1820, %v2847, %v2848
      %v2850 = vrot.slane %v2848, 4
      %v2851 = vrot.slane %v2746, 6
      %v2852 = vsel %vm1820, %v2850, %v2851
      %v2853 = vrot.slane %v2851, 4
      %v2854 = vrot.slane %v2747, 6
      %v2855 = vsel %vm1820, %v2853, %v2854
      %v2856 = vrot.slane %v2854, 4
      %v2857 = vrot.slane %v2748, 6
      %v2858 = vsel %vm1820, %v2856, %v2857
      %v2859 = vrot.slane %v2857, 4
      %v2860 = vrot.slane %v2749, 6
      %v2861 = vsel %vm1820, %v2859, %v2860
      %v2862 = vrot.slane %v2860, 4
      %v2863 = vrot.slane %v2750, 6
      %v2864 = vsel %vm1820, %v2862, %v2863
      %v2865 = vrot.slane %v2863, 4
      %v2866 = vrot.slane %v2751, 6
      %v2867 = vsel %vm1820, %v2865, %v2866
      %v2868 = vrot.slane %v2866, 4
      %v2869 = vrot.slane %v2752, 6
      %v2870 = vsel %vm1820, %v2868, %v2869
      %v2871 = vrot.slane %v2869, 4
      %v2872 = vrot.slane %v2753, 6
      %v2873 = vsel %vm1820, %v2871, %v2872
      %v2874 = vrot.slane %v2872, 4
      %v2875 = vrot.slane %v2754, 6
      %v2876 = vsel %vm1820, %v2874, %v2875
      %v2877 = vrot.slane %v2875, 4
      %v2878 = vrot.slane %v2755, 6
      %v2879 = vsel %vm1820, %v2877, %v2878
      %v2880 = vrot.slane %v2878, 4
      %v2881 = vrot.slane %v2756, 6
      %v2882 = vsel %vm1820, %v2880, %v2881
      %v2883 = vrot.slane %v2881, 4
      %v2884 = vrot.slane %v2757, 6
      %v2885 = vsel %vm1820, %v2883, %v2884
      %v2886 = vrot.slane %v2884, 4
      %v2887 = vrot.slane %v2758, 6
      %v2888 = vsel %vm1820, %v2886, %v2887
      %2889 = vrot.lane.b32.xlu0 %v2795, 32
      %v2890 = vpop.permute.xlu0 %2889
      %2891 = vrot.lane.b32.xlu0 %v2798, 32
      %v2892 = vpop.permute.xlu0 %2891
      %2893 = vrot.lane.b32.xlu0 %v2801, 32
      %v2894 = vpop.permute.xlu0 %2893
      %2895 = vrot.lane.b32.xlu0 %v2804, 32
      %v2896 = vpop.permute.xlu0 %2895
      %2897 = vrot.lane.b32.xlu0 %v2807, 32
      %v2898 = vpop.permute.xlu0 %2897
      %2899 = vrot.lane.b32.xlu0 %v2810, 32
      %v2900 = vpop.permute.xlu0 %2899
      %2901 = vrot.lane.b32.xlu0 %v2813, 32
      %v2902 = vpop.permute.xlu0 %2901
      %2903 = vrot.lane.b32.xlu0 %v2816, 32
      %v2904 = vpop.permute.xlu0 %2903
      %2905 = vrot.lane.b32.xlu0 %v2819, 32
      %v2906 = vpop.permute.xlu0 %2905
      %2907 = vrot.lane.b32.xlu0 %v2822, 32
      %v2908 = vpop.permute.xlu0 %2907
      %2909 = vrot.lane.b32.xlu0 %v2825, 32
      %v2910 = vpop.permute.xlu0 %2909
      %2911 = vrot.lane.b32.xlu0 %v2828, 32
      %v2912 = vpop.permute.xlu0 %2911
      %2913 = vrot.lane.b32.xlu0 %v2831, 32
      %v2914 = vpop.permute.xlu0 %2913
      %2915 = vrot.lane.b32.xlu0 %v2834, 32
      %v2916 = vpop.permute.xlu0 %2915
      %2917 = vrot.lane.b32.xlu0 %v2837, 32
      %v2918 = vpop.permute.xlu0 %2917
      %2919 = vrot.lane.b32.xlu0 %v2840, 32
      %v2920 = vpop.permute.xlu0 %2919
      %2921 = vrot.lane.b32.xlu0 %v2843, 32
      %v2922 = vpop.permute.xlu0 %2921
      %2923 = vrot.lane.b32.xlu0 %v2846, 32
      %v2924 = vpop.permute.xlu0 %2923
      %2925 = vrot.lane.b32.xlu0 %v2849, 32
      %v2926 = vpop.permute.xlu0 %2925
      %2927 = vrot.lane.b32.xlu0 %v2852, 32
      %v2928 = vpop.permute.xlu0 %2927
      %2929 = vrot.lane.b32.xlu0 %v2855, 32
      %v2930 = vpop.permute.xlu0 %2929
      %2931 = vrot.lane.b32.xlu0 %v2858, 32
      %v2932 = vpop.permute.xlu0 %2931
      %2933 = vrot.lane.b32.xlu0 %v2861, 32
      %v2934 = vpop.permute.xlu0 %2933
      %2935 = vrot.lane.b32.xlu0 %v2864, 32
      %v2936 = vpop.permute.xlu0 %2935
      %2937 = vrot.lane.b32.xlu0 %v2867, 32
      %v2938 = vpop.permute.xlu0 %2937
      %2939 = vrot.lane.b32.xlu0 %v2870, 32
      %v2940 = vpop.permute.xlu0 %2939
      %2941 = vrot.lane.b32.xlu0 %v2873, 32
      %v2942 = vpop.permute.xlu0 %2941
      %2943 = vrot.lane.b32.xlu0 %v2876, 32
      %v2944 = vpop.permute.xlu0 %2943
      %2945 = vrot.lane.b32.xlu0 %v2879, 32
      %v2946 = vpop.permute.xlu0 %2945
      %2947 = vrot.lane.b32.xlu0 %v2882, 32
      %v2948 = vpop.permute.xlu0 %2947
      %2949 = vrot.lane.b32.xlu0 %v2885, 32
      %v2950 = vpop.permute.xlu0 %2949
      %2951 = vrot.lane.b32.xlu0 %v2888, 32
      %v2952 = vpop.permute.xlu0 %2951
      %2985 = vst.msk [vmem:[#allocation3 + $0x4] sm:$0xf] %vm1624, %v2890
      %2986 = vst.msk [vmem:[#allocation3 + $0x10] sm:$0xf] %vm1624, %v2892
      %2987 = vst.msk [vmem:[#allocation3 + $0x1c] sm:$0xf] %vm1624, %v2894
      %2988 = vst.msk [vmem:[#allocation3 + $0x28] sm:$0xf] %vm1624, %v2896
      %2989 = vst.msk [vmem:[#allocation3 + $0x34] sm:$0xf] %vm1624, %v2898
      %2990 = vst.msk [vmem:[#allocation3 + $0x40] sm:$0xf] %vm1624, %v2900
      %2991 = vst.msk [vmem:[#allocation3 + $0x4c] sm:$0xf] %vm1624, %v2902
      %2992 = vst.msk [vmem:[#allocation3 + $0x58] sm:$0xf] %vm1624, %v2904
      %2993 = vst.msk [vmem:[#allocation3 + $0x64] sm:$0xf] %vm1624, %v2906
      %2994 = vst.msk [vmem:[#allocation3 + $0x70] sm:$0xf] %vm1624, %v2908
      %2995 = vst.msk [vmem:[#allocation3 + $0x7c] sm:$0xf] %vm1624, %v2910
      %2996 = vst.msk [vmem:[#allocation3 + $0x88] sm:$0xf] %vm1624, %v2912
      %2997 = vst.msk [vmem:[#allocation3 + $0x94] sm:$0xf] %vm1624, %v2914
      %2998 = vst.msk [vmem:[#allocation3 + $0xa0] sm:$0xf] %vm1624, %v2916
      %2999 = vst.msk [vmem:[#allocation3 + $0xac] sm:$0xf] %vm1624, %v2918
      %3000 = vst.msk [vmem:[#allocation3 + $0xb8] sm:$0xf] %vm1624, %v2920
      %3001 = vst.msk [vmem:[#allocation3 + $0xc4] sm:$0xf] %vm1624, %v2922
      %3002 = vst.msk [vmem:[#allocation3 + $0xd0] sm:$0xf] %vm1624, %v2924
      %3003 = vst.msk [vmem:[#allocation3 + $0xdc] sm:$0xf] %vm1624, %v2926
      %3004 = vst.msk [vmem:[#allocation3 + $0xe8] sm:$0xf] %vm1624, %v2928
      %3005 = vst.msk [vmem:[#allocation3 + $0xf4] sm:$0xf] %vm1624, %v2930
      %3006 = vst.msk [vmem:[#allocation3 + $0x100] sm:$0xf] %vm1624, %v2932
      %3007 = vst.msk [vmem:[#allocation3 + $0x10c] sm:$0xf] %vm1624, %v2934
      %3008 = vst.msk [vmem:[#allocation3 + $0x118] sm:$0xf] %vm1624, %v2936
      %3009 = vst.msk [vmem:[#allocation3 + $0x124] sm:$0xf] %vm1624, %v2938
      %3010 = vst.msk [vmem:[#allocation3 + $0x130] sm:$0xf] %vm1624, %v2940
      %3011 = vst.msk [vmem:[#allocation3 + $0x13c] sm:$0xf] %vm1624, %v2942
      %3012 = vst.msk [vmem:[#allocation3 + $0x148] sm:$0xf] %vm1624, %v2944
      %3013 = vst.msk [vmem:[#allocation3 + $0x154] sm:$0xf] %vm1624, %v2946
      %3014 = vst.msk [vmem:[#allocation3 + $0x160] sm:$0xf] %vm1624, %v2948
      %3015 = vst.msk [vmem:[#allocation3 + $0x16c] sm:$0xf] %vm1624, %v2950
      %3016 = vst.msk [vmem:[#allocation3 + $0x178] sm:$0xf] %vm1624, %v2952
      %v3017 = vld [vmem:[#allocation2 + $0x20] sm:$0xf]
      %v3018 = vld [vmem:[#allocation2 + $0x24] sm:$0xf]
      %v3019 = vld [vmem:[#allocation2 + $0x28] sm:$0xf]
      %v3020 = vld [vmem:[#allocation2 + $0x2c] sm:$0xf]
      %v3021 = vld [vmem:[#allocation2 + $0x30] sm:$0xf]
      %v3022 = vld [vmem:[#allocation2 + $0x34] sm:$0xf]
      %v3023 = vld [vmem:[#allocation2 + $0x38] sm:$0xf]
      %v3024 = vld [vmem:[#allocation2 + $0x3c] sm:$0xf]
      %v3025 = vld [vmem:[#allocation2 + $0x40] sm:$0xf]
      %v3026 = vld [vmem:[#allocation2 + $0x44] sm:$0xf]
      %v3027 = vld [vmem:[#allocation2 + $0x48] sm:$0xf]
      %v3028 = vld [vmem:[#allocation2 + $0x4c] sm:$0xf]
      %v3029 = vld [vmem:[#allocation2 + $0x50] sm:$0xf]
      %v3030 = vld [vmem:[#allocation2 + $0x54] sm:$0xf]
      %v3031 = vld [vmem:[#allocation2 + $0x58] sm:$0xf]
      %v3032 = vld [vmem:[#allocation2 + $0x5c] sm:$0xf]
      %v3033 = vld [vmem:[#allocation2 + $0x60] sm:$0xf]
      %v3034 = vld [vmem:[#allocation2 + $0x64] sm:$0xf]
      %v3035 = vld [vmem:[#allocation2 + $0x68] sm:$0xf]
      %v3036 = vld [vmem:[#allocation2 + $0x6c] sm:$0xf]
      %v3037 = vld [vmem:[#allocation2 + $0x70] sm:$0xf]
      %v3038 = vld [vmem:[#allocation2 + $0x74] sm:$0xf]
      %v3039 = vld [vmem:[#allocation2 + $0x78] sm:$0xf]
      %v3040 = vld [vmem:[#allocation2 + $0x7c] sm:$0xf]
      %v3041 = vld [vmem:[#allocation2 + $0x80] sm:$0xf]
      %v3042 = vld [vmem:[#allocation2 + $0x84] sm:$0xf]
      %v3043 = vld [vmem:[#allocation2 + $0x88] sm:$0xf]
      %v3044 = vld [vmem:[#allocation2 + $0x8c] sm:$0xf]
      %v3045 = vld [vmem:[#allocation2 + $0x90] sm:$0xf]
      %v3046 = vld [vmem:[#allocation2 + $0x94] sm:$0xf]
      %v3047 = vld [vmem:[#allocation2 + $0x98] sm:$0xf]
      %v3048 = vld [vmem:[#allocation2 + $0x9c] sm:$0xf]
      %v3049 = vsel %vm1266, %v3017, 0
      %v3050 = vsel %vm1267, %v3018, 0
      %v3051 = vsel %vm1268, %v3019, 0
      %v3052 = vsel %vm1269, %v3020, 0
      %v3053 = vsel %vm1270, %v3021, 0
      %v3054 = vsel %vm1271, %v3022, 0
      %v3055 = vsel %vm1272, %v3023, 0
      %v3056 = vsel %vm1273, %v3024, 0
      %v3057 = vsel %vm1274, %v3025, 0
      %v3058 = vsel %vm1275, %v3026, 0
      %v3059 = vsel %vm1276, %v3027, 0
      %v3060 = vsel %vm1277, %v3028, 0
      %v3061 = vsel %vm1278, %v3029, 0
      %v3062 = vsel %vm1279, %v3030, 0
      %v3063 = vsel %vm1280, %v3031, 0
      %v3064 = vsel %vm1281, %v3032, 0
      %v3065 = vsel %vm1282, %v3033, 0
      %v3066 = vsel %vm1283, %v3034, 0
      %v3067 = vsel %vm1284, %v3035, 0
      %v3068 = vsel %vm1285, %v3036, 0
      %v3069 = vsel %vm1286, %v3037, 0
      %v3070 = vsel %vm1287, %v3038, 0
      %v3071 = vsel %vm1288, %v3039, 0
      %v3072 = vsel %vm1289, %v3040, 0
      %v3073 = vsel %vm1290, %v3041, 0
      %v3074 = vsel %vm1291, %v3042, 0
      %v3075 = vsel %vm1292, %v3043, 0
      %v3076 = vsel %vm1293, %v3044, 0
      %v3077 = vsel %vm1294, %v3045, 0
      %v3078 = vsel %vm1295, %v3046, 0
      %v3079 = vsel %vm1296, %v3047, 0
      %v3080 = vsel %vm1297, %v3048, 0
      %3113 = vrot.lane.b32.xlu0 %v3049, 64
      %v3114 = vpop.permute.xlu0 %3113
      %3115 = vrot.lane.b32.xlu0 %v3050, 64
      %v3116 = vpop.permute.xlu0 %3115
      %3117 = vrot.lane.b32.xlu0 %v3051, 64
      %v3118 = vpop.permute.xlu0 %3117
      %3119 = vrot.lane.b32.xlu0 %v3052, 64
      %v3120 = vpop.permute.xlu0 %3119
      %3121 = vrot.lane.b32.xlu0 %v3053, 64
      %v3122 = vpop.permute.xlu0 %3121
      %3123 = vrot.lane.b32.xlu0 %v3054, 64
      %v3124 = vpop.permute.xlu0 %3123
      %3125 = vrot.lane.b32.xlu0 %v3055, 64
      %v3126 = vpop.permute.xlu0 %3125
      %3127 = vrot.lane.b32.xlu0 %v3056, 64
      %v3128 = vpop.permute.xlu0 %3127
      %3129 = vrot.lane.b32.xlu0 %v3057, 64
      %v3130 = vpop.permute.xlu0 %3129
      %3131 = vrot.lane.b32.xlu0 %v3058, 64
      %v3132 = vpop.permute.xlu0 %3131
      %3133 = vrot.lane.b32.xlu0 %v3059, 64
      %v3134 = vpop.permute.xlu0 %3133
      %3135 = vrot.lane.b32.xlu0 %v3060, 64
      %v3136 = vpop.permute.xlu0 %3135
      %3137 = vrot.lane.b32.xlu0 %v3061, 64
      %v3138 = vpop.permute.xlu0 %3137
      %3139 = vrot.lane.b32.xlu0 %v3062, 64
      %v3140 = vpop.permute.xlu0 %3139
      %3141 = vrot.lane.b32.xlu0 %v3063, 64
      %v3142 = vpop.permute.xlu0 %3141
      %3143 = vrot.lane.b32.xlu0 %v3064, 64
      %v3144 = vpop.permute.xlu0 %3143
      %3145 = vrot.lane.b32.xlu0 %v3065, 64
      %v3146 = vpop.permute.xlu0 %3145
      %3147 = vrot.lane.b32.xlu0 %v3066, 64
      %v3148 = vpop.permute.xlu0 %3147
      %3149 = vrot.lane.b32.xlu0 %v3067, 64
      %v3150 = vpop.permute.xlu0 %3149
      %3151 = vrot.lane.b32.xlu0 %v3068, 64
      %v3152 = vpop.permute.xlu0 %3151
      %3153 = vrot.lane.b32.xlu0 %v3069, 64
      %v3154 = vpop.permute.xlu0 %3153
      %3155 = vrot.lane.b32.xlu0 %v3070, 64
      %v3156 = vpop.permute.xlu0 %3155
      %3157 = vrot.lane.b32.xlu0 %v3071, 64
      %v3158 = vpop.permute.xlu0 %3157
      %3159 = vrot.lane.b32.xlu0 %v3072, 64
      %v3160 = vpop.permute.xlu0 %3159
      %3161 = vrot.lane.b32.xlu0 %v3073, 64
      %v3162 = vpop.permute.xlu0 %3161
      %3163 = vrot.lane.b32.xlu0 %v3074, 64
      %v3164 = vpop.permute.xlu0 %3163
      %3165 = vrot.lane.b32.xlu0 %v3075, 64
      %v3166 = vpop.permute.xlu0 %3165
      %3167 = vrot.lane.b32.xlu0 %v3076, 64
      %v3168 = vpop.permute.xlu0 %3167
      %3169 = vrot.lane.b32.xlu0 %v3077, 64
      %v3170 = vpop.permute.xlu0 %3169
      %3171 = vrot.lane.b32.xlu0 %v3078, 64
      %v3172 = vpop.permute.xlu0 %3171
      %3173 = vrot.lane.b32.xlu0 %v3079, 64
      %v3174 = vpop.permute.xlu0 %3173
      %3175 = vrot.lane.b32.xlu0 %v3080, 64
      %v3176 = vpop.permute.xlu0 %3175
      %3209 = vst.msk [vmem:[#allocation3 + $0x4] sm:$0xf] %vm2208, %v3114
      %3210 = vst.msk [vmem:[#allocation3 + $0x10] sm:$0xf] %vm2208, %v3116
      %3211 = vst.msk [vmem:[#allocation3 + $0x1c] sm:$0xf] %vm2208, %v3118
      %3212 = vst.msk [vmem:[#allocation3 + $0x28] sm:$0xf] %vm2208, %v3120
      %3213 = vst.msk [vmem:[#allocation3 + $0x34] sm:$0xf] %vm2208, %v3122
      %3214 = vst.msk [vmem:[#allocation3 + $0x40] sm:$0xf] %vm2208, %v3124
      %3215 = vst.msk [vmem:[#allocation3 + $0x4c] sm:$0xf] %vm2208, %v3126
      %3216 = vst.msk [vmem:[#allocation3 + $0x58] sm:$0xf] %vm2208, %v3128
      %3217 = vst.msk [vmem:[#allocation3 + $0x64] sm:$0xf] %vm2208, %v3130
      %3218 = vst.msk [vmem:[#allocation3 + $0x70] sm:$0xf] %vm2208, %v3132
      %3219 = vst.msk [vmem:[#allocation3 + $0x7c] sm:$0xf] %vm2208, %v3134
      %3220 = vst.msk [vmem:[#allocation3 + $0x88] sm:$0xf] %vm2208, %v3136
      %3221 = vst.msk [vmem:[#allocation3 + $0x94] sm:$0xf] %vm2208, %v3138
      %3222 = vst.msk [vmem:[#allocation3 + $0xa0] sm:$0xf] %vm2208, %v3140
      %3223 = vst.msk [vmem:[#allocation3 + $0xac] sm:$0xf] %vm2208, %v3142
      %3224 = vst.msk [vmem:[#allocation3 + $0xb8] sm:$0xf] %vm2208, %v3144
      %3225 = vst.msk [vmem:[#allocation3 + $0xc4] sm:$0xf] %vm2208, %v3146
      %3226 = vst.msk [vmem:[#allocation3 + $0xd0] sm:$0xf] %vm2208, %v3148
      %3227 = vst.msk [vmem:[#allocation3 + $0xdc] sm:$0xf] %vm2208, %v3150
      %3228 = vst.msk [vmem:[#allocation3 + $0xe8] sm:$0xf] %vm2208, %v3152
      %3229 = vst.msk [vmem:[#allocation3 + $0xf4] sm:$0xf] %vm2208, %v3154
      %3230 = vst.msk [vmem:[#allocation3 + $0x100] sm:$0xf] %vm2208, %v3156
      %3231 = vst.msk [vmem:[#allocation3 + $0x10c] sm:$0xf] %vm2208, %v3158
      %3232 = vst.msk [vmem:[#allocation3 + $0x118] sm:$0xf] %vm2208, %v3160
      %3233 = vst.msk [vmem:[#allocation3 + $0x124] sm:$0xf] %vm2208, %v3162
      %3234 = vst.msk [vmem:[#allocation3 + $0x130] sm:$0xf] %vm2208, %v3164
      %3235 = vst.msk [vmem:[#allocation3 + $0x13c] sm:$0xf] %vm2208, %v3166
      %3236 = vst.msk [vmem:[#allocation3 + $0x148] sm:$0xf] %vm2208, %v3168
      %3237 = vst.msk [vmem:[#allocation3 + $0x154] sm:$0xf] %vm2208, %v3170
      %3238 = vst.msk [vmem:[#allocation3 + $0x160] sm:$0xf] %vm2208, %v3172
      %3239 = vst.msk [vmem:[#allocation3 + $0x16c] sm:$0xf] %vm2208, %v3174
      %3240 = vst.msk [vmem:[#allocation3 + $0x178] sm:$0xf] %vm2208, %v3176
      %v3241 = vld [vmem:[#allocation2 + $0x20] sm:$0xe]
      %v3242 = vld [vmem:[#allocation2 + $0x24] sm:$0xf]
      %v3243 = vld [vmem:[#allocation2 + $0x28] sm:$0xf]
      %v3244 = vld [vmem:[#allocation2 + $0x2c] sm:$0xf]
      %v3245 = vld [vmem:[#allocation2 + $0x30] sm:$0xf]
      %v3246 = vld [vmem:[#allocation2 + $0x34] sm:$0xf]
      %v3247 = vld [vmem:[#allocation2 + $0x38] sm:$0xf]
      %v3248 = vld [vmem:[#allocation2 + $0x3c] sm:$0xf]
      %v3249 = vld [vmem:[#allocation2 + $0x40] sm:$0xf]
      %v3250 = vld [vmem:[#allocation2 + $0x44] sm:$0xf]
      %v3251 = vld [vmem:[#allocation2 + $0x48] sm:$0xf]
      %v3252 = vld [vmem:[#allocation2 + $0x4c] sm:$0xf]
      %v3253 = vld [vmem:[#allocation2 + $0x50] sm:$0xf]
      %v3254 = vld [vmem:[#allocation2 + $0x54] sm:$0xf]
      %v3255 = vld [vmem:[#allocation2 + $0x58] sm:$0xf]
      %v3256 = vld [vmem:[#allocation2 + $0x5c] sm:$0xf]
      %v3257 = vld [vmem:[#allocation2 + $0x60] sm:$0xf]
      %v3258 = vld [vmem:[#allocation2 + $0x64] sm:$0xf]
      %v3259 = vld [vmem:[#allocation2 + $0x68] sm:$0xf]
      %v3260 = vld [vmem:[#allocation2 + $0x6c] sm:$0xf]
      %v3261 = vld [vmem:[#allocation2 + $0x70] sm:$0xf]
      %v3262 = vld [vmem:[#allocation2 + $0x74] sm:$0xf]
      %v3263 = vld [vmem:[#allocation2 + $0x78] sm:$0xf]
      %v3264 = vld [vmem:[#allocation2 + $0x7c] sm:$0xf]
      %v3265 = vld [vmem:[#allocation2 + $0x80] sm:$0xf]
      %v3266 = vld [vmem:[#allocation2 + $0x84] sm:$0xf]
      %v3267 = vld [vmem:[#allocation2 + $0x88] sm:$0xf]
      %v3268 = vld [vmem:[#allocation2 + $0x8c] sm:$0xf]
      %v3269 = vld [vmem:[#allocation2 + $0x90] sm:$0xf]
      %v3270 = vld [vmem:[#allocation2 + $0x94] sm:$0xf]
      %v3271 = vld [vmem:[#allocation2 + $0x98] sm:$0xf]
      %v3272 = vld [vmem:[#allocation2 + $0x9c] sm:$0xf]
      %v3273 = vld [vmem:[#allocation2 + $0xa0] sm:$0x1]
      %v3307 = vrot.slane %v3241, 5
      %v3308 = vrot.slane %v3307, 4
      %v3309 = vrot.slane %v3242, 5
      %v3310 = vsel %vm1430, %v3308, %v3309
      %v3311 = vrot.slane %v3309, 4
      %v3312 = vrot.slane %v3243, 5
      %v3313 = vsel %vm1430, %v3311, %v3312
      %v3314 = vrot.slane %v3312, 4
      %v3315 = vrot.slane %v3244, 5
      %v3316 = vsel %vm1430, %v3314, %v3315
      %v3317 = vrot.slane %v3315, 4
      %v3318 = vrot.slane %v3245, 5
      %v3319 = vsel %vm1430, %v3317, %v3318
      %v3320 = vrot.slane %v3318, 4
      %v3321 = vrot.slane %v3246, 5
      %v3322 = vsel %vm1430, %v3320, %v3321
      %v3323 = vrot.slane %v3321, 4
      %v3324 = vrot.slane %v3247, 5
      %v3325 = vsel %vm1430, %v3323, %v3324
      %v3326 = vrot.slane %v3324, 4
      %v3327 = vrot.slane %v3248, 5
      %v3328 = vsel %vm1430, %v3326, %v3327
      %v3329 = vrot.slane %v3327, 4
      %v3330 = vrot.slane %v3249, 5
      %v3331 = vsel %vm1430, %v3329, %v3330
      %v3332 = vrot.slane %v3330, 4
      %v3333 = vrot.slane %v3250, 5
      %v3334 = vsel %vm1430, %v3332, %v3333
      %v3335 = vrot.slane %v3333, 4
      %v3336 = vrot.slane %v3251, 5
      %v3337 = vsel %vm1430, %v3335, %v3336
      %v3338 = vrot.slane %v3336, 4
      %v3339 = vrot.slane %v3252, 5
      %v3340 = vsel %vm1430, %v3338, %v3339
      %v3341 = vrot.slane %v3339, 4
      %v3342 = vrot.slane %v3253, 5
      %v3343 = vsel %vm1430, %v3341, %v3342
      %v3344 = vrot.slane %v3342, 4
      %v3345 = vrot.slane %v3254, 5
      %v3346 = vsel %vm1430, %v3344, %v3345
      %v3347 = vrot.slane %v3345, 4
      %v3348 = vrot.slane %v3255, 5
      %v3349 = vsel %vm1430, %v3347, %v3348
      %v3350 = vrot.slane %v3348, 4
      %v3351 = vrot.slane %v3256, 5
      %v3352 = vsel %vm1430, %v3350, %v3351
      %v3353 = vrot.slane %v3351, 4
      %v3354 = vrot.slane %v3257, 5
      %v3355 = vsel %vm1430, %v3353, %v3354
      %v3356 = vrot.slane %v3354, 4
      %v3357 = vrot.slane %v3258, 5
      %v3358 = vsel %vm1430, %v3356, %v3357
      %v3359 = vrot.slane %v3357, 4
      %v3360 = vrot.slane %v3259, 5
      %v3361 = vsel %vm1430, %v3359, %v3360
      %v3362 = vrot.slane %v3360, 4
      %v3363 = vrot.slane %v3260, 5
      %v3364 = vsel %vm1430, %v3362, %v3363
      %v3365 = vrot.slane %v3363, 4
      %v3366 = vrot.slane %v3261, 5
      %v3367 = vsel %vm1430, %v3365, %v3366
      %v3368 = vrot.slane %v3366, 4
      %v3369 = vrot.slane %v3262, 5
      %v3370 = vsel %vm1430, %v3368, %v3369
      %v3371 = vrot.slane %v3369, 4
      %v3372 = vrot.slane %v3263, 5
      %v3373 = vsel %vm1430, %v3371, %v3372
      %v3374 = vrot.slane %v3372, 4
      %v3375 = vrot.slane %v3264, 5
      %v3376 = vsel %vm1430, %v3374, %v3375
      %v3377 = vrot.slane %v3375, 4
      %v3378 = vrot.slane %v3265, 5
      %v3379 = vsel %vm1430, %v3377, %v3378
      %v3380 = vrot.slane %v3378, 4
      %v3381 = vrot.slane %v3266, 5
      %v3382 = vsel %vm1430, %v3380, %v3381
      %v3383 = vrot.slane %v3381, 4
      %v3384 = vrot.slane %v3267, 5
      %v3385 = vsel %vm1430, %v3383, %v3384
      %v3386 = vrot.slane %v3384, 4
      %v3387 = vrot.slane %v3268, 5
      %v3388 = vsel %vm1430, %v3386, %v3387
      %v3389 = vrot.slane %v3387, 4
      %v3390 = vrot.slane %v3269, 5
      %v3391 = vsel %vm1430, %v3389, %v3390
      %v3392 = vrot.slane %v3390, 4
      %v3393 = vrot.slane %v3270, 5
      %v3394 = vsel %vm1430, %v3392, %v3393
      %v3395 = vrot.slane %v3393, 4
      %v3396 = vrot.slane %v3271, 5
      %v3397 = vsel %vm1430, %v3395, %v3396
      %v3398 = vrot.slane %v3396, 4
      %v3399 = vrot.slane %v3272, 5
      %v3400 = vsel %vm1430, %v3398, %v3399
      %v3401 = vrot.slane %v3399, 4
      %v3402 = vrot.slane %v3273, 5
      %v3403 = vsel %vm1430, %v3401, %v3402
      %3404 = vrot.lane.b32.xlu0 %v3310, 96
      %v3405 = vpop.permute.xlu0 %3404
      %3406 = vrot.lane.b32.xlu0 %v3313, 96
      %v3407 = vpop.permute.xlu0 %3406
      %3408 = vrot.lane.b32.xlu0 %v3316, 96
      %v3409 = vpop.permute.xlu0 %3408
      %3410 = vrot.lane.b32.xlu0 %v3319, 96
      %v3411 = vpop.permute.xlu0 %3410
      %3412 = vrot.lane.b32.xlu0 %v3322, 96
      %v3413 = vpop.permute.xlu0 %3412
      %3414 = vrot.lane.b32.xlu0 %v3325, 96
      %v3415 = vpop.permute.xlu0 %3414
      %3416 = vrot.lane.b32.xlu0 %v3328, 96
      %v3417 = vpop.permute.xlu0 %3416
      %3418 = vrot.lane.b32.xlu0 %v3331, 96
      %v3419 = vpop.permute.xlu0 %3418
      %3420 = vrot.lane.b32.xlu0 %v3334, 96
      %v3421 = vpop.permute.xlu0 %3420
      %3422 = vrot.lane.b32.xlu0 %v3337, 96
      %v3423 = vpop.permute.xlu0 %3422
      %3424 = vrot.lane.b32.xlu0 %v3340, 96
      %v3425 = vpop.permute.xlu0 %3424
      %3426 = vrot.lane.b32.xlu0 %v3343, 96
      %v3427 = vpop.permute.xlu0 %3426
      %3428 = vrot.lane.b32.xlu0 %v3346, 96
      %v3429 = vpop.permute.xlu0 %3428
      %3430 = vrot.lane.b32.xlu0 %v3349, 96
      %v3431 = vpop.permute.xlu0 %3430
      %3432 = vrot.lane.b32.xlu0 %v3352, 96
      %v3433 = vpop.permute.xlu0 %3432
      %3434 = vrot.lane.b32.xlu0 %v3355, 96
      %v3435 = vpop.permute.xlu0 %3434
      %3436 = vrot.lane.b32.xlu0 %v3358, 96
      %v3437 = vpop.permute.xlu0 %3436
      %3438 = vrot.lane.b32.xlu0 %v3361, 96
      %v3439 = vpop.permute.xlu0 %3438
      %3440 = vrot.lane.b32.xlu0 %v3364, 96
      %v3441 = vpop.permute.xlu0 %3440
      %3442 = vrot.lane.b32.xlu0 %v3367, 96
      %v3443 = vpop.permute.xlu0 %3442
      %3444 = vrot.lane.b32.xlu0 %v3370, 96
      %v3445 = vpop.permute.xlu0 %3444
      %3446 = vrot.lane.b32.xlu0 %v3373, 96
      %v3447 = vpop.permute.xlu0 %3446
      %3448 = vrot.lane.b32.xlu0 %v3376, 96
      %v3449 = vpop.permute.xlu0 %3448
      %3450 = vrot.lane.b32.xlu0 %v3379, 96
      %v3451 = vpop.permute.xlu0 %3450
      %3452 = vrot.lane.b32.xlu0 %v3382, 96
      %v3453 = vpop.permute.xlu0 %3452
      %3454 = vrot.lane.b32.xlu0 %v3385, 96
      %v3455 = vpop.permute.xlu0 %3454
      %3456 = vrot.lane.b32.xlu0 %v3388, 96
      %v3457 = vpop.permute.xlu0 %3456
      %3458 = vrot.lane.b32.xlu0 %v3391, 96
      %v3459 = vpop.permute.xlu0 %3458
      %3460 = vrot.lane.b32.xlu0 %v3394, 96
      %v3461 = vpop.permute.xlu0 %3460
      %3462 = vrot.lane.b32.xlu0 %v3397, 96
      %v3463 = vpop.permute.xlu0 %3462
      %3464 = vrot.lane.b32.xlu0 %v3400, 96
      %v3465 = vpop.permute.xlu0 %3464
      %3466 = vrot.lane.b32.xlu0 %v3403, 96
      %v3467 = vpop.permute.xlu0 %3466
      %3500 = vst.msk [vmem:[#allocation3 + $0x4] sm:$0xf] %vm2433, %v3405
      %3501 = vst.msk [vmem:[#allocation3 + $0x10] sm:$0xf] %vm2433, %v3407
      %3502 = vst.msk [vmem:[#allocation3 + $0x1c] sm:$0xf] %vm2433, %v3409
      %3503 = vst.msk [vmem:[#allocation3 + $0x28] sm:$0xf] %vm2433, %v3411
      %3504 = vst.msk [vmem:[#allocation3 + $0x34] sm:$0xf] %vm2433, %v3413
      %3505 = vst.msk [vmem:[#allocation3 + $0x40] sm:$0xf] %vm2433, %v3415
      %3506 = vst.msk [vmem:[#allocation3 + $0x4c] sm:$0xf] %vm2433, %v3417
      %3507 = vst.msk [vmem:[#allocation3 + $0x58] sm:$0xf] %vm2433, %v3419
      %3508 = vst.msk [vmem:[#allocation3 + $0x64] sm:$0xf] %vm2433, %v3421
      %3509 = vst.msk [vmem:[#allocation3 + $0x70] sm:$0xf] %vm2433, %v3423
      %3510 = vst.msk [vmem:[#allocation3 + $0x7c] sm:$0xf] %vm2433, %v3425
      %3511 = vst.msk [vmem:[#allocation3 + $0x88] sm:$0xf] %vm2433, %v3427
      %3512 = vst.msk [vmem:[#allocation3 + $0x94] sm:$0xf] %vm2433, %v3429
      %3513 = vst.msk [vmem:[#allocation3 + $0xa0] sm:$0xf] %vm2433, %v3431
      %3514 = vst.msk [vmem:[#allocation3 + $0xac] sm:$0xf] %vm2433, %v3433
      %3515 = vst.msk [vmem:[#allocation3 + $0xb8] sm:$0xf] %vm2433, %v3435
      %3516 = vst.msk [vmem:[#allocation3 + $0xc4] sm:$0xf] %vm2433, %v3437
      %3517 = vst.msk [vmem:[#allocation3 + $0xd0] sm:$0xf] %vm2433, %v3439
      %3518 = vst.msk [vmem:[#allocation3 + $0xdc] sm:$0xf] %vm2433, %v3441
      %3519 = vst.msk [vmem:[#allocation3 + $0xe8] sm:$0xf] %vm2433, %v3443
      %3520 = vst.msk [vmem:[#allocation3 + $0xf4] sm:$0xf] %vm2433, %v3445
      %3521 = vst.msk [vmem:[#allocation3 + $0x100] sm:$0xf] %vm2433, %v3447
      %3522 = vst.msk [vmem:[#allocation3 + $0x10c] sm:$0xf] %vm2433, %v3449
      %3523 = vst.msk [vmem:[#allocation3 + $0x118] sm:$0xf] %vm2433, %v3451
      %3524 = vst.msk [vmem:[#allocation3 + $0x124] sm:$0xf] %vm2433, %v3453
      %3525 = vst.msk [vmem:[#allocation3 + $0x130] sm:$0xf] %vm2433, %v3455
      %3526 = vst.msk [vmem:[#allocation3 + $0x13c] sm:$0xf] %vm2433, %v3457
      %3527 = vst.msk [vmem:[#allocation3 + $0x148] sm:$0xf] %vm2433, %v3459
      %3528 = vst.msk [vmem:[#allocation3 + $0x154] sm:$0xf] %vm2433, %v3461
      %3529 = vst.msk [vmem:[#allocation3 + $0x160] sm:$0xf] %vm2433, %v3463
      %3530 = vst.msk [vmem:[#allocation3 + $0x16c] sm:$0xf] %vm2433, %v3465
      %3531 = vst.msk [vmem:[#allocation3 + $0x178] sm:$0xf] %vm2433, %v3467
      %v3532 = vld [vmem:[#allocation2 + $0x20] sm:$0xc]
      %v3533 = vld [vmem:[#allocation2 + $0x24] sm:$0xf]
      %v3534 = vld [vmem:[#allocation2 + $0x28] sm:$0xf]
      %v3535 = vld [vmem:[#allocation2 + $0x2c] sm:$0xf]
      %v3536 = vld [vmem:[#allocation2 + $0x30] sm:$0xf]
      %v3537 = vld [vmem:[#allocation2 + $0x34] sm:$0xf]
      %v3538 = vld [vmem:[#allocation2 + $0x38] sm:$0xf]
      %v3539 = vld [vmem:[#allocation2 + $0x3c] sm:$0xf]
      %v3540 = vld [vmem:[#allocation2 + $0x40] sm:$0xf]
      %v3541 = vld [vmem:[#allocation2 + $0x44] sm:$0xf]
      %v3542 = vld [vmem:[#allocation2 + $0x48] sm:$0xf]
      %v3543 = vld [vmem:[#allocation2 + $0x4c] sm:$0xf]
      %v3544 = vld [vmem:[#allocation2 + $0x50] sm:$0xf]
      %v3545 = vld [vmem:[#allocation2 + $0x54] sm:$0xf]
      %v3546 = vld [vmem:[#allocation2 + $0x58] sm:$0xf]
      %v3547 = vld [vmem:[#allocation2 + $0x5c] sm:$0xf]
      %v3548 = vld [vmem:[#allocation2 + $0x60] sm:$0xf]
      %v3549 = vld [vmem:[#allocation2 + $0x64] sm:$0xf]
      %v3550 = vld [vmem:[#allocation2 + $0x68] sm:$0xf]
      %v3551 = vld [vmem:[#allocation2 + $0x6c] sm:$0xf]
      %v3552 = vld [vmem:[#allocation2 + $0x70] sm:$0xf]
      %v3553 = vld [vmem:[#allocation2 + $0x74] sm:$0xf]
      %v3554 = vld [vmem:[#allocation2 + $0x78] sm:$0xf]
      %v3555 = vld [vmem:[#allocation2 + $0x7c] sm:$0xf]
      %v3556 = vld [vmem:[#allocation2 + $0x80] sm:$0xf]
      %v3557 = vld [vmem:[#allocation2 + $0x84] sm:$0xf]
      %v3558 = vld [vmem:[#allocation2 + $0x88] sm:$0xf]
      %v3559 = vld [vmem:[#allocation2 + $0x8c] sm:$0xf]
      %v3560 = vld [vmem:[#allocation2 + $0x90] sm:$0xf]
      %v3561 = vld [vmem:[#allocation2 + $0x94] sm:$0xf]
      %v3562 = vld [vmem:[#allocation2 + $0x98] sm:$0xf]
      %v3563 = vld [vmem:[#allocation2 + $0x9c] sm:$0xf]
      %v3564 = vld [vmem:[#allocation2 + $0xa0] sm:$0x3]
      %v3565 = vsel %vm1916, %v3532, 0
      %v3566 = vsel %vm1917, %v3533, 0
      %v3567 = vsel %vm1918, %v3534, 0
      %v3568 = vsel %vm1919, %v3535, 0
      %v3569 = vsel %vm1920, %v3536, 0
      %v3570 = vsel %vm1921, %v3537, 0
      %v3571 = vsel %vm1922, %v3538, 0
      %v3572 = vsel %vm1923, %v3539, 0
      %v3573 = vsel %vm1924, %v3540, 0
      %v3574 = vsel %vm1925, %v3541, 0
      %v3575 = vsel %vm1926, %v3542, 0
      %v3576 = vsel %vm1927, %v3543, 0
      %v3577 = vsel %vm1928, %v3544, 0
      %v3578 = vsel %vm1929, %v3545, 0
      %v3579 = vsel %vm1930, %v3546, 0
      %v3580 = vsel %vm1931, %v3547, 0
      %v3581 = vsel %vm1932, %v3548, 0
      %v3582 = vsel %vm1933, %v3549, 0
      %v3583 = vsel %vm1934, %v3550, 0
      %v3584 = vsel %vm1935, %v3551, 0
      %v3585 = vsel %vm1936, %v3552, 0
      %v3586 = vsel %vm1937, %v3553, 0
      %v3587 = vsel %vm1938, %v3554, 0
      %v3588 = vsel %vm1939, %v3555, 0
      %v3589 = vsel %vm1940, %v3556, 0
      %v3590 = vsel %vm1941, %v3557, 0
      %v3591 = vsel %vm1942, %v3558, 0
      %v3592 = vsel %vm1943, %v3559, 0
      %v3593 = vsel %vm1944, %v3560, 0
      %v3594 = vsel %vm1945, %v3561, 0
      %v3595 = vsel %vm1946, %v3562, 0
      %v3596 = vsel %vm1947, %v3563, 0
      %v3597 = vsel %vm1948, %v3564, 0
      %v3631 = vrot.slane %v3565, 6
      %v3632 = vrot.slane %v3631, 4
      %v3633 = vrot.slane %v3566, 6
      %v3634 = vsel %vm1820, %v3632, %v3633
      %v3635 = vrot.slane %v3633, 4
      %v3636 = vrot.slane %v3567, 6
      %v3637 = vsel %vm1820, %v3635, %v3636
      %v3638 = vrot.slane %v3636, 4
      %v3639 = vrot.slane %v3568, 6
      %v3640 = vsel %vm1820, %v3638, %v3639
      %v3641 = vrot.slane %v3639, 4
      %v3642 = vrot.slane %v3569, 6
      %v3643 = vsel %vm1820, %v3641, %v3642
      %v3644 = vrot.slane %v3642, 4
      %v3645 = vrot.slane %v3570, 6
      %v3646 = vsel %vm1820, %v3644, %v3645
      %v3647 = vrot.slane %v3645, 4
      %v3648 = vrot.slane %v3571, 6
      %v3649 = vsel %vm1820, %v3647, %v3648
      %v3650 = vrot.slane %v3648, 4
      %v3651 = vrot.slane %v3572, 6
      %v3652 = vsel %vm1820, %v3650, %v3651
      %v3653 = vrot.slane %v3651, 4
      %v3654 = vrot.slane %v3573, 6
      %v3655 = vsel %vm1820, %v3653, %v3654
      %v3656 = vrot.slane %v3654, 4
      %v3657 = vrot.slane %v3574, 6
      %v3658 = vsel %vm1820, %v3656, %v3657
      %v3659 = vrot.slane %v3657, 4
      %v3660 = vrot.slane %v3575, 6
      %v3661 = vsel %vm1820, %v3659, %v3660
      %v3662 = vrot.slane %v3660, 4
      %v3663 = vrot.slane %v3576, 6
      %v3664 = vsel %vm1820, %v3662, %v3663
      %v3665 = vrot.slane %v3663, 4
      %v3666 = vrot.slane %v3577, 6
      %v3667 = vsel %vm1820, %v3665, %v3666
      %v3668 = vrot.slane %v3666, 4
      %v3669 = vrot.slane %v3578, 6
      %v3670 = vsel %vm1820, %v3668, %v3669
      %v3671 = vrot.slane %v3669, 4
      %v3672 = vrot.slane %v3579, 6
      %v3673 = vsel %vm1820, %v3671, %v3672
      %v3674 = vrot.slane %v3672, 4
      %v3675 = vrot.slane %v3580, 6
      %v3676 = vsel %vm1820, %v3674, %v3675
      %v3677 = vrot.slane %v3675, 4
      %v3678 = vrot.slane %v3581, 6
      %v3679 = vsel %vm1820, %v3677, %v3678
      %v3680 = vrot.slane %v3678, 4
      %v3681 = vrot.slane %v3582, 6
      %v3682 = vsel %vm1820, %v3680, %v3681
      %v3683 = vrot.slane %v3681, 4
      %v3684 = vrot.slane %v3583, 6
      %v3685 = vsel %vm1820, %v3683, %v3684
      %v3686 = vrot.slane %v3684, 4
      %v3687 = vrot.slane %v3584, 6
      %v3688 = vsel %vm1820, %v3686, %v3687
      %v3689 = vrot.slane %v3687, 4
      %v3690 = vrot.slane %v3585, 6
      %v3691 = vsel %vm1820, %v3689, %v3690
      %v3692 = vrot.slane %v3690, 4
      %v3693 = vrot.slane %v3586, 6
      %v3694 = vsel %vm1820, %v3692, %v3693
      %v3695 = vrot.slane %v3693, 4
      %v3696 = vrot.slane %v3587, 6
      %v3697 = vsel %vm1820, %v3695, %v3696
      %v3698 = vrot.slane %v3696, 4
      %v3699 = vrot.slane %v3588, 6
      %v3700 = vsel %vm1820, %v3698, %v3699
      %v3701 = vrot.slane %v3699, 4
      %v3702 = vrot.slane %v3589, 6
      %v3703 = vsel %vm1820, %v3701, %v3702
      %v3704 = vrot.slane %v3702, 4
      %v3705 = vrot.slane %v3590, 6
      %v3706 = vsel %vm1820, %v3704, %v3705
      %v3707 = vrot.slane %v3705, 4
      %v3708 = vrot.slane %v3591, 6
      %v3709 = vsel %vm1820, %v3707, %v3708
      %v3710 = vrot.slane %v3708, 4
      %v3711 = vrot.slane %v3592, 6
      %v3712 = vsel %vm1820, %v3710, %v3711
      %v3713 = vrot.slane %v3711, 4
      %v3714 = vrot.slane %v3593, 6
      %v3715 = vsel %vm1820, %v3713, %v3714
      %v3716 = vrot.slane %v3714, 4
      %v3717 = vrot.slane %v3594, 6
      %v3718 = vsel %vm1820, %v3716, %v3717
      %v3719 = vrot.slane %v3717, 4
      %v3720 = vrot.slane %v3595, 6
      %v3721 = vsel %vm1820, %v3719, %v3720
      %v3722 = vrot.slane %v3720, 4
      %v3723 = vrot.slane %v3596, 6
      %v3724 = vsel %vm1820, %v3722, %v3723
      %v3725 = vrot.slane %v3723, 4
      %v3726 = vrot.slane %v3597, 6
      %v3727 = vsel %vm1820, %v3725, %v3726
      %3760 = vst.msk [vmem:[#allocation3 + $0x8] sm:$0xf] %vm242, %v3634
      %3761 = vst.msk [vmem:[#allocation3 + $0x14] sm:$0xf] %vm242, %v3637
      %3762 = vst.msk [vmem:[#allocation3 + $0x20] sm:$0xf] %vm242, %v3640
      %3763 = vst.msk [vmem:[#allocation3 + $0x2c] sm:$0xf] %vm242, %v3643
      %3764 = vst.msk [vmem:[#allocation3 + $0x38] sm:$0xf] %vm242, %v3646
      %3765 = vst.msk [vmem:[#allocation3 + $0x44] sm:$0xf] %vm242, %v3649
      %3766 = vst.msk [vmem:[#allocation3 + $0x50] sm:$0xf] %vm242, %v3652
      %3767 = vst.msk [vmem:[#allocation3 + $0x5c] sm:$0xf] %vm242, %v3655
      %3768 = vst.msk [vmem:[#allocation3 + $0x68] sm:$0xf] %vm242, %v3658
      %3769 = vst.msk [vmem:[#allocation3 + $0x74] sm:$0xf] %vm242, %v3661
      %3770 = vst.msk [vmem:[#allocation3 + $0x80] sm:$0xf] %vm242, %v3664
      %3771 = vst.msk [vmem:[#allocation3 + $0x8c] sm:$0xf] %vm242, %v3667
      %3772 = vst.msk [vmem:[#allocation3 + $0x98] sm:$0xf] %vm242, %v3670
      %3773 = vst.msk [vmem:[#allocation3 + $0xa4] sm:$0xf] %vm242, %v3673
      %3774 = vst.msk [vmem:[#allocation3 + $0xb0] sm:$0xf] %vm242, %v3676
      %3775 = vst.msk [vmem:[#allocation3 + $0xbc] sm:$0xf] %vm242, %v3679
      %3776 = vst.msk [vmem:[#allocation3 + $0xc8] sm:$0xf] %vm242, %v3682
      %3777 = vst.msk [vmem:[#allocation3 + $0xd4] sm:$0xf] %vm242, %v3685
      %3778 = vst.msk [vmem:[#allocation3 + $0xe0] sm:$0xf] %vm242, %v3688
      %3779 = vst.msk [vmem:[#allocation3 + $0xec] sm:$0xf] %vm242, %v3691
      %3780 = vst.msk [vmem:[#allocation3 + $0xf8] sm:$0xf] %vm242, %v3694
      %3781 = vst.msk [vmem:[#allocation3 + $0x104] sm:$0xf] %vm242, %v3697
      %3782 = vst.msk [vmem:[#allocation3 + $0x110] sm:$0xf] %vm242, %v3700
      %3783 = vst.msk [vmem:[#allocation3 + $0x11c] sm:$0xf] %vm242, %v3703
      %3784 = vst.msk [vmem:[#allocation3 + $0x128] sm:$0xf] %vm242, %v3706
      %3785 = vst.msk [vmem:[#allocation3 + $0x134] sm:$0xf] %vm242, %v3709
      %3786 = vst.msk [vmem:[#allocation3 + $0x140] sm:$0xf] %vm242, %v3712
      %3787 = vst.msk [vmem:[#allocation3 + $0x14c] sm:$0xf] %vm242, %v3715
      %3788 = vst.msk [vmem:[#allocation3 + $0x158] sm:$0xf] %vm242, %v3718
      %3789 = vst.msk [vmem:[#allocation3 + $0x164] sm:$0xf] %vm242, %v3721
      %3790 = vst.msk [vmem:[#allocation3 + $0x170] sm:$0xf] %vm242, %v3724
      %3791 = vst.msk [vmem:[#allocation3 + $0x17c] sm:$0xf] %vm242, %v3727
      %v3792 = vld [vmem:[#allocation3] sm:$0xff]
      %v3793 = vld [vmem:[#allocation3 + $0x8] sm:$0xf]
      %v3794 = vld [vmem:[#allocation3 + $0xc] sm:$0xff]
      %v3795 = vld [vmem:[#allocation3 + $0x14] sm:$0xf]
      %v3796 = vld [vmem:[#allocation3 + $0x18] sm:$0xff]
      %v3797 = vld [vmem:[#allocation3 + $0x20] sm:$0xf]
      %v3798 = vld [vmem:[#allocation3 + $0x24] sm:$0xff]
      %v3799 = vld [vmem:[#allocation3 + $0x2c] sm:$0xf]
      %v3800 = vld [vmem:[#allocation3 + $0x30] sm:$0xff]
      %v3801 = vld [vmem:[#allocation3 + $0x38] sm:$0xf]
      %v3802 = vld [vmem:[#allocation3 + $0x3c] sm:$0xff]
      %v3803 = vld [vmem:[#allocation3 + $0x44] sm:$0xf]
      %v3804 = vld [vmem:[#allocation3 + $0x48] sm:$0xff]
      %v3805 = vld [vmem:[#allocation3 + $0x50] sm:$0xf]
      %v3806 = vld [vmem:[#allocation3 + $0x54] sm:$0xff]
      %v3807 = vld [vmem:[#allocation3 + $0x5c] sm:$0xf]
      %v3808 = vld [vmem:[#allocation3 + $0x60] sm:$0xff]
      %v3809 = vld [vmem:[#allocation3 + $0x68] sm:$0xf]
      %v3810 = vld [vmem:[#allocation3 + $0x6c] sm:$0xff]
      %v3811 = vld [vmem:[#allocation3 + $0x74] sm:$0xf]
      %v3812 = vld [vmem:[#allocation3 + $0x78] sm:$0xff]
      %v3813 = vld [vmem:[#allocation3 + $0x80] sm:$0xf]
      %v3814 = vld [vmem:[#allocation3 + $0x84] sm:$0xff]
      %v3815 = vld [vmem:[#allocation3 + $0x8c] sm:$0xf]
      %v3816 = vld [vmem:[#allocation3 + $0x90] sm:$0xff]
      %v3817 = vld [vmem:[#allocation3 + $0x98] sm:$0xf]
      %v3818 = vld [vmem:[#allocation3 + $0x9c] sm:$0xff]
      %v3819 = vld [vmem:[#allocation3 + $0xa4] sm:$0xf]
      %v3820 = vld [vmem:[#allocation3 + $0xa8] sm:$0xff]
      %v3821 = vld [vmem:[#allocation3 + $0xb0] sm:$0xf]
      %v3822 = vld [vmem:[#allocation3 + $0xb4] sm:$0xff]
      %v3823 = vld [vmem:[#allocation3 + $0xbc] sm:$0xf]
      %v3824 = vld [vmem:[#allocation3 + $0xc0] sm:$0xff]
      %v3825 = vld [vmem:[#allocation3 + $0xc8] sm:$0xf]
      %v3826 = vld [vmem:[#allocation3 + $0xcc] sm:$0xff]
      %v3827 = vld [vmem:[#allocation3 + $0xd4] sm:$0xf]
      %v3828 = vld [vmem:[#allocation3 + $0xd8] sm:$0xff]
      %v3829 = vld [vmem:[#allocation3 + $0xe0] sm:$0xf]
      %v3830 = vld [vmem:[#allocation3 + $0xe4] sm:$0xff]
      %v3831 = vld [vmem:[#allocation3 + $0xec] sm:$0xf]
      %v3832 = vld [vmem:[#allocation3 + $0xf0] sm:$0xff]
      %v3833 = vld [vmem:[#allocation3 + $0xf8] sm:$0xf]
      %v3834 = vld [vmem:[#allocation3 + $0xfc] sm:$0xff]
      %v3835 = vld [vmem:[#allocation3 + $0x104] sm:$0xf]
      %v3836 = vld [vmem:[#allocation3 + $0x108] sm:$0xff]
      %v3837 = vld [vmem:[#allocation3 + $0x110] sm:$0xf]
      %v3838 = vld [vmem:[#allocation3 + $0x114] sm:$0xff]
      %v3839 = vld [vmem:[#allocation3 + $0x11c] sm:$0xf]
      %v3840 = vld [vmem:[#allocation3 + $0x120] sm:$0xff]
      %v3841 = vld [vmem:[#allocation3 + $0x128] sm:$0xf]
      %v3842 = vld [vmem:[#allocation3 + $0x12c] sm:$0xff]
      %v3843 = vld [vmem:[#allocation3 + $0x134] sm:$0xf]
      %v3844 = vld [vmem:[#allocation3 + $0x138] sm:$0xff]
      %v3845 = vld [vmem:[#allocation3 + $0x140] sm:$0xf]
      %v3846 = vld [vmem:[#allocation3 + $0x144] sm:$0xff]
      %v3847 = vld [vmem:[#allocation3 + $0x14c] sm:$0xf]
      %v3848 = vld [vmem:[#allocation3 + $0x150] sm:$0xff]
      %v3849 = vld [vmem:[#allocation3 + $0x158] sm:$0xf]
      %v3850 = vld [vmem:[#allocation3 + $0x15c] sm:$0xff]
      %v3851 = vld [vmem:[#allocation3 + $0x164] sm:$0xf]
      %v3852 = vld [vmem:[#allocation3 + $0x168] sm:$0xff]
      %v3853 = vld [vmem:[#allocation3 + $0x170] sm:$0xf]
      %v3854 = vld [vmem:[#allocation3 + $0x174] sm:$0xff]
      %v3855 = vld [vmem:[#allocation3 + $0x17c] sm:$0xf]
      %v3856 = vld [vmem:[%s1] sm:$0xf]
      %v3857 = vld [vmem:[%s1 + $0x4] sm:$0xf]
      %v3858 = vld [vmem:[%s1 + $0x8] sm:$0xf]
      %v3859 = vld [vmem:[%s1 + $0xc] sm:$0xf]
      %v3860 = vld [vmem:[%s1 + $0x10] sm:$0xf]
      %v3861 = vld [vmem:[%s1 + $0x14] sm:$0xf]
      %v3862 = vld [vmem:[%s1 + $0x18] sm:$0xf]
      %v3863 = vld [vmem:[%s1 + $0x1c] sm:$0xf]
      %v3864 = vld [vmem:[%s1 + $0x20] sm:$0xf]
      %v3865 = vld [vmem:[%s1 + $0x24] sm:$0xf]
      %v3866 = vld [vmem:[%s1 + $0x28] sm:$0xf]
      %v3867 = vld [vmem:[%s1 + $0x2c] sm:$0xf]
      %v3868 = vld [vmem:[%s1 + $0x30] sm:$0xf]
      %v3869 = vld [vmem:[%s1 + $0x34] sm:$0xf]
      %v3870 = vld [vmem:[%s1 + $0x38] sm:$0xf]
      %v3871 = vld [vmem:[%s1 + $0x3c] sm:$0xf]
      %v3872 = vld [vmem:[%s1 + $0x40] sm:$0xf]
      %v3873 = vld [vmem:[%s1 + $0x44] sm:$0xf]
      %v3874 = vld [vmem:[%s1 + $0x48] sm:$0xf]
      %v3875 = vld [vmem:[%s1 + $0x4c] sm:$0xf]
      %v3876 = vld [vmem:[%s1 + $0x50] sm:$0xf]
      %v3877 = vld [vmem:[%s1 + $0x54] sm:$0xf]
      %v3878 = vld [vmem:[%s1 + $0x58] sm:$0xf]
      %v3879 = vld [vmem:[%s1 + $0x5c] sm:$0xf]
      %v3880 = vld [vmem:[%s1 + $0x60] sm:$0xf]
      %v3881 = vld [vmem:[%s1 + $0x64] sm:$0xf]
      %v3882 = vld [vmem:[%s1 + $0x68] sm:$0xf]
      %v3883 = vld [vmem:[%s1 + $0x6c] sm:$0xf]
      %v3884 = vld [vmem:[%s1 + $0x70] sm:$0xf]
      %v3885 = vld [vmem:[%s1 + $0x74] sm:$0xf]
      %v3886 = vld [vmem:[%s1 + $0x78] sm:$0xf]
      %v3887 = vld [vmem:[%s1 + $0x7c] sm:$0xf]
      %v3888 = vld [vmem:[%s1 + $0x80] sm:$0xf]
      %v3889 = vld [vmem:[%s1 + $0x84] sm:$0xf]
      %v3890 = vld [vmem:[%s1 + $0x88] sm:$0xf]
      %v3891 = vld [vmem:[%s1 + $0x8c] sm:$0xf]
      %v3956 = vunpack.c.l.b16 %v3792
      %v3957 = vunpack.c.h.b16 %v3792
      %v3958 = vunpack.c.l.b16 %v3793
      %v3959 = vunpack.c.l.b16 %v3794
      %v3960 = vunpack.c.h.b16 %v3794
      %v3961 = vunpack.c.l.b16 %v3795
      %v3962 = vunpack.c.l.b16 %v3796
      %v3963 = vunpack.c.h.b16 %v3796
      %v3964 = vunpack.c.l.b16 %v3797
      %v3965 = vunpack.c.l.b16 %v3798
      %v3966 = vunpack.c.h.b16 %v3798
      %v3967 = vunpack.c.l.b16 %v3799
      %v3968 = vunpack.c.l.b16 %v3800
      %v3969 = vunpack.c.h.b16 %v3800
      %v3970 = vunpack.c.l.b16 %v3801
      %v3971 = vunpack.c.l.b16 %v3802
      %v3972 = vunpack.c.h.b16 %v3802
      %v3973 = vunpack.c.l.b16 %v3803
      %v3974 = vunpack.c.l.b16 %v3804
      %v3975 = vunpack.c.h.b16 %v3804
      %v3976 = vunpack.c.l.b16 %v3805
      %v3977 = vunpack.c.l.b16 %v3806
      %v3978 = vunpack.c.h.b16 %v3806
      %v3979 = vunpack.c.l.b16 %v3807
      %v3980 = vunpack.c.l.b16 %v3808
      %v3981 = vunpack.c.h.b16 %v3808
      %v3982 = vunpack.c.l.b16 %v3809
      %v3983 = vunpack.c.l.b16 %v3810
      %v3984 = vunpack.c.h.b16 %v3810
      %v3985 = vunpack.c.l.b16 %v3811
      %v3986 = vunpack.c.l.b16 %v3812
      %v3987 = vunpack.c.h.b16 %v3812
      %v3988 = vunpack.c.l.b16 %v3813
      %v3989 = vunpack.c.l.b16 %v3814
      %v3990 = vunpack.c.h.b16 %v3814
      %v3991 = vunpack.c.l.b16 %v3815
      %v3992 = vunpack.c.l.b16 %v3816
      %v3993 = vunpack.c.h.b16 %v3816
      %v3994 = vunpack.c.l.b16 %v3817
      %v3995 = vunpack.c.l.b16 %v3818
      %v3996 = vunpack.c.h.b16 %v3818
      %v3997 = vunpack.c.l.b16 %v3819
      %v3998 = vunpack.c.l.b16 %v3820
      %v3999 = vunpack.c.h.b16 %v3820
      %v4000 = vunpack.c.l.b16 %v3821
      %v4001 = vunpack.c.l.b16 %v3822
      %v4002 = vunpack.c.h.b16 %v3822
      %v4003 = vunpack.c.l.b16 %v3823
      %v4004 = vunpack.c.l.b16 %v3824
      %v4005 = vunpack.c.h.b16 %v3824
      %v4006 = vunpack.c.l.b16 %v3825
      %v4007 = vunpack.c.l.b16 %v3826
      %v4008 = vunpack.c.h.b16 %v3826
      %v4009 = vunpack.c.l.b16 %v3827
      %v4010 = vunpack.c.l.b16 %v3828
      %v4011 = vunpack.c.h.b16 %v3828
      %v4012 = vunpack.c.l.b16 %v3829
      %v4013 = vunpack.c.l.b16 %v3830
      %v4014 = vunpack.c.h.b16 %v3830
      %v4015 = vunpack.c.l.b16 %v3831
      %v4016 = vunpack.c.l.b16 %v3832
      %v4017 = vunpack.c.h.b16 %v3832
      %v4018 = vunpack.c.l.b16 %v3833
      %v4019 = vunpack.c.l.b16 %v3834
      %v4020 = vunpack.c.h.b16 %v3834
      %v4021 = vunpack.c.l.b16 %v3835
      %v4022 = vunpack.c.l.b16 %v3836
      %v4023 = vunpack.c.h.b16 %v3836
      %v4024 = vunpack.c.l.b16 %v3837
      %v4025 = vunpack.c.l.b16 %v3838
      %v4026 = vunpack.c.h.b16 %v3838
      %v4027 = vunpack.c.l.b16 %v3839
      %v4028 = vunpack.c.l.b16 %v3840
      %v4029 = vunpack.c.h.b16 %v3840
      %v4030 = vunpack.c.l.b16 %v3841
      %v4031 = vunpack.c.l.b16 %v3842
      %v4032 = vunpack.c.h.b16 %v3842
      %v4033 = vunpack.c.l.b16 %v3843
      %v4034 = vunpack.c.l.b16 %v3844
      %v4035 = vunpack.c.h.b16 %v3844
      %v4036 = vunpack.c.l.b16 %v3845
      %v4037 = vunpack.c.l.b16 %v3846
      %v4038 = vunpack.c.h.b16 %v3846
      %v4039 = vunpack.c.l.b16 %v3847
      %v4040 = vunpack.c.l.b16 %v3848
      %v4041 = vunpack.c.h.b16 %v3848
      %v4042 = vunpack.c.l.b16 %v3849
      %v4043 = vunpack.c.l.b16 %v3850
      %v4044 = vunpack.c.h.b16 %v3850
      %v4045 = vunpack.c.l.b16 %v3851
      %v4046 = vunpack.c.l.b16 %v3852
      %v4047 = vunpack.c.h.b16 %v3852
      %v4048 = vunpack.c.l.b16 %v3853
      %v4049 = vunpack.c.l.b16 %v3854
      %v4050 = vunpack.c.h.b16 %v3854
      %v4051 = vunpack.c.l.b16 %v3855
      %v4052 = vpack.c.b16 %v3959, %v3956
      %v4053 = vpack.c.b16 %v3960, %v3957
      %v4054 = vpack.c.b16 %v3961, %v3958
      %v4055 = vpack.c.b16 %v3965, %v3962
      %v4056 = vpack.c.b16 %v3966, %v3963
      %v4057 = vpack.c.b16 %v3967, %v3964
      %v4058 = vpack.c.b16 %v3971, %v3968
      %v4059 = vpack.c.b16 %v3972, %v3969
      %v4060 = vpack.c.b16 %v3973, %v3970
      %v4061 = vpack.c.b16 %v3977, %v3974
      %v4062 = vpack.c.b16 %v3978, %v3975
      %v4063 = vpack.c.b16 %v3979, %v3976
      %v4064 = vpack.c.b16 %v3983, %v3980
      %v4065 = vpack.c.b16 %v3984, %v3981
      %v4066 = vpack.c.b16 %v3985, %v3982
      %v4067 = vpack.c.b16 %v3989, %v3986
      %v4068 = vpack.c.b16 %v3990, %v3987
      %v4069 = vpack.c.b16 %v3991, %v3988
      %v4070 = vpack.c.b16 %v3995, %v3992
      %v4071 = vpack.c.b16 %v3996, %v3993
      %v4072 = vpack.c.b16 %v3997, %v3994
      %v4073 = vpack.c.b16 %v4001, %v3998
      %v4074 = vpack.c.b16 %v4002, %v3999
      %v4075 = vpack.c.b16 %v4003, %v4000
      %v4076 = vpack.c.b16 %v4007, %v4004
      %v4077 = vpack.c.b16 %v4008, %v4005
      %v4078 = vpack.c.b16 %v4009, %v4006
      %v4079 = vpack.c.b16 %v4013, %v4010
      %v4080 = vpack.c.b16 %v4014, %v4011
      %v4081 = vpack.c.b16 %v4015, %v4012
      %v4082 = vpack.c.b16 %v4019, %v4016
      %v4083 = vpack.c.b16 %v4020, %v4017
      %v4084 = vpack.c.b16 %v4021, %v4018
      %v4085 = vpack.c.b16 %v4025, %v4022
      %v4086 = vpack.c.b16 %v4026, %v4023
      %v4087 = vpack.c.b16 %v4027, %v4024
      %v4088 = vpack.c.b16 %v4031, %v4028
      %v4089 = vpack.c.b16 %v4032, %v4029
      %v4090 = vpack.c.b16 %v4033, %v4030
      %v4091 = vpack.c.b16 %v4037, %v4034
      %v4092 = vpack.c.b16 %v4038, %v4035
      %v4093 = vpack.c.b16 %v4039, %v4036
      %v4094 = vpack.c.b16 %v4043, %v4040
      %v4095 = vpack.c.b16 %v4044, %v4041
      %v4096 = vpack.c.b16 %v4045, %v4042
      %v4097 = vpack.c.b16 %v4049, %v4046
      %v4098 = vpack.c.b16 %v4050, %v4047
      %v4099 = vpack.c.b16 %v4051, %v4048
      %v4168 = vunpack.c.l.b16 %v3856
      %v4169 = vunpack.c.l.b16 %v3857
      %v4170 = vunpack.c.l.b16 %v3858
      %v4171 = vunpack.c.l.b16 %v3859
      %v4172 = vunpack.c.l.b16 %v3860
      %v4173 = vunpack.c.l.b16 %v3861
      %v4174 = vunpack.c.l.b16 %v3862
      %v4175 = vunpack.c.l.b16 %v3863
      %v4176 = vunpack.c.l.b16 %v3864
      %v4177 = vunpack.c.l.b16 %v3865
      %v4178 = vunpack.c.l.b16 %v3866
      %v4179 = vunpack.c.l.b16 %v3867
      %v4180 = vunpack.c.l.b16 %v3868
      %v4181 = vunpack.c.l.b16 %v3869
      %v4182 = vunpack.c.l.b16 %v3870
      %v4183 = vunpack.c.l.b16 %v3871
      %v4184 = vunpack.c.l.b16 %v3872
      %v4185 = vunpack.c.l.b16 %v3873
      %v4186 = vunpack.c.l.b16 %v3874
      %v4187 = vunpack.c.l.b16 %v3875
      %v4188 = vunpack.c.l.b16 %v3876
      %v4189 = vunpack.c.l.b16 %v3877
      %v4190 = vunpack.c.l.b16 %v3878
      %v4191 = vunpack.c.l.b16 %v3879
      %v4192 = vunpack.c.l.b16 %v3880
      %v4193 = vunpack.c.l.b16 %v3881
      %v4194 = vunpack.c.l.b16 %v3882
      %v4195 = vunpack.c.l.b16 %v3883
      %v4196 = vunpack.c.l.b16 %v3884
      %v4197 = vunpack.c.l.b16 %v3885
      %v4198 = vunpack.c.l.b16 %v3886
      %v4199 = vunpack.c.l.b16 %v3887
      %v4200 = vunpack.c.l.b16 %v3888
      %v4201 = vunpack.c.l.b16 %v3889
      %v4202 = vunpack.c.l.b16 %v3890
      %v4203 = vunpack.c.l.b16 %v3891
      %v4204 = vpack.c.b16 %v4169, %v4168
      %v4205 = vpack.c.b16 %v4171, %v4170
      %v4206 = vpack.c.b16 %v4173, %v4172
      %v4207 = vpack.c.b16 %v4175, %v4174
      %v4208 = vpack.c.b16 %v4177, %v4176
      %v4209 = vpack.c.b16 %v4179, %v4178
      %v4210 = vpack.c.b16 %v4181, %v4180
      %v4211 = vpack.c.b16 %v4183, %v4182
      %v4212 = vpack.c.b16 %v4185, %v4184
      %v4213 = vpack.c.b16 %v4187, %v4186
      %v4214 = vpack.c.b16 %v4189, %v4188
      %v4215 = vpack.c.b16 %v4191, %v4190
      %v4216 = vpack.c.b16 %v4193, %v4192
      %v4217 = vpack.c.b16 %v4195, %v4194
      %v4218 = vpack.c.b16 %v4197, %v4196
      %v4219 = vpack.c.b16 %v4199, %v4198
      %v4220 = vpack.c.b16 %v4201, %v4200
      %v4221 = vpack.c.b16 %v4203, %v4202
      %vm4240 = vcmask 261120
      %v4242 = vsel %vm4240, %v4054, 0
      %v4245 = vsel %vm4240, %v4057, 0
      %v4248 = vsel %vm4240, %v4060, 0
      %v4251 = vsel %vm4240, %v4063, 0
      %v4254 = vsel %vm4240, %v4066, 0
      %v4257 = vsel %vm4240, %v4069, 0
      %v4260 = vsel %vm4240, %v4072, 0
      %v4263 = vsel %vm4240, %v4075, 0
      %v4266 = vsel %vm4240, %v4078, 0
      %v4269 = vsel %vm4240, %v4081, 0
      %v4272 = vsel %vm4240, %v4084, 0
      %v4275 = vsel %vm4240, %v4087, 0
      %v4278 = vsel %vm4240, %v4090, 0
      %v4281 = vsel %vm4240, %v4093, 0
      %v4284 = vsel %vm4240, %v4096, 0
      %v4287 = vsel %vm4240, %v4099, 0
      %4289 = vmatprep.subr.bf16.mxu0 0
      %4290 = vmatpush1.bf16.msra.mxu0 %v4211
      %4291 = vmatprep.subr.bf16.mxu0 0
      %4292 = vmatpush1.bf16.msra.mxu0 %v4210
      %4293 = vmatprep.subr.bf16.mxu0 0
      %4294 = vmatpush1.bf16.msra.mxu0 %v4209
      %4295 = vmatprep.subr.bf16.mxu0 0
      %4296 = vmatpush1.bf16.msra.mxu0 %v4208
      %4297 = vmatprep.subr.bf16.mxu0 0
      %4298 = vmatpush1.bf16.msra.mxu0 %v4207
      %4299 = vmatprep.subr.bf16.mxu0 0
      %4300 = vmatpush1.bf16.msra.mxu0 %v4206
      %4301 = vmatprep.subr.bf16.mxu0 0
      %4302 = vmatpush1.bf16.msra.mxu0 %v4205
      %4303 = vmatprep.subr.bf16.mxu0 0
      %4304 = vmatpush1.bf16.msra.mxu0 %v4204
      %4305 = vmatprep.subr.bf16.mxu0 0
      %4306 = vmatpush2.bf16.msra.mxu0 %v4219
      %4307 = vmatprep.subr.bf16.mxu0 0
      %4308 = vmatpush2.bf16.msra.mxu0 %v4218
      %4309 = vmatprep.subr.bf16.mxu0 0
      %4310 = vmatpush2.bf16.msra.mxu0 %v4217
      %4311 = vmatprep.subr.bf16.mxu0 0
      %4312 = vmatpush2.bf16.msra.mxu0 %v4216
      %4313 = vmatprep.subr.bf16.mxu0 0
      %4314 = vmatpush2.bf16.msra.mxu0 %v4215
      %4315 = vmatprep.subr.bf16.mxu0 0
      %4316 = vmatpush2.bf16.msra.mxu0 %v4214
      %4317 = vmatprep.subr.bf16.mxu0 0
      %4318 = vmatpush2.bf16.msra.mxu0 %v4213
      %4319 = vmatprep.subr.bf16.mxu0 0
      %4320 = vmatpush2.bf16.msra.mxu0 %v4212
      %4321 = vmatprep.mubr.bf16.mxu0 %v4053
      %4322 = vmatmul.mubr.bf16.gmra.mxu0 %v4052
      %v4323 = vpop.f32.mrf.mxu0
      %v4324 = vadd.f32 0.0, %v4323
      %v4325 = vpop.f32.mrf.mxu0
      %v4326 = vpop.f32.mrf.mxu0
      %v4327 = vadd.f32 0.0, %v4326
      %v4328 = vpop.f32.mrf.mxu0
      %4329 = vmatprep.mubr.bf16.mxu0 %v4056
      %4330 = vmatmul.mubr.bf16.gmra.mxu0 %v4055
      %v4331 = vpop.f32.mrf.mxu0
      %v4332 = vadd.f32 0.0, %v4331
      %v4333 = vpop.f32.mrf.mxu0
      %v4334 = vpop.f32.mrf.mxu0
      %v4335 = vadd.f32 0.0, %v4334
      %v4336 = vpop.f32.mrf.mxu0
      %4337 = vmatprep.mubr.bf16.mxu0 %v4059
      %4338 = vmatmul.mubr.bf16.gmra.mxu0 %v4058
      %v4339 = vpop.f32.mrf.mxu0
      %v4340 = vadd.f32 0.0, %v4339
      %v4341 = vpop.f32.mrf.mxu0
      %v4342 = vpop.f32.mrf.mxu0
      %v4343 = vadd.f32 0.0, %v4342
      %v4344 = vpop.f32.mrf.mxu0
      %4345 = vmatprep.mubr.bf16.mxu0 %v4062
      %4346 = vmatmul.mubr.bf16.gmra.mxu0 %v4061
      %v4347 = vpop.f32.mrf.mxu0
      %v4348 = vadd.f32 0.0, %v4347
      %v4349 = vpop.f32.mrf.mxu0
      %v4350 = vpop.f32.mrf.mxu0
      %v4351 = vadd.f32 0.0, %v4350
      %v4352 = vpop.f32.mrf.mxu0
      %4353 = vmatprep.mubr.bf16.mxu0 %v4065
      %4354 = vmatmul.mubr.bf16.gmra.mxu0 %v4064
      %v4355 = vpop.f32.mrf.mxu0
      %v4356 = vadd.f32 0.0, %v4355
      %v4357 = vpop.f32.mrf.mxu0
      %v4358 = vpop.f32.mrf.mxu0
      %v4359 = vadd.f32 0.0, %v4358
      %v4360 = vpop.f32.mrf.mxu0
      %4361 = vmatprep.mubr.bf16.mxu0 %v4068
      %4362 = vmatmul.mubr.bf16.gmra.mxu0 %v4067
      %v4363 = vpop.f32.mrf.mxu0
      %v4364 = vadd.f32 0.0, %v4363
      %v4365 = vpop.f32.mrf.mxu0
      %v4366 = vpop.f32.mrf.mxu0
      %v4367 = vadd.f32 0.0, %v4366
      %v4368 = vpop.f32.mrf.mxu0
      %4369 = vmatprep.mubr.bf16.mxu0 %v4071
      %4370 = vmatmul.mubr.bf16.gmra.mxu0 %v4070
      %v4371 = vpop.f32.mrf.mxu0
      %v4372 = vadd.f32 0.0, %v4371
      %v4373 = vpop.f32.mrf.mxu0
      %v4374 = vpop.f32.mrf.mxu0
      %v4375 = vadd.f32 0.0, %v4374
      %v4376 = vpop.f32.mrf.mxu0
      %4377 = vmatprep.mubr.bf16.mxu0 %v4074
      %4378 = vmatmul.mubr.bf16.gmra.mxu0 %v4073
      %v4379 = vpop.f32.mrf.mxu0
      %v4380 = vadd.f32 0.0, %v4379
      %v4381 = vpop.f32.mrf.mxu0
      %v4382 = vpop.f32.mrf.mxu0
      %v4383 = vadd.f32 0.0, %v4382
      %v4384 = vpop.f32.mrf.mxu0
      %4385 = vmatprep.mubr.bf16.mxu0 %v4077
      %4386 = vmatmul.mubr.bf16.gmra.mxu0 %v4076
      %v4387 = vpop.f32.mrf.mxu0
      %v4388 = vadd.f32 0.0, %v4387
      %v4389 = vpop.f32.mrf.mxu0
      %v4390 = vpop.f32.mrf.mxu0
      %v4391 = vadd.f32 0.0, %v4390
      %v4392 = vpop.f32.mrf.mxu0
      %4393 = vmatprep.mubr.bf16.mxu0 %v4080
      %4394 = vmatmul.mubr.bf16.gmra.mxu0 %v4079
      %v4395 = vpop.f32.mrf.mxu0
      %v4396 = vadd.f32 0.0, %v4395
      %v4397 = vpop.f32.mrf.mxu0
      %v4398 = vpop.f32.mrf.mxu0
      %v4399 = vadd.f32 0.0, %v4398
      %v4400 = vpop.f32.mrf.mxu0
      %4401 = vmatprep.mubr.bf16.mxu0 %v4083
      %4402 = vmatmul.mubr.bf16.gmra.mxu0 %v4082
      %v4403 = vpop.f32.mrf.mxu0
      %v4404 = vadd.f32 0.0, %v4403
      %v4405 = vpop.f32.mrf.mxu0
      %v4406 = vpop.f32.mrf.mxu0
      %v4407 = vadd.f32 0.0, %v4406
      %v4408 = vpop.f32.mrf.mxu0
      %4409 = vmatprep.mubr.bf16.mxu0 %v4086
      %4410 = vmatmul.mubr.bf16.gmra.mxu0 %v4085
      %v4411 = vpop.f32.mrf.mxu0
      %v4412 = vadd.f32 0.0, %v4411
      %v4413 = vpop.f32.mrf.mxu0
      %v4414 = vpop.f32.mrf.mxu0
      %v4415 = vadd.f32 0.0, %v4414
      %v4416 = vpop.f32.mrf.mxu0
      %4417 = vmatprep.mubr.bf16.mxu0 %v4089
      %4418 = vmatmul.mubr.bf16.gmra.mxu0 %v4088
      %v4419 = vpop.f32.mrf.mxu0
      %v4420 = vadd.f32 0.0, %v4419
      %v4421 = vpop.f32.mrf.mxu0
      %v4422 = vpop.f32.mrf.mxu0
      %v4423 = vadd.f32 0.0, %v4422
      %v4424 = vpop.f32.mrf.mxu0
      %4425 = vmatprep.mubr.bf16.mxu0 %v4092
      %4426 = vmatmul.mubr.bf16.gmra.mxu0 %v4091
      %v4427 = vpop.f32.mrf.mxu0
      %v4428 = vadd.f32 0.0, %v4427
      %v4429 = vpop.f32.mrf.mxu0
      %v4430 = vpop.f32.mrf.mxu0
      %v4431 = vadd.f32 0.0, %v4430
      %v4432 = vpop.f32.mrf.mxu0
      %4433 = vmatprep.mubr.bf16.mxu0 %v4095
      %4434 = vmatmul.mubr.bf16.gmra.mxu0 %v4094
      %v4435 = vpop.f32.mrf.mxu0
      %v4436 = vadd.f32 0.0, %v4435
      %v4437 = vpop.f32.mrf.mxu0
      %v4438 = vpop.f32.mrf.mxu0
      %v4439 = vadd.f32 0.0, %v4438
      %v4440 = vpop.f32.mrf.mxu0
      %4441 = vmatprep.mubr.bf16.mxu0 %v4098
      %4442 = vmatmul.mubr.bf16.gmra.mxu0 %v4097
      %v4443 = vpop.f32.mrf.mxu0
      %v4444 = vadd.f32 0.0, %v4443
      %v4445 = vpop.f32.mrf.mxu0
      %v4446 = vpop.f32.mrf.mxu0
      %v4447 = vadd.f32 0.0, %v4446
      %v4448 = vpop.f32.mrf.mxu0
      %4449 = vdwg.mxu0
      %4450 = vmatprep.subr.bf16.mxu0 0
      %4451 = vmatpush1.bf16.msra.mxu0 0
      %4452 = vmatprep.subr.bf16.mxu0 0
      %4453 = vmatpush1.bf16.msra.mxu0 0
      %4454 = vmatprep.subr.bf16.mxu0 0
      %4455 = vmatpush1.bf16.msra.mxu0 0
      %4456 = vmatprep.subr.bf16.mxu0 0
      %4457 = vmatpush1.bf16.msra.mxu0 0
      %4458 = vmatprep.subr.bf16.mxu0 0
      %4459 = vmatpush1.bf16.msra.mxu0 0
      %4460 = vmatprep.subr.bf16.mxu0 0
      %4461 = vmatpush1.bf16.msra.mxu0 0
      %4462 = vmatprep.subr.bf16.mxu0 0
      %4463 = vmatpush1.bf16.msra.mxu0 %v4221
      %4464 = vmatprep.subr.bf16.mxu0 0
      %4465 = vmatpush1.bf16.msra.mxu0 %v4220
      %4466 = vmatprep.subr.bf16.mxu0 0
      %4467 = vmatpush2.bf16.msra.mxu0 0
      %4468 = vmatprep.subr.bf16.mxu0 0
      %4469 = vmatpush2.bf16.msra.mxu0 0
      %4470 = vmatprep.subr.bf16.mxu0 0
      %4471 = vmatpush2.bf16.msra.mxu0 0
      %4472 = vmatprep.subr.bf16.mxu0 0
      %4473 = vmatpush2.bf16.msra.mxu0 0
      %4474 = vmatprep.subr.bf16.mxu0 0
      %4475 = vmatpush2.bf16.msra.mxu0 0
      %4476 = vmatprep.subr.bf16.mxu0 0
      %4477 = vmatpush2.bf16.msra.mxu0 0
      %4478 = vmatprep.subr.bf16.mxu0 0
      %4479 = vmatpush2.bf16.msra.mxu0 0
      %4480 = vmatprep.subr.bf16.mxu0 0
      %4481 = vmatpush2.bf16.msra.mxu0 0
      %4482 = vmatprep.mubr.bf16.mxu0 0
      %4483 = vmatmul.mubr.bf16.gmra.mxu0 %v4242
      %v4484 = vpop.f32.mrf.mxu0
      %v4485 = vadd.f32 %v4324, %v4484
      %v4486 = vpop.f32.mrf.mxu0
      %v4487 = vpop.f32.mrf.mxu0
      %v4488 = vadd.f32 %v4327, %v4487
      %v4489 = vpop.f32.mrf.mxu0
      %4490 = vmatprep.mubr.bf16.mxu0 0
      %4491 = vmatmul.mubr.bf16.gmra.mxu0 %v4245
      %v4492 = vpop.f32.mrf.mxu0
      %v4493 = vadd.f32 %v4332, %v4492
      %v4494 = vpop.f32.mrf.mxu0
      %v4495 = vpop.f32.mrf.mxu0
      %v4496 = vadd.f32 %v4335, %v4495
      %v4497 = vpop.f32.mrf.mxu0
      %4498 = vmatprep.mubr.bf16.mxu0 0
      %4499 = vmatmul.mubr.bf16.gmra.mxu0 %v4248
      %v4500 = vpop.f32.mrf.mxu0
      %v4501 = vadd.f32 %v4340, %v4500
      %v4502 = vpop.f32.mrf.mxu0
      %v4503 = vpop.f32.mrf.mxu0
      %v4504 = vadd.f32 %v4343, %v4503
      %v4505 = vpop.f32.mrf.mxu0
      %4506 = vmatprep.mubr.bf16.mxu0 0
      %4507 = vmatmul.mubr.bf16.gmra.mxu0 %v4251
      %v4508 = vpop.f32.mrf.mxu0
      %v4509 = vadd.f32 %v4348, %v4508
      %v4510 = vpop.f32.mrf.mxu0
      %v4511 = vpop.f32.mrf.mxu0
      %v4512 = vadd.f32 %v4351, %v4511
      %v4513 = vpop.f32.mrf.mxu0
      %4514 = vmatprep.mubr.bf16.mxu0 0
      %4515 = vmatmul.mubr.bf16.gmra.mxu0 %v4254
      %v4516 = vpop.f32.mrf.mxu0
      %v4517 = vadd.f32 %v4356, %v4516
      %v4518 = vpop.f32.mrf.mxu0
      %v4519 = vpop.f32.mrf.mxu0
      %v4520 = vadd.f32 %v4359, %v4519
      %v4521 = vpop.f32.mrf.mxu0
      %4522 = vmatprep.mubr.bf16.mxu0 0
      %4523 = vmatmul.mubr.bf16.gmra.mxu0 %v4257
      %v4524 = vpop.f32.mrf.mxu0
      %v4525 = vadd.f32 %v4364, %v4524
      %v4526 = vpop.f32.mrf.mxu0
      %v4527 = vpop.f32.mrf.mxu0
      %v4528 = vadd.f32 %v4367, %v4527
      %v4529 = vpop.f32.mrf.mxu0
      %4530 = vmatprep.mubr.bf16.mxu0 0
      %4531 = vmatmul.mubr.bf16.gmra.mxu0 %v4260
      %v4532 = vpop.f32.mrf.mxu0
      %v4533 = vadd.f32 %v4372, %v4532
      %v4534 = vpop.f32.mrf.mxu0
      %v4535 = vpop.f32.mrf.mxu0
      %v4536 = vadd.f32 %v4375, %v4535
      %v4537 = vpop.f32.mrf.mxu0
      %4538 = vmatprep.mubr.bf16.mxu0 0
      %4539 = vmatmul.mubr.bf16.gmra.mxu0 %v4263
      %v4540 = vpop.f32.mrf.mxu0
      %v4541 = vadd.f32 %v4380, %v4540
      %v4542 = vpop.f32.mrf.mxu0
      %v4543 = vpop.f32.mrf.mxu0
      %v4544 = vadd.f32 %v4383, %v4543
      %v4545 = vpop.f32.mrf.mxu0
      %4546 = vmatprep.mubr.bf16.mxu0 0
      %4547 = vmatmul.mubr.bf16.gmra.mxu0 %v4266
      %v4548 = vpop.f32.mrf.mxu0
      %v4549 = vadd.f32 %v4388, %v4548
      %v4550 = vpop.f32.mrf.mxu0
      %v4551 = vpop.f32.mrf.mxu0
      %v4552 = vadd.f32 %v4391, %v4551
      %v4553 = vpop.f32.mrf.mxu0
      %4554 = vmatprep.mubr.bf16.mxu0 0
      %4555 = vmatmul.mubr.bf16.gmra.mxu0 %v4269
      %v4556 = vpop.f32.mrf.mxu0
      %v4557 = vadd.f32 %v4396, %v4556
      %v4558 = vpop.f32.mrf.mxu0
      %v4559 = vpop.f32.mrf.mxu0
      %v4560 = vadd.f32 %v4399, %v4559
      %v4561 = vpop.f32.mrf.mxu0
      %4562 = vmatprep.mubr.bf16.mxu0 0
      %4563 = vmatmul.mubr.bf16.gmra.mxu0 %v4272
      %v4564 = vpop.f32.mrf.mxu0
      %v4565 = vadd.f32 %v4404, %v4564
      %v4566 = vpop.f32.mrf.mxu0
      %v4567 = vpop.f32.mrf.mxu0
      %v4568 = vadd.f32 %v4407, %v4567
      %v4569 = vpop.f32.mrf.mxu0
      %4570 = vmatprep.mubr.bf16.mxu0 0
      %4571 = vmatmul.mubr.bf16.gmra.mxu0 %v4275
      %v4572 = vpop.f32.mrf.mxu0
      %v4573 = vadd.f32 %v4412, %v4572
      %v4574 = vpop.f32.mrf.mxu0
      %v4575 = vpop.f32.mrf.mxu0
      %v4576 = vadd.f32 %v4415, %v4575
      %v4577 = vpop.f32.mrf.mxu0
      %4578 = vmatprep.mubr.bf16.mxu0 0
      %4579 = vmatmul.mubr.bf16.gmra.mxu0 %v4278
      %v4580 = vpop.f32.mrf.mxu0
      %v4581 = vadd.f32 %v4420, %v4580
      %v4582 = vpop.f32.mrf.mxu0
      %v4583 = vpop.f32.mrf.mxu0
      %v4584 = vadd.f32 %v4423, %v4583
      %v4585 = vpop.f32.mrf.mxu0
      %4586 = vmatprep.mubr.bf16.mxu0 0
      %4587 = vmatmul.mubr.bf16.gmra.mxu0 %v4281
      %v4588 = vpop.f32.mrf.mxu0
      %v4589 = vadd.f32 %v4428, %v4588
      %v4590 = vpop.f32.mrf.mxu0
      %v4591 = vpop.f32.mrf.mxu0
      %v4592 = vadd.f32 %v4431, %v4591
      %v4593 = vpop.f32.mrf.mxu0
      %4594 = vmatprep.mubr.bf16.mxu0 0
      %4595 = vmatmul.mubr.bf16.gmra.mxu0 %v4284
      %v4596 = vpop.f32.mrf.mxu0
      %v4597 = vadd.f32 %v4436, %v4596
      %v4598 = vpop.f32.mrf.mxu0
      %v4599 = vpop.f32.mrf.mxu0
      %v4600 = vadd.f32 %v4439, %v4599
      %v4601 = vpop.f32.mrf.mxu0
      %4602 = vmatprep.mubr.bf16.mxu0 0
      %4603 = vmatmul.mubr.bf16.gmra.mxu0 %v4287
      %v4604 = vpop.f32.mrf.mxu0
      %v4605 = vadd.f32 %v4444, %v4604
      %v4606 = vpop.f32.mrf.mxu0
      %v4607 = vpop.f32.mrf.mxu0
      %v4608 = vadd.f32 %v4447, %v4607
      %v4609 = vpop.f32.mrf.mxu0
      %4610 = vdwg.mxu0
      %v4611 = vpack.c.bf16 %v4488, %v4485
      %v4612 = vpack.c.bf16 %v4496, %v4493
      %v4613 = vpack.c.bf16 %v4504, %v4501
      %v4614 = vpack.c.bf16 %v4512, %v4509
      %v4615 = vpack.c.bf16 %v4520, %v4517
      %v4616 = vpack.c.bf16 %v4528, %v4525
      %v4617 = vpack.c.bf16 %v4536, %v4533
      %v4618 = vpack.c.bf16 %v4544, %v4541
      %v4619 = vpack.c.bf16 %v4552, %v4549
      %v4620 = vpack.c.bf16 %v4560, %v4557
      %v4621 = vpack.c.bf16 %v4568, %v4565
      %v4622 = vpack.c.bf16 %v4576, %v4573
      %v4623 = vpack.c.bf16 %v4584, %v4581
      %v4624 = vpack.c.bf16 %v4592, %v4589
      %v4625 = vpack.c.bf16 %v4600, %v4597
      %v4626 = vpack.c.bf16 %v4608, %v4605
      %v4643 = vunpack.c.l.b16 %v4611
      %v4644 = vunpack.c.h.b16 %v4611
      %v4645 = vunpack.c.l.b16 %v4612
      %v4646 = vunpack.c.h.b16 %v4612
      %v4647 = vunpack.c.l.b16 %v4613
      %v4648 = vunpack.c.h.b16 %v4613
      %v4649 = vunpack.c.l.b16 %v4614
      %v4650 = vunpack.c.h.b16 %v4614
      %v4651 = vunpack.c.l.b16 %v4615
      %v4652 = vunpack.c.h.b16 %v4615
      %v4653 = vunpack.c.l.b16 %v4616
      %v4654 = vunpack.c.h.b16 %v4616
      %v4655 = vunpack.c.l.b16 %v4617
      %v4656 = vunpack.c.h.b16 %v4617
      %v4657 = vunpack.c.l.b16 %v4618
      %v4658 = vunpack.c.h.b16 %v4618
      %v4659 = vunpack.c.l.b16 %v4619
      %v4660 = vunpack.c.h.b16 %v4619
      %v4661 = vunpack.c.l.b16 %v4620
      %v4662 = vunpack.c.h.b16 %v4620
      %v4663 = vunpack.c.l.b16 %v4621
      %v4664 = vunpack.c.h.b16 %v4621
      %v4665 = vunpack.c.l.b16 %v4622
      %v4666 = vunpack.c.h.b16 %v4622
      %v4667 = vunpack.c.l.b16 %v4623
      %v4668 = vunpack.c.h.b16 %v4623
      %v4669 = vunpack.c.l.b16 %v4624
      %v4670 = vunpack.c.h.b16 %v4624
      %v4671 = vunpack.c.l.b16 %v4625
      %v4672 = vunpack.c.h.b16 %v4625
      %v4673 = vunpack.c.l.b16 %v4626
      %v4674 = vunpack.c.h.b16 %v4626
      %v4675 = vpack.c.b16 %v4643, %v4643
      %v4676 = vpack.c.b16 %v4644, %v4644
      %v4677 = vpack.c.b16 %v4645, %v4645
      %v4678 = vpack.c.b16 %v4646, %v4646
      %v4679 = vpack.c.b16 %v4647, %v4647
      %v4680 = vpack.c.b16 %v4648, %v4648
      %v4681 = vpack.c.b16 %v4649, %v4649
      %v4682 = vpack.c.b16 %v4650, %v4650
      %v4683 = vpack.c.b16 %v4651, %v4651
      %v4684 = vpack.c.b16 %v4652, %v4652
      %v4685 = vpack.c.b16 %v4653, %v4653
      %v4686 = vpack.c.b16 %v4654, %v4654
      %v4687 = vpack.c.b16 %v4655, %v4655
      %v4688 = vpack.c.b16 %v4656, %v4656
      %v4689 = vpack.c.b16 %v4657, %v4657
      %v4690 = vpack.c.b16 %v4658, %v4658
      %v4691 = vpack.c.b16 %v4659, %v4659
      %v4692 = vpack.c.b16 %v4660, %v4660
      %v4693 = vpack.c.b16 %v4661, %v4661
      %v4694 = vpack.c.b16 %v4662, %v4662
      %v4695 = vpack.c.b16 %v4663, %v4663
      %v4696 = vpack.c.b16 %v4664, %v4664
      %v4697 = vpack.c.b16 %v4665, %v4665
      %v4698 = vpack.c.b16 %v4666, %v4666
      %v4699 = vpack.c.b16 %v4667, %v4667
      %v4700 = vpack.c.b16 %v4668, %v4668
      %v4701 = vpack.c.b16 %v4669, %v4669
      %v4702 = vpack.c.b16 %v4670, %v4670
      %v4703 = vpack.c.b16 %v4671, %v4671
      %v4704 = vpack.c.b16 %v4672, %v4672
      %v4705 = vpack.c.b16 %v4673, %v4673
      %v4706 = vpack.c.b16 %v4674, %v4674
      %4739 = vst.msk [vmem:[%s233] sm:$0xf] %vm242, %v4675
      %4740 = vst.msk [vmem:[%s233 + $0x4] sm:$0xf] %vm242, %v4676
      %4741 = vst.msk [vmem:[%s233 + $0x8] sm:$0xf] %vm242, %v4677
      %4742 = vst.msk [vmem:[%s233 + $0xc] sm:$0xf] %vm242, %v4678
      %4743 = vst.msk [vmem:[%s233 + $0x10] sm:$0xf] %vm242, %v4679
      %4744 = vst.msk [vmem:[%s233 + $0x14] sm:$0xf] %vm242, %v4680
      %4745 = vst.msk [vmem:[%s233 + $0x18] sm:$0xf] %vm242, %v4681
      %4746 = vst.msk [vmem:[%s233 + $0x1c] sm:$0xf] %vm242, %v4682
      %4747 = vst.msk [vmem:[%s233 + $0x20] sm:$0xf] %vm242, %v4683
      %4748 = vst.msk [vmem:[%s233 + $0x24] sm:$0xf] %vm242, %v4684
      %4749 = vst.msk [vmem:[%s233 + $0x28] sm:$0xf] %vm242, %v4685
      %4750 = vst.msk [vmem:[%s233 + $0x2c] sm:$0xf] %vm242, %v4686
      %4751 = vst.msk [vmem:[%s233 + $0x30] sm:$0xf] %vm242, %v4687
      %4752 = vst.msk [vmem:[%s233 + $0x34] sm:$0xf] %vm242, %v4688
      %4753 = vst.msk [vmem:[%s233 + $0x38] sm:$0xf] %vm242, %v4689
      %4754 = vst.msk [vmem:[%s233 + $0x3c] sm:$0xf] %vm242, %v4690
      %4755 = vst.msk [vmem:[%s233 + $0x40] sm:$0xf] %vm242, %v4691
      %4756 = vst.msk [vmem:[%s233 + $0x44] sm:$0xf] %vm242, %v4692
      %4757 = vst.msk [vmem:[%s233 + $0x48] sm:$0xf] %vm242, %v4693
      %4758 = vst.msk [vmem:[%s233 + $0x4c] sm:$0xf] %vm242, %v4694
      %4759 = vst.msk [vmem:[%s233 + $0x50] sm:$0xf] %vm242, %v4695
      %4760 = vst.msk [vmem:[%s233 + $0x54] sm:$0xf] %vm242, %v4696
      %4761 = vst.msk [vmem:[%s233 + $0x58] sm:$0xf] %vm242, %v4697
      %4762 = vst.msk [vmem:[%s233 + $0x5c] sm:$0xf] %vm242, %v4698
      %4763 = vst.msk [vmem:[%s233 + $0x60] sm:$0xf] %vm242, %v4699
      %4764 = vst.msk [vmem:[%s233 + $0x64] sm:$0xf] %vm242, %v4700
      %4765 = vst.msk [vmem:[%s233 + $0x68] sm:$0xf] %vm242, %v4701
      %4766 = vst.msk [vmem:[%s233 + $0x6c] sm:$0xf] %vm242, %v4702
      %4767 = vst.msk [vmem:[%s233 + $0x70] sm:$0xf] %vm242, %v4703
      %4768 = vst.msk [vmem:[%s233 + $0x74] sm:$0xf] %vm242, %v4704
      %4769 = vst.msk [vmem:[%s233 + $0x78] sm:$0xf] %vm242, %v4705
      %4770 = vst.msk [vmem:[%s233 + $0x7c] sm:$0xf] %vm242, %v4706
      %v4771 = vsel %vm4240, %v4485, 0.0
      %v4772 = vsel %vm4240, %v4488, 0.0
      %v4773 = vadd.f32 %v4771, %v4772
      %v4774 = vsel %vm4240, %v4493, 0.0
      %v4775 = vadd.f32 %v4773, %v4774
      %v4776 = vsel %vm4240, %v4496, 0.0
      %v4777 = vadd.f32 %v4775, %v4776
      %v4778 = vsel %vm4240, %v4501, 0.0
      %v4779 = vadd.f32 %v4777, %v4778
      %v4780 = vsel %vm4240, %v4504, 0.0
      %v4781 = vadd.f32 %v4779, %v4780
      %v4782 = vsel %vm4240, %v4509, 0.0
      %v4783 = vadd.f32 %v4781, %v4782
      %v4784 = vsel %vm4240, %v4512, 0.0
      %v4785 = vadd.f32 %v4783, %v4784
      %v4786 = vsel %vm4240, %v4517, 0.0
      %v4787 = vadd.f32 %v4785, %v4786
      %v4788 = vsel %vm4240, %v4520, 0.0
      %v4789 = vadd.f32 %v4787, %v4788
      %v4790 = vsel %vm4240, %v4525, 0.0
      %v4791 = vadd.f32 %v4789, %v4790
      %v4792 = vsel %vm4240, %v4528, 0.0
      %v4793 = vadd.f32 %v4791, %v4792
      %v4794 = vsel %vm4240, %v4533, 0.0
      %v4795 = vadd.f32 %v4793, %v4794
      %v4796 = vsel %vm4240, %v4536, 0.0
      %v4797 = vadd.f32 %v4795, %v4796
      %v4798 = vsel %vm4240, %v4541, 0.0
      %v4799 = vadd.f32 %v4797, %v4798
      %v4800 = vsel %vm4240, %v4544, 0.0
      %v4801 = vadd.f32 %v4799, %v4800
      %v4802 = vsel %vm4240, %v4549, 0.0
      %v4803 = vadd.f32 %v4801, %v4802
      %v4804 = vsel %vm4240, %v4552, 0.0
      %v4805 = vadd.f32 %v4803, %v4804
      %v4806 = vsel %vm4240, %v4557, 0.0
      %v4807 = vadd.f32 %v4805, %v4806
      %v4808 = vsel %vm4240, %v4560, 0.0
      %v4809 = vadd.f32 %v4807, %v4808
      %v4810 = vsel %vm4240, %v4565, 0.0
      %v4811 = vadd.f32 %v4809, %v4810
      %v4812 = vsel %vm4240, %v4568, 0.0
      %v4813 = vadd.f32 %v4811, %v4812
      %v4814 = vsel %vm4240, %v4573, 0.0
      %v4815 = vadd.f32 %v4813, %v4814
      %v4816 = vsel %vm4240, %v4576, 0.0
      %v4817 = vadd.f32 %v4815, %v4816
      %v4818 = vsel %vm4240, %v4581, 0.0
      %v4819 = vadd.f32 %v4817, %v4818
      %v4820 = vsel %vm4240, %v4584, 0.0
      %v4821 = vadd.f32 %v4819, %v4820
      %v4822 = vsel %vm4240, %v4589, 0.0
      %v4823 = vadd.f32 %v4821, %v4822
      %v4824 = vsel %vm4240, %v4592, 0.0
      %v4825 = vadd.f32 %v4823, %v4824
      %v4826 = vsel %vm4240, %v4597, 0.0
      %v4827 = vadd.f32 %v4825, %v4826
      %v4828 = vsel %vm4240, %v4600, 0.0
      %v4829 = vadd.f32 %v4827, %v4828
      %v4830 = vsel %vm4240, %v4605, 0.0
      %v4831 = vadd.f32 %v4829, %v4830
      %v4832 = vsel %vm4240, %v4608, 0.0
      %v4833 = vadd.f32 %v4831, %v4832
      %v4834 = vrot.slane %v4833, 4
      %v4835 = vadd.f32 %v4833, %v4834
      %v4836 = vrot.slane %v4835, 2
      %v4837 = vadd.f32 %v4835, %v4836
      %v4838 = vrot.slane %v4837, 1
      %v4839 = vadd.f32 %v4837, %v4838
      %v4840 = vmul.f32 %v4485, %v4485
      %v4841 = vmul.f32 %v4488, %v4488
      %v4842 = vmul.f32 %v4493, %v4493
      %v4843 = vmul.f32 %v4496, %v4496
      %v4844 = vmul.f32 %v4501, %v4501
      %v4845 = vmul.f32 %v4504, %v4504
      %v4846 = vmul.f32 %v4509, %v4509
      %v4847 = vmul.f32 %v4512, %v4512
      %v4848 = vmul.f32 %v4517, %v4517
      %v4849 = vmul.f32 %v4520, %v4520
      %v4850 = vmul.f32 %v4525, %v4525
      %v4851 = vmul.f32 %v4528, %v4528
      %v4852 = vmul.f32 %v4533, %v4533
      %v4853 = vmul.f32 %v4536, %v4536
      %v4854 = vmul.f32 %v4541, %v4541
      %v4855 = vmul.f32 %v4544, %v4544
      %v4856 = vmul.f32 %v4549, %v4549
      %v4857 = vmul.f32 %v4552, %v4552
      %v4858 = vmul.f32 %v4557, %v4557
      %v4859 = vmul.f32 %v4560, %v4560
      %v4860 = vmul.f32 %v4565, %v4565
      %v4861 = vmul.f32 %v4568, %v4568
      %v4862 = vmul.f32 %v4573, %v4573
      %v4863 = vmul.f32 %v4576, %v4576
      %v4864 = vmul.f32 %v4581, %v4581
      %v4865 = vmul.f32 %v4584, %v4584
      %v4866 = vmul.f32 %v4589, %v4589
      %v4867 = vmul.f32 %v4592, %v4592
      %v4868 = vmul.f32 %v4597, %v4597
      %v4869 = vmul.f32 %v4600, %v4600
      %v4870 = vmul.f32 %v4605, %v4605
      %v4871 = vmul.f32 %v4608, %v4608
      %v4872 = vsel %vm4240, %v4840, 0.0
      %v4873 = vsel %vm4240, %v4841, 0.0
      %v4874 = vadd.f32 %v4872, %v4873
      %v4875 = vsel %vm4240, %v4842, 0.0
      %v4876 = vadd.f32 %v4874, %v4875
      %v4877 = vsel %vm4240, %v4843, 0.0
      %v4878 = vadd.f32 %v4876, %v4877
      %v4879 = vsel %vm4240, %v4844, 0.0
      %v4880 = vadd.f32 %v4878, %v4879
      %v4881 = vsel %vm4240, %v4845, 0.0
      %v4882 = vadd.f32 %v4880, %v4881
      %v4883 = vsel %vm4240, %v4846, 0.0
      %v4884 = vadd.f32 %v4882, %v4883
      %v4885 = vsel %vm4240, %v4847, 0.0
      %v4886 = vadd.f32 %v4884, %v4885
      %v4887 = vsel %vm4240, %v4848, 0.0
      %v4888 = vadd.f32 %v4886, %v4887
      %v4889 = vsel %vm4240, %v4849, 0.0
      %v4890 = vadd.f32 %v4888, %v4889
      %v4891 = vsel %vm4240, %v4850, 0.0
      %v4892 = vadd.f32 %v4890, %v4891
      %v4893 = vsel %vm4240, %v4851, 0.0
      %v4894 = vadd.f32 %v4892, %v4893
      %v4895 = vsel %vm4240, %v4852, 0.0
      %v4896 = vadd.f32 %v4894, %v4895
      %v4897 = vsel %vm4240, %v4853, 0.0
      %v4898 = vadd.f32 %v4896, %v4897
      %v4899 = vsel %vm4240, %v4854, 0.0
      %v4900 = vadd.f32 %v4898, %v4899
      %v4901 = vsel %vm4240, %v4855, 0.0
      %v4902 = vadd.f32 %v4900, %v4901
      %v4903 = vsel %vm4240, %v4856, 0.0
      %v4904 = vadd.f32 %v4902, %v4903
      %v4905 = vsel %vm4240, %v4857, 0.0
      %v4906 = vadd.f32 %v4904, %v4905
      %v4907 = vsel %vm4240, %v4858, 0.0
      %v4908 = vadd.f32 %v4906, %v4907
      %v4909 = vsel %vm4240, %v4859, 0.0
      %v4910 = vadd.f32 %v4908, %v4909
      %v4911 = vsel %vm4240, %v4860, 0.0
      %v4912 = vadd.f32 %v4910, %v4911
      %v4913 = vsel %vm4240, %v4861, 0.0
      %v4914 = vadd.f32 %v4912, %v4913
      %v4915 = vsel %vm4240, %v4862, 0.0
      %v4916 = vadd.f32 %v4914, %v4915
      %v4917 = vsel %vm4240, %v4863, 0.0
      %v4918 = vadd.f32 %v4916, %v4917
      %v4919 = vsel %vm4240, %v4864, 0.0
      %v4920 = vadd.f32 %v4918, %v4919
      %v4921 = vsel %vm4240, %v4865, 0.0
      %v4922 = vadd.f32 %v4920, %v4921
      %v4923 = vsel %vm4240, %v4866, 0.0
      %v4924 = vadd.f32 %v4922, %v4923
      %v4925 = vsel %vm4240, %v4867, 0.0
      %v4926 = vadd.f32 %v4924, %v4925
      %v4927 = vsel %vm4240, %v4868, 0.0
      %v4928 = vadd.f32 %v4926, %v4927
      %v4929 = vsel %vm4240, %v4869, 0.0
      %v4930 = vadd.f32 %v4928, %v4929
      %v4931 = vsel %vm4240, %v4870, 0.0
      %v4932 = vadd.f32 %v4930, %v4931
      %v4933 = vsel %vm4240, %v4871, 0.0
      %v4934 = vadd.f32 %v4932, %v4933
      %v4935 = vrot.slane %v4934, 4
      %v4936 = vadd.f32 %v4934, %v4935
      %v4937 = vrot.slane %v4936, 2
      %v4938 = vadd.f32 %v4936, %v4937
      %v4939 = vrot.slane %v4938, 1
      %v4940 = vadd.f32 %v4938, %v4939
      %vm4941 = vcmask 1040384
      %v4942 = vsel %vm4941, %v4839, %v4940
      %vm4943 = vcmask 254976
      %4944 = vst.msk [vmem:[%s238] sm:$0x3] %vm4943, %v4942
      %s4945 = smul.u32 32, %s17
      %p4946 = scmp.lt.s32.totalorder %s4945, 63
      %s4947 = scalar_select %p4946, %s4945, 63
      %s4948 = smul.addr %s4947, 4
      %s4949 = scalar_lea.vmem %s4, %s4948
      %p4950 = scmp.lt.s32.totalorder %s17, 1
      %s4951 = scalar_select %p4950, %s17, 1
      %s4952 = smul.addr %s4951, 2
      %s4953 = scalar_lea.vmem %s5, %s4952
      // Predicated region
      $region37: #{bottleneck_forward.5} parent=35 // pred_check
        %p4954 = pneg %p124
      $region38: #{bottleneck_forward.5} parent=35 // pred_check_branch
        %4956 = sbr.rel (%p4954) target = $region40
      $region39: #{bottleneck_forward.5} parent=35 // pred_region
        %s4957 = smul.u32 32, %s17
      $region40: #{bottleneck_forward.5} parent=35 // pred_fallthru
        _
      // Predicated region
      $region41: #{bottleneck_forward.5} parent=35 // pred_check
        %p4958 = pneg %p150
      $region42: #{bottleneck_forward.5} parent=35 // pred_check_branch
        %4960 = sbr.rel (%p4958) target = $region44
      $region43: #{bottleneck_forward.5} parent=35 // pred_region
        _
      $region44: #{bottleneck_forward.5} parent=35 // pred_fallthru
        _
    $region36: #{bottleneck_forward.5} parent=5 // pred_fallthru
      _
    %p4961 = scmp.le.s32.totalorder 2, %s12
    // Predicated region
    $region45: #{bottleneck_forward.5} parent=5 // pred_check
      %p4962 = pneg %p4961
    $region46: #{bottleneck_forward.5} parent=5 // pred_check_branch
      %4964 = sbr.rel (%p4962) target = $region48
    $region47: #{bottleneck_forward.5} parent=5 // pred_region
      %s4965 = ssub.s32 %s12, 2
      // Predicated region
      $region49: #{bottleneck_forward.5} parent=47 // pred_check
        %p4966 = pneg %p130
      $region50: #{bottleneck_forward.5} parent=47 // pred_check_branch
        %4968 = sbr.rel (%p4966) target = $region52
      $region51: #{bottleneck_forward.5} parent=47 // pred_region
        %s4969 = smul.u32 32, %s18
        %p4970 = scmp.lt.s32.totalorder %s4969, 63
        %s4971 = scalar_select %p4970, %s4969, 63
        %s4972 = smul.addr %s4971, 4
        %s4973 = scalar_lea.vmem %s4, %s4972
      $region52: #{bottleneck_forward.5} parent=47 // pred_fallthru
        _
      // Predicated region
      $region53: #{bottleneck_forward.5} parent=47 // pred_check
        %p4974 = pneg %p156
      $region54: #{bottleneck_forward.5} parent=47 // pred_check_branch
        %4976 = sbr.rel (%p4974) target = $region56
      $region55: #{bottleneck_forward.5} parent=47 // pred_region
        %p4977 = scmp.lt.s32.totalorder %s18, 1
        %s4978 = scalar_select %p4977, %s18, 1
        %s4979 = smul.addr %s4978, 2
        %s4980 = scalar_lea.vmem %s5, %s4979
      $region56: #{bottleneck_forward.5} parent=47 // pred_fallthru
        _
    $region48: #{bottleneck_forward.5} parent=5 // pred_fallthru
      _
  $region6: #{bottleneck_forward.5} parent=0 // loop_footer
    %s16 = sadd.s32 1, %s12
  $region7: #{bottleneck_forward.5} parent=0 // loop_footer_branch
    %11 = sbr.rel target = $region3
  $region8: #{bottleneck_forward.5} parent=0 // loop_exit
    _

</llo_original>
